<compile_context>
chip_gen: v6e
topology: v6e:2x2x1
jax: 0.10.0
libtpu: 0.0.40
codegen_flags: <defaults>
</compile_context>

<pallas_src>
import numpy as np
import jax
import jax.numpy as jnp
from jax.experimental import pallas as pl
from jax.experimental.pallas import tpu as pltpu


_VMEM_SPEC = pl.BlockSpec(memory_space=pltpu.MemorySpace.VMEM)
_GRID_PARAMS = pltpu.CompilerParams(
    dimension_semantics=("parallel",),       # row-chunk axis -> both TCs on v7x
    vmem_limit_bytes=32 * 1024 * 1024,       # safe on v5e/v6e/v7x, >> need
)
_NO_GRID_PARAMS = pltpu.CompilerParams(vmem_limit_bytes=32 * 1024 * 1024)


# ----------------------------- Pallas kernels -------------------------------

def _matmul_maxpool_relu_kernel(p_ref, w_ref, b_ref, o_ref):
    """relu(bias + maxpool2x2(conv)), conv = one big-K matmul per pool parity.

    p_ref: (4, BM, K)   parity q holds the im2col rows of pool member q
    w_ref: (K, Cout), b_ref: (1, Cout), o_ref: (BM, Cout)
    """
    w = w_ref[...]
    m = jnp.dot(p_ref[0], w, preferred_element_type=jnp.float32)
    for q in range(1, 4):
        m = jnp.maximum(m, jnp.dot(p_ref[q], w,
                                   preferred_element_type=jnp.float32))
    # bias constant over pool members, ReLU monotone -> apply once after max.
    o_ref[...] = jnp.maximum(m + b_ref[...], 0.0)


def _tail_kernel(p3_ref, w3_ref, b3_ref, w4_ref, b4_ref, wl_ref, bl_ref,
                 o_ref):
    """conv3+pool3 + conv4+pool4 + NCHW flatten + linear + sigmoid, fused.

    p3_ref: (4, S3*N, K3)   conv3 im2col patches, parity leading, rows (s, n)
    w3_ref: (K3, C3), b3_ref: (1, C3)
    w4_ref: (4, S3*C3, C4)  conv4 weight scattered per conv4 output position
    b4_ref: (1, C4)
    wl_ref: (C4, L), bl_ref: (1, L), o_ref: (N, L)
    """
    n = o_ref.shape[0]
    s3 = p3_ref.shape[1] // n

    # conv3 (big-K matmul per pool parity) + bias + ReLU.
    w3 = w3_ref[...]
    m3 = jnp.dot(p3_ref[0], w3, preferred_element_type=jnp.float32)
    for q in range(1, 4):
        m3 = jnp.maximum(m3, jnp.dot(p3_ref[q], w3,
                                     preferred_element_type=jnp.float32))
    h3 = jnp.maximum(m3 + b3_ref[...], 0.0)          # (S3*N, C3), spatial-major

    # Regroup per image: lane axis becomes (spatial, channel) = conv4's K axis.
    h3f = jnp.concatenate([h3[s * n:(s + 1) * n, :] for s in range(s3)],
                          axis=-1)                    # (N, S3*C3)

    # conv4 + pool4: max over the 4 conv4 output positions (the single 2x2
    # pool window) of big-K matmuls against position-scattered weights.
    m4 = jnp.dot(h3f, w4_ref[0], preferred_element_type=jnp.float32)
    for q in range(1, 4):
        m4 = jnp.maximum(m4, jnp.dot(h3f, w4_ref[q],
                                     preferred_element_type=jnp.float32))
    h4 = jnp.maximum(m4 + b4_ref[...], 0.0)          # (N, C4) == NCHW flatten

    # linear + numerically-stable sigmoid (EUP tanh path).
    y = jnp.dot(h4, wl_ref[...], preferred_element_type=jnp.float32) + bl_ref[...]
    o_ref[...] = 0.5 * (jnp.tanh(0.5 * y) + 1.0)


# ----------------------------- JAX wrappers ----------------------------------

def _pool_grouped_patches(x_nhwc, kh, kw, stride, pad, spatial_major):
    """im2col patches for conv(stride) followed by a 2x2/2 max-pool, grouped by
    pool parity.

    patches[q, m, k]:
      q = 2*(row parity) + (col parity) of the pool window
      m = n*PH*PW + ph*PW + pw   (spatial_major=False)   or
          (ph*PW + pw)*N + n     (spatial_major=True)
      k = (i*kw + j)*Cin + c
    """
    N, H, W, C = x_nhwc.shape
    xpd = jnp.pad(x_nhwc, ((0, 0), (pad, pad), (pad, pad), (0, 0)))
    Ho = (H + 2 * pad - kh) // stride + 1
    Wo = (W + 2 * pad - kw) // stride + 1
    assert Ho % 2 == 0 and Wo % 2 == 0, "conv output must be pool-divisible"
    cols = []
    for i in range(kh):
        for j in range(kw):
            cols.append(xpd[:, i:i + stride * (Ho - 1) + 1:stride,
                              j:j + stride * (Wo - 1) + 1:stride, :])
    t = jnp.stack(cols, axis=3).reshape(N, Ho, Wo, kh * kw * C)
    PH, PW = Ho // 2, Wo // 2
    t = t.reshape(N, PH, 2, PW, 2, kh * kw * C)
    if spatial_major:
        t = t.transpose(2, 4, 1, 3, 0, 5).reshape(4, PH * PW * N, kh * kw * C)
    else:
        t = t.transpose(2, 4, 0, 1, 3, 5).reshape(4, N * PH * PW, kh * kw * C)
    return t, (PH, PW)


def _pick_block_rows(rows, want):
    """Largest multiple of 8 that divides `rows` and is <= `want`."""
    if rows % 8 != 0 or rows <= want:
        return rows
    bm = max(8, (min(want, rows) // 8) * 8)
    while rows % bm:
        bm -= 8
    return bm


def conv_relu_pool(x_nhwc, w_oihw, b, *, stride, pad, block_rows):
    """Conv2d + bias + ReLU + MaxPool(2,2) as one gridded pallas_call."""
    N, H, W, Cin = x_nhwc.shape
    Cout, _, kh, kw = w_oihw.shape
    patches, (PH, PW) = _pool_grouped_patches(x_nhwc, kh, kw, stride, pad,
                                              spatial_major=False)
    K = kh * kw * Cin
    rows = N * PH * PW
    bm = _pick_block_rows(rows, block_rows)
    w_mat = jnp.transpose(w_oihw, (2, 3, 1, 0)).reshape(K, Cout)
    out = pl.pallas_call(
        _matmul_maxpool_relu_kernel,
        out_shape=jax.ShapeDtypeStruct((rows, Cout), jnp.float32),
        grid=(rows // bm,),
        in_specs=[
            pl.BlockSpec((4, bm, K), lambda i: (0, i, 0)),
            pl.BlockSpec((K, Cout), lambda i: (0, 0)),       # resident weight
            pl.BlockSpec((1, Cout), lambda i: (0, 0)),       # resident bias
        ],
        out_specs=pl.BlockSpec((bm, Cout), lambda i: (i, 0)),
        compiler_params=_GRID_PARAMS,
    )(patches, w_mat, b.reshape(1, Cout))
    return out.reshape(N, PH, PW, Cout)


def _conv4_position_weights(w_oihw, in_hw):
    """Scatter the 5x5/stride-2/pad-2 conv4 kernel into one dense
    (in_hw*in_hw*Cin, Cout) matrix per conv4 output position (taps falling on
    the zero padding are simply dropped)."""
    Cout, Cin, kh, kw = w_oihw.shape
    wt = jnp.transpose(w_oihw, (2, 3, 1, 0)).astype(jnp.float32)  # (kh,kw,Ci,Co)
    hp = in_hw + 4                                                # pad = 2
    n_out = (hp - kh) // 2 + 1
    mats = []
    for oy in range(n_out):
        for ox in range(n_out):
            full = jnp.zeros((hp, hp, Cin, Cout), jnp.float32)
            full = full.at[2 * oy:2 * oy + kh, 2 * ox:2 * ox + kw].set(wt)
            crop = full[2:2 + in_hw, 2:2 + in_hw]
            mats.append(crop.reshape(in_hw * in_hw * Cin, Cout))
    return jnp.stack(mats, axis=0)        # (n_out^2, in_hw^2*Cin, Cout)


def conv3_conv4_linear_sigmoid(x_nhwc, w3, b3, w4, b4, wl, bl):
    """Fused tail: conv3+relu+pool3 + conv4+relu+pool4 + flatten + linear
    + sigmoid in a single pallas_call."""
    N, H, W, Cin = x_nhwc.shape
    C3 = w3.shape[0]
    C4 = w4.shape[0]
    L = wl.shape[0]
    patches, (PH, PW) = _pool_grouped_patches(x_nhwc, 5, 5, stride=2, pad=2,
                                              spatial_major=True)
    K3 = 25 * Cin
    w3_mat = jnp.transpose(w3, (2, 3, 1, 0)).reshape(K3, C3)
    w4_pos = _conv4_position_weights(w4, PH)             # (4, PH*PW*C3, C4)
    # TODO(synk): flag_size > 64 makes conv4's output larger than one 2x2 pool
    # window; that case needs the general (unfused) conv4 tail.
    assert w4_pos.shape[0] == 4, "fused tail assumes conv4 output is 2x2"
    wl_mat = jnp.transpose(wl)                           # pool4 out is 1x1 -> (C4, L)
    return pl.pallas_call(
        _tail_kernel,
        out_shape=jax.ShapeDtypeStruct((N, L), jnp.float32),
        in_specs=[_VMEM_SPEC] * 7,
        out_specs=_VMEM_SPEC,
        compiler_params=_NO_GRID_PARAMS,
    )(patches, w3_mat, b3.reshape(1, C3), w4_pos, b4.reshape(1, C4),
      wl_mat, bl.reshape(1, L))


# ----------------------------- Encoder forward -------------------------------

def init_params(key, flag_size, latent_size):
    """Deterministic PyTorch-like (uniform +/- 1/sqrt(fan_in)) initialization."""
    ks = jax.random.split(key, 10)

    def uni(k, shape, fan_in):
        bound = 1.0 / np.sqrt(fan_in)
        return jax.random.uniform(k, shape, jnp.float32, -bound, bound)

    p = {}
    p["w1"] = uni(ks[0], (64, 4, 3, 3), 4 * 9);    p["b1"] = uni(ks[1], (64,), 4 * 9)
    p["w2"] = uni(ks[2], (64, 64, 3, 3), 64 * 9);  p["b2"] = uni(ks[3], (64,), 64 * 9)
    p["w3"] = uni(ks[4], (32, 64, 5, 5), 64 * 25); p["b3"] = uni(ks[5], (32,), 64 * 25)
    p["w4"] = uni(ks[6], (32, 32, 5, 5), 32 * 25); p["b4"] = uni(ks[7], (32,), 32 * 25)
    feat = 32 * (flag_size // 64) * (flag_size // 64)
    p["wl"] = uni(ks[8], (latent_size, feat), feat)
    p["bl"] = uni(ks[9], (latent_size,), feat)
    return p


def encoder_forward(x_nchw, params):
    N, C, H, W = x_nchw.shape
    assert H % 64 == 0 and W % 64 == 0, "flag_size must be a multiple of 64"
    # NCHW (PyTorch) -> NHWC (channels on the lane axis).
    x = jnp.transpose(x_nchw, (0, 2, 3, 1)).astype(jnp.float32)
    x = conv_relu_pool(x, params["w1"], params["b1"],
                       stride=1, pad=1, block_rows=256)   # conv1+relu+pool1
    x = conv_relu_pool(x, params["w2"], params["b2"],
                       stride=1, pad=1, block_rows=128)   # conv2+relu+pool2
    return conv3_conv4_linear_sigmoid(                    # conv3..sigmoid
        x, params["w3"], params["b3"], params["w4"], params["b4"],
        params["wl"], params["bl"])


# ----------------------------- pure-JAX reference ----------------------------

def reference_forward(x_nchw, p):
    hi = jax.lax.Precision.HIGHEST

    def conv(x, w, b, stride, pad):
        y = jax.lax.conv_general_dilated(
            x, w, (stride, stride), [(pad, pad), (pad, pad)],
            dimension_numbers=("NCHW", "OIHW", "NCHW"), precision=hi)
        return y + b[None, :, None, None]

    def pool(x):
        return jax.lax.reduce_window(x, -jnp.inf, jax.lax.max,
                                     (1, 1, 2, 2), (1, 1, 2, 2), "VALID")

    relu = lambda t: jnp.maximum(t, 0.0)
    x = pool(relu(conv(x_nchw, p["w1"], p["b1"], 1, 1)))
    x = pool(relu(conv(x, p["w2"], p["b2"], 1, 1)))
    x = pool(relu(conv(x, p["w3"], p["b3"], 2, 2)))
    x = pool(relu(conv(x, p["w4"], p["b4"], 2, 2)))
    x = x.reshape(x.shape[0], -1)
    y = jnp.dot(x, p["wl"].T, precision=hi) + p["bl"]
    return 1.0 / (1.0 + jnp.exp(-y))


# ----------------------------- main -------------------------------------------

if __name__ == "__main__":
    FLAG_SIZE = 64     # smallest spatial size that survives the /64 downsampling
    LATENT = 16
    BATCH = 2

    key = jax.random.PRNGKey(0)
    k_in, k_par = jax.random.split(key)
    params = init_params(k_par, FLAG_SIZE, LATENT)
    x = jax.random.normal(k_in, (BATCH, 4, FLAG_SIZE, FLAG_SIZE), jnp.float32)

    out = jax.block_until_ready(jax.jit(encoder_forward)(x, params))
    ref = jax.block_until_ready(reference_forward(x, params))
    assert out.shape == (BATCH, LATENT), out.shape
    np.testing.assert_allclose(np.asarray(out), np.asarray(ref),
                               rtol=2e-3, atol=2e-3)
    print("KERNEL_OK")
</pallas_src>

<mosaic_0001>
module attributes {stable_mosaic.version = 11 : i64} {
  func.func @_matmul_maxpool_relu_kernel(%arg0: i32, %arg1: memref<4x256x36xf32, #tpu.memory_space<vmem>>, %arg2: memref<36x64xf32, #tpu.memory_space<vmem>>, %arg3: memref<1x64xf32, #tpu.memory_space<vmem>>, %arg4: memref<256x64xf32, #tpu.memory_space<vmem>>) attributes {dimension_semantics = [#tpu.dimension_semantics<parallel>], iteration_bounds = array<i64: 8>, scalar_prefetch = 0 : i64, scratch_operands = 0 : i64, tpu.core_type = #tpu.core_type<tc>, window_params = [{transform_indices = @transform_0, window_bounds = array<i64: 4, 256, 36>}, {pipeline_mode = #tpu.pipeline_mode<synchronous>, transform_indices = @transform_1, window_bounds = array<i64: 36, 64>}, {pipeline_mode = #tpu.pipeline_mode<synchronous>, transform_indices = @transform_2, window_bounds = array<i64: 1, 64>}, {transform_indices = @transform_3, window_bounds = array<i64: 256, 64>}]} {
    %c0 = arith.constant 0 : index
    %c0_0 = arith.constant 0 : index
    %0 = vector.load %arg2[%c0, %c0_0] : memref<36x64xf32, #tpu.memory_space<vmem>>, vector<36x64xf32>
    %c0_1 = arith.constant 0 : index
    %c0_2 = arith.constant 0 : index
    %c0_3 = arith.constant 0 : index
    %1 = vector.load %arg1[%c0_1, %c0_2, %c0_3] : memref<4x256x36xf32, #tpu.memory_space<vmem>>, vector<1x256x36xf32>
    %2 = vector.shape_cast %1 : vector<1x256x36xf32> to vector<256x36xf32>
    %cst = arith.constant dense<0.000000e+00> : vector<256x64xf32>
    %3 = tpu.matmul %2, %0, %cst {dimension_numbers = #tpu.dot_dimension_numbers<[1], [0], [0], [1], [0, 0, 1, 1], [], []>} : vector<256x36xf32>, vector<36x64xf32>, vector<256x64xf32> -> vector<256x64xf32>
    %c1 = arith.constant 1 : index
    %c0_4 = arith.constant 0 : index
    %c0_5 = arith.constant 0 : index
    %4 = vector.load %arg1[%c1, %c0_4, %c0_5] : memref<4x256x36xf32, #tpu.memory_space<vmem>>, vector<1x256x36xf32>
    %5 = vector.shape_cast %4 : vector<1x256x36xf32> to vector<256x36xf32>
    %cst_6 = arith.constant dense<0.000000e+00> : vector<256x64xf32>
    %6 = tpu.matmul %5, %0, %cst_6 {dimension_numbers = #tpu.dot_dimension_numbers<[1], [0], [0], [1], [0, 0, 1, 1], [], []>} : vector<256x36xf32>, vector<36x64xf32>, vector<256x64xf32> -> vector<256x64xf32>
    %7 = arith.maximumf %3, %6 : vector<256x64xf32>
    %c2 = arith.constant 2 : index
    %c0_7 = arith.constant 0 : index
    %c0_8 = arith.constant 0 : index
    %8 = vector.load %arg1[%c2, %c0_7, %c0_8] : memref<4x256x36xf32, #tpu.memory_space<vmem>>, vector<1x256x36xf32>
    %9 = vector.shape_cast %8 : vector<1x256x36xf32> to vector<256x36xf32>
    %cst_9 = arith.constant dense<0.000000e+00> : vector<256x64xf32>
    %10 = tpu.matmul %9, %0, %cst_9 {dimension_numbers = #tpu.dot_dimension_numbers<[1], [0], [0], [1], [0, 0, 1, 1], [], []>} : vector<256x36xf32>, vector<36x64xf32>, vector<256x64xf32> -> vector<256x64xf32>
    %11 = arith.maximumf %7, %10 : vector<256x64xf32>
    %c3 = arith.constant 3 : index
    %c0_10 = arith.constant 0 : index
    %c0_11 = arith.constant 0 : index
    %12 = vector.load %arg1[%c3, %c0_10, %c0_11] : memref<4x256x36xf32, #tpu.memory_space<vmem>>, vector<1x256x36xf32>
    %13 = vector.shape_cast %12 : vector<1x256x36xf32> to vector<256x36xf32>
    %cst_12 = arith.constant dense<0.000000e+00> : vector<256x64xf32>
    %14 = tpu.matmul %13, %0, %cst_12 {dimension_numbers = #tpu.dot_dimension_numbers<[1], [0], [0], [1], [0, 0, 1, 1], [], []>} : vector<256x36xf32>, vector<36x64xf32>, vector<256x64xf32> -> vector<256x64xf32>
    %15 = arith.maximumf %11, %14 : vector<256x64xf32>
    %c0_13 = arith.constant 0 : index
    %c0_14 = arith.constant 0 : index
    %16 = vector.load %arg3[%c0_13, %c0_14] : memref<1x64xf32, #tpu.memory_space<vmem>>, vector<1x64xf32>
    %17 = vector.broadcast %16 : vector<1x64xf32> to vector<256x64xf32>
    %18 = arith.addf %15, %17 : vector<256x64xf32>
    %cst_15 = arith.constant 0.000000e+00 : f32
    %19 = vector.broadcast %cst_15 : f32 to vector<256x64xf32>
    %20 = arith.maximumf %18, %19 : vector<256x64xf32>
    %c0_16 = arith.constant 0 : index
    %c0_17 = arith.constant 0 : index
    %21 = vector.load %arg4[%c0_16, %c0_17] : memref<256x64xf32, #tpu.memory_space<vmem>>, vector<256x64xf32>
    tpu.vector_store %arg4[%c0_16, %c0_17], %20 {strides = array<i32>} : memref<256x64xf32, #tpu.memory_space<vmem>>, vector<256x64xf32>,
    return
  }
  func.func @transform_0(%arg0: i32) -> (i32, i32, i32) {
    %c0_i32 = arith.constant 0 : i32
    %c0_i32_0 = arith.constant 0 : i32
    %c0_i32_1 = arith.constant 0 : i32
    return %c0_i32, %arg0, %c0_i32_0 : i32, i32, i32
  }
  func.func @transform_1(%arg0: i32) -> (i32, i32) {
    %c0_i32 = arith.constant 0 : i32
    %c0_i32_0 = arith.constant 0 : i32
    %c0_i32_1 = arith.constant 0 : i32
    return %c0_i32, %c0_i32_0 : i32, i32
  }
  func.func @transform_2(%arg0: i32) -> (i32, i32) {
    %c0_i32 = arith.constant 0 : i32
    %c0_i32_0 = arith.constant 0 : i32
    %c0_i32_1 = arith.constant 0 : i32
    return %c0_i32, %c0_i32_0 : i32, i32
  }
  func.func @transform_3(%arg0: i32) -> (i32, i32) {
    %c0_i32 = arith.constant 0 : i32
    %c0_i32_0 = arith.constant 0 : i32
    return %arg0, %c0_i32 : i32, i32
  }
}

module attributes {stable_mosaic.version = 11 : i64} {
  func.func @_matmul_maxpool_relu_kernel(%arg0: i32, %arg1: memref<4x128x576xf32, #tpu.memory_space<vmem>>, %arg2: memref<576x64xf32, #tpu.memory_space<vmem>>, %arg3: memref<1x64xf32, #tpu.memory_space<vmem>>, %arg4: memref<128x64xf32, #tpu.memory_space<vmem>>) attributes {dimension_semantics = [#tpu.dimension_semantics<parallel>], iteration_bounds = array<i64: 4>, scalar_prefetch = 0 : i64, scratch_operands = 0 : i64, tpu.core_type = #tpu.core_type<tc>, window_params = [{transform_indices = @transform_0, window_bounds = array<i64: 4, 128, 576>}, {pipeline_mode = #tpu.pipeline_mode<synchronous>, transform_indices = @transform_1, window_bounds = array<i64: 576, 64>}, {pipeline_mode = #tpu.pipeline_mode<synchronous>, transform_indices = @transform_2, window_bounds = array<i64: 1, 64>}, {transform_indices = @transform_3, window_bounds = array<i64: 128, 64>}]} {
    %c0 = arith.constant 0 : index
    %c0_0 = arith.constant 0 : index
    %0 = vector.load %arg2[%c0, %c0_0] : memref<576x64xf32, #tpu.memory_space<vmem>>, vector<576x64xf32>
    %c0_1 = arith.constant 0 : index
    %c0_2 = arith.constant 0 : index
    %c0_3 = arith.constant 0 : index
    %1 = vector.load %arg1[%c0_1, %c0_2, %c0_3] : memref<4x128x576xf32, #tpu.memory_space<vmem>>, vector<1x128x576xf32>
    %2 = vector.shape_cast %1 : vector<1x128x576xf32> to vector<128x576xf32>
    %cst = arith.constant dense<0.000000e+00> : vector<128x64xf32>
    %3 = tpu.matmul %2, %0, %cst {dimension_numbers = #tpu.dot_dimension_numbers<[1], [0], [0], [1], [0, 0, 1, 1], [], []>} : vector<128x576xf32>, vector<576x64xf32>, vector<128x64xf32> -> vector<128x64xf32>
    %c1 = arith.constant 1 : index
    %c0_4 = arith.constant 0 : index
    %c0_5 = arith.constant 0 : index
    %4 = vector.load %arg1[%c1, %c0_4, %c0_5] : memref<4x128x576xf32, #tpu.memory_space<vmem>>, vector<1x128x576xf32>
    %5 = vector.shape_cast %4 : vector<1x128x576xf32> to vector<128x576xf32>
    %cst_6 = arith.constant dense<0.000000e+00> : vector<128x64xf32>
    %6 = tpu.matmul %5, %0, %cst_6 {dimension_numbers = #tpu.dot_dimension_numbers<[1], [0], [0], [1], [0, 0, 1, 1], [], []>} : vector<128x576xf32>, vector<576x64xf32>, vector<128x64xf32> -> vector<128x64xf32>
    %7 = arith.maximumf %3, %6 : vector<128x64xf32>
    %c2 = arith.constant 2 : index
    %c0_7 = arith.constant 0 : index
    %c0_8 = arith.constant 0 : index
    %8 = vector.load %arg1[%c2, %c0_7, %c0_8] : memref<4x128x576xf32, #tpu.memory_space<vmem>>, vector<1x128x576xf32>
    %9 = vector.shape_cast %8 : vector<1x128x576xf32> to vector<128x576xf32>
    %cst_9 = arith.constant dense<0.000000e+00> : vector<128x64xf32>
    %10 = tpu.matmul %9, %0, %cst_9 {dimension_numbers = #tpu.dot_dimension_numbers<[1], [0], [0], [1], [0, 0, 1, 1], [], []>} : vector<128x576xf32>, vector<576x64xf32>, vector<128x64xf32> -> vector<128x64xf32>
    %11 = arith.maximumf %7, %10 : vector<128x64xf32>
    %c3 = arith.constant 3 : index
    %c0_10 = arith.constant 0 : index
    %c0_11 = arith.constant 0 : index
    %12 = vector.load %arg1[%c3, %c0_10, %c0_11] : memref<4x128x576xf32, #tpu.memory_space<vmem>>, vector<1x128x576xf32>
    %13 = vector.shape_cast %12 : vector<1x128x576xf32> to vector<128x576xf32>
    %cst_12 = arith.constant dense<0.000000e+00> : vector<128x64xf32>
    %14 = tpu.matmul %13, %0, %cst_12 {dimension_numbers = #tpu.dot_dimension_numbers<[1], [0], [0], [1], [0, 0, 1, 1], [], []>} : vector<128x576xf32>, vector<576x64xf32>, vector<128x64xf32> -> vector<128x64xf32>
    %15 = arith.maximumf %11, %14 : vector<128x64xf32>
    %c0_13 = arith.constant 0 : index
    %c0_14 = arith.constant 0 : index
    %16 = vector.load %arg3[%c0_13, %c0_14] : memref<1x64xf32, #tpu.memory_space<vmem>>, vector<1x64xf32>
    %17 = vector.broadcast %16 : vector<1x64xf32> to vector<128x64xf32>
    %18 = arith.addf %15, %17 : vector<128x64xf32>
    %cst_15 = arith.constant 0.000000e+00 : f32
    %19 = vector.broadcast %cst_15 : f32 to vector<128x64xf32>
    %20 = arith.maximumf %18, %19 : vector<128x64xf32>
    %c0_16 = arith.constant 0 : index
    %c0_17 = arith.constant 0 : index
    %21 = vector.load %arg4[%c0_16, %c0_17] : memref<128x64xf32, #tpu.memory_space<vmem>>, vector<128x64xf32>
    tpu.vector_store %arg4[%c0_16, %c0_17], %20 {strides = array<i32>} : memref<128x64xf32, #tpu.memory_space<vmem>>, vector<128x64xf32>,
    return
  }
  func.func @transform_0(%arg0: i32) -> (i32, i32, i32) {
    %c0_i32 = arith.constant 0 : i32
    %c0_i32_0 = arith.constant 0 : i32
    %c0_i32_1 = arith.constant 0 : i32
    return %c0_i32, %arg0, %c0_i32_0 : i32, i32, i32
  }
  func.func @transform_1(%arg0: i32) -> (i32, i32) {
    %c0_i32 = arith.constant 0 : i32
    %c0_i32_0 = arith.constant 0 : i32
    %c0_i32_1 = arith.constant 0 : i32
    return %c0_i32, %c0_i32_0 : i32, i32
  }
  func.func @transform_2(%arg0: i32) -> (i32, i32) {
    %c0_i32 = arith.constant 0 : i32
    %c0_i32_0 = arith.constant 0 : i32
    %c0_i32_1 = arith.constant 0 : i32
    return %c0_i32, %c0_i32_0 : i32, i32
  }
  func.func @transform_3(%arg0: i32) -> (i32, i32) {
    %c0_i32 = arith.constant 0 : i32
    %c0_i32_0 = arith.constant 0 : i32
    return %arg0, %c0_i32 : i32, i32
  }
}

module attributes {stable_mosaic.version = 11 : i64} {
  func.func @_tail_kernel(%arg0: memref<4x32x1600xf32, #tpu.memory_space<vmem>>, %arg1: memref<1600x32xf32, #tpu.memory_space<vmem>>, %arg2: memref<1x32xf32, #tpu.memory_space<vmem>>, %arg3: memref<4x512x32xf32, #tpu.memory_space<vmem>>, %arg4: memref<1x32xf32, #tpu.memory_space<vmem>>, %arg5: memref<32x16xf32, #tpu.memory_space<vmem>>, %arg6: memref<1x16xf32, #tpu.memory_space<vmem>>, %arg7: memref<2x16xf32, #tpu.memory_space<vmem>>) attributes {dimension_semantics = [], scalar_prefetch = 0 : i64, scratch_operands = 0 : i64, tpu.core_type = #tpu.core_type<tc>} {
    %c0 = arith.constant 0 : index
    %c0_0 = arith.constant 0 : index
    %0 = vector.load %arg1[%c0, %c0_0] : memref<1600x32xf32, #tpu.memory_space<vmem>>, vector<1600x32xf32>
    %c0_1 = arith.constant 0 : index
    %c0_2 = arith.constant 0 : index
    %c0_3 = arith.constant 0 : index
    %1 = vector.load %arg0[%c0_1, %c0_2, %c0_3] : memref<4x32x1600xf32, #tpu.memory_space<vmem>>, vector<1x32x1600xf32>
    %2 = vector.shape_cast %1 : vector<1x32x1600xf32> to vector<32x1600xf32>
    %cst = arith.constant dense<0.000000e+00> : vector<32x32xf32>
    %3 = tpu.matmul %2, %0, %cst {dimension_numbers = #tpu.dot_dimension_numbers<[1], [0], [0], [1], [0, 0, 1, 1], [], []>} : vector<32x1600xf32>, vector<1600x32xf32>, vector<32x32xf32> -> vector<32x32xf32>
    %c1 = arith.constant 1 : index
    %c0_4 = arith.constant 0 : index
    %c0_5 = arith.constant 0 : index
    %4 = vector.load %arg0[%c1, %c0_4, %c0_5] : memref<4x32x1600xf32, #tpu.memory_space<vmem>>, vector<1x32x1600xf32>
    %5 = vector.shape_cast %4 : vector<1x32x1600xf32> to vector<32x1600xf32>
    %cst_6 = arith.constant dense<0.000000e+00> : vector<32x32xf32>
    %6 = tpu.matmul %5, %0, %cst_6 {dimension_numbers = #tpu.dot_dimension_numbers<[1], [0], [0], [1], [0, 0, 1, 1], [], []>} : vector<32x1600xf32>, vector<1600x32xf32>, vector<32x32xf32> -> vector<32x32xf32>
    %7 = arith.maximumf %3, %6 : vector<32x32xf32>
    %c2 = arith.constant 2 : index
    %c0_7 = arith.constant 0 : index
    %c0_8 = arith.constant 0 : index
    %8 = vector.load %arg0[%c2, %c0_7, %c0_8] : memref<4x32x1600xf32, #tpu.memory_space<vmem>>, vector<1x32x1600xf32>
    %9 = vector.shape_cast %8 : vector<1x32x1600xf32> to vector<32x1600xf32>
    %cst_9 = arith.constant dense<0.000000e+00> : vector<32x32xf32>
    %10 = tpu.matmul %9, %0, %cst_9 {dimension_numbers = #tpu.dot_dimension_numbers<[1], [0], [0], [1], [0, 0, 1, 1], [], []>} : vector<32x1600xf32>, vector<1600x32xf32>, vector<32x32xf32> -> vector<32x32xf32>
    %11 = arith.maximumf %7, %10 : vector<32x32xf32>
    %c3 = arith.constant 3 : index
    %c0_10 = arith.constant 0 : index
    %c0_11 = arith.constant 0 : index
    %12 = vector.load %arg0[%c3, %c0_10, %c0_11] : memref<4x32x1600xf32, #tpu.memory_space<vmem>>, vector<1x32x1600xf32>
    %13 = vector.shape_cast %12 : vector<1x32x1600xf32> to vector<32x1600xf32>
    %cst_12 = arith.constant dense<0.000000e+00> : vector<32x32xf32>
    %14 = tpu.matmul %13, %0, %cst_12 {dimension_numbers = #tpu.dot_dimension_numbers<[1], [0], [0], [1], [0, 0, 1, 1], [], []>} : vector<32x1600xf32>, vector<1600x32xf32>, vector<32x32xf32> -> vector<32x32xf32>
    %15 = arith.maximumf %11, %14 : vector<32x32xf32>
    %c0_13 = arith.constant 0 : index
    %c0_14 = arith.constant 0 : index
    %16 = vector.load %arg2[%c0_13, %c0_14] : memref<1x32xf32, #tpu.memory_space<vmem>>, vector<1x32xf32>
    %17 = vector.broadcast %16 : vector<1x32xf32> to vector<32x32xf32>
    %18 = arith.addf %15, %17 : vector<32x32xf32>
    %cst_15 = arith.constant 0.000000e+00 : f32
    %19 = vector.broadcast %cst_15 : f32 to vector<32x32xf32>
    %20 = arith.maximumf %18, %19 : vector<32x32xf32>
    %21 = vector.extract_strided_slice %20 {offsets = [0, 0], sizes = [2, 32], strides = [1, 1]} : vector<32x32xf32> to vector<2x32xf32>
    %22 = vector.extract_strided_slice %20 {offsets = [2, 0], sizes = [2, 32], strides = [1, 1]} : vector<32x32xf32> to vector<2x32xf32>
    %23 = vector.extract_strided_slice %20 {offsets = [4, 0], sizes = [2, 32], strides = [1, 1]} : vector<32x32xf32> to vector<2x32xf32>
    %24 = vector.extract_strided_slice %20 {offsets = [6, 0], sizes = [2, 32], strides = [1, 1]} : vector<32x32xf32> to vector<2x32xf32>
    %25 = vector.extract_strided_slice %20 {offsets = [8, 0], sizes = [2, 32], strides = [1, 1]} : vector<32x32xf32> to vector<2x32xf32>
    %26 = vector.extract_strided_slice %20 {offsets = [10, 0], sizes = [2, 32], strides = [1, 1]} : vector<32x32xf32> to vector<2x32xf32>
    %27 = vector.extract_strided_slice %20 {offsets = [12, 0], sizes = [2, 32], strides = [1, 1]} : vector<32x32xf32> to vector<2x32xf32>
    %28 = vector.extract_strided_slice %20 {offsets = [14, 0], sizes = [2, 32], strides = [1, 1]} : vector<32x32xf32> to vector<2x32xf32>
    %29 = vector.extract_strided_slice %20 {offsets = [16, 0], sizes = [2, 32], strides = [1, 1]} : vector<32x32xf32> to vector<2x32xf32>
    %30 = vector.extract_strided_slice %20 {offsets = [18, 0], sizes = [2, 32], strides = [1, 1]} : vector<32x32xf32> to vector<2x32xf32>
    %31 = vector.extract_strided_slice %20 {offsets = [20, 0], sizes = [2, 32], strides = [1, 1]} : vector<32x32xf32> to vector<2x32xf32>
    %32 = vector.extract_strided_slice %20 {offsets = [22, 0], sizes = [2, 32], strides = [1, 1]} : vector<32x32xf32> to vector<2x32xf32>
    %33 = vector.extract_strided_slice %20 {offsets = [24, 0], sizes = [2, 32], strides = [1, 1]} : vector<32x32xf32> to vector<2x32xf32>
    %34 = vector.extract_strided_slice %20 {offsets = [26, 0], sizes = [2, 32], strides = [1, 1]} : vector<32x32xf32> to vector<2x32xf32>
    %35 = vector.extract_strided_slice %20 {offsets = [28, 0], sizes = [2, 32], strides = [1, 1]} : vector<32x32xf32> to vector<2x32xf32>
    %36 = vector.extract_strided_slice %20 {offsets = [30, 0], sizes = [2, 32], strides = [1, 1]} : vector<32x32xf32> to vector<2x32xf32>
    %37 = tpu.concatenate %21, %22, %23, %24, %25, %26, %27, %28, %29, %30, %31, %32, %33, %34, %35, %36 in 1 : vector<2x32xf32>, vector<2x32xf32>, vector<2x32xf32>, vector<2x32xf32>, vector<2x32xf32>, vector<2x32xf32>, vector<2x32xf32>, vector<2x32xf32>, vector<2x32xf32>, vector<2x32xf32>, vector<2x32xf32>, vector<2x32xf32>, vector<2x32xf32>, vector<2x32xf32>, vector<2x32xf32>, vector<2x32xf32> -> vector<2x512xf32>
    %c0_16 = arith.constant 0 : index
    %c0_17 = arith.constant 0 : index
    %c0_18 = arith.constant 0 : index
    %38 = vector.load %arg3[%c0_16, %c0_17, %c0_18] : memref<4x512x32xf32, #tpu.memory_space<vmem>>, vector<1x512x32xf32>
    %39 = vector.shape_cast %38 : vector<1x512x32xf32> to vector<512x32xf32>
    %cst_19 = arith.constant dense<0.000000e+00> : vector<2x32xf32>
    %40 = tpu.matmul %37, %39, %cst_19 {dimension_numbers = #tpu.dot_dimension_numbers<[1], [0], [0], [1], [0, 0, 1, 1], [], []>} : vector<2x512xf32>, vector<512x32xf32>, vector<2x32xf32> -> vector<2x32xf32>
    %c1_20 = arith.constant 1 : index
    %c0_21 = arith.constant 0 : index
    %c0_22 = arith.constant 0 : index
    %41 = vector.load %arg3[%c1_20, %c0_21, %c0_22] : memref<4x512x32xf32, #tpu.memory_space<vmem>>, vector<1x512x32xf32>
    %42 = vector.shape_cast %41 : vector<1x512x32xf32> to vector<512x32xf32>
    %cst_23 = arith.constant dense<0.000000e+00> : vector<2x32xf32>
    %43 = tpu.matmul %37, %42, %cst_23 {dimension_numbers = #tpu.dot_dimension_numbers<[1], [0], [0], [1], [0, 0, 1, 1], [], []>} : vector<2x512xf32>, vector<512x32xf32>, vector<2x32xf32> -> vector<2x32xf32>
    %44 = arith.maximumf %40, %43 : vector<2x32xf32>
    %c2_24 = arith.constant 2 : index
    %c0_25 = arith.constant 0 : index
    %c0_26 = arith.constant 0 : index
    %45 = vector.load %arg3[%c2_24, %c0_25, %c0_26] : memref<4x512x32xf32, #tpu.memory_space<vmem>>, vector<1x512x32xf32>
    %46 = vector.shape_cast %45 : vector<1x512x32xf32> to vector<512x32xf32>
    %cst_27 = arith.constant dense<0.000000e+00> : vector<2x32xf32>
    %47 = tpu.matmul %37, %46, %cst_27 {dimension_numbers = #tpu.dot_dimension_numbers<[1], [0], [0], [1], [0, 0, 1, 1], [], []>} : vector<2x512xf32>, vector<512x32xf32>, vector<2x32xf32> -> vector<2x32xf32>
    %48 = arith.maximumf %44, %47 : vector<2x32xf32>
    %c3_28 = arith.constant 3 : index
    %c0_29 = arith.constant 0 : index
    %c0_30 = arith.constant 0 : index
    %49 = vector.load %arg3[%c3_28, %c0_29, %c0_30] : memref<4x512x32xf32, #tpu.memory_space<vmem>>, vector<1x512x32xf32>
    %50 = vector.shape_cast %49 : vector<1x512x32xf32> to vector<512x32xf32>
    %cst_31 = arith.constant dense<0.000000e+00> : vector<2x32xf32>
    %51 = tpu.matmul %37, %50, %cst_31 {dimension_numbers = #tpu.dot_dimension_numbers<[1], [0], [0], [1], [0, 0, 1, 1], [], []>} : vector<2x512xf32>, vector<512x32xf32>, vector<2x32xf32> -> vector<2x32xf32>
    %52 = arith.maximumf %48, %51 : vector<2x32xf32>
    %c0_32 = arith.constant 0 : index
    %c0_33 = arith.constant 0 : index
    %53 = vector.load %arg4[%c0_32, %c0_33] : memref<1x32xf32, #tpu.memory_space<vmem>>, vector<1x32xf32>
    %54 = vector.broadcast %53 : vector<1x32xf32> to vector<2x32xf32>
    %55 = arith.addf %52, %54 : vector<2x32xf32>
    %cst_34 = arith.constant 0.000000e+00 : f32
    %56 = vector.broadcast %cst_34 : f32 to vector<2x32xf32>
    %57 = arith.maximumf %55, %56 : vector<2x32xf32>
    %c0_35 = arith.constant 0 : index
    %c0_36 = arith.constant 0 : index
    %58 = vector.load %arg5[%c0_35, %c0_36] : memref<32x16xf32, #tpu.memory_space<vmem>>, vector<32x16xf32>
    %cst_37 = arith.constant dense<0.000000e+00> : vector<2x16xf32>
    %59 = tpu.matmul %57, %58, %cst_37 {dimension_numbers = #tpu.dot_dimension_numbers<[1], [0], [0], [1], [0, 0, 1, 1], [], []>} : vector<2x32xf32>, vector<32x16xf32>, vector<2x16xf32> -> vector<2x16xf32>
    %c0_38 = arith.constant 0 : index
    %c0_39 = arith.constant 0 : index
    %60 = vector.load %arg6[%c0_38, %c0_39] : memref<1x16xf32, #tpu.memory_space<vmem>>, vector<1x16xf32>
    %61 = vector.broadcast %60 : vector<1x16xf32> to vector<2x16xf32>
    %62 = arith.addf %59, %61 : vector<2x16xf32>
    %cst_40 = arith.constant 5.000000e-01 : f32
    %63 = vector.broadcast %cst_40 : f32 to vector<2x16xf32>
    %64 = arith.mulf %63, %62 : vector<2x16xf32>
    %65 = math.tanh %64 : vector<2x16xf32>
    %cst_41 = arith.constant 1.000000e+00 : f32
    %66 = vector.broadcast %cst_41 : f32 to vector<2x16xf32>
    %67 = arith.addf %65, %66 : vector<2x16xf32>
    %cst_42 = arith.constant 5.000000e-01 : f32
    %68 = vector.broadcast %cst_42 : f32 to vector<2x16xf32>
    %69 = arith.mulf %68, %67 : vector<2x16xf32>
    %c0_43 = arith.constant 0 : index
    %c0_44 = arith.constant 0 : index
    %70 = vector.load %arg7[%c0_43, %c0_44] : memref<2x16xf32, #tpu.memory_space<vmem>>, vector<2x16xf32>
    tpu.vector_store %arg7[%c0_43, %c0_44], %69 {strides = array<i32>} : memref<2x16xf32, #tpu.memory_space<vmem>>, vector<2x16xf32>,
    return
  }
}

</mosaic_0001>

<llo_original>
// kernel: encoder_forward.3
$region0: #{encoder_forward.3}
  #allocation0 [shape = 'u32[]', space=smem, size = 0x4, offset = 0x4, fixed_abs, tag = 'smem constant byte address 0x4 - core index']
  #allocation1 [shape = 'u32[144,128]{1,0:T(1,128)}', space=vmem, size = 0x12000, scoped, tag = 'internal scratch']
  %s0 = inlined_call_operand.vmem [shape: f32[4,2048,36], index: 0, kind: input, shape index: {}]
  %s1 = inlined_call_operand.vmem [shape: f32[36,64], index: 1, kind: input, shape index: {}]
  %s2 = inlined_call_operand.vmem [shape: f32[1,64], index: 2, kind: input, shape index: {}]
  %s3 = inlined_call_operand.vmem [shape: f32[2048,64], index: 3, kind: output, shape index: {}]
  %s4 = sld [smem:[#allocation0]]
  $region83: #{encoder_forward.3} parent=0
    _
  %s6 = ssub.s32 1, %s4
  %s7 = scalar_select 0, %s6, %s4
  $region1: #{encoder_forward.3} parent=0
    #allocation2 [shape = 'u8[1048576]{0}', space=vmem, size = 0x100000, scoped, tag = 'input window, operand 0']
    loop: start=0, step=1, limit=10
    $region2: #{encoder_forward.3} parent=1 // loop_pre_header
      _
    $region3: #{encoder_forward.3} parent=1 // loop_header
      %s9 = sphi 0, %s13
      %p10 = scmp.ge.s32.totalorder %s9, 10
      %s19 = sphi 0, %s21
      %s22 = sphi 0, %s19
      %s23 = sphi 0, %s22
      %s39 = sphi 0, %s23
      %s43 = sphi 0, %s43
      %s45 = sphi 0, %s43
      %s46 = sphi 0, %s45
      %s60 = sphi 0, %s46
      %s64 = sphi 0, %s64
      %s66 = sphi 0, %s64
      %s67 = sphi 0, %s66
      %s81 = sphi 0, %s67
      %s87 = sphi 0, %s89
      %s90 = sphi 0, %s87
      %s91 = sphi 0, %s90
      %s107 = sphi 0, %s91
    $region4: #{encoder_forward.3} parent=1 // loop_header_branch
      %12 = sbr.rel (%p10) target = $region8
    $region5: #{encoder_forward.3} parent=1 // loop_body
      %s14 = ssub.s32 %s9, 1
      %s15 = ssub.s32 %s9, 2
      %s16 = sadd.s32 %s9, 1
      %s17 = ssub.s32 %s9, %s16
      %p18 = scmp.eq.s32.totalorder %s17, 0
      %s20 = sadd.s32 %s19, 1
      %s21 = scalar_select %p18, %s19, %s20
      %p24 = pneg %p18
      %p25 = scmp.eq.s32.totalorder %s9, 7
      %p26 = por %p24, %p25
      %p27 = scmp.ne.s32.totalorder %s19, %s22
      %p28 = scmp.eq.s32.totalorder %s9, 0
      %p29 = por %p27, %p28
      %p30 = scmp.ne.s32.totalorder %s19, %s22
      %p31 = scmp.eq.s32.totalorder %s14, 7
      %p32 = por %p30, %p31
      %p33 = scmp.ne.s32.totalorder %s22, %s23
      %p34 = scmp.eq.s32.totalorder %s14, 0
      %p35 = por %p33, %p34
      %p36 = scmp.ne.s32.totalorder %s22, %s23
      %p37 = scmp.eq.s32.totalorder %s15, 7
      %p38 = por %p36, %p37
      %p40 = scmp.ne.s32.totalorder %s23, %s39
      %p41 = scmp.eq.s32.totalorder %s15, 0
      %p42 = por %p40, %p41
      %s44 = sadd.s32 %s43, 1
      %p47 = scmp.eq.s32.totalorder %s9, 7
      %p48 = scmp.ne.s32.totalorder %s43, %s45
      %p49 = scmp.eq.s32.totalorder %s9, 0
      %p50 = por %p48, %p49
      %p51 = scmp.ne.s32.totalorder %s43, %s45
      %p52 = scmp.eq.s32.totalorder %s14, 7
      %p53 = por %p51, %p52
      %p54 = scmp.ne.s32.totalorder %s45, %s46
      %p55 = scmp.eq.s32.totalorder %s14, 0
      %p56 = por %p54, %p55
      %p57 = scmp.ne.s32.totalorder %s45, %s46
      %p58 = scmp.eq.s32.totalorder %s15, 7
      %p59 = por %p57, %p58
      %p61 = scmp.ne.s32.totalorder %s46, %s60
      %p62 = scmp.eq.s32.totalorder %s15, 0
      %p63 = por %p61, %p62
      %s65 = sadd.s32 %s64, 1
      %p68 = scmp.eq.s32.totalorder %s9, 7
      %p69 = scmp.ne.s32.totalorder %s64, %s66
      %p70 = scmp.eq.s32.totalorder %s9, 0
      %p71 = por %p69, %p70
      %p72 = scmp.ne.s32.totalorder %s64, %s66
      %p73 = scmp.eq.s32.totalorder %s14, 7
      %p74 = por %p72, %p73
      %p75 = scmp.ne.s32.totalorder %s66, %s67
      %p76 = scmp.eq.s32.totalorder %s14, 0
      %p77 = por %p75, %p76
      %p78 = scmp.ne.s32.totalorder %s66, %s67
      %p79 = scmp.eq.s32.totalorder %s15, 7
      %p80 = por %p78, %p79
      %p82 = scmp.ne.s32.totalorder %s67, %s81
      %p83 = scmp.eq.s32.totalorder %s15, 0
      %p84 = por %p82, %p83
      %s85 = ssub.s32 %s9, %s16
      %p86 = scmp.eq.s32.totalorder %s85, 0
      %s88 = sadd.s32 %s87, 1
      %s89 = scalar_select %p86, %s87, %s88
      %p92 = pneg %p86
      %p93 = scmp.eq.s32.totalorder %s9, 7
      %p94 = por %p92, %p93
      %p95 = scmp.ne.s32.totalorder %s87, %s90
      %p96 = scmp.eq.s32.totalorder %s9, 0
      %p97 = por %p95, %p96
      %p98 = scmp.ne.s32.totalorder %s87, %s90
      %p99 = scmp.eq.s32.totalorder %s14, 7
      %p100 = por %p98, %p99
      %p101 = scmp.ne.s32.totalorder %s90, %s91
      %p102 = scmp.eq.s32.totalorder %s14, 0
      %p103 = por %p101, %p102
      %p104 = scmp.ne.s32.totalorder %s90, %s91
      %p105 = scmp.eq.s32.totalorder %s15, 7
      %p106 = por %p104, %p105
      %p108 = scmp.ne.s32.totalorder %s91, %s107
      %p109 = scmp.eq.s32.totalorder %s15, 0
      %p110 = por %p108, %p109
      %p111 = scmp.le.s32.totalorder 1, %s9
      %p112 = scmp.lt.s32.totalorder %s9, 9
      %p113 = pnand %p111, %p112
      %p114 = pneg %p113
      // Predicated region
      $region9: #{encoder_forward.3} parent=5 // pred_check
        _
      $region10: #{encoder_forward.3} parent=5 // pred_check_branch
        %116 = sbr.rel (%p113) target = $region12
      $region11: #{encoder_forward.3} parent=5 // pred_region
        %s117 = ssub.s32 %s9, 1
        // Predicated region
        $region13: #{encoder_forward.3} parent=11 // pred_check
          %p118 = pneg %p56
        $region14: #{encoder_forward.3} parent=11 // pred_check_branch
          %120 = sbr.rel (%p118) target = $region16
        $region15: #{encoder_forward.3} parent=11 // pred_region
          _
        $region16: #{encoder_forward.3} parent=11 // pred_fallthru
          _
        // Predicated region
        $region17: #{encoder_forward.3} parent=11 // pred_check
          %p121 = pneg %p77
        $region18: #{encoder_forward.3} parent=11 // pred_check_branch
          %123 = sbr.rel (%p121) target = $region20
        $region19: #{encoder_forward.3} parent=11 // pred_region
          _
        $region20: #{encoder_forward.3} parent=11 // pred_fallthru
          _
      $region12: #{encoder_forward.3} parent=5 // pred_fallthru
        _
      %p124 = scmp.lt.s32.totalorder %s9, 8
      // Predicated region
      $region21: #{encoder_forward.3} parent=5 // pred_check
        %p125 = pneg %p124
      $region22: #{encoder_forward.3} parent=5 // pred_check_branch
        %127 = sbr.rel (%p125) target = $region24
      $region23: #{encoder_forward.3} parent=5 // pred_region
        // Predicated region
        $region25: #{encoder_forward.3} parent=23 // pred_check
          %p128 = pneg %p29
        $region26: #{encoder_forward.3} parent=23 // pred_check_branch
          %130 = sbr.rel (%p128) target = $region28
        $region27: #{encoder_forward.3} parent=23 // pred_region
          %s131 = sand.u32 %s19, 1
          %s132 = sand.u32 %s19, 1
          %s133 = smul.addr %s132, 1024
          %s134 = scalar_lea.vmem [#allocation2], %s133
          %s135 = smul.u32 32, %s9
          %s136 = smul.addr %s135, 8
          %s137 = scalar_lea.vmem %s0, %s136
          // Predicated region
          $region29: #{encoder_forward.3} parent=27 // pred_check
            _
          $region30: #{encoder_forward.3} parent=27 // pred_check_branch
            %139 = sbr.rel (0) target = $region32
          $region31: #{encoder_forward.3} parent=27 // pred_region
            // Predicated region
            $region33: #{encoder_forward.3} parent=31 // pred_check
              _
            $region34: #{encoder_forward.3} parent=31 // pred_check_branch
              %141 = sbr.rel (0) target = $region36
            $region35: #{encoder_forward.3} parent=31 // pred_region
              // Predicated region
              $region48: #{encoder_forward.3} parent=35 // pred_check
                _
              $region49: #{encoder_forward.3} parent=35 // pred_check_branch
                %411 = sbr.rel (0) target = $region51
              $region50: #{encoder_forward.3} parent=35 // pred_region
                loop: start=0, step=1, limit=1
                $region52: #{encoder_forward.3} parent=50 // loop_pre_header
                  _
                $region53: #{encoder_forward.3} parent=50 // loop_header
                  %s413 = sphi 0, %s417
                  %p414 = scmp.ge.s32.totalorder %s413, 1
                  %s418 = sphi %s137, %s137
                  %s419 = sphi %s134, %s134
                $region54: #{encoder_forward.3} parent=50 // loop_header_branch
                  %416 = sbr.rel (%p414) target = $region58
                $region55: #{encoder_forward.3} parent=50 // loop_body
                  %v420 = vld [vmem:[%s418] sm:$0xff]
                  %421 = vst [vmem:[%s419] sm:$0xff] %v420
                  %v422 = vld [vmem:[%s418 + $0x8] sm:$0xff]
                  %423 = vst [vmem:[%s419 + $0x8] sm:$0xff] %v422
                  %v424 = vld [vmem:[%s418 + $0x10] sm:$0xff]
                  %425 = vst [vmem:[%s419 + $0x10] sm:$0xff] %v424
                  %v426 = vld [vmem:[%s418 + $0x18] sm:$0xff]
                  %427 = vst [vmem:[%s419 + $0x18] sm:$0xff] %v426
                  %v428 = vld [vmem:[%s418 + $0x20] sm:$0xff]
                  %429 = vst [vmem:[%s419 + $0x20] sm:$0xff] %v428
                  %v430 = vld [vmem:[%s418 + $0x28] sm:$0xff]
                  %431 = vst [vmem:[%s419 + $0x28] sm:$0xff] %v430
                  %v432 = vld [vmem:[%s418 + $0x30] sm:$0xff]
                  %433 = vst [vmem:[%s419 + $0x30] sm:$0xff] %v432
                  %v434 = vld [vmem:[%s418 + $0x38] sm:$0xff]
                  %435 = vst [vmem:[%s419 + $0x38] sm:$0xff] %v434
                  %v436 = vld [vmem:[%s418 + $0x40] sm:$0xff]
                  %437 = vst [vmem:[%s419 + $0x40] sm:$0xff] %v436
                  %v438 = vld [vmem:[%s418 + $0x48] sm:$0xff]
                  %439 = vst [vmem:[%s419 + $0x48] sm:$0xff] %v438
                  %v440 = vld [vmem:[%s418 + $0x50] sm:$0xff]
                  %441 = vst [vmem:[%s419 + $0x50] sm:$0xff] %v440
                  %v442 = vld [vmem:[%s418 + $0x58] sm:$0xff]
                  %443 = vst [vmem:[%s419 + $0x58] sm:$0xff] %v442
                  %v444 = vld [vmem:[%s418 + $0x60] sm:$0xff]
                  %445 = vst [vmem:[%s419 + $0x60] sm:$0xff] %v444
                  %v446 = vld [vmem:[%s418 + $0x68] sm:$0xff]
                  %447 = vst [vmem:[%s419 + $0x68] sm:$0xff] %v446
                  %v448 = vld [vmem:[%s418 + $0x70] sm:$0xff]
                  %449 = vst [vmem:[%s419 + $0x70] sm:$0xff] %v448
                  %v450 = vld [vmem:[%s418 + $0x78] sm:$0xff]
                  %451 = vst [vmem:[%s419 + $0x78] sm:$0xff] %v450
                  %v452 = vld [vmem:[%s418 + $0x80] sm:$0xff]
                  %453 = vst [vmem:[%s419 + $0x80] sm:$0xff] %v452
                  %v454 = vld [vmem:[%s418 + $0x88] sm:$0xff]
                  %455 = vst [vmem:[%s419 + $0x88] sm:$0xff] %v454
                  %v456 = vld [vmem:[%s418 + $0x90] sm:$0xff]
                  %457 = vst [vmem:[%s419 + $0x90] sm:$0xff] %v456
                  %v458 = vld [vmem:[%s418 + $0x98] sm:$0xff]
                  %459 = vst [vmem:[%s419 + $0x98] sm:$0xff] %v458
                  %v460 = vld [vmem:[%s418 + $0xa0] sm:$0xff]
                  %461 = vst [vmem:[%s419 + $0xa0] sm:$0xff] %v460
                  %v462 = vld [vmem:[%s418 + $0xa8] sm:$0xff]
                  %463 = vst [vmem:[%s419 + $0xa8] sm:$0xff] %v462
                  %v464 = vld [vmem:[%s418 + $0xb0] sm:$0xff]
                  %465 = vst [vmem:[%s419 + $0xb0] sm:$0xff] %v464
                  %v466 = vld [vmem:[%s418 + $0xb8] sm:$0xff]
                  %467 = vst [vmem:[%s419 + $0xb8] sm:$0xff] %v466
                  %v468 = vld [vmem:[%s418 + $0xc0] sm:$0xff]
                  %469 = vst [vmem:[%s419 + $0xc0] sm:$0xff] %v468
                  %v470 = vld [vmem:[%s418 + $0xc8] sm:$0xff]
                  %471 = vst [vmem:[%s419 + $0xc8] sm:$0xff] %v470
                  %v472 = vld [vmem:[%s418 + $0xd0] sm:$0xff]
                  %473 = vst [vmem:[%s419 + $0xd0] sm:$0xff] %v472
                  %v474 = vld [vmem:[%s418 + $0xd8] sm:$0xff]
                  %475 = vst [vmem:[%s419 + $0xd8] sm:$0xff] %v474
                  %v476 = vld [vmem:[%s418 + $0xe0] sm:$0xff]
                  %477 = vst [vmem:[%s419 + $0xe0] sm:$0xff] %v476
                  %v478 = vld [vmem:[%s418 + $0xe8] sm:$0xff]
                  %479 = vst [vmem:[%s419 + $0xe8] sm:$0xff] %v478
                  %v480 = vld [vmem:[%s418 + $0xf0] sm:$0xff]
                  %481 = vst [vmem:[%s419 + $0xf0] sm:$0xff] %v480
                  %v482 = vld [vmem:[%s418 + $0xf8] sm:$0xff]
                  %483 = vst [vmem:[%s419 + $0xf8] sm:$0xff] %v482
                  %v484 = vld [vmem:[%s418 + $0x800] sm:$0xff]
                  %485 = vst [vmem:[%s419 + $0x100] sm:$0xff] %v484
                  %v486 = vld [vmem:[%s418 + $0x808] sm:$0xff]
                  %487 = vst [vmem:[%s419 + $0x108] sm:$0xff] %v486
                  %v488 = vld [vmem:[%s418 + $0x810] sm:$0xff]
                  %489 = vst [vmem:[%s419 + $0x110] sm:$0xff] %v488
                  %v490 = vld [vmem:[%s418 + $0x818] sm:$0xff]
                  %491 = vst [vmem:[%s419 + $0x118] sm:$0xff] %v490
                  %v492 = vld [vmem:[%s418 + $0x820] sm:$0xff]
                  %493 = vst [vmem:[%s419 + $0x120] sm:$0xff] %v492
                  %v494 = vld [vmem:[%s418 + $0x828] sm:$0xff]
                  %495 = vst [vmem:[%s419 + $0x128] sm:$0xff] %v494
                  %v496 = vld [vmem:[%s418 + $0x830] sm:$0xff]
                  %497 = vst [vmem:[%s419 + $0x130] sm:$0xff] %v496
                  %v498 = vld [vmem:[%s418 + $0x838] sm:$0xff]
                  %499 = vst [vmem:[%s419 + $0x138] sm:$0xff] %v498
                  %v500 = vld [vmem:[%s418 + $0x840] sm:$0xff]
                  %501 = vst [vmem:[%s419 + $0x140] sm:$0xff] %v500
                  %v502 = vld [vmem:[%s418 + $0x848] sm:$0xff]
                  %503 = vst [vmem:[%s419 + $0x148] sm:$0xff] %v502
                  %v504 = vld [vmem:[%s418 + $0x850] sm:$0xff]
                  %505 = vst [vmem:[%s419 + $0x150] sm:$0xff] %v504
                  %v506 = vld [vmem:[%s418 + $0x858] sm:$0xff]
                  %507 = vst [vmem:[%s419 + $0x158] sm:$0xff] %v506
                  %v508 = vld [vmem:[%s418 + $0x860] sm:$0xff]
                  %509 = vst [vmem:[%s419 + $0x160] sm:$0xff] %v508
                  %v510 = vld [vmem:[%s418 + $0x868] sm:$0xff]
                  %511 = vst [vmem:[%s419 + $0x168] sm:$0xff] %v510
                  %v512 = vld [vmem:[%s418 + $0x870] sm:$0xff]
                  %513 = vst [vmem:[%s419 + $0x170] sm:$0xff] %v512
                  %v514 = vld [vmem:[%s418 + $0x878] sm:$0xff]
                  %515 = vst [vmem:[%s419 + $0x178] sm:$0xff] %v514
                  %v516 = vld [vmem:[%s418 + $0x880] sm:$0xff]
                  %517 = vst [vmem:[%s419 + $0x180] sm:$0xff] %v516
                  %v518 = vld [vmem:[%s418 + $0x888] sm:$0xff]
                  %519 = vst [vmem:[%s419 + $0x188] sm:$0xff] %v518
                  %v520 = vld [vmem:[%s418 + $0x890] sm:$0xff]
                  %521 = vst [vmem:[%s419 + $0x190] sm:$0xff] %v520
                  %v522 = vld [vmem:[%s418 + $0x898] sm:$0xff]
                  %523 = vst [vmem:[%s419 + $0x198] sm:$0xff] %v522
                  %v524 = vld [vmem:[%s418 + $0x8a0] sm:$0xff]
                  %525 = vst [vmem:[%s419 + $0x1a0] sm:$0xff] %v524
                  %v526 = vld [vmem:[%s418 + $0x8a8] sm:$0xff]
                  %527 = vst [vmem:[%s419 + $0x1a8] sm:$0xff] %v526
                  %v528 = vld [vmem:[%s418 + $0x8b0] sm:$0xff]
                  %529 = vst [vmem:[%s419 + $0x1b0] sm:$0xff] %v528
                  %v530 = vld [vmem:[%s418 + $0x8b8] sm:$0xff]
                  %531 = vst [vmem:[%s419 + $0x1b8] sm:$0xff] %v530
                  %v532 = vld [vmem:[%s418 + $0x8c0] sm:$0xff]
                  %533 = vst [vmem:[%s419 + $0x1c0] sm:$0xff] %v532
                  %v534 = vld [vmem:[%s418 + $0x8c8] sm:$0xff]
                  %535 = vst [vmem:[%s419 + $0x1c8] sm:$0xff] %v534
                  %v536 = vld [vmem:[%s418 + $0x8d0] sm:$0xff]
                  %537 = vst [vmem:[%s419 + $0x1d0] sm:$0xff] %v536
                  %v538 = vld [vmem:[%s418 + $0x8d8] sm:$0xff]
                  %539 = vst [vmem:[%s419 + $0x1d8] sm:$0xff] %v538
                  %v540 = vld [vmem:[%s418 + $0x8e0] sm:$0xff]
                  %541 = vst [vmem:[%s419 + $0x1e0] sm:$0xff] %v540
                  %v542 = vld [vmem:[%s418 + $0x8e8] sm:$0xff]
                  %543 = vst [vmem:[%s419 + $0x1e8] sm:$0xff] %v542
                  %v544 = vld [vmem:[%s418 + $0x8f0] sm:$0xff]
                  %545 = vst [vmem:[%s419 + $0x1f0] sm:$0xff] %v544
                  %v546 = vld [vmem:[%s418 + $0x8f8] sm:$0xff]
                  %547 = vst [vmem:[%s419 + $0x1f8] sm:$0xff] %v546
                  %v548 = vld [vmem:[%s418 + $0x1000] sm:$0xff]
                  %549 = vst [vmem:[%s419 + $0x200] sm:$0xff] %v548
                  %v550 = vld [vmem:[%s418 + $0x1008] sm:$0xff]
                  %551 = vst [vmem:[%s419 + $0x208] sm:$0xff] %v550
                  %v552 = vld [vmem:[%s418 + $0x1010] sm:$0xff]
                  %553 = vst [vmem:[%s419 + $0x210] sm:$0xff] %v552
                  %v554 = vld [vmem:[%s418 + $0x1018] sm:$0xff]
                  %555 = vst [vmem:[%s419 + $0x218] sm:$0xff] %v554
                  %v556 = vld [vmem:[%s418 + $0x1020] sm:$0xff]
                  %557 = vst [vmem:[%s419 + $0x220] sm:$0xff] %v556
                  %v558 = vld [vmem:[%s418 + $0x1028] sm:$0xff]
                  %559 = vst [vmem:[%s419 + $0x228] sm:$0xff] %v558
                  %v560 = vld [vmem:[%s418 + $0x1030] sm:$0xff]
                  %561 = vst [vmem:[%s419 + $0x230] sm:$0xff] %v560
                  %v562 = vld [vmem:[%s418 + $0x1038] sm:$0xff]
                  %563 = vst [vmem:[%s419 + $0x238] sm:$0xff] %v562
                  %v564 = vld [vmem:[%s418 + $0x1040] sm:$0xff]
                  %565 = vst [vmem:[%s419 + $0x240] sm:$0xff] %v564
                  %v566 = vld [vmem:[%s418 + $0x1048] sm:$0xff]
                  %567 = vst [vmem:[%s419 + $0x248] sm:$0xff] %v566
                  %v568 = vld [vmem:[%s418 + $0x1050] sm:$0xff]
                  %569 = vst [vmem:[%s419 + $0x250] sm:$0xff] %v568
                  %v570 = vld [vmem:[%s418 + $0x1058] sm:$0xff]
                  %571 = vst [vmem:[%s419 + $0x258] sm:$0xff] %v570
                  %v572 = vld [vmem:[%s418 + $0x1060] sm:$0xff]
                  %573 = vst [vmem:[%s419 + $0x260] sm:$0xff] %v572
                  %v574 = vld [vmem:[%s418 + $0x1068] sm:$0xff]
                  %575 = vst [vmem:[%s419 + $0x268] sm:$0xff] %v574
                  %v576 = vld [vmem:[%s418 + $0x1070] sm:$0xff]
                  %577 = vst [vmem:[%s419 + $0x270] sm:$0xff] %v576
                  %v578 = vld [vmem:[%s418 + $0x1078] sm:$0xff]
                  %579 = vst [vmem:[%s419 + $0x278] sm:$0xff] %v578
                  %v580 = vld [vmem:[%s418 + $0x1080] sm:$0xff]
                  %581 = vst [vmem:[%s419 + $0x280] sm:$0xff] %v580
                  %v582 = vld [vmem:[%s418 + $0x1088] sm:$0xff]
                  %583 = vst [vmem:[%s419 + $0x288] sm:$0xff] %v582
                  %v584 = vld [vmem:[%s418 + $0x1090] sm:$0xff]
                  %585 = vst [vmem:[%s419 + $0x290] sm:$0xff] %v584
                  %v586 = vld [vmem:[%s418 + $0x1098] sm:$0xff]
                  %587 = vst [vmem:[%s419 + $0x298] sm:$0xff] %v586
                  %v588 = vld [vmem:[%s418 + $0x10a0] sm:$0xff]
                  %589 = vst [vmem:[%s419 + $0x2a0] sm:$0xff] %v588
                  %v590 = vld [vmem:[%s418 + $0x10a8] sm:$0xff]
                  %591 = vst [vmem:[%s419 + $0x2a8] sm:$0xff] %v590
                  %v592 = vld [vmem:[%s418 + $0x10b0] sm:$0xff]
                  %593 = vst [vmem:[%s419 + $0x2b0] sm:$0xff] %v592
                  %v594 = vld [vmem:[%s418 + $0x10b8] sm:$0xff]
                  %595 = vst [vmem:[%s419 + $0x2b8] sm:$0xff] %v594
                  %v596 = vld [vmem:[%s418 + $0x10c0] sm:$0xff]
                  %597 = vst [vmem:[%s419 + $0x2c0] sm:$0xff] %v596
                  %v598 = vld [vmem:[%s418 + $0x10c8] sm:$0xff]
                  %599 = vst [vmem:[%s419 + $0x2c8] sm:$0xff] %v598
                  %v600 = vld [vmem:[%s418 + $0x10d0] sm:$0xff]
                  %601 = vst [vmem:[%s419 + $0x2d0] sm:$0xff] %v600
                  %v602 = vld [vmem:[%s418 + $0x10d8] sm:$0xff]
                  %603 = vst [vmem:[%s419 + $0x2d8] sm:$0xff] %v602
                  %v604 = vld [vmem:[%s418 + $0x10e0] sm:$0xff]
                  %605 = vst [vmem:[%s419 + $0x2e0] sm:$0xff] %v604
                  %v606 = vld [vmem:[%s418 + $0x10e8] sm:$0xff]
                  %607 = vst [vmem:[%s419 + $0x2e8] sm:$0xff] %v606
                  %v608 = vld [vmem:[%s418 + $0x10f0] sm:$0xff]
                  %609 = vst [vmem:[%s419 + $0x2f0] sm:$0xff] %v608
                  %v610 = vld [vmem:[%s418 + $0x10f8] sm:$0xff]
                  %611 = vst [vmem:[%s419 + $0x2f8] sm:$0xff] %v610
                  %v612 = vld [vmem:[%s418 + $0x1800] sm:$0xff]
                  %613 = vst [vmem:[%s419 + $0x300] sm:$0xff] %v612
                  %v614 = vld [vmem:[%s418 + $0x1808] sm:$0xff]
                  %615 = vst [vmem:[%s419 + $0x308] sm:$0xff] %v614
                  %v616 = vld [vmem:[%s418 + $0x1810] sm:$0xff]
                  %617 = vst [vmem:[%s419 + $0x310] sm:$0xff] %v616
                  %v618 = vld [vmem:[%s418 + $0x1818] sm:$0xff]
                  %619 = vst [vmem:[%s419 + $0x318] sm:$0xff] %v618
                  %v620 = vld [vmem:[%s418 + $0x1820] sm:$0xff]
                  %621 = vst [vmem:[%s419 + $0x320] sm:$0xff] %v620
                  %v622 = vld [vmem:[%s418 + $0x1828] sm:$0xff]
                  %623 = vst [vmem:[%s419 + $0x328] sm:$0xff] %v622
                  %v624 = vld [vmem:[%s418 + $0x1830] sm:$0xff]
                  %625 = vst [vmem:[%s419 + $0x330] sm:$0xff] %v624
                  %v626 = vld [vmem:[%s418 + $0x1838] sm:$0xff]
                  %627 = vst [vmem:[%s419 + $0x338] sm:$0xff] %v626
                  %v628 = vld [vmem:[%s418 + $0x1840] sm:$0xff]
                  %629 = vst [vmem:[%s419 + $0x340] sm:$0xff] %v628
                  %v630 = vld [vmem:[%s418 + $0x1848] sm:$0xff]
                  %631 = vst [vmem:[%s419 + $0x348] sm:$0xff] %v630
                  %v632 = vld [vmem:[%s418 + $0x1850] sm:$0xff]
                  %633 = vst [vmem:[%s419 + $0x350] sm:$0xff] %v632
                  %v634 = vld [vmem:[%s418 + $0x1858] sm:$0xff]
                  %635 = vst [vmem:[%s419 + $0x358] sm:$0xff] %v634
                  %v636 = vld [vmem:[%s418 + $0x1860] sm:$0xff]
                  %637 = vst [vmem:[%s419 + $0x360] sm:$0xff] %v636
                  %v638 = vld [vmem:[%s418 + $0x1868] sm:$0xff]
                  %639 = vst [vmem:[%s419 + $0x368] sm:$0xff] %v638
                  %v640 = vld [vmem:[%s418 + $0x1870] sm:$0xff]
                  %641 = vst [vmem:[%s419 + $0x370] sm:$0xff] %v640
                  %v642 = vld [vmem:[%s418 + $0x1878] sm:$0xff]
                  %643 = vst [vmem:[%s419 + $0x378] sm:$0xff] %v642
                  %v644 = vld [vmem:[%s418 + $0x1880] sm:$0xff]
                  %645 = vst [vmem:[%s419 + $0x380] sm:$0xff] %v644
                  %v646 = vld [vmem:[%s418 + $0x1888] sm:$0xff]
                  %647 = vst [vmem:[%s419 + $0x388] sm:$0xff] %v646
                  %v648 = vld [vmem:[%s418 + $0x1890] sm:$0xff]
                  %649 = vst [vmem:[%s419 + $0x390] sm:$0xff] %v648
                  %v650 = vld [vmem:[%s418 + $0x1898] sm:$0xff]
                  %651 = vst [vmem:[%s419 + $0x398] sm:$0xff] %v650
                  %v652 = vld [vmem:[%s418 + $0x18a0] sm:$0xff]
                  %653 = vst [vmem:[%s419 + $0x3a0] sm:$0xff] %v652
                  %v654 = vld [vmem:[%s418 + $0x18a8] sm:$0xff]
                  %655 = vst [vmem:[%s419 + $0x3a8] sm:$0xff] %v654
                  %v656 = vld [vmem:[%s418 + $0x18b0] sm:$0xff]
                  %657 = vst [vmem:[%s419 + $0x3b0] sm:$0xff] %v656
                  %v658 = vld [vmem:[%s418 + $0x18b8] sm:$0xff]
                  %659 = vst [vmem:[%s419 + $0x3b8] sm:$0xff] %v658
                  %v660 = vld [vmem:[%s418 + $0x18c0] sm:$0xff]
                  %661 = vst [vmem:[%s419 + $0x3c0] sm:$0xff] %v660
                  %v662 = vld [vmem:[%s418 + $0x18c8] sm:$0xff]
                  %663 = vst [vmem:[%s419 + $0x3c8] sm:$0xff] %v662
                  %v664 = vld [vmem:[%s418 + $0x18d0] sm:$0xff]
                  %665 = vst [vmem:[%s419 + $0x3d0] sm:$0xff] %v664
                  %v666 = vld [vmem:[%s418 + $0x18d8] sm:$0xff]
                  %667 = vst [vmem:[%s419 + $0x3d8] sm:$0xff] %v666
                  %v668 = vld [vmem:[%s418 + $0x18e0] sm:$0xff]
                  %669 = vst [vmem:[%s419 + $0x3e0] sm:$0xff] %v668
                  %v670 = vld [vmem:[%s418 + $0x18e8] sm:$0xff]
                  %671 = vst [vmem:[%s419 + $0x3e8] sm:$0xff] %v670
                  %v672 = vld [vmem:[%s418 + $0x18f0] sm:$0xff]
                  %673 = vst [vmem:[%s419 + $0x3f0] sm:$0xff] %v672
                  %v674 = vld [vmem:[%s418 + $0x18f8] sm:$0xff]
                  %675 = vst [vmem:[%s419 + $0x3f8] sm:$0xff] %v674
                $region56: #{encoder_forward.3} parent=50 // loop_footer
                  %s417 = sadd.s32 1, %s413
                $region57: #{encoder_forward.3} parent=50 // loop_footer_branch
                  %412 = sbr.rel target = $region53
                $region58: #{encoder_forward.3} parent=50 // loop_exit
                  _
              $region51: #{encoder_forward.3} parent=35 // pred_fallthru
                _
              // Predicated region
              $region59: #{encoder_forward.3} parent=35 // pred_check
                _
              $region60: #{encoder_forward.3} parent=35 // pred_check_branch
                %677 = sbr.rel target = $region62
              $region61: #{encoder_forward.3} parent=35 // pred_region
                _
              $region62: #{encoder_forward.3} parent=35 // pred_fallthru
                _
            $region36: #{encoder_forward.3} parent=31 // pred_fallthru
              _
            // Predicated region
            $region37: #{encoder_forward.3} parent=31 // pred_check
              _
            $region38: #{encoder_forward.3} parent=31 // pred_check_branch
              %143 = sbr.rel target = $region40
            $region39: #{encoder_forward.3} parent=31 // pred_region
              %s145 = ssub.s32 256, 1
              loop: start=0, step=1, limit=1
              $region41: #{encoder_forward.3} parent=39 // loop_pre_header
                _
              $region42: #{encoder_forward.3} parent=39 // loop_header
                %s147 = sphi 0, %s151
                %p148 = scmp.ge.s32.totalorder %s147, 1
                %s152 = sphi %s137, %s137
                %s153 = sphi %s134, %s134
              $region43: #{encoder_forward.3} parent=39 // loop_header_branch
                %150 = sbr.rel (%p148) target = $region47
              $region44: #{encoder_forward.3} parent=39 // loop_body
                %v154 = vld [vmem:[%s152] sm:%s145]
                %155 = vst [vmem:[%s153] sm:%s145] %v154
                %v156 = vld [vmem:[%s152 + $0x8] sm:%s145]
                %157 = vst [vmem:[%s153 + $0x8] sm:%s145] %v156
                %v158 = vld [vmem:[%s152 + $0x10] sm:%s145]
                %159 = vst [vmem:[%s153 + $0x10] sm:%s145] %v158
                %v160 = vld [vmem:[%s152 + $0x18] sm:%s145]
                %161 = vst [vmem:[%s153 + $0x18] sm:%s145] %v160
                %v162 = vld [vmem:[%s152 + $0x20] sm:%s145]
                %163 = vst [vmem:[%s153 + $0x20] sm:%s145] %v162
                %v164 = vld [vmem:[%s152 + $0x28] sm:%s145]
                %165 = vst [vmem:[%s153 + $0x28] sm:%s145] %v164
                %v166 = vld [vmem:[%s152 + $0x30] sm:%s145]
                %167 = vst [vmem:[%s153 + $0x30] sm:%s145] %v166
                %v168 = vld [vmem:[%s152 + $0x38] sm:%s145]
                %169 = vst [vmem:[%s153 + $0x38] sm:%s145] %v168
                %v170 = vld [vmem:[%s152 + $0x40] sm:%s145]
                %171 = vst [vmem:[%s153 + $0x40] sm:%s145] %v170
                %v172 = vld [vmem:[%s152 + $0x48] sm:%s145]
                %173 = vst [vmem:[%s153 + $0x48] sm:%s145] %v172
                %v174 = vld [vmem:[%s152 + $0x50] sm:%s145]
                %175 = vst [vmem:[%s153 + $0x50] sm:%s145] %v174
                %v176 = vld [vmem:[%s152 + $0x58] sm:%s145]
                %177 = vst [vmem:[%s153 + $0x58] sm:%s145] %v176
                %v178 = vld [vmem:[%s152 + $0x60] sm:%s145]
                %179 = vst [vmem:[%s153 + $0x60] sm:%s145] %v178
                %v180 = vld [vmem:[%s152 + $0x68] sm:%s145]
                %181 = vst [vmem:[%s153 + $0x68] sm:%s145] %v180
                %v182 = vld [vmem:[%s152 + $0x70] sm:%s145]
                %183 = vst [vmem:[%s153 + $0x70] sm:%s145] %v182
                %v184 = vld [vmem:[%s152 + $0x78] sm:%s145]
                %185 = vst [vmem:[%s153 + $0x78] sm:%s145] %v184
                %v186 = vld [vmem:[%s152 + $0x80] sm:%s145]
                %187 = vst [vmem:[%s153 + $0x80] sm:%s145] %v186
                %v188 = vld [vmem:[%s152 + $0x88] sm:%s145]
                %189 = vst [vmem:[%s153 + $0x88] sm:%s145] %v188
                %v190 = vld [vmem:[%s152 + $0x90] sm:%s145]
                %191 = vst [vmem:[%s153 + $0x90] sm:%s145] %v190
                %v192 = vld [vmem:[%s152 + $0x98] sm:%s145]
                %193 = vst [vmem:[%s153 + $0x98] sm:%s145] %v192
                %v194 = vld [vmem:[%s152 + $0xa0] sm:%s145]
                %195 = vst [vmem:[%s153 + $0xa0] sm:%s145] %v194
                %v196 = vld [vmem:[%s152 + $0xa8] sm:%s145]
                %197 = vst [vmem:[%s153 + $0xa8] sm:%s145] %v196
                %v198 = vld [vmem:[%s152 + $0xb0] sm:%s145]
                %199 = vst [vmem:[%s153 + $0xb0] sm:%s145] %v198
                %v200 = vld [vmem:[%s152 + $0xb8] sm:%s145]
                %201 = vst [vmem:[%s153 + $0xb8] sm:%s145] %v200
                %v202 = vld [vmem:[%s152 + $0xc0] sm:%s145]
                %203 = vst [vmem:[%s153 + $0xc0] sm:%s145] %v202
                %v204 = vld [vmem:[%s152 + $0xc8] sm:%s145]
                %205 = vst [vmem:[%s153 + $0xc8] sm:%s145] %v204
                %v206 = vld [vmem:[%s152 + $0xd0] sm:%s145]
                %207 = vst [vmem:[%s153 + $0xd0] sm:%s145] %v206
                %v208 = vld [vmem:[%s152 + $0xd8] sm:%s145]
                %209 = vst [vmem:[%s153 + $0xd8] sm:%s145] %v208
                %v210 = vld [vmem:[%s152 + $0xe0] sm:%s145]
                %211 = vst [vmem:[%s153 + $0xe0] sm:%s145] %v210
                %v212 = vld [vmem:[%s152 + $0xe8] sm:%s145]
                %213 = vst [vmem:[%s153 + $0xe8] sm:%s145] %v212
                %v214 = vld [vmem:[%s152 + $0xf0] sm:%s145]
                %215 = vst [vmem:[%s153 + $0xf0] sm:%s145] %v214
                %v216 = vld [vmem:[%s152 + $0xf8] sm:%s145]
                %217 = vst [vmem:[%s153 + $0xf8] sm:%s145] %v216
                %v218 = vld [vmem:[%s152 + $0x800] sm:%s145]
                %219 = vst [vmem:[%s153 + $0x100] sm:%s145] %v218
                %v220 = vld [vmem:[%s152 + $0x808] sm:%s145]
                %221 = vst [vmem:[%s153 + $0x108] sm:%s145] %v220
                %v222 = vld [vmem:[%s152 + $0x810] sm:%s145]
                %223 = vst [vmem:[%s153 + $0x110] sm:%s145] %v222
                %v224 = vld [vmem:[%s152 + $0x818] sm:%s145]
                %225 = vst [vmem:[%s153 + $0x118] sm:%s145] %v224
                %v226 = vld [vmem:[%s152 + $0x820] sm:%s145]
                %227 = vst [vmem:[%s153 + $0x120] sm:%s145] %v226
                %v228 = vld [vmem:[%s152 + $0x828] sm:%s145]
                %229 = vst [vmem:[%s153 + $0x128] sm:%s145] %v228
                %v230 = vld [vmem:[%s152 + $0x830] sm:%s145]
                %231 = vst [vmem:[%s153 + $0x130] sm:%s145] %v230
                %v232 = vld [vmem:[%s152 + $0x838] sm:%s145]
                %233 = vst [vmem:[%s153 + $0x138] sm:%s145] %v232
                %v234 = vld [vmem:[%s152 + $0x840] sm:%s145]
                %235 = vst [vmem:[%s153 + $0x140] sm:%s145] %v234
                %v236 = vld [vmem:[%s152 + $0x848] sm:%s145]
                %237 = vst [vmem:[%s153 + $0x148] sm:%s145] %v236
                %v238 = vld [vmem:[%s152 + $0x850] sm:%s145]
                %239 = vst [vmem:[%s153 + $0x150] sm:%s145] %v238
                %v240 = vld [vmem:[%s152 + $0x858] sm:%s145]
                %241 = vst [vmem:[%s153 + $0x158] sm:%s145] %v240
                %v242 = vld [vmem:[%s152 + $0x860] sm:%s145]
                %243 = vst [vmem:[%s153 + $0x160] sm:%s145] %v242
                %v244 = vld [vmem:[%s152 + $0x868] sm:%s145]
                %245 = vst [vmem:[%s153 + $0x168] sm:%s145] %v244
                %v246 = vld [vmem:[%s152 + $0x870] sm:%s145]
                %247 = vst [vmem:[%s153 + $0x170] sm:%s145] %v246
                %v248 = vld [vmem:[%s152 + $0x878] sm:%s145]
                %249 = vst [vmem:[%s153 + $0x178] sm:%s145] %v248
                %v250 = vld [vmem:[%s152 + $0x880] sm:%s145]
                %251 = vst [vmem:[%s153 + $0x180] sm:%s145] %v250
                %v252 = vld [vmem:[%s152 + $0x888] sm:%s145]
                %253 = vst [vmem:[%s153 + $0x188] sm:%s145] %v252
                %v254 = vld [vmem:[%s152 + $0x890] sm:%s145]
                %255 = vst [vmem:[%s153 + $0x190] sm:%s145] %v254
                %v256 = vld [vmem:[%s152 + $0x898] sm:%s145]
                %257 = vst [vmem:[%s153 + $0x198] sm:%s145] %v256
                %v258 = vld [vmem:[%s152 + $0x8a0] sm:%s145]
                %259 = vst [vmem:[%s153 + $0x1a0] sm:%s145] %v258
                %v260 = vld [vmem:[%s152 + $0x8a8] sm:%s145]
                %261 = vst [vmem:[%s153 + $0x1a8] sm:%s145] %v260
                %v262 = vld [vmem:[%s152 + $0x8b0] sm:%s145]
                %263 = vst [vmem:[%s153 + $0x1b0] sm:%s145] %v262
                %v264 = vld [vmem:[%s152 + $0x8b8] sm:%s145]
                %265 = vst [vmem:[%s153 + $0x1b8] sm:%s145] %v264
                %v266 = vld [vmem:[%s152 + $0x8c0] sm:%s145]
                %267 = vst [vmem:[%s153 + $0x1c0] sm:%s145] %v266
                %v268 = vld [vmem:[%s152 + $0x8c8] sm:%s145]
                %269 = vst [vmem:[%s153 + $0x1c8] sm:%s145] %v268
                %v270 = vld [vmem:[%s152 + $0x8d0] sm:%s145]
                %271 = vst [vmem:[%s153 + $0x1d0] sm:%s145] %v270
                %v272 = vld [vmem:[%s152 + $0x8d8] sm:%s145]
                %273 = vst [vmem:[%s153 + $0x1d8] sm:%s145] %v272
                %v274 = vld [vmem:[%s152 + $0x8e0] sm:%s145]
                %275 = vst [vmem:[%s153 + $0x1e0] sm:%s145] %v274
                %v276 = vld [vmem:[%s152 + $0x8e8] sm:%s145]
                %277 = vst [vmem:[%s153 + $0x1e8] sm:%s145] %v276
                %v278 = vld [vmem:[%s152 + $0x8f0] sm:%s145]
                %279 = vst [vmem:[%s153 + $0x1f0] sm:%s145] %v278
                %v280 = vld [vmem:[%s152 + $0x8f8] sm:%s145]
                %281 = vst [vmem:[%s153 + $0x1f8] sm:%s145] %v280
                %v282 = vld [vmem:[%s152 + $0x1000] sm:%s145]
                %283 = vst [vmem:[%s153 + $0x200] sm:%s145] %v282
                %v284 = vld [vmem:[%s152 + $0x1008] sm:%s145]
                %285 = vst [vmem:[%s153 + $0x208] sm:%s145] %v284
                %v286 = vld [vmem:[%s152 + $0x1010] sm:%s145]
                %287 = vst [vmem:[%s153 + $0x210] sm:%s145] %v286
                %v288 = vld [vmem:[%s152 + $0x1018] sm:%s145]
                %289 = vst [vmem:[%s153 + $0x218] sm:%s145] %v288
                %v290 = vld [vmem:[%s152 + $0x1020] sm:%s145]
                %291 = vst [vmem:[%s153 + $0x220] sm:%s145] %v290
                %v292 = vld [vmem:[%s152 + $0x1028] sm:%s145]
                %293 = vst [vmem:[%s153 + $0x228] sm:%s145] %v292
                %v294 = vld [vmem:[%s152 + $0x1030] sm:%s145]
                %295 = vst [vmem:[%s153 + $0x230] sm:%s145] %v294
                %v296 = vld [vmem:[%s152 + $0x1038] sm:%s145]
                %297 = vst [vmem:[%s153 + $0x238] sm:%s145] %v296
                %v298 = vld [vmem:[%s152 + $0x1040] sm:%s145]
                %299 = vst [vmem:[%s153 + $0x240] sm:%s145] %v298
                %v300 = vld [vmem:[%s152 + $0x1048] sm:%s145]
                %301 = vst [vmem:[%s153 + $0x248] sm:%s145] %v300
                %v302 = vld [vmem:[%s152 + $0x1050] sm:%s145]
                %303 = vst [vmem:[%s153 + $0x250] sm:%s145] %v302
                %v304 = vld [vmem:[%s152 + $0x1058] sm:%s145]
                %305 = vst [vmem:[%s153 + $0x258] sm:%s145] %v304
                %v306 = vld [vmem:[%s152 + $0x1060] sm:%s145]
                %307 = vst [vmem:[%s153 + $0x260] sm:%s145] %v306
                %v308 = vld [vmem:[%s152 + $0x1068] sm:%s145]
                %309 = vst [vmem:[%s153 + $0x268] sm:%s145] %v308
                %v310 = vld [vmem:[%s152 + $0x1070] sm:%s145]
                %311 = vst [vmem:[%s153 + $0x270] sm:%s145] %v310
                %v312 = vld [vmem:[%s152 + $0x1078] sm:%s145]
                %313 = vst [vmem:[%s153 + $0x278] sm:%s145] %v312
                %v314 = vld [vmem:[%s152 + $0x1080] sm:%s145]
                %315 = vst [vmem:[%s153 + $0x280] sm:%s145] %v314
                %v316 = vld [vmem:[%s152 + $0x1088] sm:%s145]
                %317 = vst [vmem:[%s153 + $0x288] sm:%s145] %v316
                %v318 = vld [vmem:[%s152 + $0x1090] sm:%s145]
                %319 = vst [vmem:[%s153 + $0x290] sm:%s145] %v318
                %v320 = vld [vmem:[%s152 + $0x1098] sm:%s145]
                %321 = vst [vmem:[%s153 + $0x298] sm:%s145] %v320
                %v322 = vld [vmem:[%s152 + $0x10a0] sm:%s145]
                %323 = vst [vmem:[%s153 + $0x2a0] sm:%s145] %v322
                %v324 = vld [vmem:[%s152 + $0x10a8] sm:%s145]
                %325 = vst [vmem:[%s153 + $0x2a8] sm:%s145] %v324
                %v326 = vld [vmem:[%s152 + $0x10b0] sm:%s145]
                %327 = vst [vmem:[%s153 + $0x2b0] sm:%s145] %v326
                %v328 = vld [vmem:[%s152 + $0x10b8] sm:%s145]
                %329 = vst [vmem:[%s153 + $0x2b8] sm:%s145] %v328
                %v330 = vld [vmem:[%s152 + $0x10c0] sm:%s145]
                %331 = vst [vmem:[%s153 + $0x2c0] sm:%s145] %v330
                %v332 = vld [vmem:[%s152 + $0x10c8] sm:%s145]
                %333 = vst [vmem:[%s153 + $0x2c8] sm:%s145] %v332
                %v334 = vld [vmem:[%s152 + $0x10d0] sm:%s145]
                %335 = vst [vmem:[%s153 + $0x2d0] sm:%s145] %v334
                %v336 = vld [vmem:[%s152 + $0x10d8] sm:%s145]
                %337 = vst [vmem:[%s153 + $0x2d8] sm:%s145] %v336
                %v338 = vld [vmem:[%s152 + $0x10e0] sm:%s145]
                %339 = vst [vmem:[%s153 + $0x2e0] sm:%s145] %v338
                %v340 = vld [vmem:[%s152 + $0x10e8] sm:%s145]
                %341 = vst [vmem:[%s153 + $0x2e8] sm:%s145] %v340
                %v342 = vld [vmem:[%s152 + $0x10f0] sm:%s145]
                %343 = vst [vmem:[%s153 + $0x2f0] sm:%s145] %v342
                %v344 = vld [vmem:[%s152 + $0x10f8] sm:%s145]
                %345 = vst [vmem:[%s153 + $0x2f8] sm:%s145] %v344
                %v346 = vld [vmem:[%s152 + $0x1800] sm:%s145]
                %347 = vst [vmem:[%s153 + $0x300] sm:%s145] %v346
                %v348 = vld [vmem:[%s152 + $0x1808] sm:%s145]
                %349 = vst [vmem:[%s153 + $0x308] sm:%s145] %v348
                %v350 = vld [vmem:[%s152 + $0x1810] sm:%s145]
                %351 = vst [vmem:[%s153 + $0x310] sm:%s145] %v350
                %v352 = vld [vmem:[%s152 + $0x1818] sm:%s145]
                %353 = vst [vmem:[%s153 + $0x318] sm:%s145] %v352
                %v354 = vld [vmem:[%s152 + $0x1820] sm:%s145]
                %355 = vst [vmem:[%s153 + $0x320] sm:%s145] %v354
                %v356 = vld [vmem:[%s152 + $0x1828] sm:%s145]
                %357 = vst [vmem:[%s153 + $0x328] sm:%s145] %v356
                %v358 = vld [vmem:[%s152 + $0x1830] sm:%s145]
                %359 = vst [vmem:[%s153 + $0x330] sm:%s145] %v358
                %v360 = vld [vmem:[%s152 + $0x1838] sm:%s145]
                %361 = vst [vmem:[%s153 + $0x338] sm:%s145] %v360
                %v362 = vld [vmem:[%s152 + $0x1840] sm:%s145]
                %363 = vst [vmem:[%s153 + $0x340] sm:%s145] %v362
                %v364 = vld [vmem:[%s152 + $0x1848] sm:%s145]
                %365 = vst [vmem:[%s153 + $0x348] sm:%s145] %v364
                %v366 = vld [vmem:[%s152 + $0x1850] sm:%s145]
                %367 = vst [vmem:[%s153 + $0x350] sm:%s145] %v366
                %v368 = vld [vmem:[%s152 + $0x1858] sm:%s145]
                %369 = vst [vmem:[%s153 + $0x358] sm:%s145] %v368
                %v370 = vld [vmem:[%s152 + $0x1860] sm:%s145]
                %371 = vst [vmem:[%s153 + $0x360] sm:%s145] %v370
                %v372 = vld [vmem:[%s152 + $0x1868] sm:%s145]
                %373 = vst [vmem:[%s153 + $0x368] sm:%s145] %v372
                %v374 = vld [vmem:[%s152 + $0x1870] sm:%s145]
                %375 = vst [vmem:[%s153 + $0x370] sm:%s145] %v374
                %v376 = vld [vmem:[%s152 + $0x1878] sm:%s145]
                %377 = vst [vmem:[%s153 + $0x378] sm:%s145] %v376
                %v378 = vld [vmem:[%s152 + $0x1880] sm:%s145]
                %379 = vst [vmem:[%s153 + $0x380] sm:%s145] %v378
                %v380 = vld [vmem:[%s152 + $0x1888] sm:%s145]
                %381 = vst [vmem:[%s153 + $0x388] sm:%s145] %v380
                %v382 = vld [vmem:[%s152 + $0x1890] sm:%s145]
                %383 = vst [vmem:[%s153 + $0x390] sm:%s145] %v382
                %v384 = vld [vmem:[%s152 + $0x1898] sm:%s145]
                %385 = vst [vmem:[%s153 + $0x398] sm:%s145] %v384
                %v386 = vld [vmem:[%s152 + $0x18a0] sm:%s145]
                %387 = vst [vmem:[%s153 + $0x3a0] sm:%s145] %v386
                %v388 = vld [vmem:[%s152 + $0x18a8] sm:%s145]
                %389 = vst [vmem:[%s153 + $0x3a8] sm:%s145] %v388
                %v390 = vld [vmem:[%s152 + $0x18b0] sm:%s145]
                %391 = vst [vmem:[%s153 + $0x3b0] sm:%s145] %v390
                %v392 = vld [vmem:[%s152 + $0x18b8] sm:%s145]
                %393 = vst [vmem:[%s153 + $0x3b8] sm:%s145] %v392
                %v394 = vld [vmem:[%s152 + $0x18c0] sm:%s145]
                %395 = vst [vmem:[%s153 + $0x3c0] sm:%s145] %v394
                %v396 = vld [vmem:[%s152 + $0x18c8] sm:%s145]
                %397 = vst [vmem:[%s153 + $0x3c8] sm:%s145] %v396
                %v398 = vld [vmem:[%s152 + $0x18d0] sm:%s145]
                %399 = vst [vmem:[%s153 + $0x3d0] sm:%s145] %v398
                %v400 = vld [vmem:[%s152 + $0x18d8] sm:%s145]
                %401 = vst [vmem:[%s153 + $0x3d8] sm:%s145] %v400
                %v402 = vld [vmem:[%s152 + $0x18e0] sm:%s145]
                %403 = vst [vmem:[%s153 + $0x3e0] sm:%s145] %v402
                %v404 = vld [vmem:[%s152 + $0x18e8] sm:%s145]
                %405 = vst [vmem:[%s153 + $0x3e8] sm:%s145] %v404
                %v406 = vld [vmem:[%s152 + $0x18f0] sm:%s145]
                %407 = vst [vmem:[%s153 + $0x3f0] sm:%s145] %v406
                %v408 = vld [vmem:[%s152 + $0x18f8] sm:%s145]
                %409 = vst [vmem:[%s153 + $0x3f8] sm:%s145] %v408
              $region45: #{encoder_forward.3} parent=39 // loop_footer
                %s151 = sadd.s32 1, %s147
              $region46: #{encoder_forward.3} parent=39 // loop_footer_branch
                %146 = sbr.rel target = $region42
              $region47: #{encoder_forward.3} parent=39 // loop_exit
                _
            $region40: #{encoder_forward.3} parent=31 // pred_fallthru
              _
          $region32: #{encoder_forward.3} parent=27 // pred_fallthru
            _
          %678 = vnop
        $region28: #{encoder_forward.3} parent=23 // pred_fallthru
          _
      $region24: #{encoder_forward.3} parent=5 // pred_fallthru
        _
      %p679 = scmp.le.s32.totalorder 1, %s9
      %p680 = scmp.lt.s32.totalorder %s9, 9
      %p681 = pnand %p679, %p680
      %p682 = pneg %p681
      // Predicated region
      $region63: #{encoder_forward.3} parent=5 // pred_check
        _
      $region64: #{encoder_forward.3} parent=5 // pred_check_branch
        %684 = sbr.rel (%p681) target = $region66
      $region65: #{encoder_forward.3} parent=5 // pred_region
        %s685 = ssub.s32 %s9, 1
        %s686 = sand.u32 %s22, 1
        %s687 = sand.u32 %s22, 1
        %s688 = smul.addr %s687, 1024
        %s689 = scalar_lea.vmem [#allocation2], %s688
        // Predicated region
        $region67: #{encoder_forward.3} parent=65 // pred_check
          %p690 = pneg %p35
        $region68: #{encoder_forward.3} parent=65 // pred_check_branch
          %692 = sbr.rel (%p690) target = $region70
        $region69: #{encoder_forward.3} parent=65 // pred_region
          _
        $region70: #{encoder_forward.3} parent=65 // pred_fallthru
          _
        %s693 = sand.u32 %s22, 1
        %s694 = sand.u32 %s22, 1
        %s695 = smul.addr %s694, 1024
        %s696 = scalar_lea.vmem [#allocation2], %s695
        %p697 = pneg %p35
        %p698 = pneg %p32
        %p699 = pneg %p56
        %p700 = pneg %p53
        %p701 = pneg %p77
        %p702 = pneg %p74
        %p703 = pneg %p103
        %p704 = pneg %p100
        %s705 = smul.u32 32, %s14
        %p706 = scmp.lt.s32.totalorder %s705, 255
        %s707 = scalar_select %p706, %s705, 255
        %s708 = smul.addr %s707, 8
        %s709 = scalar_lea.vmem %s3, %s708
        %s710 = smul.u32 32, %s14
        %s711 = smul.u32 32, %s14
        %p712 = scmp.lt.s32.totalorder %s711, 255
        %s713 = scalar_select %p712, %s711, 255
        %s714 = smul.addr %s713, 8
        %s715 = scalar_lea.vmem %s3, %s714
        %s716 = smul.u32 32, %s14
        %v717 = vld [vmem:[%s1] sm:$0xff]
        %v718 = vld [vmem:[%s1 + $0x8] sm:$0xff]
        %v719 = vld [vmem:[%s1 + $0x10] sm:$0xff]
        %v720 = vld [vmem:[%s1 + $0x18] sm:$0xff]
        %v721 = vld [vmem:[%s1 + $0x20] sm:$0xf]
        %v722 = vld [vmem:[%s689] sm:$0xff]
        %v723 = vld [vmem:[%s689 + $0x8] sm:$0xff]
        %v724 = vld [vmem:[%s689 + $0x10] sm:$0xff]
        %v725 = vld [vmem:[%s689 + $0x18] sm:$0xff]
        %v726 = vld [vmem:[%s689 + $0x20] sm:$0xff]
        %v727 = vld [vmem:[%s689 + $0x28] sm:$0xff]
        %v728 = vld [vmem:[%s689 + $0x30] sm:$0xff]
        %v729 = vld [vmem:[%s689 + $0x38] sm:$0xff]
        %v730 = vld [vmem:[%s689 + $0x40] sm:$0xff]
        %v731 = vld [vmem:[%s689 + $0x48] sm:$0xff]
        %v732 = vld [vmem:[%s689 + $0x50] sm:$0xff]
        %v733 = vld [vmem:[%s689 + $0x58] sm:$0xff]
        %v734 = vld [vmem:[%s689 + $0x60] sm:$0xff]
        %v735 = vld [vmem:[%s689 + $0x68] sm:$0xff]
        %v736 = vld [vmem:[%s689 + $0x70] sm:$0xff]
        %v737 = vld [vmem:[%s689 + $0x78] sm:$0xff]
        %v738 = vld [vmem:[%s689 + $0x80] sm:$0xff]
        %v739 = vld [vmem:[%s689 + $0x88] sm:$0xff]
        %v740 = vld [vmem:[%s689 + $0x90] sm:$0xff]
        %v741 = vld [vmem:[%s689 + $0x98] sm:$0xff]
        %v742 = vld [vmem:[%s689 + $0xa0] sm:$0xff]
        %v743 = vld [vmem:[%s689 + $0xa8] sm:$0xff]
        %v744 = vld [vmem:[%s689 + $0xb0] sm:$0xff]
        %v745 = vld [vmem:[%s689 + $0xb8] sm:$0xff]
        %v746 = vld [vmem:[%s689 + $0xc0] sm:$0xff]
        %v747 = vld [vmem:[%s689 + $0xc8] sm:$0xff]
        %v748 = vld [vmem:[%s689 + $0xd0] sm:$0xff]
        %v749 = vld [vmem:[%s689 + $0xd8] sm:$0xff]
        %v750 = vld [vmem:[%s689 + $0xe0] sm:$0xff]
        %v751 = vld [vmem:[%s689 + $0xe8] sm:$0xff]
        %v752 = vld [vmem:[%s689 + $0xf0] sm:$0xff]
        %v753 = vld [vmem:[%s689 + $0xf8] sm:$0xff]
        %vm754 = vcmask 293888
        %v756 = vsel %vm754, %v722, 0
        %v759 = vsel %vm754, %v723, 0
        %v762 = vsel %vm754, %v724, 0
        %v765 = vsel %vm754, %v725, 0
        %v768 = vsel %vm754, %v726, 0
        %v771 = vsel %vm754, %v727, 0
        %v774 = vsel %vm754, %v728, 0
        %v777 = vsel %vm754, %v729, 0
        %v780 = vsel %vm754, %v730, 0
        %v783 = vsel %vm754, %v731, 0
        %v786 = vsel %vm754, %v732, 0
        %v789 = vsel %vm754, %v733, 0
        %v792 = vsel %vm754, %v734, 0
        %v795 = vsel %vm754, %v735, 0
        %v798 = vsel %vm754, %v736, 0
        %v801 = vsel %vm754, %v737, 0
        %v804 = vsel %vm754, %v738, 0
        %v807 = vsel %vm754, %v739, 0
        %v810 = vsel %vm754, %v740, 0
        %v813 = vsel %vm754, %v741, 0
        %v816 = vsel %vm754, %v742, 0
        %v819 = vsel %vm754, %v743, 0
        %v822 = vsel %vm754, %v744, 0
        %v825 = vsel %vm754, %v745, 0
        %v828 = vsel %vm754, %v746, 0
        %v831 = vsel %vm754, %v747, 0
        %v834 = vsel %vm754, %v748, 0
        %v837 = vsel %vm754, %v749, 0
        %v840 = vsel %vm754, %v750, 0
        %v843 = vsel %vm754, %v751, 0
        %v846 = vsel %vm754, %v752, 0
        %v849 = vsel %vm754, %v753, 0
        %vm851 = vcmask 1043456
        %v853 = vsel %vm851, %v721, 0
        %855 = vmatprep.subr.mxu0 0.0
        %856 = vmatpush1.msra.mxu0 0.0
        %857 = vmatprep.subr.mxu0 0.0
        %858 = vmatpush1.msra.mxu0 0.0
        %859 = vmatprep.subr.mxu0 0.0
        %860 = vmatpush1.msra.mxu0 0.0
        %861 = vmatprep.subr.mxu0 0.0
        %862 = vmatpush1.msra.mxu0 0.0
        %863 = vmatprep.subr.mxu0 0.0
        %864 = vmatpush1.msra.mxu0 0.0
        %865 = vmatprep.subr.mxu0 0.0
        %866 = vmatpush1.msra.mxu0 0.0
        %867 = vmatprep.subr.mxu0 0.0
        %868 = vmatpush1.msra.mxu0 0.0
        %869 = vmatprep.subr.mxu0 0.0
        %870 = vmatpush1.msra.mxu0 0.0
        %871 = vmatprep.subr.mxu0 0.0
        %872 = vmatpush1.msra.mxu0 0.0
        %873 = vmatprep.subr.mxu0 0.0
        %874 = vmatpush1.msra.mxu0 0.0
        %875 = vmatprep.subr.mxu0 0.0
        %876 = vmatpush1.msra.mxu0 0.0
        %877 = vmatprep.subr.mxu0 0.0
        %878 = vmatpush1.msra.mxu0 %v853
        %879 = vmatprep.subr.mxu0 0.0
        %880 = vmatpush1.msra.mxu0 %v720
        %881 = vmatprep.subr.mxu0 0.0
        %882 = vmatpush1.msra.mxu0 %v719
        %883 = vmatprep.subr.mxu0 0.0
        %884 = vmatpush1.msra.mxu0 %v718
        %885 = vmatprep.subr.mxu0 0.0
        %886 = vmatpush1.msra.mxu0 %v717
        %887 = vmatprep.subr.mxu0 0.0
        %888 = vmatpush2.msra.mxu0 0.0
        %889 = vmatprep.subr.mxu0 0.0
        %890 = vmatpush2.msra.mxu0 0.0
        %891 = vmatprep.subr.mxu0 0.0
        %892 = vmatpush2.msra.mxu0 0.0
        %893 = vmatprep.subr.mxu0 0.0
        %894 = vmatpush2.msra.mxu0 0.0
        %895 = vmatprep.subr.mxu0 0.0
        %896 = vmatpush2.msra.mxu0 0.0
        %897 = vmatprep.subr.mxu0 0.0
        %898 = vmatpush2.msra.mxu0 0.0
        %899 = vmatprep.subr.mxu0 0.0
        %900 = vmatpush2.msra.mxu0 0.0
        %901 = vmatprep.subr.mxu0 0.0
        %902 = vmatpush2.msra.mxu0 0.0
        %903 = vmatprep.subr.mxu0 0.0
        %904 = vmatpush2.msra.mxu0 0.0
        %905 = vmatprep.subr.mxu0 0.0
        %906 = vmatpush2.msra.mxu0 0.0
        %907 = vmatprep.subr.mxu0 0.0
        %908 = vmatpush2.msra.mxu0 0.0
        %909 = vmatprep.subr.mxu0 0.0
        %910 = vmatpush2.msra.mxu0 0.0
        %911 = vmatprep.subr.mxu0 0.0
        %912 = vmatpush2.msra.mxu0 0.0
        %913 = vmatprep.subr.mxu0 0.0
        %914 = vmatpush2.msra.mxu0 0.0
        %915 = vmatprep.subr.mxu0 0.0
        %916 = vmatpush2.msra.mxu0 0.0
        %917 = vmatprep.subr.mxu0 0.0
        %918 = vmatpush2.msra.mxu0 0.0
        %919 = vmatprep.mubr.f32.mxu0 0.0
        %920 = vmatmul.mubr.f32.gmra.mxu0 %v756
        %v921 = vpop.f32.mrf.mxu0
        %v922 = vadd.f32 0.0, %v921
        %v923 = vpop.f32.mrf.mxu0
        %924 = vmatprep.mubr.f32.mxu0 0.0
        %925 = vmatmul.mubr.f32.gmra.mxu0 %v759
        %v926 = vpop.f32.mrf.mxu0
        %v927 = vadd.f32 0.0, %v926
        %v928 = vpop.f32.mrf.mxu0
        %929 = vmatprep.mubr.f32.mxu0 0.0
        %930 = vmatmul.mubr.f32.gmra.mxu0 %v762
        %v931 = vpop.f32.mrf.mxu0
        %v932 = vadd.f32 0.0, %v931
        %v933 = vpop.f32.mrf.mxu0
        %934 = vmatprep.mubr.f32.mxu0 0.0
        %935 = vmatmul.mubr.f32.gmra.mxu0 %v765
        %v936 = vpop.f32.mrf.mxu0
        %v937 = vadd.f32 0.0, %v936
        %v938 = vpop.f32.mrf.mxu0
        %939 = vmatprep.mubr.f32.mxu0 0.0
        %940 = vmatmul.mubr.f32.gmra.mxu0 %v768
        %v941 = vpop.f32.mrf.mxu0
        %v942 = vadd.f32 0.0, %v941
        %v943 = vpop.f32.mrf.mxu0
        %944 = vmatprep.mubr.f32.mxu0 0.0
        %945 = vmatmul.mubr.f32.gmra.mxu0 %v771
        %v946 = vpop.f32.mrf.mxu0
        %v947 = vadd.f32 0.0, %v946
        %v948 = vpop.f32.mrf.mxu0
        %949 = vmatprep.mubr.f32.mxu0 0.0
        %950 = vmatmul.mubr.f32.gmra.mxu0 %v774
        %v951 = vpop.f32.mrf.mxu0
        %v952 = vadd.f32 0.0, %v951
        %v953 = vpop.f32.mrf.mxu0
        %954 = vmatprep.mubr.f32.mxu0 0.0
        %955 = vmatmul.mubr.f32.gmra.mxu0 %v777
        %v956 = vpop.f32.mrf.mxu0
        %v957 = vadd.f32 0.0, %v956
        %v958 = vpop.f32.mrf.mxu0
        %959 = vmatprep.mubr.f32.mxu0 0.0
        %960 = vmatmul.mubr.f32.gmra.mxu0 %v780
        %v961 = vpop.f32.mrf.mxu0
        %v962 = vadd.f32 0.0, %v961
        %v963 = vpop.f32.mrf.mxu0
        %964 = vmatprep.mubr.f32.mxu0 0.0
        %965 = vmatmul.mubr.f32.gmra.mxu0 %v783
        %v966 = vpop.f32.mrf.mxu0
        %v967 = vadd.f32 0.0, %v966
        %v968 = vpop.f32.mrf.mxu0
        %969 = vmatprep.mubr.f32.mxu0 0.0
        %970 = vmatmul.mubr.f32.gmra.mxu0 %v786
        %v971 = vpop.f32.mrf.mxu0
        %v972 = vadd.f32 0.0, %v971
        %v973 = vpop.f32.mrf.mxu0
        %974 = vmatprep.mubr.f32.mxu0 0.0
        %975 = vmatmul.mubr.f32.gmra.mxu0 %v789
        %v976 = vpop.f32.mrf.mxu0
        %v977 = vadd.f32 0.0, %v976
        %v978 = vpop.f32.mrf.mxu0
        %979 = vmatprep.mubr.f32.mxu0 0.0
        %980 = vmatmul.mubr.f32.gmra.mxu0 %v792
        %v981 = vpop.f32.mrf.mxu0
        %v982 = vadd.f32 0.0, %v981
        %v983 = vpop.f32.mrf.mxu0
        %984 = vmatprep.mubr.f32.mxu0 0.0
        %985 = vmatmul.mubr.f32.gmra.mxu0 %v795
        %v986 = vpop.f32.mrf.mxu0
        %v987 = vadd.f32 0.0, %v986
        %v988 = vpop.f32.mrf.mxu0
        %989 = vmatprep.mubr.f32.mxu0 0.0
        %990 = vmatmul.mubr.f32.gmra.mxu0 %v798
        %v991 = vpop.f32.mrf.mxu0
        %v992 = vadd.f32 0.0, %v991
        %v993 = vpop.f32.mrf.mxu0
        %994 = vmatprep.mubr.f32.mxu0 0.0
        %995 = vmatmul.mubr.f32.gmra.mxu0 %v801
        %v996 = vpop.f32.mrf.mxu0
        %v997 = vadd.f32 0.0, %v996
        %v998 = vpop.f32.mrf.mxu0
        %999 = vmatprep.mubr.f32.mxu0 0.0
        %1000 = vmatmul.mubr.f32.gmra.mxu0 %v804
        %v1001 = vpop.f32.mrf.mxu0
        %v1002 = vadd.f32 0.0, %v1001
        %v1003 = vpop.f32.mrf.mxu0
        %1004 = vmatprep.mubr.f32.mxu0 0.0
        %1005 = vmatmul.mubr.f32.gmra.mxu0 %v807
        %v1006 = vpop.f32.mrf.mxu0
        %v1007 = vadd.f32 0.0, %v1006
        %v1008 = vpop.f32.mrf.mxu0
        %1009 = vmatprep.mubr.f32.mxu0 0.0
        %1010 = vmatmul.mubr.f32.gmra.mxu0 %v810
        %v1011 = vpop.f32.mrf.mxu0
        %v1012 = vadd.f32 0.0, %v1011
        %v1013 = vpop.f32.mrf.mxu0
        %1014 = vmatprep.mubr.f32.mxu0 0.0
        %1015 = vmatmul.mubr.f32.gmra.mxu0 %v813
        %v1016 = vpop.f32.mrf.mxu0
        %v1017 = vadd.f32 0.0, %v1016
        %v1018 = vpop.f32.mrf.mxu0
        %1019 = vmatprep.mubr.f32.mxu0 0.0
        %1020 = vmatmul.mubr.f32.gmra.mxu0 %v816
        %v1021 = vpop.f32.mrf.mxu0
        %v1022 = vadd.f32 0.0, %v1021
        %v1023 = vpop.f32.mrf.mxu0
        %1024 = vmatprep.mubr.f32.mxu0 0.0
        %1025 = vmatmul.mubr.f32.gmra.mxu0 %v819
        %v1026 = vpop.f32.mrf.mxu0
        %v1027 = vadd.f32 0.0, %v1026
        %v1028 = vpop.f32.mrf.mxu0
        %1029 = vmatprep.mubr.f32.mxu0 0.0
        %1030 = vmatmul.mubr.f32.gmra.mxu0 %v822
        %v1031 = vpop.f32.mrf.mxu0
        %v1032 = vadd.f32 0.0, %v1031
        %v1033 = vpop.f32.mrf.mxu0
        %1034 = vmatprep.mubr.f32.mxu0 0.0
        %1035 = vmatmul.mubr.f32.gmra.mxu0 %v825
        %v1036 = vpop.f32.mrf.mxu0
        %v1037 = vadd.f32 0.0, %v1036
        %v1038 = vpop.f32.mrf.mxu0
        %1039 = vmatprep.mubr.f32.mxu0 0.0
        %1040 = vmatmul.mubr.f32.gmra.mxu0 %v828
        %v1041 = vpop.f32.mrf.mxu0
        %v1042 = vadd.f32 0.0, %v1041
        %v1043 = vpop.f32.mrf.mxu0
        %1044 = vmatprep.mubr.f32.mxu0 0.0
        %1045 = vmatmul.mubr.f32.gmra.mxu0 %v831
        %v1046 = vpop.f32.mrf.mxu0
        %v1047 = vadd.f32 0.0, %v1046
        %v1048 = vpop.f32.mrf.mxu0
        %1049 = vmatprep.mubr.f32.mxu0 0.0
        %1050 = vmatmul.mubr.f32.gmra.mxu0 %v834
        %v1051 = vpop.f32.mrf.mxu0
        %v1052 = vadd.f32 0.0, %v1051
        %v1053 = vpop.f32.mrf.mxu0
        %1054 = vmatprep.mubr.f32.mxu0 0.0
        %1055 = vmatmul.mubr.f32.gmra.mxu0 %v837
        %v1056 = vpop.f32.mrf.mxu0
        %v1057 = vadd.f32 0.0, %v1056
        %v1058 = vpop.f32.mrf.mxu0
        %1059 = vmatprep.mubr.f32.mxu0 0.0
        %1060 = vmatmul.mubr.f32.gmra.mxu0 %v840
        %v1061 = vpop.f32.mrf.mxu0
        %v1062 = vadd.f32 0.0, %v1061
        %v1063 = vpop.f32.mrf.mxu0
        %1064 = vmatprep.mubr.f32.mxu0 0.0
        %1065 = vmatmul.mubr.f32.gmra.mxu0 %v843
        %v1066 = vpop.f32.mrf.mxu0
        %v1067 = vadd.f32 0.0, %v1066
        %v1068 = vpop.f32.mrf.mxu0
        %1069 = vmatprep.mubr.f32.mxu0 0.0
        %1070 = vmatmul.mubr.f32.gmra.mxu0 %v846
        %v1071 = vpop.f32.mrf.mxu0
        %v1072 = vadd.f32 0.0, %v1071
        %v1073 = vpop.f32.mrf.mxu0
        %1074 = vmatprep.mubr.f32.mxu0 0.0
        %1075 = vmatmul.mubr.f32.gmra.mxu0 %v849
        %v1076 = vpop.f32.mrf.mxu0
        %v1077 = vadd.f32 0.0, %v1076
        %v1078 = vpop.f32.mrf.mxu0
        %1079 = vdwg.mxu0
        %s1080 = scalar_lea.vmem %s689, 256 [#allocation2]
        %v1081 = vld [vmem:[%s1080] sm:$0xff]
        %v1082 = vld [vmem:[%s1080 + $0x8] sm:$0xff]
        %v1083 = vld [vmem:[%s1080 + $0x10] sm:$0xff]
        %v1084 = vld [vmem:[%s1080 + $0x18] sm:$0xff]
        %v1085 = vld [vmem:[%s1080 + $0x20] sm:$0xff]
        %v1086 = vld [vmem:[%s1080 + $0x28] sm:$0xff]
        %v1087 = vld [vmem:[%s1080 + $0x30] sm:$0xff]
        %v1088 = vld [vmem:[%s1080 + $0x38] sm:$0xff]
        %v1089 = vld [vmem:[%s1080 + $0x40] sm:$0xff]
        %v1090 = vld [vmem:[%s1080 + $0x48] sm:$0xff]
        %v1091 = vld [vmem:[%s1080 + $0x50] sm:$0xff]
        %v1092 = vld [vmem:[%s1080 + $0x58] sm:$0xff]
        %v1093 = vld [vmem:[%s1080 + $0x60] sm:$0xff]
        %v1094 = vld [vmem:[%s1080 + $0x68] sm:$0xff]
        %v1095 = vld [vmem:[%s1080 + $0x70] sm:$0xff]
        %v1096 = vld [vmem:[%s1080 + $0x78] sm:$0xff]
        %v1097 = vld [vmem:[%s1080 + $0x80] sm:$0xff]
        %v1098 = vld [vmem:[%s1080 + $0x88] sm:$0xff]
        %v1099 = vld [vmem:[%s1080 + $0x90] sm:$0xff]
        %v1100 = vld [vmem:[%s1080 + $0x98] sm:$0xff]
        %v1101 = vld [vmem:[%s1080 + $0xa0] sm:$0xff]
        %v1102 = vld [vmem:[%s1080 + $0xa8] sm:$0xff]
        %v1103 = vld [vmem:[%s1080 + $0xb0] sm:$0xff]
        %v1104 = vld [vmem:[%s1080 + $0xb8] sm:$0xff]
        %v1105 = vld [vmem:[%s1080 + $0xc0] sm:$0xff]
        %v1106 = vld [vmem:[%s1080 + $0xc8] sm:$0xff]
        %v1107 = vld [vmem:[%s1080 + $0xd0] sm:$0xff]
        %v1108 = vld [vmem:[%s1080 + $0xd8] sm:$0xff]
        %v1109 = vld [vmem:[%s1080 + $0xe0] sm:$0xff]
        %v1110 = vld [vmem:[%s1080 + $0xe8] sm:$0xff]
        %v1111 = vld [vmem:[%s1080 + $0xf0] sm:$0xff]
        %v1112 = vld [vmem:[%s1080 + $0xf8] sm:$0xff]
        %v1114 = vsel %vm754, %v1081, 0
        %v1117 = vsel %vm754, %v1082, 0
        %v1120 = vsel %vm754, %v1083, 0
        %v1123 = vsel %vm754, %v1084, 0
        %v1126 = vsel %vm754, %v1085, 0
        %v1129 = vsel %vm754, %v1086, 0
        %v1132 = vsel %vm754, %v1087, 0
        %v1135 = vsel %vm754, %v1088, 0
        %v1138 = vsel %vm754, %v1089, 0
        %v1141 = vsel %vm754, %v1090, 0
        %v1144 = vsel %vm754, %v1091, 0
        %v1147 = vsel %vm754, %v1092, 0
        %v1150 = vsel %vm754, %v1093, 0
        %v1153 = vsel %vm754, %v1094, 0
        %v1156 = vsel %vm754, %v1095, 0
        %v1159 = vsel %vm754, %v1096, 0
        %v1162 = vsel %vm754, %v1097, 0
        %v1165 = vsel %vm754, %v1098, 0
        %v1168 = vsel %vm754, %v1099, 0
        %v1171 = vsel %vm754, %v1100, 0
        %v1174 = vsel %vm754, %v1101, 0
        %v1177 = vsel %vm754, %v1102, 0
        %v1180 = vsel %vm754, %v1103, 0
        %v1183 = vsel %vm754, %v1104, 0
        %v1186 = vsel %vm754, %v1105, 0
        %v1189 = vsel %vm754, %v1106, 0
        %v1192 = vsel %vm754, %v1107, 0
        %v1195 = vsel %vm754, %v1108, 0
        %v1198 = vsel %vm754, %v1109, 0
        %v1201 = vsel %vm754, %v1110, 0
        %v1204 = vsel %vm754, %v1111, 0
        %v1207 = vsel %vm754, %v1112, 0
        %1209 = vmatprep.subr.mxu0 0.0
        %1210 = vmatpush1.msra.mxu0 0.0
        %1211 = vmatprep.subr.mxu0 0.0
        %1212 = vmatpush1.msra.mxu0 0.0
        %1213 = vmatprep.subr.mxu0 0.0
        %1214 = vmatpush1.msra.mxu0 0.0
        %1215 = vmatprep.subr.mxu0 0.0
        %1216 = vmatpush1.msra.mxu0 0.0
        %1217 = vmatprep.subr.mxu0 0.0
        %1218 = vmatpush1.msra.mxu0 0.0
        %1219 = vmatprep.subr.mxu0 0.0
        %1220 = vmatpush1.msra.mxu0 0.0
        %1221 = vmatprep.subr.mxu0 0.0
        %1222 = vmatpush1.msra.mxu0 0.0
        %1223 = vmatprep.subr.mxu0 0.0
        %1224 = vmatpush1.msra.mxu0 0.0
        %1225 = vmatprep.subr.mxu0 0.0
        %1226 = vmatpush1.msra.mxu0 0.0
        %1227 = vmatprep.subr.mxu0 0.0
        %1228 = vmatpush1.msra.mxu0 0.0
        %1229 = vmatprep.subr.mxu0 0.0
        %1230 = vmatpush1.msra.mxu0 0.0
        %1231 = vmatprep.subr.mxu0 0.0
        %1232 = vmatpush1.msra.mxu0 %v853
        %1233 = vmatprep.subr.mxu0 0.0
        %1234 = vmatpush1.msra.mxu0 %v720
        %1235 = vmatprep.subr.mxu0 0.0
        %1236 = vmatpush1.msra.mxu0 %v719
        %1237 = vmatprep.subr.mxu0 0.0
        %1238 = vmatpush1.msra.mxu0 %v718
        %1239 = vmatprep.subr.mxu0 0.0
        %1240 = vmatpush1.msra.mxu0 %v717
        %1241 = vmatprep.subr.mxu0 0.0
        %1242 = vmatpush2.msra.mxu0 0.0
        %1243 = vmatprep.subr.mxu0 0.0
        %1244 = vmatpush2.msra.mxu0 0.0
        %1245 = vmatprep.subr.mxu0 0.0
        %1246 = vmatpush2.msra.mxu0 0.0
        %1247 = vmatprep.subr.mxu0 0.0
        %1248 = vmatpush2.msra.mxu0 0.0
        %1249 = vmatprep.subr.mxu0 0.0
        %1250 = vmatpush2.msra.mxu0 0.0
        %1251 = vmatprep.subr.mxu0 0.0
        %1252 = vmatpush2.msra.mxu0 0.0
        %1253 = vmatprep.subr.mxu0 0.0
        %1254 = vmatpush2.msra.mxu0 0.0
        %1255 = vmatprep.subr.mxu0 0.0
        %1256 = vmatpush2.msra.mxu0 0.0
        %1257 = vmatprep.subr.mxu0 0.0
        %1258 = vmatpush2.msra.mxu0 0.0
        %1259 = vmatprep.subr.mxu0 0.0
        %1260 = vmatpush2.msra.mxu0 0.0
        %1261 = vmatprep.subr.mxu0 0.0
        %1262 = vmatpush2.msra.mxu0 0.0
        %1263 = vmatprep.subr.mxu0 0.0
        %1264 = vmatpush2.msra.mxu0 0.0
        %1265 = vmatprep.subr.mxu0 0.0
        %1266 = vmatpush2.msra.mxu0 0.0
        %1267 = vmatprep.subr.mxu0 0.0
        %1268 = vmatpush2.msra.mxu0 0.0
        %1269 = vmatprep.subr.mxu0 0.0
        %1270 = vmatpush2.msra.mxu0 0.0
        %1271 = vmatprep.subr.mxu0 0.0
        %1272 = vmatpush2.msra.mxu0 0.0
        %1273 = vmatprep.mubr.f32.mxu0 0.0
        %1274 = vmatmul.mubr.f32.gmra.mxu0 %v1114
        %v1275 = vpop.f32.mrf.mxu0
        %v1276 = vadd.f32 0.0, %v1275
        %v1277 = vpop.f32.mrf.mxu0
        %1278 = vmatprep.mubr.f32.mxu0 0.0
        %1279 = vmatmul.mubr.f32.gmra.mxu0 %v1117
        %v1280 = vpop.f32.mrf.mxu0
        %v1281 = vadd.f32 0.0, %v1280
        %v1282 = vpop.f32.mrf.mxu0
        %1283 = vmatprep.mubr.f32.mxu0 0.0
        %1284 = vmatmul.mubr.f32.gmra.mxu0 %v1120
        %v1285 = vpop.f32.mrf.mxu0
        %v1286 = vadd.f32 0.0, %v1285
        %v1287 = vpop.f32.mrf.mxu0
        %1288 = vmatprep.mubr.f32.mxu0 0.0
        %1289 = vmatmul.mubr.f32.gmra.mxu0 %v1123
        %v1290 = vpop.f32.mrf.mxu0
        %v1291 = vadd.f32 0.0, %v1290
        %v1292 = vpop.f32.mrf.mxu0
        %1293 = vmatprep.mubr.f32.mxu0 0.0
        %1294 = vmatmul.mubr.f32.gmra.mxu0 %v1126
        %v1295 = vpop.f32.mrf.mxu0
        %v1296 = vadd.f32 0.0, %v1295
        %v1297 = vpop.f32.mrf.mxu0
        %1298 = vmatprep.mubr.f32.mxu0 0.0
        %1299 = vmatmul.mubr.f32.gmra.mxu0 %v1129
        %v1300 = vpop.f32.mrf.mxu0
        %v1301 = vadd.f32 0.0, %v1300
        %v1302 = vpop.f32.mrf.mxu0
        %1303 = vmatprep.mubr.f32.mxu0 0.0
        %1304 = vmatmul.mubr.f32.gmra.mxu0 %v1132
        %v1305 = vpop.f32.mrf.mxu0
        %v1306 = vadd.f32 0.0, %v1305
        %v1307 = vpop.f32.mrf.mxu0
        %1308 = vmatprep.mubr.f32.mxu0 0.0
        %1309 = vmatmul.mubr.f32.gmra.mxu0 %v1135
        %v1310 = vpop.f32.mrf.mxu0
        %v1311 = vadd.f32 0.0, %v1310
        %v1312 = vpop.f32.mrf.mxu0
        %1313 = vmatprep.mubr.f32.mxu0 0.0
        %1314 = vmatmul.mubr.f32.gmra.mxu0 %v1138
        %v1315 = vpop.f32.mrf.mxu0
        %v1316 = vadd.f32 0.0, %v1315
        %v1317 = vpop.f32.mrf.mxu0
        %1318 = vmatprep.mubr.f32.mxu0 0.0
        %1319 = vmatmul.mubr.f32.gmra.mxu0 %v1141
        %v1320 = vpop.f32.mrf.mxu0
        %v1321 = vadd.f32 0.0, %v1320
        %v1322 = vpop.f32.mrf.mxu0
        %1323 = vmatprep.mubr.f32.mxu0 0.0
        %1324 = vmatmul.mubr.f32.gmra.mxu0 %v1144
        %v1325 = vpop.f32.mrf.mxu0
        %v1326 = vadd.f32 0.0, %v1325
        %v1327 = vpop.f32.mrf.mxu0
        %1328 = vmatprep.mubr.f32.mxu0 0.0
        %1329 = vmatmul.mubr.f32.gmra.mxu0 %v1147
        %v1330 = vpop.f32.mrf.mxu0
        %v1331 = vadd.f32 0.0, %v1330
        %v1332 = vpop.f32.mrf.mxu0
        %1333 = vmatprep.mubr.f32.mxu0 0.0
        %1334 = vmatmul.mubr.f32.gmra.mxu0 %v1150
        %v1335 = vpop.f32.mrf.mxu0
        %v1336 = vadd.f32 0.0, %v1335
        %v1337 = vpop.f32.mrf.mxu0
        %1338 = vmatprep.mubr.f32.mxu0 0.0
        %1339 = vmatmul.mubr.f32.gmra.mxu0 %v1153
        %v1340 = vpop.f32.mrf.mxu0
        %v1341 = vadd.f32 0.0, %v1340
        %v1342 = vpop.f32.mrf.mxu0
        %1343 = vmatprep.mubr.f32.mxu0 0.0
        %1344 = vmatmul.mubr.f32.gmra.mxu0 %v1156
        %v1345 = vpop.f32.mrf.mxu0
        %v1346 = vadd.f32 0.0, %v1345
        %v1347 = vpop.f32.mrf.mxu0
        %1348 = vmatprep.mubr.f32.mxu0 0.0
        %1349 = vmatmul.mubr.f32.gmra.mxu0 %v1159
        %v1350 = vpop.f32.mrf.mxu0
        %v1351 = vadd.f32 0.0, %v1350
        %v1352 = vpop.f32.mrf.mxu0
        %1353 = vmatprep.mubr.f32.mxu0 0.0
        %1354 = vmatmul.mubr.f32.gmra.mxu0 %v1162
        %v1355 = vpop.f32.mrf.mxu0
        %v1356 = vadd.f32 0.0, %v1355
        %v1357 = vpop.f32.mrf.mxu0
        %1358 = vmatprep.mubr.f32.mxu0 0.0
        %1359 = vmatmul.mubr.f32.gmra.mxu0 %v1165
        %v1360 = vpop.f32.mrf.mxu0
        %v1361 = vadd.f32 0.0, %v1360
        %v1362 = vpop.f32.mrf.mxu0
        %1363 = vmatprep.mubr.f32.mxu0 0.0
        %1364 = vmatmul.mubr.f32.gmra.mxu0 %v1168
        %v1365 = vpop.f32.mrf.mxu0
        %v1366 = vadd.f32 0.0, %v1365
        %v1367 = vpop.f32.mrf.mxu0
        %1368 = vmatprep.mubr.f32.mxu0 0.0
        %1369 = vmatmul.mubr.f32.gmra.mxu0 %v1171
        %v1370 = vpop.f32.mrf.mxu0
        %v1371 = vadd.f32 0.0, %v1370
        %v1372 = vpop.f32.mrf.mxu0
        %1373 = vmatprep.mubr.f32.mxu0 0.0
        %1374 = vmatmul.mubr.f32.gmra.mxu0 %v1174
        %v1375 = vpop.f32.mrf.mxu0
        %v1376 = vadd.f32 0.0, %v1375
        %v1377 = vpop.f32.mrf.mxu0
        %1378 = vmatprep.mubr.f32.mxu0 0.0
        %1379 = vmatmul.mubr.f32.gmra.mxu0 %v1177
        %v1380 = vpop.f32.mrf.mxu0
        %v1381 = vadd.f32 0.0, %v1380
        %v1382 = vpop.f32.mrf.mxu0
        %1383 = vmatprep.mubr.f32.mxu0 0.0
        %1384 = vmatmul.mubr.f32.gmra.mxu0 %v1180
        %v1385 = vpop.f32.mrf.mxu0
        %v1386 = vadd.f32 0.0, %v1385
        %v1387 = vpop.f32.mrf.mxu0
        %1388 = vmatprep.mubr.f32.mxu0 0.0
        %1389 = vmatmul.mubr.f32.gmra.mxu0 %v1183
        %v1390 = vpop.f32.mrf.mxu0
        %v1391 = vadd.f32 0.0, %v1390
        %v1392 = vpop.f32.mrf.mxu0
        %1393 = vmatprep.mubr.f32.mxu0 0.0
        %1394 = vmatmul.mubr.f32.gmra.mxu0 %v1186
        %v1395 = vpop.f32.mrf.mxu0
        %v1396 = vadd.f32 0.0, %v1395
        %v1397 = vpop.f32.mrf.mxu0
        %1398 = vmatprep.mubr.f32.mxu0 0.0
        %1399 = vmatmul.mubr.f32.gmra.mxu0 %v1189
        %v1400 = vpop.f32.mrf.mxu0
        %v1401 = vadd.f32 0.0, %v1400
        %v1402 = vpop.f32.mrf.mxu0
        %1403 = vmatprep.mubr.f32.mxu0 0.0
        %1404 = vmatmul.mubr.f32.gmra.mxu0 %v1192
        %v1405 = vpop.f32.mrf.mxu0
        %v1406 = vadd.f32 0.0, %v1405
        %v1407 = vpop.f32.mrf.mxu0
        %1408 = vmatprep.mubr.f32.mxu0 0.0
        %1409 = vmatmul.mubr.f32.gmra.mxu0 %v1195
        %v1410 = vpop.f32.mrf.mxu0
        %v1411 = vadd.f32 0.0, %v1410
        %v1412 = vpop.f32.mrf.mxu0
        %1413 = vmatprep.mubr.f32.mxu0 0.0
        %1414 = vmatmul.mubr.f32.gmra.mxu0 %v1198
        %v1415 = vpop.f32.mrf.mxu0
        %v1416 = vadd.f32 0.0, %v1415
        %v1417 = vpop.f32.mrf.mxu0
        %1418 = vmatprep.mubr.f32.mxu0 0.0
        %1419 = vmatmul.mubr.f32.gmra.mxu0 %v1201
        %v1420 = vpop.f32.mrf.mxu0
        %v1421 = vadd.f32 0.0, %v1420
        %v1422 = vpop.f32.mrf.mxu0
        %1423 = vmatprep.mubr.f32.mxu0 0.0
        %1424 = vmatmul.mubr.f32.gmra.mxu0 %v1204
        %v1425 = vpop.f32.mrf.mxu0
        %v1426 = vadd.f32 0.0, %v1425
        %v1427 = vpop.f32.mrf.mxu0
        %1428 = vmatprep.mubr.f32.mxu0 0.0
        %1429 = vmatmul.mubr.f32.gmra.mxu0 %v1207
        %v1430 = vpop.f32.mrf.mxu0
        %v1431 = vadd.f32 0.0, %v1430
        %v1432 = vpop.f32.mrf.mxu0
        %1433 = vdwg.mxu0
        %v1434 = vmax.f32 %v922, %v1276
        %v1435 = vmax.f32 %v927, %v1281
        %v1436 = vmax.f32 %v932, %v1286
        %v1437 = vmax.f32 %v937, %v1291
        %v1438 = vmax.f32 %v942, %v1296
        %v1439 = vmax.f32 %v947, %v1301
        %v1440 = vmax.f32 %v952, %v1306
        %v1441 = vmax.f32 %v957, %v1311
        %v1442 = vmax.f32 %v962, %v1316
        %v1443 = vmax.f32 %v967, %v1321
        %v1444 = vmax.f32 %v972, %v1326
        %v1445 = vmax.f32 %v977, %v1331
        %v1446 = vmax.f32 %v982, %v1336
        %v1447 = vmax.f32 %v987, %v1341
        %v1448 = vmax.f32 %v992, %v1346
        %v1449 = vmax.f32 %v997, %v1351
        %v1450 = vmax.f32 %v1002, %v1356
        %v1451 = vmax.f32 %v1007, %v1361
        %v1452 = vmax.f32 %v1012, %v1366
        %v1453 = vmax.f32 %v1017, %v1371
        %v1454 = vmax.f32 %v1022, %v1376
        %v1455 = vmax.f32 %v1027, %v1381
        %v1456 = vmax.f32 %v1032, %v1386
        %v1457 = vmax.f32 %v1037, %v1391
        %v1458 = vmax.f32 %v1042, %v1396
        %v1459 = vmax.f32 %v1047, %v1401
        %v1460 = vmax.f32 %v1052, %v1406
        %v1461 = vmax.f32 %v1057, %v1411
        %v1462 = vmax.f32 %v1062, %v1416
        %v1463 = vmax.f32 %v1067, %v1421
        %v1464 = vmax.f32 %v1072, %v1426
        %v1465 = vmax.f32 %v1077, %v1431
        %s1466 = scalar_lea.vmem %s689, 512 [#allocation2]
        %v1467 = vld [vmem:[%s1466] sm:$0xff]
        %v1468 = vld [vmem:[%s1466 + $0x8] sm:$0xff]
        %v1469 = vld [vmem:[%s1466 + $0x10] sm:$0xff]
        %v1470 = vld [vmem:[%s1466 + $0x18] sm:$0xff]
        %v1471 = vld [vmem:[%s1466 + $0x20] sm:$0xff]
        %v1472 = vld [vmem:[%s1466 + $0x28] sm:$0xff]
        %v1473 = vld [vmem:[%s1466 + $0x30] sm:$0xff]
        %v1474 = vld [vmem:[%s1466 + $0x38] sm:$0xff]
        %v1475 = vld [vmem:[%s1466 + $0x40] sm:$0xff]
        %v1476 = vld [vmem:[%s1466 + $0x48] sm:$0xff]
        %v1477 = vld [vmem:[%s1466 + $0x50] sm:$0xff]
        %v1478 = vld [vmem:[%s1466 + $0x58] sm:$0xff]
        %v1479 = vld [vmem:[%s1466 + $0x60] sm:$0xff]
        %v1480 = vld [vmem:[%s1466 + $0x68] sm:$0xff]
        %v1481 = vld [vmem:[%s1466 + $0x70] sm:$0xff]
        %v1482 = vld [vmem:[%s1466 + $0x78] sm:$0xff]
        %v1483 = vld [vmem:[%s1466 + $0x80] sm:$0xff]
        %v1484 = vld [vmem:[%s1466 + $0x88] sm:$0xff]
        %v1485 = vld [vmem:[%s1466 + $0x90] sm:$0xff]
        %v1486 = vld [vmem:[%s1466 + $0x98] sm:$0xff]
        %v1487 = vld [vmem:[%s1466 + $0xa0] sm:$0xff]
        %v1488 = vld [vmem:[%s1466 + $0xa8] sm:$0xff]
        %v1489 = vld [vmem:[%s1466 + $0xb0] sm:$0xff]
        %v1490 = vld [vmem:[%s1466 + $0xb8] sm:$0xff]
        %v1491 = vld [vmem:[%s1466 + $0xc0] sm:$0xff]
        %v1492 = vld [vmem:[%s1466 + $0xc8] sm:$0xff]
        %v1493 = vld [vmem:[%s1466 + $0xd0] sm:$0xff]
        %v1494 = vld [vmem:[%s1466 + $0xd8] sm:$0xff]
        %v1495 = vld [vmem:[%s1466 + $0xe0] sm:$0xff]
        %v1496 = vld [vmem:[%s1466 + $0xe8] sm:$0xff]
        %v1497 = vld [vmem:[%s1466 + $0xf0] sm:$0xff]
        %v1498 = vld [vmem:[%s1466 + $0xf8] sm:$0xff]
        %v1500 = vsel %vm754, %v1467, 0
        %v1503 = vsel %vm754, %v1468, 0
        %v1506 = vsel %vm754, %v1469, 0
        %v1509 = vsel %vm754, %v1470, 0
        %v1512 = vsel %vm754, %v1471, 0
        %v1515 = vsel %vm754, %v1472, 0
        %v1518 = vsel %vm754, %v1473, 0
        %v1521 = vsel %vm754, %v1474, 0
        %v1524 = vsel %vm754, %v1475, 0
        %v1527 = vsel %vm754, %v1476, 0
        %v1530 = vsel %vm754, %v1477, 0
        %v1533 = vsel %vm754, %v1478, 0
        %v1536 = vsel %vm754, %v1479, 0
        %v1539 = vsel %vm754, %v1480, 0
        %v1542 = vsel %vm754, %v1481, 0
        %v1545 = vsel %vm754, %v1482, 0
        %v1548 = vsel %vm754, %v1483, 0
        %v1551 = vsel %vm754, %v1484, 0
        %v1554 = vsel %vm754, %v1485, 0
        %v1557 = vsel %vm754, %v1486, 0
        %v1560 = vsel %vm754, %v1487, 0
        %v1563 = vsel %vm754, %v1488, 0
        %v1566 = vsel %vm754, %v1489, 0
        %v1569 = vsel %vm754, %v1490, 0
        %v1572 = vsel %vm754, %v1491, 0
        %v1575 = vsel %vm754, %v1492, 0
        %v1578 = vsel %vm754, %v1493, 0
        %v1581 = vsel %vm754, %v1494, 0
        %v1584 = vsel %vm754, %v1495, 0
        %v1587 = vsel %vm754, %v1496, 0
        %v1590 = vsel %vm754, %v1497, 0
        %v1593 = vsel %vm754, %v1498, 0
        %1595 = vmatprep.subr.mxu0 0.0
        %1596 = vmatpush1.msra.mxu0 0.0
        %1597 = vmatprep.subr.mxu0 0.0
        %1598 = vmatpush1.msra.mxu0 0.0
        %1599 = vmatprep.subr.mxu0 0.0
        %1600 = vmatpush1.msra.mxu0 0.0
        %1601 = vmatprep.subr.mxu0 0.0
        %1602 = vmatpush1.msra.mxu0 0.0
        %1603 = vmatprep.subr.mxu0 0.0
        %1604 = vmatpush1.msra.mxu0 0.0
        %1605 = vmatprep.subr.mxu0 0.0
        %1606 = vmatpush1.msra.mxu0 0.0
        %1607 = vmatprep.subr.mxu0 0.0
        %1608 = vmatpush1.msra.mxu0 0.0
        %1609 = vmatprep.subr.mxu0 0.0
        %1610 = vmatpush1.msra.mxu0 0.0
        %1611 = vmatprep.subr.mxu0 0.0
        %1612 = vmatpush1.msra.mxu0 0.0
        %1613 = vmatprep.subr.mxu0 0.0
        %1614 = vmatpush1.msra.mxu0 0.0
        %1615 = vmatprep.subr.mxu0 0.0
        %1616 = vmatpush1.msra.mxu0 0.0
        %1617 = vmatprep.subr.mxu0 0.0
        %1618 = vmatpush1.msra.mxu0 %v853
        %1619 = vmatprep.subr.mxu0 0.0
        %1620 = vmatpush1.msra.mxu0 %v720
        %1621 = vmatprep.subr.mxu0 0.0
        %1622 = vmatpush1.msra.mxu0 %v719
        %1623 = vmatprep.subr.mxu0 0.0
        %1624 = vmatpush1.msra.mxu0 %v718
        %1625 = vmatprep.subr.mxu0 0.0
        %1626 = vmatpush1.msra.mxu0 %v717
        %1627 = vmatprep.subr.mxu0 0.0
        %1628 = vmatpush2.msra.mxu0 0.0
        %1629 = vmatprep.subr.mxu0 0.0
        %1630 = vmatpush2.msra.mxu0 0.0
        %1631 = vmatprep.subr.mxu0 0.0
        %1632 = vmatpush2.msra.mxu0 0.0
        %1633 = vmatprep.subr.mxu0 0.0
        %1634 = vmatpush2.msra.mxu0 0.0
        %1635 = vmatprep.subr.mxu0 0.0
        %1636 = vmatpush2.msra.mxu0 0.0
        %1637 = vmatprep.subr.mxu0 0.0
        %1638 = vmatpush2.msra.mxu0 0.0
        %1639 = vmatprep.subr.mxu0 0.0
        %1640 = vmatpush2.msra.mxu0 0.0
        %1641 = vmatprep.subr.mxu0 0.0
        %1642 = vmatpush2.msra.mxu0 0.0
        %1643 = vmatprep.subr.mxu0 0.0
        %1644 = vmatpush2.msra.mxu0 0.0
        %1645 = vmatprep.subr.mxu0 0.0
        %1646 = vmatpush2.msra.mxu0 0.0
        %1647 = vmatprep.subr.mxu0 0.0
        %1648 = vmatpush2.msra.mxu0 0.0
        %1649 = vmatprep.subr.mxu0 0.0
        %1650 = vmatpush2.msra.mxu0 0.0
        %1651 = vmatprep.subr.mxu0 0.0
        %1652 = vmatpush2.msra.mxu0 0.0
        %1653 = vmatprep.subr.mxu0 0.0
        %1654 = vmatpush2.msra.mxu0 0.0
        %1655 = vmatprep.subr.mxu0 0.0
        %1656 = vmatpush2.msra.mxu0 0.0
        %1657 = vmatprep.subr.mxu0 0.0
        %1658 = vmatpush2.msra.mxu0 0.0
        %1659 = vmatprep.mubr.f32.mxu0 0.0
        %1660 = vmatmul.mubr.f32.gmra.mxu0 %v1500
        %v1661 = vpop.f32.mrf.mxu0
        %v1662 = vadd.f32 0.0, %v1661
        %v1663 = vpop.f32.mrf.mxu0
        %1664 = vmatprep.mubr.f32.mxu0 0.0
        %1665 = vmatmul.mubr.f32.gmra.mxu0 %v1503
        %v1666 = vpop.f32.mrf.mxu0
        %v1667 = vadd.f32 0.0, %v1666
        %v1668 = vpop.f32.mrf.mxu0
        %1669 = vmatprep.mubr.f32.mxu0 0.0
        %1670 = vmatmul.mubr.f32.gmra.mxu0 %v1506
        %v1671 = vpop.f32.mrf.mxu0
        %v1672 = vadd.f32 0.0, %v1671
        %v1673 = vpop.f32.mrf.mxu0
        %1674 = vmatprep.mubr.f32.mxu0 0.0
        %1675 = vmatmul.mubr.f32.gmra.mxu0 %v1509
        %v1676 = vpop.f32.mrf.mxu0
        %v1677 = vadd.f32 0.0, %v1676
        %v1678 = vpop.f32.mrf.mxu0
        %1679 = vmatprep.mubr.f32.mxu0 0.0
        %1680 = vmatmul.mubr.f32.gmra.mxu0 %v1512
        %v1681 = vpop.f32.mrf.mxu0
        %v1682 = vadd.f32 0.0, %v1681
        %v1683 = vpop.f32.mrf.mxu0
        %1684 = vmatprep.mubr.f32.mxu0 0.0
        %1685 = vmatmul.mubr.f32.gmra.mxu0 %v1515
        %v1686 = vpop.f32.mrf.mxu0
        %v1687 = vadd.f32 0.0, %v1686
        %v1688 = vpop.f32.mrf.mxu0
        %1689 = vmatprep.mubr.f32.mxu0 0.0
        %1690 = vmatmul.mubr.f32.gmra.mxu0 %v1518
        %v1691 = vpop.f32.mrf.mxu0
        %v1692 = vadd.f32 0.0, %v1691
        %v1693 = vpop.f32.mrf.mxu0
        %1694 = vmatprep.mubr.f32.mxu0 0.0
        %1695 = vmatmul.mubr.f32.gmra.mxu0 %v1521
        %v1696 = vpop.f32.mrf.mxu0
        %v1697 = vadd.f32 0.0, %v1696
        %v1698 = vpop.f32.mrf.mxu0
        %1699 = vmatprep.mubr.f32.mxu0 0.0
        %1700 = vmatmul.mubr.f32.gmra.mxu0 %v1524
        %v1701 = vpop.f32.mrf.mxu0
        %v1702 = vadd.f32 0.0, %v1701
        %v1703 = vpop.f32.mrf.mxu0
        %1704 = vmatprep.mubr.f32.mxu0 0.0
        %1705 = vmatmul.mubr.f32.gmra.mxu0 %v1527
        %v1706 = vpop.f32.mrf.mxu0
        %v1707 = vadd.f32 0.0, %v1706
        %v1708 = vpop.f32.mrf.mxu0
        %1709 = vmatprep.mubr.f32.mxu0 0.0
        %1710 = vmatmul.mubr.f32.gmra.mxu0 %v1530
        %v1711 = vpop.f32.mrf.mxu0
        %v1712 = vadd.f32 0.0, %v1711
        %v1713 = vpop.f32.mrf.mxu0
        %1714 = vmatprep.mubr.f32.mxu0 0.0
        %1715 = vmatmul.mubr.f32.gmra.mxu0 %v1533
        %v1716 = vpop.f32.mrf.mxu0
        %v1717 = vadd.f32 0.0, %v1716
        %v1718 = vpop.f32.mrf.mxu0
        %1719 = vmatprep.mubr.f32.mxu0 0.0
        %1720 = vmatmul.mubr.f32.gmra.mxu0 %v1536
        %v1721 = vpop.f32.mrf.mxu0
        %v1722 = vadd.f32 0.0, %v1721
        %v1723 = vpop.f32.mrf.mxu0
        %1724 = vmatprep.mubr.f32.mxu0 0.0
        %1725 = vmatmul.mubr.f32.gmra.mxu0 %v1539
        %v1726 = vpop.f32.mrf.mxu0
        %v1727 = vadd.f32 0.0, %v1726
        %v1728 = vpop.f32.mrf.mxu0
        %1729 = vmatprep.mubr.f32.mxu0 0.0
        %1730 = vmatmul.mubr.f32.gmra.mxu0 %v1542
        %v1731 = vpop.f32.mrf.mxu0
        %v1732 = vadd.f32 0.0, %v1731
        %v1733 = vpop.f32.mrf.mxu0
        %1734 = vmatprep.mubr.f32.mxu0 0.0
        %1735 = vmatmul.mubr.f32.gmra.mxu0 %v1545
        %v1736 = vpop.f32.mrf.mxu0
        %v1737 = vadd.f32 0.0, %v1736
        %v1738 = vpop.f32.mrf.mxu0
        %1739 = vmatprep.mubr.f32.mxu0 0.0
        %1740 = vmatmul.mubr.f32.gmra.mxu0 %v1548
        %v1741 = vpop.f32.mrf.mxu0
        %v1742 = vadd.f32 0.0, %v1741
        %v1743 = vpop.f32.mrf.mxu0
        %1744 = vmatprep.mubr.f32.mxu0 0.0
        %1745 = vmatmul.mubr.f32.gmra.mxu0 %v1551
        %v1746 = vpop.f32.mrf.mxu0
        %v1747 = vadd.f32 0.0, %v1746
        %v1748 = vpop.f32.mrf.mxu0
        %1749 = vmatprep.mubr.f32.mxu0 0.0
        %1750 = vmatmul.mubr.f32.gmra.mxu0 %v1554
        %v1751 = vpop.f32.mrf.mxu0
        %v1752 = vadd.f32 0.0, %v1751
        %v1753 = vpop.f32.mrf.mxu0
        %1754 = vmatprep.mubr.f32.mxu0 0.0
        %1755 = vmatmul.mubr.f32.gmra.mxu0 %v1557
        %v1756 = vpop.f32.mrf.mxu0
        %v1757 = vadd.f32 0.0, %v1756
        %v1758 = vpop.f32.mrf.mxu0
        %1759 = vmatprep.mubr.f32.mxu0 0.0
        %1760 = vmatmul.mubr.f32.gmra.mxu0 %v1560
        %v1761 = vpop.f32.mrf.mxu0
        %v1762 = vadd.f32 0.0, %v1761
        %v1763 = vpop.f32.mrf.mxu0
        %1764 = vmatprep.mubr.f32.mxu0 0.0
        %1765 = vmatmul.mubr.f32.gmra.mxu0 %v1563
        %v1766 = vpop.f32.mrf.mxu0
        %v1767 = vadd.f32 0.0, %v1766
        %v1768 = vpop.f32.mrf.mxu0
        %1769 = vmatprep.mubr.f32.mxu0 0.0
        %1770 = vmatmul.mubr.f32.gmra.mxu0 %v1566
        %v1771 = vpop.f32.mrf.mxu0
        %v1772 = vadd.f32 0.0, %v1771
        %v1773 = vpop.f32.mrf.mxu0
        %1774 = vmatprep.mubr.f32.mxu0 0.0
        %1775 = vmatmul.mubr.f32.gmra.mxu0 %v1569
        %v1776 = vpop.f32.mrf.mxu0
        %v1777 = vadd.f32 0.0, %v1776
        %v1778 = vpop.f32.mrf.mxu0
        %1779 = vmatprep.mubr.f32.mxu0 0.0
        %1780 = vmatmul.mubr.f32.gmra.mxu0 %v1572
        %v1781 = vpop.f32.mrf.mxu0
        %v1782 = vadd.f32 0.0, %v1781
        %v1783 = vpop.f32.mrf.mxu0
        %1784 = vmatprep.mubr.f32.mxu0 0.0
        %1785 = vmatmul.mubr.f32.gmra.mxu0 %v1575
        %v1786 = vpop.f32.mrf.mxu0
        %v1787 = vadd.f32 0.0, %v1786
        %v1788 = vpop.f32.mrf.mxu0
        %1789 = vmatprep.mubr.f32.mxu0 0.0
        %1790 = vmatmul.mubr.f32.gmra.mxu0 %v1578
        %v1791 = vpop.f32.mrf.mxu0
        %v1792 = vadd.f32 0.0, %v1791
        %v1793 = vpop.f32.mrf.mxu0
        %1794 = vmatprep.mubr.f32.mxu0 0.0
        %1795 = vmatmul.mubr.f32.gmra.mxu0 %v1581
        %v1796 = vpop.f32.mrf.mxu0
        %v1797 = vadd.f32 0.0, %v1796
        %v1798 = vpop.f32.mrf.mxu0
        %1799 = vmatprep.mubr.f32.mxu0 0.0
        %1800 = vmatmul.mubr.f32.gmra.mxu0 %v1584
        %v1801 = vpop.f32.mrf.mxu0
        %v1802 = vadd.f32 0.0, %v1801
        %v1803 = vpop.f32.mrf.mxu0
        %1804 = vmatprep.mubr.f32.mxu0 0.0
        %1805 = vmatmul.mubr.f32.gmra.mxu0 %v1587
        %v1806 = vpop.f32.mrf.mxu0
        %v1807 = vadd.f32 0.0, %v1806
        %v1808 = vpop.f32.mrf.mxu0
        %1809 = vmatprep.mubr.f32.mxu0 0.0
        %1810 = vmatmul.mubr.f32.gmra.mxu0 %v1590
        %v1811 = vpop.f32.mrf.mxu0
        %v1812 = vadd.f32 0.0, %v1811
        %v1813 = vpop.f32.mrf.mxu0
        %1814 = vmatprep.mubr.f32.mxu0 0.0
        %1815 = vmatmul.mubr.f32.gmra.mxu0 %v1593
        %v1816 = vpop.f32.mrf.mxu0
        %v1817 = vadd.f32 0.0, %v1816
        %v1818 = vpop.f32.mrf.mxu0
        %1819 = vdwg.mxu0
        %v1820 = vmax.f32 %v1434, %v1662
        %v1821 = vmax.f32 %v1435, %v1667
        %v1822 = vmax.f32 %v1436, %v1672
        %v1823 = vmax.f32 %v1437, %v1677
        %v1824 = vmax.f32 %v1438, %v1682
        %v1825 = vmax.f32 %v1439, %v1687
        %v1826 = vmax.f32 %v1440, %v1692
        %v1827 = vmax.f32 %v1441, %v1697
        %v1828 = vmax.f32 %v1442, %v1702
        %v1829 = vmax.f32 %v1443, %v1707
        %v1830 = vmax.f32 %v1444, %v1712
        %v1831 = vmax.f32 %v1445, %v1717
        %v1832 = vmax.f32 %v1446, %v1722
        %v1833 = vmax.f32 %v1447, %v1727
        %v1834 = vmax.f32 %v1448, %v1732
        %v1835 = vmax.f32 %v1449, %v1737
        %v1836 = vmax.f32 %v1450, %v1742
        %v1837 = vmax.f32 %v1451, %v1747
        %v1838 = vmax.f32 %v1452, %v1752
        %v1839 = vmax.f32 %v1453, %v1757
        %v1840 = vmax.f32 %v1454, %v1762
        %v1841 = vmax.f32 %v1455, %v1767
        %v1842 = vmax.f32 %v1456, %v1772
        %v1843 = vmax.f32 %v1457, %v1777
        %v1844 = vmax.f32 %v1458, %v1782
        %v1845 = vmax.f32 %v1459, %v1787
        %v1846 = vmax.f32 %v1460, %v1792
        %v1847 = vmax.f32 %v1461, %v1797
        %v1848 = vmax.f32 %v1462, %v1802
        %v1849 = vmax.f32 %v1463, %v1807
        %v1850 = vmax.f32 %v1464, %v1812
        %v1851 = vmax.f32 %v1465, %v1817
        %s1852 = scalar_lea.vmem %s689, 768 [#allocation2]
        %v1853 = vld [vmem:[%s1852] sm:$0xff]
        %v1854 = vld [vmem:[%s1852 + $0x8] sm:$0xff]
        %v1855 = vld [vmem:[%s1852 + $0x10] sm:$0xff]
        %v1856 = vld [vmem:[%s1852 + $0x18] sm:$0xff]
        %v1857 = vld [vmem:[%s1852 + $0x20] sm:$0xff]
        %v1858 = vld [vmem:[%s1852 + $0x28] sm:$0xff]
        %v1859 = vld [vmem:[%s1852 + $0x30] sm:$0xff]
        %v1860 = vld [vmem:[%s1852 + $0x38] sm:$0xff]
        %v1861 = vld [vmem:[%s1852 + $0x40] sm:$0xff]
        %v1862 = vld [vmem:[%s1852 + $0x48] sm:$0xff]
        %v1863 = vld [vmem:[%s1852 + $0x50] sm:$0xff]
        %v1864 = vld [vmem:[%s1852 + $0x58] sm:$0xff]
        %v1865 = vld [vmem:[%s1852 + $0x60] sm:$0xff]
        %v1866 = vld [vmem:[%s1852 + $0x68] sm:$0xff]
        %v1867 = vld [vmem:[%s1852 + $0x70] sm:$0xff]
        %v1868 = vld [vmem:[%s1852 + $0x78] sm:$0xff]
        %v1869 = vld [vmem:[%s1852 + $0x80] sm:$0xff]
        %v1870 = vld [vmem:[%s1852 + $0x88] sm:$0xff]
        %v1871 = vld [vmem:[%s1852 + $0x90] sm:$0xff]
        %v1872 = vld [vmem:[%s1852 + $0x98] sm:$0xff]
        %v1873 = vld [vmem:[%s1852 + $0xa0] sm:$0xff]
        %v1874 = vld [vmem:[%s1852 + $0xa8] sm:$0xff]
        %v1875 = vld [vmem:[%s1852 + $0xb0] sm:$0xff]
        %v1876 = vld [vmem:[%s1852 + $0xb8] sm:$0xff]
        %v1877 = vld [vmem:[%s1852 + $0xc0] sm:$0xff]
        %v1878 = vld [vmem:[%s1852 + $0xc8] sm:$0xff]
        %v1879 = vld [vmem:[%s1852 + $0xd0] sm:$0xff]
        %v1880 = vld [vmem:[%s1852 + $0xd8] sm:$0xff]
        %v1881 = vld [vmem:[%s1852 + $0xe0] sm:$0xff]
        %v1882 = vld [vmem:[%s1852 + $0xe8] sm:$0xff]
        %v1883 = vld [vmem:[%s1852 + $0xf0] sm:$0xff]
        %v1884 = vld [vmem:[%s1852 + $0xf8] sm:$0xff]
        %v1886 = vsel %vm754, %v1853, 0
        %v1889 = vsel %vm754, %v1854, 0
        %v1892 = vsel %vm754, %v1855, 0
        %v1895 = vsel %vm754, %v1856, 0
        %v1898 = vsel %vm754, %v1857, 0
        %v1901 = vsel %vm754, %v1858, 0
        %v1904 = vsel %vm754, %v1859, 0
        %v1907 = vsel %vm754, %v1860, 0
        %v1910 = vsel %vm754, %v1861, 0
        %v1913 = vsel %vm754, %v1862, 0
        %v1916 = vsel %vm754, %v1863, 0
        %v1919 = vsel %vm754, %v1864, 0
        %v1922 = vsel %vm754, %v1865, 0
        %v1925 = vsel %vm754, %v1866, 0
        %v1928 = vsel %vm754, %v1867, 0
        %v1931 = vsel %vm754, %v1868, 0
        %v1934 = vsel %vm754, %v1869, 0
        %v1937 = vsel %vm754, %v1870, 0
        %v1940 = vsel %vm754, %v1871, 0
        %v1943 = vsel %vm754, %v1872, 0
        %v1946 = vsel %vm754, %v1873, 0
        %v1949 = vsel %vm754, %v1874, 0
        %v1952 = vsel %vm754, %v1875, 0
        %v1955 = vsel %vm754, %v1876, 0
        %v1958 = vsel %vm754, %v1877, 0
        %v1961 = vsel %vm754, %v1878, 0
        %v1964 = vsel %vm754, %v1879, 0
        %v1967 = vsel %vm754, %v1880, 0
        %v1970 = vsel %vm754, %v1881, 0
        %v1973 = vsel %vm754, %v1882, 0
        %v1976 = vsel %vm754, %v1883, 0
        %v1979 = vsel %vm754, %v1884, 0
        %1981 = vmatprep.subr.mxu0 0.0
        %1982 = vmatpush1.msra.mxu0 0.0
        %1983 = vmatprep.subr.mxu0 0.0
        %1984 = vmatpush1.msra.mxu0 0.0
        %1985 = vmatprep.subr.mxu0 0.0
        %1986 = vmatpush1.msra.mxu0 0.0
        %1987 = vmatprep.subr.mxu0 0.0
        %1988 = vmatpush1.msra.mxu0 0.0
        %1989 = vmatprep.subr.mxu0 0.0
        %1990 = vmatpush1.msra.mxu0 0.0
        %1991 = vmatprep.subr.mxu0 0.0
        %1992 = vmatpush1.msra.mxu0 0.0
        %1993 = vmatprep.subr.mxu0 0.0
        %1994 = vmatpush1.msra.mxu0 0.0
        %1995 = vmatprep.subr.mxu0 0.0
        %1996 = vmatpush1.msra.mxu0 0.0
        %1997 = vmatprep.subr.mxu0 0.0
        %1998 = vmatpush1.msra.mxu0 0.0
        %1999 = vmatprep.subr.mxu0 0.0
        %2000 = vmatpush1.msra.mxu0 0.0
        %2001 = vmatprep.subr.mxu0 0.0
        %2002 = vmatpush1.msra.mxu0 0.0
        %2003 = vmatprep.subr.mxu0 0.0
        %2004 = vmatpush1.msra.mxu0 %v853
        %2005 = vmatprep.subr.mxu0 0.0
        %2006 = vmatpush1.msra.mxu0 %v720
        %2007 = vmatprep.subr.mxu0 0.0
        %2008 = vmatpush1.msra.mxu0 %v719
        %2009 = vmatprep.subr.mxu0 0.0
        %2010 = vmatpush1.msra.mxu0 %v718
        %2011 = vmatprep.subr.mxu0 0.0
        %2012 = vmatpush1.msra.mxu0 %v717
        %2013 = vmatprep.subr.mxu0 0.0
        %2014 = vmatpush2.msra.mxu0 0.0
        %2015 = vmatprep.subr.mxu0 0.0
        %2016 = vmatpush2.msra.mxu0 0.0
        %2017 = vmatprep.subr.mxu0 0.0
        %2018 = vmatpush2.msra.mxu0 0.0
        %2019 = vmatprep.subr.mxu0 0.0
        %2020 = vmatpush2.msra.mxu0 0.0
        %2021 = vmatprep.subr.mxu0 0.0
        %2022 = vmatpush2.msra.mxu0 0.0
        %2023 = vmatprep.subr.mxu0 0.0
        %2024 = vmatpush2.msra.mxu0 0.0
        %2025 = vmatprep.subr.mxu0 0.0
        %2026 = vmatpush2.msra.mxu0 0.0
        %2027 = vmatprep.subr.mxu0 0.0
        %2028 = vmatpush2.msra.mxu0 0.0
        %2029 = vmatprep.subr.mxu0 0.0
        %2030 = vmatpush2.msra.mxu0 0.0
        %2031 = vmatprep.subr.mxu0 0.0
        %2032 = vmatpush2.msra.mxu0 0.0
        %2033 = vmatprep.subr.mxu0 0.0
        %2034 = vmatpush2.msra.mxu0 0.0
        %2035 = vmatprep.subr.mxu0 0.0
        %2036 = vmatpush2.msra.mxu0 0.0
        %2037 = vmatprep.subr.mxu0 0.0
        %2038 = vmatpush2.msra.mxu0 0.0
        %2039 = vmatprep.subr.mxu0 0.0
        %2040 = vmatpush2.msra.mxu0 0.0
        %2041 = vmatprep.subr.mxu0 0.0
        %2042 = vmatpush2.msra.mxu0 0.0
        %2043 = vmatprep.subr.mxu0 0.0
        %2044 = vmatpush2.msra.mxu0 0.0
        %2045 = vmatprep.mubr.f32.mxu0 0.0
        %2046 = vmatmul.mubr.f32.gmra.mxu0 %v1886
        %v2047 = vpop.f32.mrf.mxu0
        %v2048 = vadd.f32 0.0, %v2047
        %v2049 = vpop.f32.mrf.mxu0
        %2050 = vmatprep.mubr.f32.mxu0 0.0
        %2051 = vmatmul.mubr.f32.gmra.mxu0 %v1889
        %v2052 = vpop.f32.mrf.mxu0
        %v2053 = vadd.f32 0.0, %v2052
        %v2054 = vpop.f32.mrf.mxu0
        %2055 = vmatprep.mubr.f32.mxu0 0.0
        %2056 = vmatmul.mubr.f32.gmra.mxu0 %v1892
        %v2057 = vpop.f32.mrf.mxu0
        %v2058 = vadd.f32 0.0, %v2057
        %v2059 = vpop.f32.mrf.mxu0
        %2060 = vmatprep.mubr.f32.mxu0 0.0
        %2061 = vmatmul.mubr.f32.gmra.mxu0 %v1895
        %v2062 = vpop.f32.mrf.mxu0
        %v2063 = vadd.f32 0.0, %v2062
        %v2064 = vpop.f32.mrf.mxu0
        %2065 = vmatprep.mubr.f32.mxu0 0.0
        %2066 = vmatmul.mubr.f32.gmra.mxu0 %v1898
        %v2067 = vpop.f32.mrf.mxu0
        %v2068 = vadd.f32 0.0, %v2067
        %v2069 = vpop.f32.mrf.mxu0
        %2070 = vmatprep.mubr.f32.mxu0 0.0
        %2071 = vmatmul.mubr.f32.gmra.mxu0 %v1901
        %v2072 = vpop.f32.mrf.mxu0
        %v2073 = vadd.f32 0.0, %v2072
        %v2074 = vpop.f32.mrf.mxu0
        %2075 = vmatprep.mubr.f32.mxu0 0.0
        %2076 = vmatmul.mubr.f32.gmra.mxu0 %v1904
        %v2077 = vpop.f32.mrf.mxu0
        %v2078 = vadd.f32 0.0, %v2077
        %v2079 = vpop.f32.mrf.mxu0
        %2080 = vmatprep.mubr.f32.mxu0 0.0
        %2081 = vmatmul.mubr.f32.gmra.mxu0 %v1907
        %v2082 = vpop.f32.mrf.mxu0
        %v2083 = vadd.f32 0.0, %v2082
        %v2084 = vpop.f32.mrf.mxu0
        %2085 = vmatprep.mubr.f32.mxu0 0.0
        %2086 = vmatmul.mubr.f32.gmra.mxu0 %v1910
        %v2087 = vpop.f32.mrf.mxu0
        %v2088 = vadd.f32 0.0, %v2087
        %v2089 = vpop.f32.mrf.mxu0
        %2090 = vmatprep.mubr.f32.mxu0 0.0
        %2091 = vmatmul.mubr.f32.gmra.mxu0 %v1913
        %v2092 = vpop.f32.mrf.mxu0
        %v2093 = vadd.f32 0.0, %v2092
        %v2094 = vpop.f32.mrf.mxu0
        %2095 = vmatprep.mubr.f32.mxu0 0.0
        %2096 = vmatmul.mubr.f32.gmra.mxu0 %v1916
        %v2097 = vpop.f32.mrf.mxu0
        %v2098 = vadd.f32 0.0, %v2097
        %v2099 = vpop.f32.mrf.mxu0
        %2100 = vmatprep.mubr.f32.mxu0 0.0
        %2101 = vmatmul.mubr.f32.gmra.mxu0 %v1919
        %v2102 = vpop.f32.mrf.mxu0
        %v2103 = vadd.f32 0.0, %v2102
        %v2104 = vpop.f32.mrf.mxu0
        %2105 = vmatprep.mubr.f32.mxu0 0.0
        %2106 = vmatmul.mubr.f32.gmra.mxu0 %v1922
        %v2107 = vpop.f32.mrf.mxu0
        %v2108 = vadd.f32 0.0, %v2107
        %v2109 = vpop.f32.mrf.mxu0
        %2110 = vmatprep.mubr.f32.mxu0 0.0
        %2111 = vmatmul.mubr.f32.gmra.mxu0 %v1925
        %v2112 = vpop.f32.mrf.mxu0
        %v2113 = vadd.f32 0.0, %v2112
        %v2114 = vpop.f32.mrf.mxu0
        %2115 = vmatprep.mubr.f32.mxu0 0.0
        %2116 = vmatmul.mubr.f32.gmra.mxu0 %v1928
        %v2117 = vpop.f32.mrf.mxu0
        %v2118 = vadd.f32 0.0, %v2117
        %v2119 = vpop.f32.mrf.mxu0
        %2120 = vmatprep.mubr.f32.mxu0 0.0
        %2121 = vmatmul.mubr.f32.gmra.mxu0 %v1931
        %v2122 = vpop.f32.mrf.mxu0
        %v2123 = vadd.f32 0.0, %v2122
        %v2124 = vpop.f32.mrf.mxu0
        %2125 = vmatprep.mubr.f32.mxu0 0.0
        %2126 = vmatmul.mubr.f32.gmra.mxu0 %v1934
        %v2127 = vpop.f32.mrf.mxu0
        %v2128 = vadd.f32 0.0, %v2127
        %v2129 = vpop.f32.mrf.mxu0
        %2130 = vmatprep.mubr.f32.mxu0 0.0
        %2131 = vmatmul.mubr.f32.gmra.mxu0 %v1937
        %v2132 = vpop.f32.mrf.mxu0
        %v2133 = vadd.f32 0.0, %v2132
        %v2134 = vpop.f32.mrf.mxu0
        %2135 = vmatprep.mubr.f32.mxu0 0.0
        %2136 = vmatmul.mubr.f32.gmra.mxu0 %v1940
        %v2137 = vpop.f32.mrf.mxu0
        %v2138 = vadd.f32 0.0, %v2137
        %v2139 = vpop.f32.mrf.mxu0
        %2140 = vmatprep.mubr.f32.mxu0 0.0
        %2141 = vmatmul.mubr.f32.gmra.mxu0 %v1943
        %v2142 = vpop.f32.mrf.mxu0
        %v2143 = vadd.f32 0.0, %v2142
        %v2144 = vpop.f32.mrf.mxu0
        %2145 = vmatprep.mubr.f32.mxu0 0.0
        %2146 = vmatmul.mubr.f32.gmra.mxu0 %v1946
        %v2147 = vpop.f32.mrf.mxu0
        %v2148 = vadd.f32 0.0, %v2147
        %v2149 = vpop.f32.mrf.mxu0
        %2150 = vmatprep.mubr.f32.mxu0 0.0
        %2151 = vmatmul.mubr.f32.gmra.mxu0 %v1949
        %v2152 = vpop.f32.mrf.mxu0
        %v2153 = vadd.f32 0.0, %v2152
        %v2154 = vpop.f32.mrf.mxu0
        %2155 = vmatprep.mubr.f32.mxu0 0.0
        %2156 = vmatmul.mubr.f32.gmra.mxu0 %v1952
        %v2157 = vpop.f32.mrf.mxu0
        %v2158 = vadd.f32 0.0, %v2157
        %v2159 = vpop.f32.mrf.mxu0
        %2160 = vmatprep.mubr.f32.mxu0 0.0
        %2161 = vmatmul.mubr.f32.gmra.mxu0 %v1955
        %v2162 = vpop.f32.mrf.mxu0
        %v2163 = vadd.f32 0.0, %v2162
        %v2164 = vpop.f32.mrf.mxu0
        %2165 = vmatprep.mubr.f32.mxu0 0.0
        %2166 = vmatmul.mubr.f32.gmra.mxu0 %v1958
        %v2167 = vpop.f32.mrf.mxu0
        %v2168 = vadd.f32 0.0, %v2167
        %v2169 = vpop.f32.mrf.mxu0
        %2170 = vmatprep.mubr.f32.mxu0 0.0
        %2171 = vmatmul.mubr.f32.gmra.mxu0 %v1961
        %v2172 = vpop.f32.mrf.mxu0
        %v2173 = vadd.f32 0.0, %v2172
        %v2174 = vpop.f32.mrf.mxu0
        %2175 = vmatprep.mubr.f32.mxu0 0.0
        %2176 = vmatmul.mubr.f32.gmra.mxu0 %v1964
        %v2177 = vpop.f32.mrf.mxu0
        %v2178 = vadd.f32 0.0, %v2177
        %v2179 = vpop.f32.mrf.mxu0
        %2180 = vmatprep.mubr.f32.mxu0 0.0
        %2181 = vmatmul.mubr.f32.gmra.mxu0 %v1967
        %v2182 = vpop.f32.mrf.mxu0
        %v2183 = vadd.f32 0.0, %v2182
        %v2184 = vpop.f32.mrf.mxu0
        %2185 = vmatprep.mubr.f32.mxu0 0.0
        %2186 = vmatmul.mubr.f32.gmra.mxu0 %v1970
        %v2187 = vpop.f32.mrf.mxu0
        %v2188 = vadd.f32 0.0, %v2187
        %v2189 = vpop.f32.mrf.mxu0
        %2190 = vmatprep.mubr.f32.mxu0 0.0
        %2191 = vmatmul.mubr.f32.gmra.mxu0 %v1973
        %v2192 = vpop.f32.mrf.mxu0
        %v2193 = vadd.f32 0.0, %v2192
        %v2194 = vpop.f32.mrf.mxu0
        %2195 = vmatprep.mubr.f32.mxu0 0.0
        %2196 = vmatmul.mubr.f32.gmra.mxu0 %v1976
        %v2197 = vpop.f32.mrf.mxu0
        %v2198 = vadd.f32 0.0, %v2197
        %v2199 = vpop.f32.mrf.mxu0
        %2200 = vmatprep.mubr.f32.mxu0 0.0
        %2201 = vmatmul.mubr.f32.gmra.mxu0 %v1979
        %v2202 = vpop.f32.mrf.mxu0
        %v2203 = vadd.f32 0.0, %v2202
        %v2204 = vpop.f32.mrf.mxu0
        %2205 = vdwg.mxu0
        %v2206 = vmax.f32 %v1820, %v2048
        %v2207 = vmax.f32 %v1821, %v2053
        %v2208 = vmax.f32 %v1822, %v2058
        %v2209 = vmax.f32 %v1823, %v2063
        %v2210 = vmax.f32 %v1824, %v2068
        %v2211 = vmax.f32 %v1825, %v2073
        %v2212 = vmax.f32 %v1826, %v2078
        %v2213 = vmax.f32 %v1827, %v2083
        %v2214 = vmax.f32 %v1828, %v2088
        %v2215 = vmax.f32 %v1829, %v2093
        %v2216 = vmax.f32 %v1830, %v2098
        %v2217 = vmax.f32 %v1831, %v2103
        %v2218 = vmax.f32 %v1832, %v2108
        %v2219 = vmax.f32 %v1833, %v2113
        %v2220 = vmax.f32 %v1834, %v2118
        %v2221 = vmax.f32 %v1835, %v2123
        %v2222 = vmax.f32 %v1836, %v2128
        %v2223 = vmax.f32 %v1837, %v2133
        %v2224 = vmax.f32 %v1838, %v2138
        %v2225 = vmax.f32 %v1839, %v2143
        %v2226 = vmax.f32 %v1840, %v2148
        %v2227 = vmax.f32 %v1841, %v2153
        %v2228 = vmax.f32 %v1842, %v2158
        %v2229 = vmax.f32 %v1843, %v2163
        %v2230 = vmax.f32 %v1844, %v2168
        %v2231 = vmax.f32 %v1845, %v2173
        %v2232 = vmax.f32 %v1846, %v2178
        %v2233 = vmax.f32 %v1847, %v2183
        %v2234 = vmax.f32 %v1848, %v2188
        %v2235 = vmax.f32 %v1849, %v2193
        %v2236 = vmax.f32 %v1850, %v2198
        %v2237 = vmax.f32 %v1851, %v2203
        %v2238 = vld [vmem:[%s2] sm:$0x1]
        %v2240 = vlaneseq
        %v2241 = vshrl.u32 %v2240, 7
        %v2242 = vsub.s32 0, %v2241
        %v2243 = vrot.slane %v2238, %v2242
        %v2245 = vadd.f32 %v2206, %v2243
        %v2246 = vadd.f32 %v2207, %v2243
        %v2247 = vadd.f32 %v2208, %v2243
        %v2248 = vadd.f32 %v2209, %v2243
        %v2249 = vadd.f32 %v2210, %v2243
        %v2250 = vadd.f32 %v2211, %v2243
        %v2251 = vadd.f32 %v2212, %v2243
        %v2252 = vadd.f32 %v2213, %v2243
        %v2253 = vadd.f32 %v2214, %v2243
        %v2254 = vadd.f32 %v2215, %v2243
        %v2255 = vadd.f32 %v2216, %v2243
        %v2256 = vadd.f32 %v2217, %v2243
        %v2257 = vadd.f32 %v2218, %v2243
        %v2258 = vadd.f32 %v2219, %v2243
        %v2259 = vadd.f32 %v2220, %v2243
        %v2260 = vadd.f32 %v2221, %v2243
        %v2261 = vadd.f32 %v2222, %v2243
        %v2262 = vadd.f32 %v2223, %v2243
        %v2263 = vadd.f32 %v2224, %v2243
        %v2264 = vadd.f32 %v2225, %v2243
        %v2265 = vadd.f32 %v2226, %v2243
        %v2266 = vadd.f32 %v2227, %v2243
        %v2267 = vadd.f32 %v2228, %v2243
        %v2268 = vadd.f32 %v2229, %v2243
        %v2269 = vadd.f32 %v2230, %v2243
        %v2270 = vadd.f32 %v2231, %v2243
        %v2271 = vadd.f32 %v2232, %v2243
        %v2272 = vadd.f32 %v2233, %v2243
        %v2273 = vadd.f32 %v2234, %v2243
        %v2274 = vadd.f32 %v2235, %v2243
        %v2275 = vadd.f32 %v2236, %v2243
        %v2276 = vadd.f32 %v2237, %v2243
        %v2277 = vmax.f32 %v2245, 0.0
        %v2278 = vmax.f32 %v2246, 0.0
        %v2279 = vmax.f32 %v2247, 0.0
        %v2280 = vmax.f32 %v2248, 0.0
        %v2281 = vmax.f32 %v2249, 0.0
        %v2282 = vmax.f32 %v2250, 0.0
        %v2283 = vmax.f32 %v2251, 0.0
        %v2284 = vmax.f32 %v2252, 0.0
        %v2285 = vmax.f32 %v2253, 0.0
        %v2286 = vmax.f32 %v2254, 0.0
        %v2287 = vmax.f32 %v2255, 0.0
        %v2288 = vmax.f32 %v2256, 0.0
        %v2289 = vmax.f32 %v2257, 0.0
        %v2290 = vmax.f32 %v2258, 0.0
        %v2291 = vmax.f32 %v2259, 0.0
        %v2292 = vmax.f32 %v2260, 0.0
        %v2293 = vmax.f32 %v2261, 0.0
        %v2294 = vmax.f32 %v2262, 0.0
        %v2295 = vmax.f32 %v2263, 0.0
        %v2296 = vmax.f32 %v2264, 0.0
        %v2297 = vmax.f32 %v2265, 0.0
        %v2298 = vmax.f32 %v2266, 0.0
        %v2299 = vmax.f32 %v2267, 0.0
        %v2300 = vmax.f32 %v2268, 0.0
        %v2301 = vmax.f32 %v2269, 0.0
        %v2302 = vmax.f32 %v2270, 0.0
        %v2303 = vmax.f32 %v2271, 0.0
        %v2304 = vmax.f32 %v2272, 0.0
        %v2305 = vmax.f32 %v2273, 0.0
        %v2306 = vmax.f32 %v2274, 0.0
        %v2307 = vmax.f32 %v2275, 0.0
        %v2308 = vmax.f32 %v2276, 0.0
        %vm2309 = vcmask 523264
        %2310 = vst.msk [vmem:[%s715] sm:$0xff] %vm2309, %v2277
        %2311 = vst.msk [vmem:[%s715 + $0x8] sm:$0xff] %vm2309, %v2278
        %2312 = vst.msk [vmem:[%s715 + $0x10] sm:$0xff] %vm2309, %v2279
        %2313 = vst.msk [vmem:[%s715 + $0x18] sm:$0xff] %vm2309, %v2280
        %2314 = vst.msk [vmem:[%s715 + $0x20] sm:$0xff] %vm2309, %v2281
        %2315 = vst.msk [vmem:[%s715 + $0x28] sm:$0xff] %vm2309, %v2282
        %2316 = vst.msk [vmem:[%s715 + $0x30] sm:$0xff] %vm2309, %v2283
        %2317 = vst.msk [vmem:[%s715 + $0x38] sm:$0xff] %vm2309, %v2284
        %2318 = vst.msk [vmem:[%s715 + $0x40] sm:$0xff] %vm2309, %v2285
        %2319 = vst.msk [vmem:[%s715 + $0x48] sm:$0xff] %vm2309, %v2286
        %2320 = vst.msk [vmem:[%s715 + $0x50] sm:$0xff] %vm2309, %v2287
        %2321 = vst.msk [vmem:[%s715 + $0x58] sm:$0xff] %vm2309, %v2288
        %2322 = vst.msk [vmem:[%s715 + $0x60] sm:$0xff] %vm2309, %v2289
        %2323 = vst.msk [vmem:[%s715 + $0x68] sm:$0xff] %vm2309, %v2290
        %2324 = vst.msk [vmem:[%s715 + $0x70] sm:$0xff] %vm2309, %v2291
        %2325 = vst.msk [vmem:[%s715 + $0x78] sm:$0xff] %vm2309, %v2292
        %2326 = vst.msk [vmem:[%s715 + $0x80] sm:$0xff] %vm2309, %v2293
        %2327 = vst.msk [vmem:[%s715 + $0x88] sm:$0xff] %vm2309, %v2294
        %2328 = vst.msk [vmem:[%s715 + $0x90] sm:$0xff] %vm2309, %v2295
        %2329 = vst.msk [vmem:[%s715 + $0x98] sm:$0xff] %vm2309, %v2296
        %2330 = vst.msk [vmem:[%s715 + $0xa0] sm:$0xff] %vm2309, %v2297
        %2331 = vst.msk [vmem:[%s715 + $0xa8] sm:$0xff] %vm2309, %v2298
        %2332 = vst.msk [vmem:[%s715 + $0xb0] sm:$0xff] %vm2309, %v2299
        %2333 = vst.msk [vmem:[%s715 + $0xb8] sm:$0xff] %vm2309, %v2300
        %2334 = vst.msk [vmem:[%s715 + $0xc0] sm:$0xff] %vm2309, %v2301
        %2335 = vst.msk [vmem:[%s715 + $0xc8] sm:$0xff] %vm2309, %v2302
        %2336 = vst.msk [vmem:[%s715 + $0xd0] sm:$0xff] %vm2309, %v2303
        %2337 = vst.msk [vmem:[%s715 + $0xd8] sm:$0xff] %vm2309, %v2304
        %2338 = vst.msk [vmem:[%s715 + $0xe0] sm:$0xff] %vm2309, %v2305
        %2339 = vst.msk [vmem:[%s715 + $0xe8] sm:$0xff] %vm2309, %v2306
        %2340 = vst.msk [vmem:[%s715 + $0xf0] sm:$0xff] %vm2309, %v2307
        %2341 = vst.msk [vmem:[%s715 + $0xf8] sm:$0xff] %vm2309, %v2308
        %s2342 = smul.u32 32, %s14
        %p2343 = scmp.lt.s32.totalorder %s2342, 255
        %s2344 = scalar_select %p2343, %s2342, 255
        %s2345 = smul.addr %s2344, 8
        %s2346 = scalar_lea.vmem %s3, %s2345
        // Predicated region
        $region71: #{encoder_forward.3} parent=65 // pred_check
          %p2347 = pneg %p100
        $region72: #{encoder_forward.3} parent=65 // pred_check_branch
          %2349 = sbr.rel (%p2347) target = $region74
        $region73: #{encoder_forward.3} parent=65 // pred_region
          %s2350 = smul.u32 32, %s14
        $region74: #{encoder_forward.3} parent=65 // pred_fallthru
          _
      $region66: #{encoder_forward.3} parent=5 // pred_fallthru
        _
      %p2351 = scmp.le.s32.totalorder 2, %s9
      // Predicated region
      $region75: #{encoder_forward.3} parent=5 // pred_check
        %p2352 = pneg %p2351
      $region76: #{encoder_forward.3} parent=5 // pred_check_branch
        %2354 = sbr.rel (%p2352) target = $region78
      $region77: #{encoder_forward.3} parent=5 // pred_region
        %s2355 = ssub.s32 %s9, 2
        // Predicated region
        $region79: #{encoder_forward.3} parent=77 // pred_check
          %p2356 = pneg %p106
        $region80: #{encoder_forward.3} parent=77 // pred_check_branch
          %2358 = sbr.rel (%p2356) target = $region82
        $region81: #{encoder_forward.3} parent=77 // pred_region
          %s2359 = smul.u32 32, %s15
          %p2360 = scmp.lt.s32.totalorder %s2359, 255
          %s2361 = scalar_select %p2360, %s2359, 255
          %s2362 = smul.addr %s2361, 8
          %s2363 = scalar_lea.vmem %s3, %s2362
        $region82: #{encoder_forward.3} parent=77 // pred_fallthru
          _
      $region78: #{encoder_forward.3} parent=5 // pred_fallthru
        _
    $region6: #{encoder_forward.3} parent=1 // loop_footer
      %s13 = sadd.s32 1, %s9
    $region7: #{encoder_forward.3} parent=1 // loop_footer_branch
      %8 = sbr.rel target = $region3
    $region8: #{encoder_forward.3} parent=1 // loop_exit
      _

// kernel: encoder_forward.4
$region0: #{encoder_forward.4}
  #allocation0 [shape = 'u32[]', space=smem, size = 0x4, offset = 0x4, fixed_abs, tag = 'smem constant byte address 0x4 - core index']
  #allocation1 [shape = 'u32[144,128]{1,0:T(1,128)}', space=vmem, size = 0x12000, scoped, tag = 'internal scratch']
  %s0 = inlined_call_operand.vmem [shape: f32[4,512,576], index: 0, kind: input, shape index: {}]
  %s1 = inlined_call_operand.vmem [shape: f32[576,64], index: 1, kind: input, shape index: {}]
  %s2 = inlined_call_operand.vmem [shape: f32[1,64], index: 2, kind: input, shape index: {}]
  %s3 = inlined_call_operand.vmem [shape: f32[512,64], index: 3, kind: output, shape index: {}]
  %s4 = sld [smem:[#allocation0]]
  $region68: #{encoder_forward.4} parent=0
    _
  %s6 = ssub.s32 1, %s4
  %s7 = scalar_select 0, %s6, %s4
  $region1: #{encoder_forward.4} parent=0
    #allocation2 [shape = 'u8[2621440]{0}', space=vmem, size = 0x280000, scoped, tag = 'input window, operand 0']
    loop: start=0, step=1, limit=6
    $region2: #{encoder_forward.4} parent=1 // loop_pre_header
      _
    $region3: #{encoder_forward.4} parent=1 // loop_header
      %s9 = sphi 0, %s13
      %p10 = scmp.ge.s32.totalorder %s9, 6
      %s19 = sphi 0, %s21
      %s22 = sphi 0, %s19
      %s23 = sphi 0, %s22
      %s39 = sphi 0, %s23
      %s43 = sphi 0, %s43
      %s45 = sphi 0, %s43
      %s46 = sphi 0, %s45
      %s60 = sphi 0, %s46
      %s64 = sphi 0, %s64
      %s66 = sphi 0, %s64
      %s67 = sphi 0, %s66
      %s81 = sphi 0, %s67
      %s87 = sphi 0, %s89
      %s90 = sphi 0, %s87
      %s91 = sphi 0, %s90
      %s107 = sphi 0, %s91
    $region4: #{encoder_forward.4} parent=1 // loop_header_branch
      %12 = sbr.rel (%p10) target = $region8
    $region5: #{encoder_forward.4} parent=1 // loop_body
      %s14 = ssub.s32 %s9, 1
      %s15 = ssub.s32 %s9, 2
      %s16 = sadd.s32 %s9, 1
      %s17 = ssub.s32 %s9, %s16
      %p18 = scmp.eq.s32.totalorder %s17, 0
      %s20 = sadd.s32 %s19, 1
      %s21 = scalar_select %p18, %s19, %s20
      %p24 = pneg %p18
      %p25 = scmp.eq.s32.totalorder %s9, 3
      %p26 = por %p24, %p25
      %p27 = scmp.ne.s32.totalorder %s19, %s22
      %p28 = scmp.eq.s32.totalorder %s9, 0
      %p29 = por %p27, %p28
      %p30 = scmp.ne.s32.totalorder %s19, %s22
      %p31 = scmp.eq.s32.totalorder %s14, 3
      %p32 = por %p30, %p31
      %p33 = scmp.ne.s32.totalorder %s22, %s23
      %p34 = scmp.eq.s32.totalorder %s14, 0
      %p35 = por %p33, %p34
      %p36 = scmp.ne.s32.totalorder %s22, %s23
      %p37 = scmp.eq.s32.totalorder %s15, 3
      %p38 = por %p36, %p37
      %p40 = scmp.ne.s32.totalorder %s23, %s39
      %p41 = scmp.eq.s32.totalorder %s15, 0
      %p42 = por %p40, %p41
      %s44 = sadd.s32 %s43, 1
      %p47 = scmp.eq.s32.totalorder %s9, 3
      %p48 = scmp.ne.s32.totalorder %s43, %s45
      %p49 = scmp.eq.s32.totalorder %s9, 0
      %p50 = por %p48, %p49
      %p51 = scmp.ne.s32.totalorder %s43, %s45
      %p52 = scmp.eq.s32.totalorder %s14, 3
      %p53 = por %p51, %p52
      %p54 = scmp.ne.s32.totalorder %s45, %s46
      %p55 = scmp.eq.s32.totalorder %s14, 0
      %p56 = por %p54, %p55
      %p57 = scmp.ne.s32.totalorder %s45, %s46
      %p58 = scmp.eq.s32.totalorder %s15, 3
      %p59 = por %p57, %p58
      %p61 = scmp.ne.s32.totalorder %s46, %s60
      %p62 = scmp.eq.s32.totalorder %s15, 0
      %p63 = por %p61, %p62
      %s65 = sadd.s32 %s64, 1
      %p68 = scmp.eq.s32.totalorder %s9, 3
      %p69 = scmp.ne.s32.totalorder %s64, %s66
      %p70 = scmp.eq.s32.totalorder %s9, 0
      %p71 = por %p69, %p70
      %p72 = scmp.ne.s32.totalorder %s64, %s66
      %p73 = scmp.eq.s32.totalorder %s14, 3
      %p74 = por %p72, %p73
      %p75 = scmp.ne.s32.totalorder %s66, %s67
      %p76 = scmp.eq.s32.totalorder %s14, 0
      %p77 = por %p75, %p76
      %p78 = scmp.ne.s32.totalorder %s66, %s67
      %p79 = scmp.eq.s32.totalorder %s15, 3
      %p80 = por %p78, %p79
      %p82 = scmp.ne.s32.totalorder %s67, %s81
      %p83 = scmp.eq.s32.totalorder %s15, 0
      %p84 = por %p82, %p83
      %s85 = ssub.s32 %s9, %s16
      %p86 = scmp.eq.s32.totalorder %s85, 0
      %s88 = sadd.s32 %s87, 1
      %s89 = scalar_select %p86, %s87, %s88
      %p92 = pneg %p86
      %p93 = scmp.eq.s32.totalorder %s9, 3
      %p94 = por %p92, %p93
      %p95 = scmp.ne.s32.totalorder %s87, %s90
      %p96 = scmp.eq.s32.totalorder %s9, 0
      %p97 = por %p95, %p96
      %p98 = scmp.ne.s32.totalorder %s87, %s90
      %p99 = scmp.eq.s32.totalorder %s14, 3
      %p100 = por %p98, %p99
      %p101 = scmp.ne.s32.totalorder %s90, %s91
      %p102 = scmp.eq.s32.totalorder %s14, 0
      %p103 = por %p101, %p102
      %p104 = scmp.ne.s32.totalorder %s90, %s91
      %p105 = scmp.eq.s32.totalorder %s15, 3
      %p106 = por %p104, %p105
      %p108 = scmp.ne.s32.totalorder %s91, %s107
      %p109 = scmp.eq.s32.totalorder %s15, 0
      %p110 = por %p108, %p109
      %p111 = scmp.le.s32.totalorder 1, %s9
      %p112 = scmp.lt.s32.totalorder %s9, 5
      %p113 = pnand %p111, %p112
      %p114 = pneg %p113
      // Predicated region
      $region9: #{encoder_forward.4} parent=5 // pred_check
        _
      $region10: #{encoder_forward.4} parent=5 // pred_check_branch
        %116 = sbr.rel (%p113) target = $region12
      $region11: #{encoder_forward.4} parent=5 // pred_region
        %s117 = ssub.s32 %s9, 1
        // Predicated region
        $region13: #{encoder_forward.4} parent=11 // pred_check
          %p118 = pneg %p56
        $region14: #{encoder_forward.4} parent=11 // pred_check_branch
          %120 = sbr.rel (%p118) target = $region16
        $region15: #{encoder_forward.4} parent=11 // pred_region
          _
        $region16: #{encoder_forward.4} parent=11 // pred_fallthru
          _
        // Predicated region
        $region17: #{encoder_forward.4} parent=11 // pred_check
          %p121 = pneg %p77
        $region18: #{encoder_forward.4} parent=11 // pred_check_branch
          %123 = sbr.rel (%p121) target = $region20
        $region19: #{encoder_forward.4} parent=11 // pred_region
          _
        $region20: #{encoder_forward.4} parent=11 // pred_fallthru
          _
      $region12: #{encoder_forward.4} parent=5 // pred_fallthru
        _
      %p124 = scmp.lt.s32.totalorder %s9, 4
      // Predicated region
      $region21: #{encoder_forward.4} parent=5 // pred_check
        %p125 = pneg %p124
      $region22: #{encoder_forward.4} parent=5 // pred_check_branch
        %127 = sbr.rel (%p125) target = $region24
      $region23: #{encoder_forward.4} parent=5 // pred_region
        // Predicated region
        $region25: #{encoder_forward.4} parent=23 // pred_check
          %p128 = pneg %p29
        $region26: #{encoder_forward.4} parent=23 // pred_check_branch
          %130 = sbr.rel (%p128) target = $region28
        $region27: #{encoder_forward.4} parent=23 // pred_region
          %s131 = sand.u32 %s19, 1
          %s132 = sand.u32 %s19, 1
          %s133 = smul.addr %s132, 2560
          %s134 = scalar_lea.vmem [#allocation2], %s133
          %s135 = smul.u32 16, %s9
          %s136 = smul.addr %s135, 5
          %s137 = smul.addr %s136, 8
          %s138 = scalar_lea.vmem %s0, %s137
          // Predicated region
          $region29: #{encoder_forward.4} parent=27 // pred_check
            _
          $region30: #{encoder_forward.4} parent=27 // pred_check_branch
            %140 = sbr.rel (0) target = $region32
          $region31: #{encoder_forward.4} parent=27 // pred_region
            // Predicated region
            $region33: #{encoder_forward.4} parent=31 // pred_check
              _
            $region34: #{encoder_forward.4} parent=31 // pred_check_branch
              %142 = sbr.rel (0) target = $region36
            $region35: #{encoder_forward.4} parent=31 // pred_region
              loop: start=0, step=1, limit=1
              $region37: #{encoder_forward.4} parent=35 // loop_pre_header
                _
              $region38: #{encoder_forward.4} parent=35 // loop_header
                %s144 = sphi 0, %s148
                %p145 = scmp.ge.s32.totalorder %s144, 1
                %s149 = sphi %s138, %s138
                %s150 = sphi %s134, %s134
              $region39: #{encoder_forward.4} parent=35 // loop_header_branch
                %147 = sbr.rel (%p145) target = $region43
              $region40: #{encoder_forward.4} parent=35 // loop_body
                %v151 = vld [vmem:[%s149] sm:$0xff]
                %152 = vst [vmem:[%s150] sm:$0xff] %v151
                %v153 = vld [vmem:[%s149 + $0x8] sm:$0xff]
                %154 = vst [vmem:[%s150 + $0x8] sm:$0xff] %v153
                %v155 = vld [vmem:[%s149 + $0x10] sm:$0xff]
                %156 = vst [vmem:[%s150 + $0x10] sm:$0xff] %v155
                %v157 = vld [vmem:[%s149 + $0x18] sm:$0xff]
                %158 = vst [vmem:[%s150 + $0x18] sm:$0xff] %v157
                %v159 = vld [vmem:[%s149 + $0x20] sm:$0xff]
                %160 = vst [vmem:[%s150 + $0x20] sm:$0xff] %v159
                %v161 = vld [vmem:[%s149 + $0x28] sm:$0xff]
                %162 = vst [vmem:[%s150 + $0x28] sm:$0xff] %v161
                %v163 = vld [vmem:[%s149 + $0x30] sm:$0xff]
                %164 = vst [vmem:[%s150 + $0x30] sm:$0xff] %v163
                %v165 = vld [vmem:[%s149 + $0x38] sm:$0xff]
                %166 = vst [vmem:[%s150 + $0x38] sm:$0xff] %v165
                %v167 = vld [vmem:[%s149 + $0x40] sm:$0xff]
                %168 = vst [vmem:[%s150 + $0x40] sm:$0xff] %v167
                %v169 = vld [vmem:[%s149 + $0x48] sm:$0xff]
                %170 = vst [vmem:[%s150 + $0x48] sm:$0xff] %v169
                %v171 = vld [vmem:[%s149 + $0x50] sm:$0xff]
                %172 = vst [vmem:[%s150 + $0x50] sm:$0xff] %v171
                %v173 = vld [vmem:[%s149 + $0x58] sm:$0xff]
                %174 = vst [vmem:[%s150 + $0x58] sm:$0xff] %v173
                %v175 = vld [vmem:[%s149 + $0x60] sm:$0xff]
                %176 = vst [vmem:[%s150 + $0x60] sm:$0xff] %v175
                %v177 = vld [vmem:[%s149 + $0x68] sm:$0xff]
                %178 = vst [vmem:[%s150 + $0x68] sm:$0xff] %v177
                %v179 = vld [vmem:[%s149 + $0x70] sm:$0xff]
                %180 = vst [vmem:[%s150 + $0x70] sm:$0xff] %v179
                %v181 = vld [vmem:[%s149 + $0x78] sm:$0xff]
                %182 = vst [vmem:[%s150 + $0x78] sm:$0xff] %v181
                %v183 = vld [vmem:[%s149 + $0x80] sm:$0xff]
                %184 = vst [vmem:[%s150 + $0x80] sm:$0xff] %v183
                %v185 = vld [vmem:[%s149 + $0x88] sm:$0xff]
                %186 = vst [vmem:[%s150 + $0x88] sm:$0xff] %v185
                %v187 = vld [vmem:[%s149 + $0x90] sm:$0xff]
                %188 = vst [vmem:[%s150 + $0x90] sm:$0xff] %v187
                %v189 = vld [vmem:[%s149 + $0x98] sm:$0xff]
                %190 = vst [vmem:[%s150 + $0x98] sm:$0xff] %v189
                %v191 = vld [vmem:[%s149 + $0xa0] sm:$0xff]
                %192 = vst [vmem:[%s150 + $0xa0] sm:$0xff] %v191
                %v193 = vld [vmem:[%s149 + $0xa8] sm:$0xff]
                %194 = vst [vmem:[%s150 + $0xa8] sm:$0xff] %v193
                %v195 = vld [vmem:[%s149 + $0xb0] sm:$0xff]
                %196 = vst [vmem:[%s150 + $0xb0] sm:$0xff] %v195
                %v197 = vld [vmem:[%s149 + $0xb8] sm:$0xff]
                %198 = vst [vmem:[%s150 + $0xb8] sm:$0xff] %v197
                %v199 = vld [vmem:[%s149 + $0xc0] sm:$0xff]
                %200 = vst [vmem:[%s150 + $0xc0] sm:$0xff] %v199
                %v201 = vld [vmem:[%s149 + $0xc8] sm:$0xff]
                %202 = vst [vmem:[%s150 + $0xc8] sm:$0xff] %v201
                %v203 = vld [vmem:[%s149 + $0xd0] sm:$0xff]
                %204 = vst [vmem:[%s150 + $0xd0] sm:$0xff] %v203
                %v205 = vld [vmem:[%s149 + $0xd8] sm:$0xff]
                %206 = vst [vmem:[%s150 + $0xd8] sm:$0xff] %v205
                %v207 = vld [vmem:[%s149 + $0xe0] sm:$0xff]
                %208 = vst [vmem:[%s150 + $0xe0] sm:$0xff] %v207
                %v209 = vld [vmem:[%s149 + $0xe8] sm:$0xff]
                %210 = vst [vmem:[%s150 + $0xe8] sm:$0xff] %v209
                %v211 = vld [vmem:[%s149 + $0xf0] sm:$0xff]
                %212 = vst [vmem:[%s150 + $0xf0] sm:$0xff] %v211
                %v213 = vld [vmem:[%s149 + $0xf8] sm:$0xff]
                %214 = vst [vmem:[%s150 + $0xf8] sm:$0xff] %v213
                %v215 = vld [vmem:[%s149 + $0x100] sm:$0xff]
                %216 = vst [vmem:[%s150 + $0x100] sm:$0xff] %v215
                %v217 = vld [vmem:[%s149 + $0x108] sm:$0xff]
                %218 = vst [vmem:[%s150 + $0x108] sm:$0xff] %v217
                %v219 = vld [vmem:[%s149 + $0x110] sm:$0xff]
                %220 = vst [vmem:[%s150 + $0x110] sm:$0xff] %v219
                %v221 = vld [vmem:[%s149 + $0x118] sm:$0xff]
                %222 = vst [vmem:[%s150 + $0x118] sm:$0xff] %v221
                %v223 = vld [vmem:[%s149 + $0x120] sm:$0xff]
                %224 = vst [vmem:[%s150 + $0x120] sm:$0xff] %v223
                %v225 = vld [vmem:[%s149 + $0x128] sm:$0xff]
                %226 = vst [vmem:[%s150 + $0x128] sm:$0xff] %v225
                %v227 = vld [vmem:[%s149 + $0x130] sm:$0xff]
                %228 = vst [vmem:[%s150 + $0x130] sm:$0xff] %v227
                %v229 = vld [vmem:[%s149 + $0x138] sm:$0xff]
                %230 = vst [vmem:[%s150 + $0x138] sm:$0xff] %v229
                %v231 = vld [vmem:[%s149 + $0x140] sm:$0xff]
                %232 = vst [vmem:[%s150 + $0x140] sm:$0xff] %v231
                %v233 = vld [vmem:[%s149 + $0x148] sm:$0xff]
                %234 = vst [vmem:[%s150 + $0x148] sm:$0xff] %v233
                %v235 = vld [vmem:[%s149 + $0x150] sm:$0xff]
                %236 = vst [vmem:[%s150 + $0x150] sm:$0xff] %v235
                %v237 = vld [vmem:[%s149 + $0x158] sm:$0xff]
                %238 = vst [vmem:[%s150 + $0x158] sm:$0xff] %v237
                %v239 = vld [vmem:[%s149 + $0x160] sm:$0xff]
                %240 = vst [vmem:[%s150 + $0x160] sm:$0xff] %v239
                %v241 = vld [vmem:[%s149 + $0x168] sm:$0xff]
                %242 = vst [vmem:[%s150 + $0x168] sm:$0xff] %v241
                %v243 = vld [vmem:[%s149 + $0x170] sm:$0xff]
                %244 = vst [vmem:[%s150 + $0x170] sm:$0xff] %v243
                %v245 = vld [vmem:[%s149 + $0x178] sm:$0xff]
                %246 = vst [vmem:[%s150 + $0x178] sm:$0xff] %v245
                %v247 = vld [vmem:[%s149 + $0x180] sm:$0xff]
                %248 = vst [vmem:[%s150 + $0x180] sm:$0xff] %v247
                %v249 = vld [vmem:[%s149 + $0x188] sm:$0xff]
                %250 = vst [vmem:[%s150 + $0x188] sm:$0xff] %v249
                %v251 = vld [vmem:[%s149 + $0x190] sm:$0xff]
                %252 = vst [vmem:[%s150 + $0x190] sm:$0xff] %v251
                %v253 = vld [vmem:[%s149 + $0x198] sm:$0xff]
                %254 = vst [vmem:[%s150 + $0x198] sm:$0xff] %v253
                %v255 = vld [vmem:[%s149 + $0x1a0] sm:$0xff]
                %256 = vst [vmem:[%s150 + $0x1a0] sm:$0xff] %v255
                %v257 = vld [vmem:[%s149 + $0x1a8] sm:$0xff]
                %258 = vst [vmem:[%s150 + $0x1a8] sm:$0xff] %v257
                %v259 = vld [vmem:[%s149 + $0x1b0] sm:$0xff]
                %260 = vst [vmem:[%s150 + $0x1b0] sm:$0xff] %v259
                %v261 = vld [vmem:[%s149 + $0x1b8] sm:$0xff]
                %262 = vst [vmem:[%s150 + $0x1b8] sm:$0xff] %v261
                %v263 = vld [vmem:[%s149 + $0x1c0] sm:$0xff]
                %264 = vst [vmem:[%s150 + $0x1c0] sm:$0xff] %v263
                %v265 = vld [vmem:[%s149 + $0x1c8] sm:$0xff]
                %266 = vst [vmem:[%s150 + $0x1c8] sm:$0xff] %v265
                %v267 = vld [vmem:[%s149 + $0x1d0] sm:$0xff]
                %268 = vst [vmem:[%s150 + $0x1d0] sm:$0xff] %v267
                %v269 = vld [vmem:[%s149 + $0x1d8] sm:$0xff]
                %270 = vst [vmem:[%s150 + $0x1d8] sm:$0xff] %v269
                %v271 = vld [vmem:[%s149 + $0x1e0] sm:$0xff]
                %272 = vst [vmem:[%s150 + $0x1e0] sm:$0xff] %v271
                %v273 = vld [vmem:[%s149 + $0x1e8] sm:$0xff]
                %274 = vst [vmem:[%s150 + $0x1e8] sm:$0xff] %v273
                %v275 = vld [vmem:[%s149 + $0x1f0] sm:$0xff]
                %276 = vst [vmem:[%s150 + $0x1f0] sm:$0xff] %v275
                %v277 = vld [vmem:[%s149 + $0x1f8] sm:$0xff]
                %278 = vst [vmem:[%s150 + $0x1f8] sm:$0xff] %v277
                %v279 = vld [vmem:[%s149 + $0x200] sm:$0xff]
                %280 = vst [vmem:[%s150 + $0x200] sm:$0xff] %v279
                %v281 = vld [vmem:[%s149 + $0x208] sm:$0xff]
                %282 = vst [vmem:[%s150 + $0x208] sm:$0xff] %v281
                %v283 = vld [vmem:[%s149 + $0x210] sm:$0xff]
                %284 = vst [vmem:[%s150 + $0x210] sm:$0xff] %v283
                %v285 = vld [vmem:[%s149 + $0x218] sm:$0xff]
                %286 = vst [vmem:[%s150 + $0x218] sm:$0xff] %v285
                %v287 = vld [vmem:[%s149 + $0x220] sm:$0xff]
                %288 = vst [vmem:[%s150 + $0x220] sm:$0xff] %v287
                %v289 = vld [vmem:[%s149 + $0x228] sm:$0xff]
                %290 = vst [vmem:[%s150 + $0x228] sm:$0xff] %v289
                %v291 = vld [vmem:[%s149 + $0x230] sm:$0xff]
                %292 = vst [vmem:[%s150 + $0x230] sm:$0xff] %v291
                %v293 = vld [vmem:[%s149 + $0x238] sm:$0xff]
                %294 = vst [vmem:[%s150 + $0x238] sm:$0xff] %v293
                %v295 = vld [vmem:[%s149 + $0x240] sm:$0xff]
                %296 = vst [vmem:[%s150 + $0x240] sm:$0xff] %v295
                %v297 = vld [vmem:[%s149 + $0x248] sm:$0xff]
                %298 = vst [vmem:[%s150 + $0x248] sm:$0xff] %v297
                %v299 = vld [vmem:[%s149 + $0x250] sm:$0xff]
                %300 = vst [vmem:[%s150 + $0x250] sm:$0xff] %v299
                %v301 = vld [vmem:[%s149 + $0x258] sm:$0xff]
                %302 = vst [vmem:[%s150 + $0x258] sm:$0xff] %v301
                %v303 = vld [vmem:[%s149 + $0x260] sm:$0xff]
                %304 = vst [vmem:[%s150 + $0x260] sm:$0xff] %v303
                %v305 = vld [vmem:[%s149 + $0x268] sm:$0xff]
                %306 = vst [vmem:[%s150 + $0x268] sm:$0xff] %v305
                %v307 = vld [vmem:[%s149 + $0x270] sm:$0xff]
                %308 = vst [vmem:[%s150 + $0x270] sm:$0xff] %v307
                %v309 = vld [vmem:[%s149 + $0x278] sm:$0xff]
                %310 = vst [vmem:[%s150 + $0x278] sm:$0xff] %v309
                %v311 = vld [vmem:[%s149 + $0xa00] sm:$0xff]
                %312 = vst [vmem:[%s150 + $0x280] sm:$0xff] %v311
                %v313 = vld [vmem:[%s149 + $0xa08] sm:$0xff]
                %314 = vst [vmem:[%s150 + $0x288] sm:$0xff] %v313
                %v315 = vld [vmem:[%s149 + $0xa10] sm:$0xff]
                %316 = vst [vmem:[%s150 + $0x290] sm:$0xff] %v315
                %v317 = vld [vmem:[%s149 + $0xa18] sm:$0xff]
                %318 = vst [vmem:[%s150 + $0x298] sm:$0xff] %v317
                %v319 = vld [vmem:[%s149 + $0xa20] sm:$0xff]
                %320 = vst [vmem:[%s150 + $0x2a0] sm:$0xff] %v319
                %v321 = vld [vmem:[%s149 + $0xa28] sm:$0xff]
                %322 = vst [vmem:[%s150 + $0x2a8] sm:$0xff] %v321
                %v323 = vld [vmem:[%s149 + $0xa30] sm:$0xff]
                %324 = vst [vmem:[%s150 + $0x2b0] sm:$0xff] %v323
                %v325 = vld [vmem:[%s149 + $0xa38] sm:$0xff]
                %326 = vst [vmem:[%s150 + $0x2b8] sm:$0xff] %v325
                %v327 = vld [vmem:[%s149 + $0xa40] sm:$0xff]
                %328 = vst [vmem:[%s150 + $0x2c0] sm:$0xff] %v327
                %v329 = vld [vmem:[%s149 + $0xa48] sm:$0xff]
                %330 = vst [vmem:[%s150 + $0x2c8] sm:$0xff] %v329
                %v331 = vld [vmem:[%s149 + $0xa50] sm:$0xff]
                %332 = vst [vmem:[%s150 + $0x2d0] sm:$0xff] %v331
                %v333 = vld [vmem:[%s149 + $0xa58] sm:$0xff]
                %334 = vst [vmem:[%s150 + $0x2d8] sm:$0xff] %v333
                %v335 = vld [vmem:[%s149 + $0xa60] sm:$0xff]
                %336 = vst [vmem:[%s150 + $0x2e0] sm:$0xff] %v335
                %v337 = vld [vmem:[%s149 + $0xa68] sm:$0xff]
                %338 = vst [vmem:[%s150 + $0x2e8] sm:$0xff] %v337
                %v339 = vld [vmem:[%s149 + $0xa70] sm:$0xff]
                %340 = vst [vmem:[%s150 + $0x2f0] sm:$0xff] %v339
                %v341 = vld [vmem:[%s149 + $0xa78] sm:$0xff]
                %342 = vst [vmem:[%s150 + $0x2f8] sm:$0xff] %v341
                %v343 = vld [vmem:[%s149 + $0xa80] sm:$0xff]
                %344 = vst [vmem:[%s150 + $0x300] sm:$0xff] %v343
                %v345 = vld [vmem:[%s149 + $0xa88] sm:$0xff]
                %346 = vst [vmem:[%s150 + $0x308] sm:$0xff] %v345
                %v347 = vld [vmem:[%s149 + $0xa90] sm:$0xff]
                %348 = vst [vmem:[%s150 + $0x310] sm:$0xff] %v347
                %v349 = vld [vmem:[%s149 + $0xa98] sm:$0xff]
                %350 = vst [vmem:[%s150 + $0x318] sm:$0xff] %v349
                %v351 = vld [vmem:[%s149 + $0xaa0] sm:$0xff]
                %352 = vst [vmem:[%s150 + $0x320] sm:$0xff] %v351
                %v353 = vld [vmem:[%s149 + $0xaa8] sm:$0xff]
                %354 = vst [vmem:[%s150 + $0x328] sm:$0xff] %v353
                %v355 = vld [vmem:[%s149 + $0xab0] sm:$0xff]
                %356 = vst [vmem:[%s150 + $0x330] sm:$0xff] %v355
                %v357 = vld [vmem:[%s149 + $0xab8] sm:$0xff]
                %358 = vst [vmem:[%s150 + $0x338] sm:$0xff] %v357
                %v359 = vld [vmem:[%s149 + $0xac0] sm:$0xff]
                %360 = vst [vmem:[%s150 + $0x340] sm:$0xff] %v359
                %v361 = vld [vmem:[%s149 + $0xac8] sm:$0xff]
                %362 = vst [vmem:[%s150 + $0x348] sm:$0xff] %v361
                %v363 = vld [vmem:[%s149 + $0xad0] sm:$0xff]
                %364 = vst [vmem:[%s150 + $0x350] sm:$0xff] %v363
                %v365 = vld [vmem:[%s149 + $0xad8] sm:$0xff]
                %366 = vst [vmem:[%s150 + $0x358] sm:$0xff] %v365
                %v367 = vld [vmem:[%s149 + $0xae0] sm:$0xff]
                %368 = vst [vmem:[%s150 + $0x360] sm:$0xff] %v367
                %v369 = vld [vmem:[%s149 + $0xae8] sm:$0xff]
                %370 = vst [vmem:[%s150 + $0x368] sm:$0xff] %v369
                %v371 = vld [vmem:[%s149 + $0xaf0] sm:$0xff]
                %372 = vst [vmem:[%s150 + $0x370] sm:$0xff] %v371
                %v373 = vld [vmem:[%s149 + $0xaf8] sm:$0xff]
                %374 = vst [vmem:[%s150 + $0x378] sm:$0xff] %v373
                %v375 = vld [vmem:[%s149 + $0xb00] sm:$0xff]
                %376 = vst [vmem:[%s150 + $0x380] sm:$0xff] %v375
                %v377 = vld [vmem:[%s149 + $0xb08] sm:$0xff]
                %378 = vst [vmem:[%s150 + $0x388] sm:$0xff] %v377
                %v379 = vld [vmem:[%s149 + $0xb10] sm:$0xff]
                %380 = vst [vmem:[%s150 + $0x390] sm:$0xff] %v379
                %v381 = vld [vmem:[%s149 + $0xb18] sm:$0xff]
                %382 = vst [vmem:[%s150 + $0x398] sm:$0xff] %v381
                %v383 = vld [vmem:[%s149 + $0xb20] sm:$0xff]
                %384 = vst [vmem:[%s150 + $0x3a0] sm:$0xff] %v383
                %v385 = vld [vmem:[%s149 + $0xb28] sm:$0xff]
                %386 = vst [vmem:[%s150 + $0x3a8] sm:$0xff] %v385
                %v387 = vld [vmem:[%s149 + $0xb30] sm:$0xff]
                %388 = vst [vmem:[%s150 + $0x3b0] sm:$0xff] %v387
                %v389 = vld [vmem:[%s149 + $0xb38] sm:$0xff]
                %390 = vst [vmem:[%s150 + $0x3b8] sm:$0xff] %v389
                %v391 = vld [vmem:[%s149 + $0xb40] sm:$0xff]
                %392 = vst [vmem:[%s150 + $0x3c0] sm:$0xff] %v391
                %v393 = vld [vmem:[%s149 + $0xb48] sm:$0xff]
                %394 = vst [vmem:[%s150 + $0x3c8] sm:$0xff] %v393
                %v395 = vld [vmem:[%s149 + $0xb50] sm:$0xff]
                %396 = vst [vmem:[%s150 + $0x3d0] sm:$0xff] %v395
                %v397 = vld [vmem:[%s149 + $0xb58] sm:$0xff]
                %398 = vst [vmem:[%s150 + $0x3d8] sm:$0xff] %v397
                %v399 = vld [vmem:[%s149 + $0xb60] sm:$0xff]
                %400 = vst [vmem:[%s150 + $0x3e0] sm:$0xff] %v399
                %v401 = vld [vmem:[%s149 + $0xb68] sm:$0xff]
                %402 = vst [vmem:[%s150 + $0x3e8] sm:$0xff] %v401
                %v403 = vld [vmem:[%s149 + $0xb70] sm:$0xff]
                %404 = vst [vmem:[%s150 + $0x3f0] sm:$0xff] %v403
                %v405 = vld [vmem:[%s149 + $0xb78] sm:$0xff]
                %406 = vst [vmem:[%s150 + $0x3f8] sm:$0xff] %v405
                %v407 = vld [vmem:[%s149 + $0xb80] sm:$0xff]
                %408 = vst [vmem:[%s150 + $0x400] sm:$0xff] %v407
                %v409 = vld [vmem:[%s149 + $0xb88] sm:$0xff]
                %410 = vst [vmem:[%s150 + $0x408] sm:$0xff] %v409
                %v411 = vld [vmem:[%s149 + $0xb90] sm:$0xff]
                %412 = vst [vmem:[%s150 + $0x410] sm:$0xff] %v411
                %v413 = vld [vmem:[%s149 + $0xb98] sm:$0xff]
                %414 = vst [vmem:[%s150 + $0x418] sm:$0xff] %v413
                %v415 = vld [vmem:[%s149 + $0xba0] sm:$0xff]
                %416 = vst [vmem:[%s150 + $0x420] sm:$0xff] %v415
                %v417 = vld [vmem:[%s149 + $0xba8] sm:$0xff]
                %418 = vst [vmem:[%s150 + $0x428] sm:$0xff] %v417
                %v419 = vld [vmem:[%s149 + $0xbb0] sm:$0xff]
                %420 = vst [vmem:[%s150 + $0x430] sm:$0xff] %v419
                %v421 = vld [vmem:[%s149 + $0xbb8] sm:$0xff]
                %422 = vst [vmem:[%s150 + $0x438] sm:$0xff] %v421
                %v423 = vld [vmem:[%s149 + $0xbc0] sm:$0xff]
                %424 = vst [vmem:[%s150 + $0x440] sm:$0xff] %v423
                %v425 = vld [vmem:[%s149 + $0xbc8] sm:$0xff]
                %426 = vst [vmem:[%s150 + $0x448] sm:$0xff] %v425
                %v427 = vld [vmem:[%s149 + $0xbd0] sm:$0xff]
                %428 = vst [vmem:[%s150 + $0x450] sm:$0xff] %v427
                %v429 = vld [vmem:[%s149 + $0xbd8] sm:$0xff]
                %430 = vst [vmem:[%s150 + $0x458] sm:$0xff] %v429
                %v431 = vld [vmem:[%s149 + $0xbe0] sm:$0xff]
                %432 = vst [vmem:[%s150 + $0x460] sm:$0xff] %v431
                %v433 = vld [vmem:[%s149 + $0xbe8] sm:$0xff]
                %434 = vst [vmem:[%s150 + $0x468] sm:$0xff] %v433
                %v435 = vld [vmem:[%s149 + $0xbf0] sm:$0xff]
                %436 = vst [vmem:[%s150 + $0x470] sm:$0xff] %v435
                %v437 = vld [vmem:[%s149 + $0xbf8] sm:$0xff]
                %438 = vst [vmem:[%s150 + $0x478] sm:$0xff] %v437
                %v439 = vld [vmem:[%s149 + $0xc00] sm:$0xff]
                %440 = vst [vmem:[%s150 + $0x480] sm:$0xff] %v439
                %v441 = vld [vmem:[%s149 + $0xc08] sm:$0xff]
                %442 = vst [vmem:[%s150 + $0x488] sm:$0xff] %v441
                %v443 = vld [vmem:[%s149 + $0xc10] sm:$0xff]
                %444 = vst [vmem:[%s150 + $0x490] sm:$0xff] %v443
                %v445 = vld [vmem:[%s149 + $0xc18] sm:$0xff]
                %446 = vst [vmem:[%s150 + $0x498] sm:$0xff] %v445
                %v447 = vld [vmem:[%s149 + $0xc20] sm:$0xff]
                %448 = vst [vmem:[%s150 + $0x4a0] sm:$0xff] %v447
                %v449 = vld [vmem:[%s149 + $0xc28] sm:$0xff]
                %450 = vst [vmem:[%s150 + $0x4a8] sm:$0xff] %v449
                %v451 = vld [vmem:[%s149 + $0xc30] sm:$0xff]
                %452 = vst [vmem:[%s150 + $0x4b0] sm:$0xff] %v451
                %v453 = vld [vmem:[%s149 + $0xc38] sm:$0xff]
                %454 = vst [vmem:[%s150 + $0x4b8] sm:$0xff] %v453
                %v455 = vld [vmem:[%s149 + $0xc40] sm:$0xff]
                %456 = vst [vmem:[%s150 + $0x4c0] sm:$0xff] %v455
                %v457 = vld [vmem:[%s149 + $0xc48] sm:$0xff]
                %458 = vst [vmem:[%s150 + $0x4c8] sm:$0xff] %v457
                %v459 = vld [vmem:[%s149 + $0xc50] sm:$0xff]
                %460 = vst [vmem:[%s150 + $0x4d0] sm:$0xff] %v459
                %v461 = vld [vmem:[%s149 + $0xc58] sm:$0xff]
                %462 = vst [vmem:[%s150 + $0x4d8] sm:$0xff] %v461
                %v463 = vld [vmem:[%s149 + $0xc60] sm:$0xff]
                %464 = vst [vmem:[%s150 + $0x4e0] sm:$0xff] %v463
                %v465 = vld [vmem:[%s149 + $0xc68] sm:$0xff]
                %466 = vst [vmem:[%s150 + $0x4e8] sm:$0xff] %v465
                %v467 = vld [vmem:[%s149 + $0xc70] sm:$0xff]
                %468 = vst [vmem:[%s150 + $0x4f0] sm:$0xff] %v467
                %v469 = vld [vmem:[%s149 + $0xc78] sm:$0xff]
                %470 = vst [vmem:[%s150 + $0x4f8] sm:$0xff] %v469
                %v471 = vld [vmem:[%s149 + $0x1400] sm:$0xff]
                %472 = vst [vmem:[%s150 + $0x500] sm:$0xff] %v471
                %v473 = vld [vmem:[%s149 + $0x1408] sm:$0xff]
                %474 = vst [vmem:[%s150 + $0x508] sm:$0xff] %v473
                %v475 = vld [vmem:[%s149 + $0x1410] sm:$0xff]
                %476 = vst [vmem:[%s150 + $0x510] sm:$0xff] %v475
                %v477 = vld [vmem:[%s149 + $0x1418] sm:$0xff]
                %478 = vst [vmem:[%s150 + $0x518] sm:$0xff] %v477
                %v479 = vld [vmem:[%s149 + $0x1420] sm:$0xff]
                %480 = vst [vmem:[%s150 + $0x520] sm:$0xff] %v479
                %v481 = vld [vmem:[%s149 + $0x1428] sm:$0xff]
                %482 = vst [vmem:[%s150 + $0x528] sm:$0xff] %v481
                %v483 = vld [vmem:[%s149 + $0x1430] sm:$0xff]
                %484 = vst [vmem:[%s150 + $0x530] sm:$0xff] %v483
                %v485 = vld [vmem:[%s149 + $0x1438] sm:$0xff]
                %486 = vst [vmem:[%s150 + $0x538] sm:$0xff] %v485
                %v487 = vld [vmem:[%s149 + $0x1440] sm:$0xff]
                %488 = vst [vmem:[%s150 + $0x540] sm:$0xff] %v487
                %v489 = vld [vmem:[%s149 + $0x1448] sm:$0xff]
                %490 = vst [vmem:[%s150 + $0x548] sm:$0xff] %v489
                %v491 = vld [vmem:[%s149 + $0x1450] sm:$0xff]
                %492 = vst [vmem:[%s150 + $0x550] sm:$0xff] %v491
                %v493 = vld [vmem:[%s149 + $0x1458] sm:$0xff]
                %494 = vst [vmem:[%s150 + $0x558] sm:$0xff] %v493
                %v495 = vld [vmem:[%s149 + $0x1460] sm:$0xff]
                %496 = vst [vmem:[%s150 + $0x560] sm:$0xff] %v495
                %v497 = vld [vmem:[%s149 + $0x1468] sm:$0xff]
                %498 = vst [vmem:[%s150 + $0x568] sm:$0xff] %v497
                %v499 = vld [vmem:[%s149 + $0x1470] sm:$0xff]
                %500 = vst [vmem:[%s150 + $0x570] sm:$0xff] %v499
                %v501 = vld [vmem:[%s149 + $0x1478] sm:$0xff]
                %502 = vst [vmem:[%s150 + $0x578] sm:$0xff] %v501
                %v503 = vld [vmem:[%s149 + $0x1480] sm:$0xff]
                %504 = vst [vmem:[%s150 + $0x580] sm:$0xff] %v503
                %v505 = vld [vmem:[%s149 + $0x1488] sm:$0xff]
                %506 = vst [vmem:[%s150 + $0x588] sm:$0xff] %v505
                %v507 = vld [vmem:[%s149 + $0x1490] sm:$0xff]
                %508 = vst [vmem:[%s150 + $0x590] sm:$0xff] %v507
                %v509 = vld [vmem:[%s149 + $0x1498] sm:$0xff]
                %510 = vst [vmem:[%s150 + $0x598] sm:$0xff] %v509
                %v511 = vld [vmem:[%s149 + $0x14a0] sm:$0xff]
                %512 = vst [vmem:[%s150 + $0x5a0] sm:$0xff] %v511
                %v513 = vld [vmem:[%s149 + $0x14a8] sm:$0xff]
                %514 = vst [vmem:[%s150 + $0x5a8] sm:$0xff] %v513
                %v515 = vld [vmem:[%s149 + $0x14b0] sm:$0xff]
                %516 = vst [vmem:[%s150 + $0x5b0] sm:$0xff] %v515
                %v517 = vld [vmem:[%s149 + $0x14b8] sm:$0xff]
                %518 = vst [vmem:[%s150 + $0x5b8] sm:$0xff] %v517
                %v519 = vld [vmem:[%s149 + $0x14c0] sm:$0xff]
                %520 = vst [vmem:[%s150 + $0x5c0] sm:$0xff] %v519
                %v521 = vld [vmem:[%s149 + $0x14c8] sm:$0xff]
                %522 = vst [vmem:[%s150 + $0x5c8] sm:$0xff] %v521
                %v523 = vld [vmem:[%s149 + $0x14d0] sm:$0xff]
                %524 = vst [vmem:[%s150 + $0x5d0] sm:$0xff] %v523
                %v525 = vld [vmem:[%s149 + $0x14d8] sm:$0xff]
                %526 = vst [vmem:[%s150 + $0x5d8] sm:$0xff] %v525
                %v527 = vld [vmem:[%s149 + $0x14e0] sm:$0xff]
                %528 = vst [vmem:[%s150 + $0x5e0] sm:$0xff] %v527
                %v529 = vld [vmem:[%s149 + $0x14e8] sm:$0xff]
                %530 = vst [vmem:[%s150 + $0x5e8] sm:$0xff] %v529
                %v531 = vld [vmem:[%s149 + $0x14f0] sm:$0xff]
                %532 = vst [vmem:[%s150 + $0x5f0] sm:$0xff] %v531
                %v533 = vld [vmem:[%s149 + $0x14f8] sm:$0xff]
                %534 = vst [vmem:[%s150 + $0x5f8] sm:$0xff] %v533
                %v535 = vld [vmem:[%s149 + $0x1500] sm:$0xff]
                %536 = vst [vmem:[%s150 + $0x600] sm:$0xff] %v535
                %v537 = vld [vmem:[%s149 + $0x1508] sm:$0xff]
                %538 = vst [vmem:[%s150 + $0x608] sm:$0xff] %v537
                %v539 = vld [vmem:[%s149 + $0x1510] sm:$0xff]
                %540 = vst [vmem:[%s150 + $0x610] sm:$0xff] %v539
                %v541 = vld [vmem:[%s149 + $0x1518] sm:$0xff]
                %542 = vst [vmem:[%s150 + $0x618] sm:$0xff] %v541
                %v543 = vld [vmem:[%s149 + $0x1520] sm:$0xff]
                %544 = vst [vmem:[%s150 + $0x620] sm:$0xff] %v543
                %v545 = vld [vmem:[%s149 + $0x1528] sm:$0xff]
                %546 = vst [vmem:[%s150 + $0x628] sm:$0xff] %v545
                %v547 = vld [vmem:[%s149 + $0x1530] sm:$0xff]
                %548 = vst [vmem:[%s150 + $0x630] sm:$0xff] %v547
                %v549 = vld [vmem:[%s149 + $0x1538] sm:$0xff]
                %550 = vst [vmem:[%s150 + $0x638] sm:$0xff] %v549
                %v551 = vld [vmem:[%s149 + $0x1540] sm:$0xff]
                %552 = vst [vmem:[%s150 + $0x640] sm:$0xff] %v551
                %v553 = vld [vmem:[%s149 + $0x1548] sm:$0xff]
                %554 = vst [vmem:[%s150 + $0x648] sm:$0xff] %v553
                %v555 = vld [vmem:[%s149 + $0x1550] sm:$0xff]
                %556 = vst [vmem:[%s150 + $0x650] sm:$0xff] %v555
                %v557 = vld [vmem:[%s149 + $0x1558] sm:$0xff]
                %558 = vst [vmem:[%s150 + $0x658] sm:$0xff] %v557
                %v559 = vld [vmem:[%s149 + $0x1560] sm:$0xff]
                %560 = vst [vmem:[%s150 + $0x660] sm:$0xff] %v559
                %v561 = vld [vmem:[%s149 + $0x1568] sm:$0xff]
                %562 = vst [vmem:[%s150 + $0x668] sm:$0xff] %v561
                %v563 = vld [vmem:[%s149 + $0x1570] sm:$0xff]
                %564 = vst [vmem:[%s150 + $0x670] sm:$0xff] %v563
                %v565 = vld [vmem:[%s149 + $0x1578] sm:$0xff]
                %566 = vst [vmem:[%s150 + $0x678] sm:$0xff] %v565
                %v567 = vld [vmem:[%s149 + $0x1580] sm:$0xff]
                %568 = vst [vmem:[%s150 + $0x680] sm:$0xff] %v567
                %v569 = vld [vmem:[%s149 + $0x1588] sm:$0xff]
                %570 = vst [vmem:[%s150 + $0x688] sm:$0xff] %v569
                %v571 = vld [vmem:[%s149 + $0x1590] sm:$0xff]
                %572 = vst [vmem:[%s150 + $0x690] sm:$0xff] %v571
                %v573 = vld [vmem:[%s149 + $0x1598] sm:$0xff]
                %574 = vst [vmem:[%s150 + $0x698] sm:$0xff] %v573
                %v575 = vld [vmem:[%s149 + $0x15a0] sm:$0xff]
                %576 = vst [vmem:[%s150 + $0x6a0] sm:$0xff] %v575
                %v577 = vld [vmem:[%s149 + $0x15a8] sm:$0xff]
                %578 = vst [vmem:[%s150 + $0x6a8] sm:$0xff] %v577
                %v579 = vld [vmem:[%s149 + $0x15b0] sm:$0xff]
                %580 = vst [vmem:[%s150 + $0x6b0] sm:$0xff] %v579
                %v581 = vld [vmem:[%s149 + $0x15b8] sm:$0xff]
                %582 = vst [vmem:[%s150 + $0x6b8] sm:$0xff] %v581
                %v583 = vld [vmem:[%s149 + $0x15c0] sm:$0xff]
                %584 = vst [vmem:[%s150 + $0x6c0] sm:$0xff] %v583
                %v585 = vld [vmem:[%s149 + $0x15c8] sm:$0xff]
                %586 = vst [vmem:[%s150 + $0x6c8] sm:$0xff] %v585
                %v587 = vld [vmem:[%s149 + $0x15d0] sm:$0xff]
                %588 = vst [vmem:[%s150 + $0x6d0] sm:$0xff] %v587
                %v589 = vld [vmem:[%s149 + $0x15d8] sm:$0xff]
                %590 = vst [vmem:[%s150 + $0x6d8] sm:$0xff] %v589
                %v591 = vld [vmem:[%s149 + $0x15e0] sm:$0xff]
                %592 = vst [vmem:[%s150 + $0x6e0] sm:$0xff] %v591
                %v593 = vld [vmem:[%s149 + $0x15e8] sm:$0xff]
                %594 = vst [vmem:[%s150 + $0x6e8] sm:$0xff] %v593
                %v595 = vld [vmem:[%s149 + $0x15f0] sm:$0xff]
                %596 = vst [vmem:[%s150 + $0x6f0] sm:$0xff] %v595
                %v597 = vld [vmem:[%s149 + $0x15f8] sm:$0xff]
                %598 = vst [vmem:[%s150 + $0x6f8] sm:$0xff] %v597
                %v599 = vld [vmem:[%s149 + $0x1600] sm:$0xff]
                %600 = vst [vmem:[%s150 + $0x700] sm:$0xff] %v599
                %v601 = vld [vmem:[%s149 + $0x1608] sm:$0xff]
                %602 = vst [vmem:[%s150 + $0x708] sm:$0xff] %v601
                %v603 = vld [vmem:[%s149 + $0x1610] sm:$0xff]
                %604 = vst [vmem:[%s150 + $0x710] sm:$0xff] %v603
                %v605 = vld [vmem:[%s149 + $0x1618] sm:$0xff]
                %606 = vst [vmem:[%s150 + $0x718] sm:$0xff] %v605
                %v607 = vld [vmem:[%s149 + $0x1620] sm:$0xff]
                %608 = vst [vmem:[%s150 + $0x720] sm:$0xff] %v607
                %v609 = vld [vmem:[%s149 + $0x1628] sm:$0xff]
                %610 = vst [vmem:[%s150 + $0x728] sm:$0xff] %v609
                %v611 = vld [vmem:[%s149 + $0x1630] sm:$0xff]
                %612 = vst [vmem:[%s150 + $0x730] sm:$0xff] %v611
                %v613 = vld [vmem:[%s149 + $0x1638] sm:$0xff]
                %614 = vst [vmem:[%s150 + $0x738] sm:$0xff] %v613
                %v615 = vld [vmem:[%s149 + $0x1640] sm:$0xff]
                %616 = vst [vmem:[%s150 + $0x740] sm:$0xff] %v615
                %v617 = vld [vmem:[%s149 + $0x1648] sm:$0xff]
                %618 = vst [vmem:[%s150 + $0x748] sm:$0xff] %v617
                %v619 = vld [vmem:[%s149 + $0x1650] sm:$0xff]
                %620 = vst [vmem:[%s150 + $0x750] sm:$0xff] %v619
                %v621 = vld [vmem:[%s149 + $0x1658] sm:$0xff]
                %622 = vst [vmem:[%s150 + $0x758] sm:$0xff] %v621
                %v623 = vld [vmem:[%s149 + $0x1660] sm:$0xff]
                %624 = vst [vmem:[%s150 + $0x760] sm:$0xff] %v623
                %v625 = vld [vmem:[%s149 + $0x1668] sm:$0xff]
                %626 = vst [vmem:[%s150 + $0x768] sm:$0xff] %v625
                %v627 = vld [vmem:[%s149 + $0x1670] sm:$0xff]
                %628 = vst [vmem:[%s150 + $0x770] sm:$0xff] %v627
                %v629 = vld [vmem:[%s149 + $0x1678] sm:$0xff]
                %630 = vst [vmem:[%s150 + $0x778] sm:$0xff] %v629
                %v631 = vld [vmem:[%s149 + $0x1e00] sm:$0xff]
                %632 = vst [vmem:[%s150 + $0x780] sm:$0xff] %v631
                %v633 = vld [vmem:[%s149 + $0x1e08] sm:$0xff]
                %634 = vst [vmem:[%s150 + $0x788] sm:$0xff] %v633
                %v635 = vld [vmem:[%s149 + $0x1e10] sm:$0xff]
                %636 = vst [vmem:[%s150 + $0x790] sm:$0xff] %v635
                %v637 = vld [vmem:[%s149 + $0x1e18] sm:$0xff]
                %638 = vst [vmem:[%s150 + $0x798] sm:$0xff] %v637
                %v639 = vld [vmem:[%s149 + $0x1e20] sm:$0xff]
                %640 = vst [vmem:[%s150 + $0x7a0] sm:$0xff] %v639
                %v641 = vld [vmem:[%s149 + $0x1e28] sm:$0xff]
                %642 = vst [vmem:[%s150 + $0x7a8] sm:$0xff] %v641
                %v643 = vld [vmem:[%s149 + $0x1e30] sm:$0xff]
                %644 = vst [vmem:[%s150 + $0x7b0] sm:$0xff] %v643
                %v645 = vld [vmem:[%s149 + $0x1e38] sm:$0xff]
                %646 = vst [vmem:[%s150 + $0x7b8] sm:$0xff] %v645
                %v647 = vld [vmem:[%s149 + $0x1e40] sm:$0xff]
                %648 = vst [vmem:[%s150 + $0x7c0] sm:$0xff] %v647
                %v649 = vld [vmem:[%s149 + $0x1e48] sm:$0xff]
                %650 = vst [vmem:[%s150 + $0x7c8] sm:$0xff] %v649
                %v651 = vld [vmem:[%s149 + $0x1e50] sm:$0xff]
                %652 = vst [vmem:[%s150 + $0x7d0] sm:$0xff] %v651
                %v653 = vld [vmem:[%s149 + $0x1e58] sm:$0xff]
                %654 = vst [vmem:[%s150 + $0x7d8] sm:$0xff] %v653
                %v655 = vld [vmem:[%s149 + $0x1e60] sm:$0xff]
                %656 = vst [vmem:[%s150 + $0x7e0] sm:$0xff] %v655
                %v657 = vld [vmem:[%s149 + $0x1e68] sm:$0xff]
                %658 = vst [vmem:[%s150 + $0x7e8] sm:$0xff] %v657
                %v659 = vld [vmem:[%s149 + $0x1e70] sm:$0xff]
                %660 = vst [vmem:[%s150 + $0x7f0] sm:$0xff] %v659
                %v661 = vld [vmem:[%s149 + $0x1e78] sm:$0xff]
                %662 = vst [vmem:[%s150 + $0x7f8] sm:$0xff] %v661
                %v663 = vld [vmem:[%s149 + $0x1e80] sm:$0xff]
                %664 = vst [vmem:[%s150 + $0x800] sm:$0xff] %v663
                %v665 = vld [vmem:[%s149 + $0x1e88] sm:$0xff]
                %666 = vst [vmem:[%s150 + $0x808] sm:$0xff] %v665
                %v667 = vld [vmem:[%s149 + $0x1e90] sm:$0xff]
                %668 = vst [vmem:[%s150 + $0x810] sm:$0xff] %v667
                %v669 = vld [vmem:[%s149 + $0x1e98] sm:$0xff]
                %670 = vst [vmem:[%s150 + $0x818] sm:$0xff] %v669
                %v671 = vld [vmem:[%s149 + $0x1ea0] sm:$0xff]
                %672 = vst [vmem:[%s150 + $0x820] sm:$0xff] %v671
                %v673 = vld [vmem:[%s149 + $0x1ea8] sm:$0xff]
                %674 = vst [vmem:[%s150 + $0x828] sm:$0xff] %v673
                %v675 = vld [vmem:[%s149 + $0x1eb0] sm:$0xff]
                %676 = vst [vmem:[%s150 + $0x830] sm:$0xff] %v675
                %v677 = vld [vmem:[%s149 + $0x1eb8] sm:$0xff]
                %678 = vst [vmem:[%s150 + $0x838] sm:$0xff] %v677
                %v679 = vld [vmem:[%s149 + $0x1ec0] sm:$0xff]
                %680 = vst [vmem:[%s150 + $0x840] sm:$0xff] %v679
                %v681 = vld [vmem:[%s149 + $0x1ec8] sm:$0xff]
                %682 = vst [vmem:[%s150 + $0x848] sm:$0xff] %v681
                %v683 = vld [vmem:[%s149 + $0x1ed0] sm:$0xff]
                %684 = vst [vmem:[%s150 + $0x850] sm:$0xff] %v683
                %v685 = vld [vmem:[%s149 + $0x1ed8] sm:$0xff]
                %686 = vst [vmem:[%s150 + $0x858] sm:$0xff] %v685
                %v687 = vld [vmem:[%s149 + $0x1ee0] sm:$0xff]
                %688 = vst [vmem:[%s150 + $0x860] sm:$0xff] %v687
                %v689 = vld [vmem:[%s149 + $0x1ee8] sm:$0xff]
                %690 = vst [vmem:[%s150 + $0x868] sm:$0xff] %v689
                %v691 = vld [vmem:[%s149 + $0x1ef0] sm:$0xff]
                %692 = vst [vmem:[%s150 + $0x870] sm:$0xff] %v691
                %v693 = vld [vmem:[%s149 + $0x1ef8] sm:$0xff]
                %694 = vst [vmem:[%s150 + $0x878] sm:$0xff] %v693
                %v695 = vld [vmem:[%s149 + $0x1f00] sm:$0xff]
                %696 = vst [vmem:[%s150 + $0x880] sm:$0xff] %v695
                %v697 = vld [vmem:[%s149 + $0x1f08] sm:$0xff]
                %698 = vst [vmem:[%s150 + $0x888] sm:$0xff] %v697
                %v699 = vld [vmem:[%s149 + $0x1f10] sm:$0xff]
                %700 = vst [vmem:[%s150 + $0x890] sm:$0xff] %v699
                %v701 = vld [vmem:[%s149 + $0x1f18] sm:$0xff]
                %702 = vst [vmem:[%s150 + $0x898] sm:$0xff] %v701
                %v703 = vld [vmem:[%s149 + $0x1f20] sm:$0xff]
                %704 = vst [vmem:[%s150 + $0x8a0] sm:$0xff] %v703
                %v705 = vld [vmem:[%s149 + $0x1f28] sm:$0xff]
                %706 = vst [vmem:[%s150 + $0x8a8] sm:$0xff] %v705
                %v707 = vld [vmem:[%s149 + $0x1f30] sm:$0xff]
                %708 = vst [vmem:[%s150 + $0x8b0] sm:$0xff] %v707
                %v709 = vld [vmem:[%s149 + $0x1f38] sm:$0xff]
                %710 = vst [vmem:[%s150 + $0x8b8] sm:$0xff] %v709
                %v711 = vld [vmem:[%s149 + $0x1f40] sm:$0xff]
                %712 = vst [vmem:[%s150 + $0x8c0] sm:$0xff] %v711
                %v713 = vld [vmem:[%s149 + $0x1f48] sm:$0xff]
                %714 = vst [vmem:[%s150 + $0x8c8] sm:$0xff] %v713
                %v715 = vld [vmem:[%s149 + $0x1f50] sm:$0xff]
                %716 = vst [vmem:[%s150 + $0x8d0] sm:$0xff] %v715
                %v717 = vld [vmem:[%s149 + $0x1f58] sm:$0xff]
                %718 = vst [vmem:[%s150 + $0x8d8] sm:$0xff] %v717
                %v719 = vld [vmem:[%s149 + $0x1f60] sm:$0xff]
                %720 = vst [vmem:[%s150 + $0x8e0] sm:$0xff] %v719
                %v721 = vld [vmem:[%s149 + $0x1f68] sm:$0xff]
                %722 = vst [vmem:[%s150 + $0x8e8] sm:$0xff] %v721
                %v723 = vld [vmem:[%s149 + $0x1f70] sm:$0xff]
                %724 = vst [vmem:[%s150 + $0x8f0] sm:$0xff] %v723
                %v725 = vld [vmem:[%s149 + $0x1f78] sm:$0xff]
                %726 = vst [vmem:[%s150 + $0x8f8] sm:$0xff] %v725
                %v727 = vld [vmem:[%s149 + $0x1f80] sm:$0xff]
                %728 = vst [vmem:[%s150 + $0x900] sm:$0xff] %v727
                %v729 = vld [vmem:[%s149 + $0x1f88] sm:$0xff]
                %730 = vst [vmem:[%s150 + $0x908] sm:$0xff] %v729
                %v731 = vld [vmem:[%s149 + $0x1f90] sm:$0xff]
                %732 = vst [vmem:[%s150 + $0x910] sm:$0xff] %v731
                %v733 = vld [vmem:[%s149 + $0x1f98] sm:$0xff]
                %734 = vst [vmem:[%s150 + $0x918] sm:$0xff] %v733
                %v735 = vld [vmem:[%s149 + $0x1fa0] sm:$0xff]
                %736 = vst [vmem:[%s150 + $0x920] sm:$0xff] %v735
                %v737 = vld [vmem:[%s149 + $0x1fa8] sm:$0xff]
                %738 = vst [vmem:[%s150 + $0x928] sm:$0xff] %v737
                %v739 = vld [vmem:[%s149 + $0x1fb0] sm:$0xff]
                %740 = vst [vmem:[%s150 + $0x930] sm:$0xff] %v739
                %v741 = vld [vmem:[%s149 + $0x1fb8] sm:$0xff]
                %742 = vst [vmem:[%s150 + $0x938] sm:$0xff] %v741
                %v743 = vld [vmem:[%s149 + $0x1fc0] sm:$0xff]
                %744 = vst [vmem:[%s150 + $0x940] sm:$0xff] %v743
                %v745 = vld [vmem:[%s149 + $0x1fc8] sm:$0xff]
                %746 = vst [vmem:[%s150 + $0x948] sm:$0xff] %v745
                %v747 = vld [vmem:[%s149 + $0x1fd0] sm:$0xff]
                %748 = vst [vmem:[%s150 + $0x950] sm:$0xff] %v747
                %v749 = vld [vmem:[%s149 + $0x1fd8] sm:$0xff]
                %750 = vst [vmem:[%s150 + $0x958] sm:$0xff] %v749
                %v751 = vld [vmem:[%s149 + $0x1fe0] sm:$0xff]
                %752 = vst [vmem:[%s150 + $0x960] sm:$0xff] %v751
                %v753 = vld [vmem:[%s149 + $0x1fe8] sm:$0xff]
                %754 = vst [vmem:[%s150 + $0x968] sm:$0xff] %v753
                %v755 = vld [vmem:[%s149 + $0x1ff0] sm:$0xff]
                %756 = vst [vmem:[%s150 + $0x970] sm:$0xff] %v755
                %v757 = vld [vmem:[%s149 + $0x1ff8] sm:$0xff]
                %758 = vst [vmem:[%s150 + $0x978] sm:$0xff] %v757
                %v759 = vld [vmem:[%s149 + $0x2000] sm:$0xff]
                %760 = vst [vmem:[%s150 + $0x980] sm:$0xff] %v759
                %v761 = vld [vmem:[%s149 + $0x2008] sm:$0xff]
                %762 = vst [vmem:[%s150 + $0x988] sm:$0xff] %v761
                %v763 = vld [vmem:[%s149 + $0x2010] sm:$0xff]
                %764 = vst [vmem:[%s150 + $0x990] sm:$0xff] %v763
                %v765 = vld [vmem:[%s149 + $0x2018] sm:$0xff]
                %766 = vst [vmem:[%s150 + $0x998] sm:$0xff] %v765
                %v767 = vld [vmem:[%s149 + $0x2020] sm:$0xff]
                %768 = vst [vmem:[%s150 + $0x9a0] sm:$0xff] %v767
                %v769 = vld [vmem:[%s149 + $0x2028] sm:$0xff]
                %770 = vst [vmem:[%s150 + $0x9a8] sm:$0xff] %v769
                %v771 = vld [vmem:[%s149 + $0x2030] sm:$0xff]
                %772 = vst [vmem:[%s150 + $0x9b0] sm:$0xff] %v771
                %v773 = vld [vmem:[%s149 + $0x2038] sm:$0xff]
                %774 = vst [vmem:[%s150 + $0x9b8] sm:$0xff] %v773
                %v775 = vld [vmem:[%s149 + $0x2040] sm:$0xff]
                %776 = vst [vmem:[%s150 + $0x9c0] sm:$0xff] %v775
                %v777 = vld [vmem:[%s149 + $0x2048] sm:$0xff]
                %778 = vst [vmem:[%s150 + $0x9c8] sm:$0xff] %v777
                %v779 = vld [vmem:[%s149 + $0x2050] sm:$0xff]
                %780 = vst [vmem:[%s150 + $0x9d0] sm:$0xff] %v779
                %v781 = vld [vmem:[%s149 + $0x2058] sm:$0xff]
                %782 = vst [vmem:[%s150 + $0x9d8] sm:$0xff] %v781
                %v783 = vld [vmem:[%s149 + $0x2060] sm:$0xff]
                %784 = vst [vmem:[%s150 + $0x9e0] sm:$0xff] %v783
                %v785 = vld [vmem:[%s149 + $0x2068] sm:$0xff]
                %786 = vst [vmem:[%s150 + $0x9e8] sm:$0xff] %v785
                %v787 = vld [vmem:[%s149 + $0x2070] sm:$0xff]
                %788 = vst [vmem:[%s150 + $0x9f0] sm:$0xff] %v787
                %v789 = vld [vmem:[%s149 + $0x2078] sm:$0xff]
                %790 = vst [vmem:[%s150 + $0x9f8] sm:$0xff] %v789
              $region41: #{encoder_forward.4} parent=35 // loop_footer
                %s148 = sadd.s32 1, %s144
              $region42: #{encoder_forward.4} parent=35 // loop_footer_branch
                %143 = sbr.rel target = $region38
              $region43: #{encoder_forward.4} parent=35 // loop_exit
                _
            $region36: #{encoder_forward.4} parent=31 // pred_fallthru
              _
            // Predicated region
            $region44: #{encoder_forward.4} parent=31 // pred_check
              _
            $region45: #{encoder_forward.4} parent=31 // pred_check_branch
              %792 = sbr.rel target = $region47
            $region46: #{encoder_forward.4} parent=31 // pred_region
              _
            $region47: #{encoder_forward.4} parent=31 // pred_fallthru
              _
          $region32: #{encoder_forward.4} parent=27 // pred_fallthru
            _
          %793 = vnop
        $region28: #{encoder_forward.4} parent=23 // pred_fallthru
          _
      $region24: #{encoder_forward.4} parent=5 // pred_fallthru
        _
      %p794 = scmp.le.s32.totalorder 1, %s9
      %p795 = scmp.lt.s32.totalorder %s9, 5
      %p796 = pnand %p794, %p795
      %p797 = pneg %p796
      // Predicated region
      $region48: #{encoder_forward.4} parent=5 // pred_check
        _
      $region49: #{encoder_forward.4} parent=5 // pred_check_branch
        %799 = sbr.rel (%p796) target = $region51
      $region50: #{encoder_forward.4} parent=5 // pred_region
        %s800 = ssub.s32 %s9, 1
        %s801 = sand.u32 %s22, 1
        %s802 = sand.u32 %s22, 1
        %s803 = smul.addr %s802, 2560
        %s804 = scalar_lea.vmem [#allocation2], %s803
        // Predicated region
        $region52: #{encoder_forward.4} parent=50 // pred_check
          %p805 = pneg %p35
        $region53: #{encoder_forward.4} parent=50 // pred_check_branch
          %807 = sbr.rel (%p805) target = $region55
        $region54: #{encoder_forward.4} parent=50 // pred_region
          _
        $region55: #{encoder_forward.4} parent=50 // pred_fallthru
          _
        %s808 = sand.u32 %s22, 1
        %s809 = sand.u32 %s22, 1
        %s810 = smul.addr %s809, 2560
        %s811 = scalar_lea.vmem [#allocation2], %s810
        %p812 = pneg %p35
        %p813 = pneg %p32
        %p814 = pneg %p56
        %p815 = pneg %p53
        %p816 = pneg %p77
        %p817 = pneg %p74
        %p818 = pneg %p103
        %p819 = pneg %p100
        %s820 = smul.u32 16, %s14
        %p821 = scmp.lt.s32.totalorder %s820, 63
        %s822 = scalar_select %p821, %s820, 63
        %s823 = smul.addr %s822, 8
        %s824 = scalar_lea.vmem %s3, %s823
        %s825 = smul.u32 16, %s14
        %s826 = smul.u32 16, %s14
        %p827 = scmp.lt.s32.totalorder %s826, 63
        %s828 = scalar_select %p827, %s826, 63
        %s829 = smul.addr %s828, 8
        %s830 = scalar_lea.vmem %s3, %s829
        %s831 = smul.u32 16, %s14
        %v832 = vld [vmem:[%s1] sm:$0xff]
        %v833 = vld [vmem:[%s1 + $0x8] sm:$0xff]
        %v834 = vld [vmem:[%s1 + $0x10] sm:$0xff]
        %v835 = vld [vmem:[%s1 + $0x18] sm:$0xff]
        %v836 = vld [vmem:[%s1 + $0x20] sm:$0xff]
        %v837 = vld [vmem:[%s1 + $0x28] sm:$0xff]
        %v838 = vld [vmem:[%s1 + $0x30] sm:$0xff]
        %v839 = vld [vmem:[%s1 + $0x38] sm:$0xff]
        %v840 = vld [vmem:[%s1 + $0x40] sm:$0xff]
        %v841 = vld [vmem:[%s1 + $0x48] sm:$0xff]
        %v842 = vld [vmem:[%s1 + $0x50] sm:$0xff]
        %v843 = vld [vmem:[%s1 + $0x58] sm:$0xff]
        %v844 = vld [vmem:[%s1 + $0x60] sm:$0xff]
        %v845 = vld [vmem:[%s1 + $0x68] sm:$0xff]
        %v846 = vld [vmem:[%s1 + $0x70] sm:$0xff]
        %v847 = vld [vmem:[%s1 + $0x78] sm:$0xff]
        %v848 = vld [vmem:[%s1 + $0x80] sm:$0xff]
        %v849 = vld [vmem:[%s1 + $0x88] sm:$0xff]
        %v850 = vld [vmem:[%s1 + $0x90] sm:$0xff]
        %v851 = vld [vmem:[%s1 + $0x98] sm:$0xff]
        %v852 = vld [vmem:[%s1 + $0xa0] sm:$0xff]
        %v853 = vld [vmem:[%s1 + $0xa8] sm:$0xff]
        %v854 = vld [vmem:[%s1 + $0xb0] sm:$0xff]
        %v855 = vld [vmem:[%s1 + $0xb8] sm:$0xff]
        %v856 = vld [vmem:[%s1 + $0xc0] sm:$0xff]
        %v857 = vld [vmem:[%s1 + $0xc8] sm:$0xff]
        %v858 = vld [vmem:[%s1 + $0xd0] sm:$0xff]
        %v859 = vld [vmem:[%s1 + $0xd8] sm:$0xff]
        %v860 = vld [vmem:[%s1 + $0xe0] sm:$0xff]
        %v861 = vld [vmem:[%s1 + $0xe8] sm:$0xff]
        %v862 = vld [vmem:[%s1 + $0xf0] sm:$0xff]
        %v863 = vld [vmem:[%s1 + $0xf8] sm:$0xff]
        %v864 = vld [vmem:[%s1 + $0x100] sm:$0xff]
        %v865 = vld [vmem:[%s1 + $0x108] sm:$0xff]
        %v866 = vld [vmem:[%s1 + $0x110] sm:$0xff]
        %v867 = vld [vmem:[%s1 + $0x118] sm:$0xff]
        %v868 = vld [vmem:[%s1 + $0x120] sm:$0xff]
        %v869 = vld [vmem:[%s1 + $0x128] sm:$0xff]
        %v870 = vld [vmem:[%s1 + $0x130] sm:$0xff]
        %v871 = vld [vmem:[%s1 + $0x138] sm:$0xff]
        %v872 = vld [vmem:[%s1 + $0x140] sm:$0xff]
        %v873 = vld [vmem:[%s1 + $0x148] sm:$0xff]
        %v874 = vld [vmem:[%s1 + $0x150] sm:$0xff]
        %v875 = vld [vmem:[%s1 + $0x158] sm:$0xff]
        %v876 = vld [vmem:[%s1 + $0x160] sm:$0xff]
        %v877 = vld [vmem:[%s1 + $0x168] sm:$0xff]
        %v878 = vld [vmem:[%s1 + $0x170] sm:$0xff]
        %v879 = vld [vmem:[%s1 + $0x178] sm:$0xff]
        %v880 = vld [vmem:[%s1 + $0x180] sm:$0xff]
        %v881 = vld [vmem:[%s1 + $0x188] sm:$0xff]
        %v882 = vld [vmem:[%s1 + $0x190] sm:$0xff]
        %v883 = vld [vmem:[%s1 + $0x198] sm:$0xff]
        %v884 = vld [vmem:[%s1 + $0x1a0] sm:$0xff]
        %v885 = vld [vmem:[%s1 + $0x1a8] sm:$0xff]
        %v886 = vld [vmem:[%s1 + $0x1b0] sm:$0xff]
        %v887 = vld [vmem:[%s1 + $0x1b8] sm:$0xff]
        %v888 = vld [vmem:[%s1 + $0x1c0] sm:$0xff]
        %v889 = vld [vmem:[%s1 + $0x1c8] sm:$0xff]
        %v890 = vld [vmem:[%s1 + $0x1d0] sm:$0xff]
        %v891 = vld [vmem:[%s1 + $0x1d8] sm:$0xff]
        %v892 = vld [vmem:[%s1 + $0x1e0] sm:$0xff]
        %v893 = vld [vmem:[%s1 + $0x1e8] sm:$0xff]
        %v894 = vld [vmem:[%s1 + $0x1f0] sm:$0xff]
        %v895 = vld [vmem:[%s1 + $0x1f8] sm:$0xff]
        %v896 = vld [vmem:[%s1 + $0x200] sm:$0xff]
        %v897 = vld [vmem:[%s1 + $0x208] sm:$0xff]
        %v898 = vld [vmem:[%s1 + $0x210] sm:$0xff]
        %v899 = vld [vmem:[%s1 + $0x218] sm:$0xff]
        %v900 = vld [vmem:[%s1 + $0x220] sm:$0xff]
        %v901 = vld [vmem:[%s1 + $0x228] sm:$0xff]
        %v902 = vld [vmem:[%s1 + $0x230] sm:$0xff]
        %v903 = vld [vmem:[%s1 + $0x238] sm:$0xff]
        %v904 = vld [vmem:[%s804] sm:$0xff]
        %v905 = vld [vmem:[%s804 + $0x8] sm:$0xff]
        %v906 = vld [vmem:[%s804 + $0x10] sm:$0xff]
        %v907 = vld [vmem:[%s804 + $0x18] sm:$0xff]
        %v908 = vld [vmem:[%s804 + $0x20] sm:$0xff]
        %v909 = vld [vmem:[%s804 + $0x28] sm:$0xff]
        %v910 = vld [vmem:[%s804 + $0x30] sm:$0xff]
        %v911 = vld [vmem:[%s804 + $0x38] sm:$0xff]
        %v912 = vld [vmem:[%s804 + $0x40] sm:$0xff]
        %v913 = vld [vmem:[%s804 + $0x48] sm:$0xff]
        %v914 = vld [vmem:[%s804 + $0x50] sm:$0xff]
        %v915 = vld [vmem:[%s804 + $0x58] sm:$0xff]
        %v916 = vld [vmem:[%s804 + $0x60] sm:$0xff]
        %v917 = vld [vmem:[%s804 + $0x68] sm:$0xff]
        %v918 = vld [vmem:[%s804 + $0x70] sm:$0xff]
        %v919 = vld [vmem:[%s804 + $0x78] sm:$0xff]
        %v920 = vld [vmem:[%s804 + $0x80] sm:$0xff]
        %v921 = vld [vmem:[%s804 + $0x88] sm:$0xff]
        %v922 = vld [vmem:[%s804 + $0x90] sm:$0xff]
        %v923 = vld [vmem:[%s804 + $0x98] sm:$0xff]
        %v924 = vld [vmem:[%s804 + $0xa0] sm:$0xff]
        %v925 = vld [vmem:[%s804 + $0xa8] sm:$0xff]
        %v926 = vld [vmem:[%s804 + $0xb0] sm:$0xff]
        %v927 = vld [vmem:[%s804 + $0xb8] sm:$0xff]
        %v928 = vld [vmem:[%s804 + $0xc0] sm:$0xff]
        %v929 = vld [vmem:[%s804 + $0xc8] sm:$0xff]
        %v930 = vld [vmem:[%s804 + $0xd0] sm:$0xff]
        %v931 = vld [vmem:[%s804 + $0xd8] sm:$0xff]
        %v932 = vld [vmem:[%s804 + $0xe0] sm:$0xff]
        %v933 = vld [vmem:[%s804 + $0xe8] sm:$0xff]
        %v934 = vld [vmem:[%s804 + $0xf0] sm:$0xff]
        %v935 = vld [vmem:[%s804 + $0xf8] sm:$0xff]
        %v936 = vld [vmem:[%s804 + $0x100] sm:$0xff]
        %v937 = vld [vmem:[%s804 + $0x108] sm:$0xff]
        %v938 = vld [vmem:[%s804 + $0x110] sm:$0xff]
        %v939 = vld [vmem:[%s804 + $0x118] sm:$0xff]
        %v940 = vld [vmem:[%s804 + $0x120] sm:$0xff]
        %v941 = vld [vmem:[%s804 + $0x128] sm:$0xff]
        %v942 = vld [vmem:[%s804 + $0x130] sm:$0xff]
        %v943 = vld [vmem:[%s804 + $0x138] sm:$0xff]
        %v944 = vld [vmem:[%s804 + $0x140] sm:$0xff]
        %v945 = vld [vmem:[%s804 + $0x148] sm:$0xff]
        %v946 = vld [vmem:[%s804 + $0x150] sm:$0xff]
        %v947 = vld [vmem:[%s804 + $0x158] sm:$0xff]
        %v948 = vld [vmem:[%s804 + $0x160] sm:$0xff]
        %v949 = vld [vmem:[%s804 + $0x168] sm:$0xff]
        %v950 = vld [vmem:[%s804 + $0x170] sm:$0xff]
        %v951 = vld [vmem:[%s804 + $0x178] sm:$0xff]
        %v952 = vld [vmem:[%s804 + $0x180] sm:$0xff]
        %v953 = vld [vmem:[%s804 + $0x188] sm:$0xff]
        %v954 = vld [vmem:[%s804 + $0x190] sm:$0xff]
        %v955 = vld [vmem:[%s804 + $0x198] sm:$0xff]
        %v956 = vld [vmem:[%s804 + $0x1a0] sm:$0xff]
        %v957 = vld [vmem:[%s804 + $0x1a8] sm:$0xff]
        %v958 = vld [vmem:[%s804 + $0x1b0] sm:$0xff]
        %v959 = vld [vmem:[%s804 + $0x1b8] sm:$0xff]
        %v960 = vld [vmem:[%s804 + $0x1c0] sm:$0xff]
        %v961 = vld [vmem:[%s804 + $0x1c8] sm:$0xff]
        %v962 = vld [vmem:[%s804 + $0x1d0] sm:$0xff]
        %v963 = vld [vmem:[%s804 + $0x1d8] sm:$0xff]
        %v964 = vld [vmem:[%s804 + $0x1e0] sm:$0xff]
        %v965 = vld [vmem:[%s804 + $0x1e8] sm:$0xff]
        %v966 = vld [vmem:[%s804 + $0x1f0] sm:$0xff]
        %v967 = vld [vmem:[%s804 + $0x1f8] sm:$0xff]
        %v968 = vld [vmem:[%s804 + $0x200] sm:$0xff]
        %v969 = vld [vmem:[%s804 + $0x208] sm:$0xff]
        %v970 = vld [vmem:[%s804 + $0x210] sm:$0xff]
        %v971 = vld [vmem:[%s804 + $0x218] sm:$0xff]
        %v972 = vld [vmem:[%s804 + $0x220] sm:$0xff]
        %v973 = vld [vmem:[%s804 + $0x228] sm:$0xff]
        %v974 = vld [vmem:[%s804 + $0x230] sm:$0xff]
        %v975 = vld [vmem:[%s804 + $0x238] sm:$0xff]
        %v976 = vld [vmem:[%s804 + $0x240] sm:$0xff]
        %v977 = vld [vmem:[%s804 + $0x248] sm:$0xff]
        %v978 = vld [vmem:[%s804 + $0x250] sm:$0xff]
        %v979 = vld [vmem:[%s804 + $0x258] sm:$0xff]
        %v980 = vld [vmem:[%s804 + $0x260] sm:$0xff]
        %v981 = vld [vmem:[%s804 + $0x268] sm:$0xff]
        %v982 = vld [vmem:[%s804 + $0x270] sm:$0xff]
        %v983 = vld [vmem:[%s804 + $0x278] sm:$0xff]
        %vm984 = vcmask 523264
        %v986 = vsel %vm984, %v908, 0
        %v989 = vsel %vm984, %v913, 0
        %v992 = vsel %vm984, %v918, 0
        %v995 = vsel %vm984, %v923, 0
        %v998 = vsel %vm984, %v928, 0
        %v1001 = vsel %vm984, %v933, 0
        %v1004 = vsel %vm984, %v938, 0
        %v1007 = vsel %vm984, %v943, 0
        %v1010 = vsel %vm984, %v948, 0
        %v1013 = vsel %vm984, %v953, 0
        %v1016 = vsel %vm984, %v958, 0
        %v1019 = vsel %vm984, %v963, 0
        %v1022 = vsel %vm984, %v968, 0
        %v1025 = vsel %vm984, %v973, 0
        %v1028 = vsel %vm984, %v978, 0
        %v1031 = vsel %vm984, %v983, 0
        %1033 = vmatprep.subr.mxu0 0.0
        %1034 = vmatpush1.msra.mxu0 %v847
        %1035 = vmatprep.subr.mxu0 0.0
        %1036 = vmatpush1.msra.mxu0 %v846
        %1037 = vmatprep.subr.mxu0 0.0
        %1038 = vmatpush1.msra.mxu0 %v845
        %1039 = vmatprep.subr.mxu0 0.0
        %1040 = vmatpush1.msra.mxu0 %v844
        %1041 = vmatprep.subr.mxu0 0.0
        %1042 = vmatpush1.msra.mxu0 %v843
        %1043 = vmatprep.subr.mxu0 0.0
        %1044 = vmatpush1.msra.mxu0 %v842
        %1045 = vmatprep.subr.mxu0 0.0
        %1046 = vmatpush1.msra.mxu0 %v841
        %1047 = vmatprep.subr.mxu0 0.0
        %1048 = vmatpush1.msra.mxu0 %v840
        %1049 = vmatprep.subr.mxu0 0.0
        %1050 = vmatpush1.msra.mxu0 %v839
        %1051 = vmatprep.subr.mxu0 0.0
        %1052 = vmatpush1.msra.mxu0 %v838
        %1053 = vmatprep.subr.mxu0 0.0
        %1054 = vmatpush1.msra.mxu0 %v837
        %1055 = vmatprep.subr.mxu0 0.0
        %1056 = vmatpush1.msra.mxu0 %v836
        %1057 = vmatprep.subr.mxu0 0.0
        %1058 = vmatpush1.msra.mxu0 %v835
        %1059 = vmatprep.subr.mxu0 0.0
        %1060 = vmatpush1.msra.mxu0 %v834
        %1061 = vmatprep.subr.mxu0 0.0
        %1062 = vmatpush1.msra.mxu0 %v833
        %1063 = vmatprep.subr.mxu0 0.0
        %1064 = vmatpush1.msra.mxu0 %v832
        %1065 = vmatprep.subr.mxu0 0.0
        %1066 = vmatpush2.msra.mxu0 %v863
        %1067 = vmatprep.subr.mxu0 0.0
        %1068 = vmatpush2.msra.mxu0 %v862
        %1069 = vmatprep.subr.mxu0 0.0
        %1070 = vmatpush2.msra.mxu0 %v861
        %1071 = vmatprep.subr.mxu0 0.0
        %1072 = vmatpush2.msra.mxu0 %v860
        %1073 = vmatprep.subr.mxu0 0.0
        %1074 = vmatpush2.msra.mxu0 %v859
        %1075 = vmatprep.subr.mxu0 0.0
        %1076 = vmatpush2.msra.mxu0 %v858
        %1077 = vmatprep.subr.mxu0 0.0
        %1078 = vmatpush2.msra.mxu0 %v857
        %1079 = vmatprep.subr.mxu0 0.0
        %1080 = vmatpush2.msra.mxu0 %v856
        %1081 = vmatprep.subr.mxu0 0.0
        %1082 = vmatpush2.msra.mxu0 %v855
        %1083 = vmatprep.subr.mxu0 0.0
        %1084 = vmatpush2.msra.mxu0 %v854
        %1085 = vmatprep.subr.mxu0 0.0
        %1086 = vmatpush2.msra.mxu0 %v853
        %1087 = vmatprep.subr.mxu0 0.0
        %1088 = vmatpush2.msra.mxu0 %v852
        %1089 = vmatprep.subr.mxu0 0.0
        %1090 = vmatpush2.msra.mxu0 %v851
        %1091 = vmatprep.subr.mxu0 0.0
        %1092 = vmatpush2.msra.mxu0 %v850
        %1093 = vmatprep.subr.mxu0 0.0
        %1094 = vmatpush2.msra.mxu0 %v849
        %1095 = vmatprep.subr.mxu0 0.0
        %1096 = vmatpush2.msra.mxu0 %v848
        %1097 = vmatprep.mubr.f32.mxu0 %v905
        %1098 = vmatmul.mubr.f32.gmra.mxu0 %v904
        %v1099 = vpop.f32.mrf.mxu0
        %v1100 = vadd.f32 0.0, %v1099
        %v1101 = vpop.f32.mrf.mxu0
        %1102 = vmatprep.mubr.f32.mxu0 %v910
        %1103 = vmatmul.mubr.f32.gmra.mxu0 %v909
        %v1104 = vpop.f32.mrf.mxu0
        %v1105 = vadd.f32 0.0, %v1104
        %v1106 = vpop.f32.mrf.mxu0
        %1107 = vmatprep.mubr.f32.mxu0 %v915
        %1108 = vmatmul.mubr.f32.gmra.mxu0 %v914
        %v1109 = vpop.f32.mrf.mxu0
        %v1110 = vadd.f32 0.0, %v1109
        %v1111 = vpop.f32.mrf.mxu0
        %1112 = vmatprep.mubr.f32.mxu0 %v920
        %1113 = vmatmul.mubr.f32.gmra.mxu0 %v919
        %v1114 = vpop.f32.mrf.mxu0
        %v1115 = vadd.f32 0.0, %v1114
        %v1116 = vpop.f32.mrf.mxu0
        %1117 = vmatprep.mubr.f32.mxu0 %v925
        %1118 = vmatmul.mubr.f32.gmra.mxu0 %v924
        %v1119 = vpop.f32.mrf.mxu0
        %v1120 = vadd.f32 0.0, %v1119
        %v1121 = vpop.f32.mrf.mxu0
        %1122 = vmatprep.mubr.f32.mxu0 %v930
        %1123 = vmatmul.mubr.f32.gmra.mxu0 %v929
        %v1124 = vpop.f32.mrf.mxu0
        %v1125 = vadd.f32 0.0, %v1124
        %v1126 = vpop.f32.mrf.mxu0
        %1127 = vmatprep.mubr.f32.mxu0 %v935
        %1128 = vmatmul.mubr.f32.gmra.mxu0 %v934
        %v1129 = vpop.f32.mrf.mxu0
        %v1130 = vadd.f32 0.0, %v1129
        %v1131 = vpop.f32.mrf.mxu0
        %1132 = vmatprep.mubr.f32.mxu0 %v940
        %1133 = vmatmul.mubr.f32.gmra.mxu0 %v939
        %v1134 = vpop.f32.mrf.mxu0
        %v1135 = vadd.f32 0.0, %v1134
        %v1136 = vpop.f32.mrf.mxu0
        %1137 = vmatprep.mubr.f32.mxu0 %v945
        %1138 = vmatmul.mubr.f32.gmra.mxu0 %v944
        %v1139 = vpop.f32.mrf.mxu0
        %v1140 = vadd.f32 0.0, %v1139
        %v1141 = vpop.f32.mrf.mxu0
        %1142 = vmatprep.mubr.f32.mxu0 %v950
        %1143 = vmatmul.mubr.f32.gmra.mxu0 %v949
        %v1144 = vpop.f32.mrf.mxu0
        %v1145 = vadd.f32 0.0, %v1144
        %v1146 = vpop.f32.mrf.mxu0
        %1147 = vmatprep.mubr.f32.mxu0 %v955
        %1148 = vmatmul.mubr.f32.gmra.mxu0 %v954
        %v1149 = vpop.f32.mrf.mxu0
        %v1150 = vadd.f32 0.0, %v1149
        %v1151 = vpop.f32.mrf.mxu0
        %1152 = vmatprep.mubr.f32.mxu0 %v960
        %1153 = vmatmul.mubr.f32.gmra.mxu0 %v959
        %v1154 = vpop.f32.mrf.mxu0
        %v1155 = vadd.f32 0.0, %v1154
        %v1156 = vpop.f32.mrf.mxu0
        %1157 = vmatprep.mubr.f32.mxu0 %v965
        %1158 = vmatmul.mubr.f32.gmra.mxu0 %v964
        %v1159 = vpop.f32.mrf.mxu0
        %v1160 = vadd.f32 0.0, %v1159
        %v1161 = vpop.f32.mrf.mxu0
        %1162 = vmatprep.mubr.f32.mxu0 %v970
        %1163 = vmatmul.mubr.f32.gmra.mxu0 %v969
        %v1164 = vpop.f32.mrf.mxu0
        %v1165 = vadd.f32 0.0, %v1164
        %v1166 = vpop.f32.mrf.mxu0
        %1167 = vmatprep.mubr.f32.mxu0 %v975
        %1168 = vmatmul.mubr.f32.gmra.mxu0 %v974
        %v1169 = vpop.f32.mrf.mxu0
        %v1170 = vadd.f32 0.0, %v1169
        %v1171 = vpop.f32.mrf.mxu0
        %1172 = vmatprep.mubr.f32.mxu0 %v980
        %1173 = vmatmul.mubr.f32.gmra.mxu0 %v979
        %v1174 = vpop.f32.mrf.mxu0
        %v1175 = vadd.f32 0.0, %v1174
        %v1176 = vpop.f32.mrf.mxu0
        %1177 = vdwg.mxu0
        %1178 = vmatprep.subr.mxu0 0.0
        %1179 = vmatpush1.msra.mxu0 %v879
        %1180 = vmatprep.subr.mxu0 0.0
        %1181 = vmatpush1.msra.mxu0 %v878
        %1182 = vmatprep.subr.mxu0 0.0
        %1183 = vmatpush1.msra.mxu0 %v877
        %1184 = vmatprep.subr.mxu0 0.0
        %1185 = vmatpush1.msra.mxu0 %v876
        %1186 = vmatprep.subr.mxu0 0.0
        %1187 = vmatpush1.msra.mxu0 %v875
        %1188 = vmatprep.subr.mxu0 0.0
        %1189 = vmatpush1.msra.mxu0 %v874
        %1190 = vmatprep.subr.mxu0 0.0
        %1191 = vmatpush1.msra.mxu0 %v873
        %1192 = vmatprep.subr.mxu0 0.0
        %1193 = vmatpush1.msra.mxu0 %v872
        %1194 = vmatprep.subr.mxu0 0.0
        %1195 = vmatpush1.msra.mxu0 %v871
        %1196 = vmatprep.subr.mxu0 0.0
        %1197 = vmatpush1.msra.mxu0 %v870
        %1198 = vmatprep.subr.mxu0 0.0
        %1199 = vmatpush1.msra.mxu0 %v869
        %1200 = vmatprep.subr.mxu0 0.0
        %1201 = vmatpush1.msra.mxu0 %v868
        %1202 = vmatprep.subr.mxu0 0.0
        %1203 = vmatpush1.msra.mxu0 %v867
        %1204 = vmatprep.subr.mxu0 0.0
        %1205 = vmatpush1.msra.mxu0 %v866
        %1206 = vmatprep.subr.mxu0 0.0
        %1207 = vmatpush1.msra.mxu0 %v865
        %1208 = vmatprep.subr.mxu0 0.0
        %1209 = vmatpush1.msra.mxu0 %v864
        %1210 = vmatprep.subr.mxu0 0.0
        %1211 = vmatpush2.msra.mxu0 %v895
        %1212 = vmatprep.subr.mxu0 0.0
        %1213 = vmatpush2.msra.mxu0 %v894
        %1214 = vmatprep.subr.mxu0 0.0
        %1215 = vmatpush2.msra.mxu0 %v893
        %1216 = vmatprep.subr.mxu0 0.0
        %1217 = vmatpush2.msra.mxu0 %v892
        %1218 = vmatprep.subr.mxu0 0.0
        %1219 = vmatpush2.msra.mxu0 %v891
        %1220 = vmatprep.subr.mxu0 0.0
        %1221 = vmatpush2.msra.mxu0 %v890
        %1222 = vmatprep.subr.mxu0 0.0
        %1223 = vmatpush2.msra.mxu0 %v889
        %1224 = vmatprep.subr.mxu0 0.0
        %1225 = vmatpush2.msra.mxu0 %v888
        %1226 = vmatprep.subr.mxu0 0.0
        %1227 = vmatpush2.msra.mxu0 %v887
        %1228 = vmatprep.subr.mxu0 0.0
        %1229 = vmatpush2.msra.mxu0 %v886
        %1230 = vmatprep.subr.mxu0 0.0
        %1231 = vmatpush2.msra.mxu0 %v885
        %1232 = vmatprep.subr.mxu0 0.0
        %1233 = vmatpush2.msra.mxu0 %v884
        %1234 = vmatprep.subr.mxu0 0.0
        %1235 = vmatpush2.msra.mxu0 %v883
        %1236 = vmatprep.subr.mxu0 0.0
        %1237 = vmatpush2.msra.mxu0 %v882
        %1238 = vmatprep.subr.mxu0 0.0
        %1239 = vmatpush2.msra.mxu0 %v881
        %1240 = vmatprep.subr.mxu0 0.0
        %1241 = vmatpush2.msra.mxu0 %v880
        %1242 = vmatprep.mubr.f32.mxu0 %v907
        %1243 = vmatmul.mubr.f32.gmra.mxu0 %v906
        %v1244 = vpop.f32.mrf.mxu0
        %v1245 = vadd.f32 %v1100, %v1244
        %v1246 = vpop.f32.mrf.mxu0
        %1247 = vmatprep.mubr.f32.mxu0 %v912
        %1248 = vmatmul.mubr.f32.gmra.mxu0 %v911
        %v1249 = vpop.f32.mrf.mxu0
        %v1250 = vadd.f32 %v1105, %v1249
        %v1251 = vpop.f32.mrf.mxu0
        %1252 = vmatprep.mubr.f32.mxu0 %v917
        %1253 = vmatmul.mubr.f32.gmra.mxu0 %v916
        %v1254 = vpop.f32.mrf.mxu0
        %v1255 = vadd.f32 %v1110, %v1254
        %v1256 = vpop.f32.mrf.mxu0
        %1257 = vmatprep.mubr.f32.mxu0 %v922
        %1258 = vmatmul.mubr.f32.gmra.mxu0 %v921
        %v1259 = vpop.f32.mrf.mxu0
        %v1260 = vadd.f32 %v1115, %v1259
        %v1261 = vpop.f32.mrf.mxu0
        %1262 = vmatprep.mubr.f32.mxu0 %v927
        %1263 = vmatmul.mubr.f32.gmra.mxu0 %v926
        %v1264 = vpop.f32.mrf.mxu0
        %v1265 = vadd.f32 %v1120, %v1264
        %v1266 = vpop.f32.mrf.mxu0
        %1267 = vmatprep.mubr.f32.mxu0 %v932
        %1268 = vmatmul.mubr.f32.gmra.mxu0 %v931
        %v1269 = vpop.f32.mrf.mxu0
        %v1270 = vadd.f32 %v1125, %v1269
        %v1271 = vpop.f32.mrf.mxu0
        %1272 = vmatprep.mubr.f32.mxu0 %v937
        %1273 = vmatmul.mubr.f32.gmra.mxu0 %v936
        %v1274 = vpop.f32.mrf.mxu0
        %v1275 = vadd.f32 %v1130, %v1274
        %v1276 = vpop.f32.mrf.mxu0
        %1277 = vmatprep.mubr.f32.mxu0 %v942
        %1278 = vmatmul.mubr.f32.gmra.mxu0 %v941
        %v1279 = vpop.f32.mrf.mxu0
        %v1280 = vadd.f32 %v1135, %v1279
        %v1281 = vpop.f32.mrf.mxu0
        %1282 = vmatprep.mubr.f32.mxu0 %v947
        %1283 = vmatmul.mubr.f32.gmra.mxu0 %v946
        %v1284 = vpop.f32.mrf.mxu0
        %v1285 = vadd.f32 %v1140, %v1284
        %v1286 = vpop.f32.mrf.mxu0
        %1287 = vmatprep.mubr.f32.mxu0 %v952
        %1288 = vmatmul.mubr.f32.gmra.mxu0 %v951
        %v1289 = vpop.f32.mrf.mxu0
        %v1290 = vadd.f32 %v1145, %v1289
        %v1291 = vpop.f32.mrf.mxu0
        %1292 = vmatprep.mubr.f32.mxu0 %v957
        %1293 = vmatmul.mubr.f32.gmra.mxu0 %v956
        %v1294 = vpop.f32.mrf.mxu0
        %v1295 = vadd.f32 %v1150, %v1294
        %v1296 = vpop.f32.mrf.mxu0
        %1297 = vmatprep.mubr.f32.mxu0 %v962
        %1298 = vmatmul.mubr.f32.gmra.mxu0 %v961
        %v1299 = vpop.f32.mrf.mxu0
        %v1300 = vadd.f32 %v1155, %v1299
        %v1301 = vpop.f32.mrf.mxu0
        %1302 = vmatprep.mubr.f32.mxu0 %v967
        %1303 = vmatmul.mubr.f32.gmra.mxu0 %v966
        %v1304 = vpop.f32.mrf.mxu0
        %v1305 = vadd.f32 %v1160, %v1304
        %v1306 = vpop.f32.mrf.mxu0
        %1307 = vmatprep.mubr.f32.mxu0 %v972
        %1308 = vmatmul.mubr.f32.gmra.mxu0 %v971
        %v1309 = vpop.f32.mrf.mxu0
        %v1310 = vadd.f32 %v1165, %v1309
        %v1311 = vpop.f32.mrf.mxu0
        %1312 = vmatprep.mubr.f32.mxu0 %v977
        %1313 = vmatmul.mubr.f32.gmra.mxu0 %v976
        %v1314 = vpop.f32.mrf.mxu0
        %v1315 = vadd.f32 %v1170, %v1314
        %v1316 = vpop.f32.mrf.mxu0
        %1317 = vmatprep.mubr.f32.mxu0 %v982
        %1318 = vmatmul.mubr.f32.gmra.mxu0 %v981
        %v1319 = vpop.f32.mrf.mxu0
        %v1320 = vadd.f32 %v1175, %v1319
        %v1321 = vpop.f32.mrf.mxu0
        %1322 = vdwg.mxu0
        %1323 = vmatprep.subr.mxu0 0.0
        %1324 = vmatpush1.msra.mxu0 0.0
        %1325 = vmatprep.subr.mxu0 0.0
        %1326 = vmatpush1.msra.mxu0 0.0
        %1327 = vmatprep.subr.mxu0 0.0
        %1328 = vmatpush1.msra.mxu0 0.0
        %1329 = vmatprep.subr.mxu0 0.0
        %1330 = vmatpush1.msra.mxu0 0.0
        %1331 = vmatprep.subr.mxu0 0.0
        %1332 = vmatpush1.msra.mxu0 0.0
        %1333 = vmatprep.subr.mxu0 0.0
        %1334 = vmatpush1.msra.mxu0 0.0
        %1335 = vmatprep.subr.mxu0 0.0
        %1336 = vmatpush1.msra.mxu0 0.0
        %1337 = vmatprep.subr.mxu0 0.0
        %1338 = vmatpush1.msra.mxu0 0.0
        %1339 = vmatprep.subr.mxu0 0.0
        %1340 = vmatpush1.msra.mxu0 %v903
        %1341 = vmatprep.subr.mxu0 0.0
        %1342 = vmatpush1.msra.mxu0 %v902
        %1343 = vmatprep.subr.mxu0 0.0
        %1344 = vmatpush1.msra.mxu0 %v901
        %1345 = vmatprep.subr.mxu0 0.0
        %1346 = vmatpush1.msra.mxu0 %v900
        %1347 = vmatprep.subr.mxu0 0.0
        %1348 = vmatpush1.msra.mxu0 %v899
        %1349 = vmatprep.subr.mxu0 0.0
        %1350 = vmatpush1.msra.mxu0 %v898
        %1351 = vmatprep.subr.mxu0 0.0
        %1352 = vmatpush1.msra.mxu0 %v897
        %1353 = vmatprep.subr.mxu0 0.0
        %1354 = vmatpush1.msra.mxu0 %v896
        %1355 = vmatprep.subr.mxu0 0.0
        %1356 = vmatpush2.msra.mxu0 0.0
        %1357 = vmatprep.subr.mxu0 0.0
        %1358 = vmatpush2.msra.mxu0 0.0
        %1359 = vmatprep.subr.mxu0 0.0
        %1360 = vmatpush2.msra.mxu0 0.0
        %1361 = vmatprep.subr.mxu0 0.0
        %1362 = vmatpush2.msra.mxu0 0.0
        %1363 = vmatprep.subr.mxu0 0.0
        %1364 = vmatpush2.msra.mxu0 0.0
        %1365 = vmatprep.subr.mxu0 0.0
        %1366 = vmatpush2.msra.mxu0 0.0
        %1367 = vmatprep.subr.mxu0 0.0
        %1368 = vmatpush2.msra.mxu0 0.0
        %1369 = vmatprep.subr.mxu0 0.0
        %1370 = vmatpush2.msra.mxu0 0.0
        %1371 = vmatprep.subr.mxu0 0.0
        %1372 = vmatpush2.msra.mxu0 0.0
        %1373 = vmatprep.subr.mxu0 0.0
        %1374 = vmatpush2.msra.mxu0 0.0
        %1375 = vmatprep.subr.mxu0 0.0
        %1376 = vmatpush2.msra.mxu0 0.0
        %1377 = vmatprep.subr.mxu0 0.0
        %1378 = vmatpush2.msra.mxu0 0.0
        %1379 = vmatprep.subr.mxu0 0.0
        %1380 = vmatpush2.msra.mxu0 0.0
        %1381 = vmatprep.subr.mxu0 0.0
        %1382 = vmatpush2.msra.mxu0 0.0
        %1383 = vmatprep.subr.mxu0 0.0
        %1384 = vmatpush2.msra.mxu0 0.0
        %1385 = vmatprep.subr.mxu0 0.0
        %1386 = vmatpush2.msra.mxu0 0.0
        %1387 = vmatprep.mubr.f32.mxu0 0.0
        %1388 = vmatmul.mubr.f32.gmra.mxu0 %v986
        %v1389 = vpop.f32.mrf.mxu0
        %v1390 = vadd.f32 %v1245, %v1389
        %v1391 = vpop.f32.mrf.mxu0
        %1392 = vmatprep.mubr.f32.mxu0 0.0
        %1393 = vmatmul.mubr.f32.gmra.mxu0 %v989
        %v1394 = vpop.f32.mrf.mxu0
        %v1395 = vadd.f32 %v1250, %v1394
        %v1396 = vpop.f32.mrf.mxu0
        %1397 = vmatprep.mubr.f32.mxu0 0.0
        %1398 = vmatmul.mubr.f32.gmra.mxu0 %v992
        %v1399 = vpop.f32.mrf.mxu0
        %v1400 = vadd.f32 %v1255, %v1399
        %v1401 = vpop.f32.mrf.mxu0
        %1402 = vmatprep.mubr.f32.mxu0 0.0
        %1403 = vmatmul.mubr.f32.gmra.mxu0 %v995
        %v1404 = vpop.f32.mrf.mxu0
        %v1405 = vadd.f32 %v1260, %v1404
        %v1406 = vpop.f32.mrf.mxu0
        %1407 = vmatprep.mubr.f32.mxu0 0.0
        %1408 = vmatmul.mubr.f32.gmra.mxu0 %v998
        %v1409 = vpop.f32.mrf.mxu0
        %v1410 = vadd.f32 %v1265, %v1409
        %v1411 = vpop.f32.mrf.mxu0
        %1412 = vmatprep.mubr.f32.mxu0 0.0
        %1413 = vmatmul.mubr.f32.gmra.mxu0 %v1001
        %v1414 = vpop.f32.mrf.mxu0
        %v1415 = vadd.f32 %v1270, %v1414
        %v1416 = vpop.f32.mrf.mxu0
        %1417 = vmatprep.mubr.f32.mxu0 0.0
        %1418 = vmatmul.mubr.f32.gmra.mxu0 %v1004
        %v1419 = vpop.f32.mrf.mxu0
        %v1420 = vadd.f32 %v1275, %v1419
        %v1421 = vpop.f32.mrf.mxu0
        %1422 = vmatprep.mubr.f32.mxu0 0.0
        %1423 = vmatmul.mubr.f32.gmra.mxu0 %v1007
        %v1424 = vpop.f32.mrf.mxu0
        %v1425 = vadd.f32 %v1280, %v1424
        %v1426 = vpop.f32.mrf.mxu0
        %1427 = vmatprep.mubr.f32.mxu0 0.0
        %1428 = vmatmul.mubr.f32.gmra.mxu0 %v1010
        %v1429 = vpop.f32.mrf.mxu0
        %v1430 = vadd.f32 %v1285, %v1429
        %v1431 = vpop.f32.mrf.mxu0
        %1432 = vmatprep.mubr.f32.mxu0 0.0
        %1433 = vmatmul.mubr.f32.gmra.mxu0 %v1013
        %v1434 = vpop.f32.mrf.mxu0
        %v1435 = vadd.f32 %v1290, %v1434
        %v1436 = vpop.f32.mrf.mxu0
        %1437 = vmatprep.mubr.f32.mxu0 0.0
        %1438 = vmatmul.mubr.f32.gmra.mxu0 %v1016
        %v1439 = vpop.f32.mrf.mxu0
        %v1440 = vadd.f32 %v1295, %v1439
        %v1441 = vpop.f32.mrf.mxu0
        %1442 = vmatprep.mubr.f32.mxu0 0.0
        %1443 = vmatmul.mubr.f32.gmra.mxu0 %v1019
        %v1444 = vpop.f32.mrf.mxu0
        %v1445 = vadd.f32 %v1300, %v1444
        %v1446 = vpop.f32.mrf.mxu0
        %1447 = vmatprep.mubr.f32.mxu0 0.0
        %1448 = vmatmul.mubr.f32.gmra.mxu0 %v1022
        %v1449 = vpop.f32.mrf.mxu0
        %v1450 = vadd.f32 %v1305, %v1449
        %v1451 = vpop.f32.mrf.mxu0
        %1452 = vmatprep.mubr.f32.mxu0 0.0
        %1453 = vmatmul.mubr.f32.gmra.mxu0 %v1025
        %v1454 = vpop.f32.mrf.mxu0
        %v1455 = vadd.f32 %v1310, %v1454
        %v1456 = vpop.f32.mrf.mxu0
        %1457 = vmatprep.mubr.f32.mxu0 0.0
        %1458 = vmatmul.mubr.f32.gmra.mxu0 %v1028
        %v1459 = vpop.f32.mrf.mxu0
        %v1460 = vadd.f32 %v1315, %v1459
        %v1461 = vpop.f32.mrf.mxu0
        %1462 = vmatprep.mubr.f32.mxu0 0.0
        %1463 = vmatmul.mubr.f32.gmra.mxu0 %v1031
        %v1464 = vpop.f32.mrf.mxu0
        %v1465 = vadd.f32 %v1320, %v1464
        %v1466 = vpop.f32.mrf.mxu0
        %1467 = vdwg.mxu0
        %s1468 = scalar_lea.vmem %s804, 640 [#allocation2]
        %v1469 = vld [vmem:[%s1468] sm:$0xff]
        %v1470 = vld [vmem:[%s1468 + $0x8] sm:$0xff]
        %v1471 = vld [vmem:[%s1468 + $0x10] sm:$0xff]
        %v1472 = vld [vmem:[%s1468 + $0x18] sm:$0xff]
        %v1473 = vld [vmem:[%s1468 + $0x20] sm:$0xff]
        %v1474 = vld [vmem:[%s1468 + $0x28] sm:$0xff]
        %v1475 = vld [vmem:[%s1468 + $0x30] sm:$0xff]
        %v1476 = vld [vmem:[%s1468 + $0x38] sm:$0xff]
        %v1477 = vld [vmem:[%s1468 + $0x40] sm:$0xff]
        %v1478 = vld [vmem:[%s1468 + $0x48] sm:$0xff]
        %v1479 = vld [vmem:[%s1468 + $0x50] sm:$0xff]
        %v1480 = vld [vmem:[%s1468 + $0x58] sm:$0xff]
        %v1481 = vld [vmem:[%s1468 + $0x60] sm:$0xff]
        %v1482 = vld [vmem:[%s1468 + $0x68] sm:$0xff]
        %v1483 = vld [vmem:[%s1468 + $0x70] sm:$0xff]
        %v1484 = vld [vmem:[%s1468 + $0x78] sm:$0xff]
        %v1485 = vld [vmem:[%s1468 + $0x80] sm:$0xff]
        %v1486 = vld [vmem:[%s1468 + $0x88] sm:$0xff]
        %v1487 = vld [vmem:[%s1468 + $0x90] sm:$0xff]
        %v1488 = vld [vmem:[%s1468 + $0x98] sm:$0xff]
        %v1489 = vld [vmem:[%s1468 + $0xa0] sm:$0xff]
        %v1490 = vld [vmem:[%s1468 + $0xa8] sm:$0xff]
        %v1491 = vld [vmem:[%s1468 + $0xb0] sm:$0xff]
        %v1492 = vld [vmem:[%s1468 + $0xb8] sm:$0xff]
        %v1493 = vld [vmem:[%s1468 + $0xc0] sm:$0xff]
        %v1494 = vld [vmem:[%s1468 + $0xc8] sm:$0xff]
        %v1495 = vld [vmem:[%s1468 + $0xd0] sm:$0xff]
        %v1496 = vld [vmem:[%s1468 + $0xd8] sm:$0xff]
        %v1497 = vld [vmem:[%s1468 + $0xe0] sm:$0xff]
        %v1498 = vld [vmem:[%s1468 + $0xe8] sm:$0xff]
        %v1499 = vld [vmem:[%s1468 + $0xf0] sm:$0xff]
        %v1500 = vld [vmem:[%s1468 + $0xf8] sm:$0xff]
        %v1501 = vld [vmem:[%s1468 + $0x100] sm:$0xff]
        %v1502 = vld [vmem:[%s1468 + $0x108] sm:$0xff]
        %v1503 = vld [vmem:[%s1468 + $0x110] sm:$0xff]
        %v1504 = vld [vmem:[%s1468 + $0x118] sm:$0xff]
        %v1505 = vld [vmem:[%s1468 + $0x120] sm:$0xff]
        %v1506 = vld [vmem:[%s1468 + $0x128] sm:$0xff]
        %v1507 = vld [vmem:[%s1468 + $0x130] sm:$0xff]
        %v1508 = vld [vmem:[%s1468 + $0x138] sm:$0xff]
        %v1509 = vld [vmem:[%s1468 + $0x140] sm:$0xff]
        %v1510 = vld [vmem:[%s1468 + $0x148] sm:$0xff]
        %v1511 = vld [vmem:[%s1468 + $0x150] sm:$0xff]
        %v1512 = vld [vmem:[%s1468 + $0x158] sm:$0xff]
        %v1513 = vld [vmem:[%s1468 + $0x160] sm:$0xff]
        %v1514 = vld [vmem:[%s1468 + $0x168] sm:$0xff]
        %v1515 = vld [vmem:[%s1468 + $0x170] sm:$0xff]
        %v1516 = vld [vmem:[%s1468 + $0x178] sm:$0xff]
        %v1517 = vld [vmem:[%s1468 + $0x180] sm:$0xff]
        %v1518 = vld [vmem:[%s1468 + $0x188] sm:$0xff]
        %v1519 = vld [vmem:[%s1468 + $0x190] sm:$0xff]
        %v1520 = vld [vmem:[%s1468 + $0x198] sm:$0xff]
        %v1521 = vld [vmem:[%s1468 + $0x1a0] sm:$0xff]
        %v1522 = vld [vmem:[%s1468 + $0x1a8] sm:$0xff]
        %v1523 = vld [vmem:[%s1468 + $0x1b0] sm:$0xff]
        %v1524 = vld [vmem:[%s1468 + $0x1b8] sm:$0xff]
        %v1525 = vld [vmem:[%s1468 + $0x1c0] sm:$0xff]
        %v1526 = vld [vmem:[%s1468 + $0x1c8] sm:$0xff]
        %v1527 = vld [vmem:[%s1468 + $0x1d0] sm:$0xff]
        %v1528 = vld [vmem:[%s1468 + $0x1d8] sm:$0xff]
        %v1529 = vld [vmem:[%s1468 + $0x1e0] sm:$0xff]
        %v1530 = vld [vmem:[%s1468 + $0x1e8] sm:$0xff]
        %v1531 = vld [vmem:[%s1468 + $0x1f0] sm:$0xff]
        %v1532 = vld [vmem:[%s1468 + $0x1f8] sm:$0xff]
        %v1533 = vld [vmem:[%s1468 + $0x200] sm:$0xff]
        %v1534 = vld [vmem:[%s1468 + $0x208] sm:$0xff]
        %v1535 = vld [vmem:[%s1468 + $0x210] sm:$0xff]
        %v1536 = vld [vmem:[%s1468 + $0x218] sm:$0xff]
        %v1537 = vld [vmem:[%s1468 + $0x220] sm:$0xff]
        %v1538 = vld [vmem:[%s1468 + $0x228] sm:$0xff]
        %v1539 = vld [vmem:[%s1468 + $0x230] sm:$0xff]
        %v1540 = vld [vmem:[%s1468 + $0x238] sm:$0xff]
        %v1541 = vld [vmem:[%s1468 + $0x240] sm:$0xff]
        %v1542 = vld [vmem:[%s1468 + $0x248] sm:$0xff]
        %v1543 = vld [vmem:[%s1468 + $0x250] sm:$0xff]
        %v1544 = vld [vmem:[%s1468 + $0x258] sm:$0xff]
        %v1545 = vld [vmem:[%s1468 + $0x260] sm:$0xff]
        %v1546 = vld [vmem:[%s1468 + $0x268] sm:$0xff]
        %v1547 = vld [vmem:[%s1468 + $0x270] sm:$0xff]
        %v1548 = vld [vmem:[%s1468 + $0x278] sm:$0xff]
        %v1550 = vsel %vm984, %v1473, 0
        %v1553 = vsel %vm984, %v1478, 0
        %v1556 = vsel %vm984, %v1483, 0
        %v1559 = vsel %vm984, %v1488, 0
        %v1562 = vsel %vm984, %v1493, 0
        %v1565 = vsel %vm984, %v1498, 0
        %v1568 = vsel %vm984, %v1503, 0
        %v1571 = vsel %vm984, %v1508, 0
        %v1574 = vsel %vm984, %v1513, 0
        %v1577 = vsel %vm984, %v1518, 0
        %v1580 = vsel %vm984, %v1523, 0
        %v1583 = vsel %vm984, %v1528, 0
        %v1586 = vsel %vm984, %v1533, 0
        %v1589 = vsel %vm984, %v1538, 0
        %v1592 = vsel %vm984, %v1543, 0
        %v1595 = vsel %vm984, %v1548, 0
        %1597 = vmatprep.subr.mxu0 0.0
        %1598 = vmatpush1.msra.mxu0 %v847
        %1599 = vmatprep.subr.mxu0 0.0
        %1600 = vmatpush1.msra.mxu0 %v846
        %1601 = vmatprep.subr.mxu0 0.0
        %1602 = vmatpush1.msra.mxu0 %v845
        %1603 = vmatprep.subr.mxu0 0.0
        %1604 = vmatpush1.msra.mxu0 %v844
        %1605 = vmatprep.subr.mxu0 0.0
        %1606 = vmatpush1.msra.mxu0 %v843
        %1607 = vmatprep.subr.mxu0 0.0
        %1608 = vmatpush1.msra.mxu0 %v842
        %1609 = vmatprep.subr.mxu0 0.0
        %1610 = vmatpush1.msra.mxu0 %v841
        %1611 = vmatprep.subr.mxu0 0.0
        %1612 = vmatpush1.msra.mxu0 %v840
        %1613 = vmatprep.subr.mxu0 0.0
        %1614 = vmatpush1.msra.mxu0 %v839
        %1615 = vmatprep.subr.mxu0 0.0
        %1616 = vmatpush1.msra.mxu0 %v838
        %1617 = vmatprep.subr.mxu0 0.0
        %1618 = vmatpush1.msra.mxu0 %v837
        %1619 = vmatprep.subr.mxu0 0.0
        %1620 = vmatpush1.msra.mxu0 %v836
        %1621 = vmatprep.subr.mxu0 0.0
        %1622 = vmatpush1.msra.mxu0 %v835
        %1623 = vmatprep.subr.mxu0 0.0
        %1624 = vmatpush1.msra.mxu0 %v834
        %1625 = vmatprep.subr.mxu0 0.0
        %1626 = vmatpush1.msra.mxu0 %v833
        %1627 = vmatprep.subr.mxu0 0.0
        %1628 = vmatpush1.msra.mxu0 %v832
        %1629 = vmatprep.subr.mxu0 0.0
        %1630 = vmatpush2.msra.mxu0 %v863
        %1631 = vmatprep.subr.mxu0 0.0
        %1632 = vmatpush2.msra.mxu0 %v862
        %1633 = vmatprep.subr.mxu0 0.0
        %1634 = vmatpush2.msra.mxu0 %v861
        %1635 = vmatprep.subr.mxu0 0.0
        %1636 = vmatpush2.msra.mxu0 %v860
        %1637 = vmatprep.subr.mxu0 0.0
        %1638 = vmatpush2.msra.mxu0 %v859
        %1639 = vmatprep.subr.mxu0 0.0
        %1640 = vmatpush2.msra.mxu0 %v858
        %1641 = vmatprep.subr.mxu0 0.0
        %1642 = vmatpush2.msra.mxu0 %v857
        %1643 = vmatprep.subr.mxu0 0.0
        %1644 = vmatpush2.msra.mxu0 %v856
        %1645 = vmatprep.subr.mxu0 0.0
        %1646 = vmatpush2.msra.mxu0 %v855
        %1647 = vmatprep.subr.mxu0 0.0
        %1648 = vmatpush2.msra.mxu0 %v854
        %1649 = vmatprep.subr.mxu0 0.0
        %1650 = vmatpush2.msra.mxu0 %v853
        %1651 = vmatprep.subr.mxu0 0.0
        %1652 = vmatpush2.msra.mxu0 %v852
        %1653 = vmatprep.subr.mxu0 0.0
        %1654 = vmatpush2.msra.mxu0 %v851
        %1655 = vmatprep.subr.mxu0 0.0
        %1656 = vmatpush2.msra.mxu0 %v850
        %1657 = vmatprep.subr.mxu0 0.0
        %1658 = vmatpush2.msra.mxu0 %v849
        %1659 = vmatprep.subr.mxu0 0.0
        %1660 = vmatpush2.msra.mxu0 %v848
        %1661 = vmatprep.mubr.f32.mxu0 %v1470
        %1662 = vmatmul.mubr.f32.gmra.mxu0 %v1469
        %v1663 = vpop.f32.mrf.mxu0
        %v1664 = vadd.f32 0.0, %v1663
        %v1665 = vpop.f32.mrf.mxu0
        %1666 = vmatprep.mubr.f32.mxu0 %v1475
        %1667 = vmatmul.mubr.f32.gmra.mxu0 %v1474
        %v1668 = vpop.f32.mrf.mxu0
        %v1669 = vadd.f32 0.0, %v1668
        %v1670 = vpop.f32.mrf.mxu0
        %1671 = vmatprep.mubr.f32.mxu0 %v1480
        %1672 = vmatmul.mubr.f32.gmra.mxu0 %v1479
        %v1673 = vpop.f32.mrf.mxu0
        %v1674 = vadd.f32 0.0, %v1673
        %v1675 = vpop.f32.mrf.mxu0
        %1676 = vmatprep.mubr.f32.mxu0 %v1485
        %1677 = vmatmul.mubr.f32.gmra.mxu0 %v1484
        %v1678 = vpop.f32.mrf.mxu0
        %v1679 = vadd.f32 0.0, %v1678
        %v1680 = vpop.f32.mrf.mxu0
        %1681 = vmatprep.mubr.f32.mxu0 %v1490
        %1682 = vmatmul.mubr.f32.gmra.mxu0 %v1489
        %v1683 = vpop.f32.mrf.mxu0
        %v1684 = vadd.f32 0.0, %v1683
        %v1685 = vpop.f32.mrf.mxu0
        %1686 = vmatprep.mubr.f32.mxu0 %v1495
        %1687 = vmatmul.mubr.f32.gmra.mxu0 %v1494
        %v1688 = vpop.f32.mrf.mxu0
        %v1689 = vadd.f32 0.0, %v1688
        %v1690 = vpop.f32.mrf.mxu0
        %1691 = vmatprep.mubr.f32.mxu0 %v1500
        %1692 = vmatmul.mubr.f32.gmra.mxu0 %v1499
        %v1693 = vpop.f32.mrf.mxu0
        %v1694 = vadd.f32 0.0, %v1693
        %v1695 = vpop.f32.mrf.mxu0
        %1696 = vmatprep.mubr.f32.mxu0 %v1505
        %1697 = vmatmul.mubr.f32.gmra.mxu0 %v1504
        %v1698 = vpop.f32.mrf.mxu0
        %v1699 = vadd.f32 0.0, %v1698
        %v1700 = vpop.f32.mrf.mxu0
        %1701 = vmatprep.mubr.f32.mxu0 %v1510
        %1702 = vmatmul.mubr.f32.gmra.mxu0 %v1509
        %v1703 = vpop.f32.mrf.mxu0
        %v1704 = vadd.f32 0.0, %v1703
        %v1705 = vpop.f32.mrf.mxu0
        %1706 = vmatprep.mubr.f32.mxu0 %v1515
        %1707 = vmatmul.mubr.f32.gmra.mxu0 %v1514
        %v1708 = vpop.f32.mrf.mxu0
        %v1709 = vadd.f32 0.0, %v1708
        %v1710 = vpop.f32.mrf.mxu0
        %1711 = vmatprep.mubr.f32.mxu0 %v1520
        %1712 = vmatmul.mubr.f32.gmra.mxu0 %v1519
        %v1713 = vpop.f32.mrf.mxu0
        %v1714 = vadd.f32 0.0, %v1713
        %v1715 = vpop.f32.mrf.mxu0
        %1716 = vmatprep.mubr.f32.mxu0 %v1525
        %1717 = vmatmul.mubr.f32.gmra.mxu0 %v1524
        %v1718 = vpop.f32.mrf.mxu0
        %v1719 = vadd.f32 0.0, %v1718
        %v1720 = vpop.f32.mrf.mxu0
        %1721 = vmatprep.mubr.f32.mxu0 %v1530
        %1722 = vmatmul.mubr.f32.gmra.mxu0 %v1529
        %v1723 = vpop.f32.mrf.mxu0
        %v1724 = vadd.f32 0.0, %v1723
        %v1725 = vpop.f32.mrf.mxu0
        %1726 = vmatprep.mubr.f32.mxu0 %v1535
        %1727 = vmatmul.mubr.f32.gmra.mxu0 %v1534
        %v1728 = vpop.f32.mrf.mxu0
        %v1729 = vadd.f32 0.0, %v1728
        %v1730 = vpop.f32.mrf.mxu0
        %1731 = vmatprep.mubr.f32.mxu0 %v1540
        %1732 = vmatmul.mubr.f32.gmra.mxu0 %v1539
        %v1733 = vpop.f32.mrf.mxu0
        %v1734 = vadd.f32 0.0, %v1733
        %v1735 = vpop.f32.mrf.mxu0
        %1736 = vmatprep.mubr.f32.mxu0 %v1545
        %1737 = vmatmul.mubr.f32.gmra.mxu0 %v1544
        %v1738 = vpop.f32.mrf.mxu0
        %v1739 = vadd.f32 0.0, %v1738
        %v1740 = vpop.f32.mrf.mxu0
        %1741 = vdwg.mxu0
        %1742 = vmatprep.subr.mxu0 0.0
        %1743 = vmatpush1.msra.mxu0 %v879
        %1744 = vmatprep.subr.mxu0 0.0
        %1745 = vmatpush1.msra.mxu0 %v878
        %1746 = vmatprep.subr.mxu0 0.0
        %1747 = vmatpush1.msra.mxu0 %v877
        %1748 = vmatprep.subr.mxu0 0.0
        %1749 = vmatpush1.msra.mxu0 %v876
        %1750 = vmatprep.subr.mxu0 0.0
        %1751 = vmatpush1.msra.mxu0 %v875
        %1752 = vmatprep.subr.mxu0 0.0
        %1753 = vmatpush1.msra.mxu0 %v874
        %1754 = vmatprep.subr.mxu0 0.0
        %1755 = vmatpush1.msra.mxu0 %v873
        %1756 = vmatprep.subr.mxu0 0.0
        %1757 = vmatpush1.msra.mxu0 %v872
        %1758 = vmatprep.subr.mxu0 0.0
        %1759 = vmatpush1.msra.mxu0 %v871
        %1760 = vmatprep.subr.mxu0 0.0
        %1761 = vmatpush1.msra.mxu0 %v870
        %1762 = vmatprep.subr.mxu0 0.0
        %1763 = vmatpush1.msra.mxu0 %v869
        %1764 = vmatprep.subr.mxu0 0.0
        %1765 = vmatpush1.msra.mxu0 %v868
        %1766 = vmatprep.subr.mxu0 0.0
        %1767 = vmatpush1.msra.mxu0 %v867
        %1768 = vmatprep.subr.mxu0 0.0
        %1769 = vmatpush1.msra.mxu0 %v866
        %1770 = vmatprep.subr.mxu0 0.0
        %1771 = vmatpush1.msra.mxu0 %v865
        %1772 = vmatprep.subr.mxu0 0.0
        %1773 = vmatpush1.msra.mxu0 %v864
        %1774 = vmatprep.subr.mxu0 0.0
        %1775 = vmatpush2.msra.mxu0 %v895
        %1776 = vmatprep.subr.mxu0 0.0
        %1777 = vmatpush2.msra.mxu0 %v894
        %1778 = vmatprep.subr.mxu0 0.0
        %1779 = vmatpush2.msra.mxu0 %v893
        %1780 = vmatprep.subr.mxu0 0.0
        %1781 = vmatpush2.msra.mxu0 %v892
        %1782 = vmatprep.subr.mxu0 0.0
        %1783 = vmatpush2.msra.mxu0 %v891
        %1784 = vmatprep.subr.mxu0 0.0
        %1785 = vmatpush2.msra.mxu0 %v890
        %1786 = vmatprep.subr.mxu0 0.0
        %1787 = vmatpush2.msra.mxu0 %v889
        %1788 = vmatprep.subr.mxu0 0.0
        %1789 = vmatpush2.msra.mxu0 %v888
        %1790 = vmatprep.subr.mxu0 0.0
        %1791 = vmatpush2.msra.mxu0 %v887
        %1792 = vmatprep.subr.mxu0 0.0
        %1793 = vmatpush2.msra.mxu0 %v886
        %1794 = vmatprep.subr.mxu0 0.0
        %1795 = vmatpush2.msra.mxu0 %v885
        %1796 = vmatprep.subr.mxu0 0.0
        %1797 = vmatpush2.msra.mxu0 %v884
        %1798 = vmatprep.subr.mxu0 0.0
        %1799 = vmatpush2.msra.mxu0 %v883
        %1800 = vmatprep.subr.mxu0 0.0
        %1801 = vmatpush2.msra.mxu0 %v882
        %1802 = vmatprep.subr.mxu0 0.0
        %1803 = vmatpush2.msra.mxu0 %v881
        %1804 = vmatprep.subr.mxu0 0.0
        %1805 = vmatpush2.msra.mxu0 %v880
        %1806 = vmatprep.mubr.f32.mxu0 %v1472
        %1807 = vmatmul.mubr.f32.gmra.mxu0 %v1471
        %v1808 = vpop.f32.mrf.mxu0
        %v1809 = vadd.f32 %v1664, %v1808
        %v1810 = vpop.f32.mrf.mxu0
        %1811 = vmatprep.mubr.f32.mxu0 %v1477
        %1812 = vmatmul.mubr.f32.gmra.mxu0 %v1476
        %v1813 = vpop.f32.mrf.mxu0
        %v1814 = vadd.f32 %v1669, %v1813
        %v1815 = vpop.f32.mrf.mxu0
        %1816 = vmatprep.mubr.f32.mxu0 %v1482
        %1817 = vmatmul.mubr.f32.gmra.mxu0 %v1481
        %v1818 = vpop.f32.mrf.mxu0
        %v1819 = vadd.f32 %v1674, %v1818
        %v1820 = vpop.f32.mrf.mxu0
        %1821 = vmatprep.mubr.f32.mxu0 %v1487
        %1822 = vmatmul.mubr.f32.gmra.mxu0 %v1486
        %v1823 = vpop.f32.mrf.mxu0
        %v1824 = vadd.f32 %v1679, %v1823
        %v1825 = vpop.f32.mrf.mxu0
        %1826 = vmatprep.mubr.f32.mxu0 %v1492
        %1827 = vmatmul.mubr.f32.gmra.mxu0 %v1491
        %v1828 = vpop.f32.mrf.mxu0
        %v1829 = vadd.f32 %v1684, %v1828
        %v1830 = vpop.f32.mrf.mxu0
        %1831 = vmatprep.mubr.f32.mxu0 %v1497
        %1832 = vmatmul.mubr.f32.gmra.mxu0 %v1496
        %v1833 = vpop.f32.mrf.mxu0
        %v1834 = vadd.f32 %v1689, %v1833
        %v1835 = vpop.f32.mrf.mxu0
        %1836 = vmatprep.mubr.f32.mxu0 %v1502
        %1837 = vmatmul.mubr.f32.gmra.mxu0 %v1501
        %v1838 = vpop.f32.mrf.mxu0
        %v1839 = vadd.f32 %v1694, %v1838
        %v1840 = vpop.f32.mrf.mxu0
        %1841 = vmatprep.mubr.f32.mxu0 %v1507
        %1842 = vmatmul.mubr.f32.gmra.mxu0 %v1506
        %v1843 = vpop.f32.mrf.mxu0
        %v1844 = vadd.f32 %v1699, %v1843
        %v1845 = vpop.f32.mrf.mxu0
        %1846 = vmatprep.mubr.f32.mxu0 %v1512
        %1847 = vmatmul.mubr.f32.gmra.mxu0 %v1511
        %v1848 = vpop.f32.mrf.mxu0
        %v1849 = vadd.f32 %v1704, %v1848
        %v1850 = vpop.f32.mrf.mxu0
        %1851 = vmatprep.mubr.f32.mxu0 %v1517
        %1852 = vmatmul.mubr.f32.gmra.mxu0 %v1516
        %v1853 = vpop.f32.mrf.mxu0
        %v1854 = vadd.f32 %v1709, %v1853
        %v1855 = vpop.f32.mrf.mxu0
        %1856 = vmatprep.mubr.f32.mxu0 %v1522
        %1857 = vmatmul.mubr.f32.gmra.mxu0 %v1521
        %v1858 = vpop.f32.mrf.mxu0
        %v1859 = vadd.f32 %v1714, %v1858
        %v1860 = vpop.f32.mrf.mxu0
        %1861 = vmatprep.mubr.f32.mxu0 %v1527
        %1862 = vmatmul.mubr.f32.gmra.mxu0 %v1526
        %v1863 = vpop.f32.mrf.mxu0
        %v1864 = vadd.f32 %v1719, %v1863
        %v1865 = vpop.f32.mrf.mxu0
        %1866 = vmatprep.mubr.f32.mxu0 %v1532
        %1867 = vmatmul.mubr.f32.gmra.mxu0 %v1531
        %v1868 = vpop.f32.mrf.mxu0
        %v1869 = vadd.f32 %v1724, %v1868
        %v1870 = vpop.f32.mrf.mxu0
        %1871 = vmatprep.mubr.f32.mxu0 %v1537
        %1872 = vmatmul.mubr.f32.gmra.mxu0 %v1536
        %v1873 = vpop.f32.mrf.mxu0
        %v1874 = vadd.f32 %v1729, %v1873
        %v1875 = vpop.f32.mrf.mxu0
        %1876 = vmatprep.mubr.f32.mxu0 %v1542
        %1877 = vmatmul.mubr.f32.gmra.mxu0 %v1541
        %v1878 = vpop.f32.mrf.mxu0
        %v1879 = vadd.f32 %v1734, %v1878
        %v1880 = vpop.f32.mrf.mxu0
        %1881 = vmatprep.mubr.f32.mxu0 %v1547
        %1882 = vmatmul.mubr.f32.gmra.mxu0 %v1546
        %v1883 = vpop.f32.mrf.mxu0
        %v1884 = vadd.f32 %v1739, %v1883
        %v1885 = vpop.f32.mrf.mxu0
        %1886 = vdwg.mxu0
        %1887 = vmatprep.subr.mxu0 0.0
        %1888 = vmatpush1.msra.mxu0 0.0
        %1889 = vmatprep.subr.mxu0 0.0
        %1890 = vmatpush1.msra.mxu0 0.0
        %1891 = vmatprep.subr.mxu0 0.0
        %1892 = vmatpush1.msra.mxu0 0.0
        %1893 = vmatprep.subr.mxu0 0.0
        %1894 = vmatpush1.msra.mxu0 0.0
        %1895 = vmatprep.subr.mxu0 0.0
        %1896 = vmatpush1.msra.mxu0 0.0
        %1897 = vmatprep.subr.mxu0 0.0
        %1898 = vmatpush1.msra.mxu0 0.0
        %1899 = vmatprep.subr.mxu0 0.0
        %1900 = vmatpush1.msra.mxu0 0.0
        %1901 = vmatprep.subr.mxu0 0.0
        %1902 = vmatpush1.msra.mxu0 0.0
        %1903 = vmatprep.subr.mxu0 0.0
        %1904 = vmatpush1.msra.mxu0 %v903
        %1905 = vmatprep.subr.mxu0 0.0
        %1906 = vmatpush1.msra.mxu0 %v902
        %1907 = vmatprep.subr.mxu0 0.0
        %1908 = vmatpush1.msra.mxu0 %v901
        %1909 = vmatprep.subr.mxu0 0.0
        %1910 = vmatpush1.msra.mxu0 %v900
        %1911 = vmatprep.subr.mxu0 0.0
        %1912 = vmatpush1.msra.mxu0 %v899
        %1913 = vmatprep.subr.mxu0 0.0
        %1914 = vmatpush1.msra.mxu0 %v898
        %1915 = vmatprep.subr.mxu0 0.0
        %1916 = vmatpush1.msra.mxu0 %v897
        %1917 = vmatprep.subr.mxu0 0.0
        %1918 = vmatpush1.msra.mxu0 %v896
        %1919 = vmatprep.subr.mxu0 0.0
        %1920 = vmatpush2.msra.mxu0 0.0
        %1921 = vmatprep.subr.mxu0 0.0
        %1922 = vmatpush2.msra.mxu0 0.0
        %1923 = vmatprep.subr.mxu0 0.0
        %1924 = vmatpush2.msra.mxu0 0.0
        %1925 = vmatprep.subr.mxu0 0.0
        %1926 = vmatpush2.msra.mxu0 0.0
        %1927 = vmatprep.subr.mxu0 0.0
        %1928 = vmatpush2.msra.mxu0 0.0
        %1929 = vmatprep.subr.mxu0 0.0
        %1930 = vmatpush2.msra.mxu0 0.0
        %1931 = vmatprep.subr.mxu0 0.0
        %1932 = vmatpush2.msra.mxu0 0.0
        %1933 = vmatprep.subr.mxu0 0.0
        %1934 = vmatpush2.msra.mxu0 0.0
        %1935 = vmatprep.subr.mxu0 0.0
        %1936 = vmatpush2.msra.mxu0 0.0
        %1937 = vmatprep.subr.mxu0 0.0
        %1938 = vmatpush2.msra.mxu0 0.0
        %1939 = vmatprep.subr.mxu0 0.0
        %1940 = vmatpush2.msra.mxu0 0.0
        %1941 = vmatprep.subr.mxu0 0.0
        %1942 = vmatpush2.msra.mxu0 0.0
        %1943 = vmatprep.subr.mxu0 0.0
        %1944 = vmatpush2.msra.mxu0 0.0
        %1945 = vmatprep.subr.mxu0 0.0
        %1946 = vmatpush2.msra.mxu0 0.0
        %1947 = vmatprep.subr.mxu0 0.0
        %1948 = vmatpush2.msra.mxu0 0.0
        %1949 = vmatprep.subr.mxu0 0.0
        %1950 = vmatpush2.msra.mxu0 0.0
        %1951 = vmatprep.mubr.f32.mxu0 0.0
        %1952 = vmatmul.mubr.f32.gmra.mxu0 %v1550
        %v1953 = vpop.f32.mrf.mxu0
        %v1954 = vadd.f32 %v1809, %v1953
        %v1955 = vpop.f32.mrf.mxu0
        %1956 = vmatprep.mubr.f32.mxu0 0.0
        %1957 = vmatmul.mubr.f32.gmra.mxu0 %v1553
        %v1958 = vpop.f32.mrf.mxu0
        %v1959 = vadd.f32 %v1814, %v1958
        %v1960 = vpop.f32.mrf.mxu0
        %1961 = vmatprep.mubr.f32.mxu0 0.0
        %1962 = vmatmul.mubr.f32.gmra.mxu0 %v1556
        %v1963 = vpop.f32.mrf.mxu0
        %v1964 = vadd.f32 %v1819, %v1963
        %v1965 = vpop.f32.mrf.mxu0
        %1966 = vmatprep.mubr.f32.mxu0 0.0
        %1967 = vmatmul.mubr.f32.gmra.mxu0 %v1559
        %v1968 = vpop.f32.mrf.mxu0
        %v1969 = vadd.f32 %v1824, %v1968
        %v1970 = vpop.f32.mrf.mxu0
        %1971 = vmatprep.mubr.f32.mxu0 0.0
        %1972 = vmatmul.mubr.f32.gmra.mxu0 %v1562
        %v1973 = vpop.f32.mrf.mxu0
        %v1974 = vadd.f32 %v1829, %v1973
        %v1975 = vpop.f32.mrf.mxu0
        %1976 = vmatprep.mubr.f32.mxu0 0.0
        %1977 = vmatmul.mubr.f32.gmra.mxu0 %v1565
        %v1978 = vpop.f32.mrf.mxu0
        %v1979 = vadd.f32 %v1834, %v1978
        %v1980 = vpop.f32.mrf.mxu0
        %1981 = vmatprep.mubr.f32.mxu0 0.0
        %1982 = vmatmul.mubr.f32.gmra.mxu0 %v1568
        %v1983 = vpop.f32.mrf.mxu0
        %v1984 = vadd.f32 %v1839, %v1983
        %v1985 = vpop.f32.mrf.mxu0
        %1986 = vmatprep.mubr.f32.mxu0 0.0
        %1987 = vmatmul.mubr.f32.gmra.mxu0 %v1571
        %v1988 = vpop.f32.mrf.mxu0
        %v1989 = vadd.f32 %v1844, %v1988
        %v1990 = vpop.f32.mrf.mxu0
        %1991 = vmatprep.mubr.f32.mxu0 0.0
        %1992 = vmatmul.mubr.f32.gmra.mxu0 %v1574
        %v1993 = vpop.f32.mrf.mxu0
        %v1994 = vadd.f32 %v1849, %v1993
        %v1995 = vpop.f32.mrf.mxu0
        %1996 = vmatprep.mubr.f32.mxu0 0.0
        %1997 = vmatmul.mubr.f32.gmra.mxu0 %v1577
        %v1998 = vpop.f32.mrf.mxu0
        %v1999 = vadd.f32 %v1854, %v1998
        %v2000 = vpop.f32.mrf.mxu0
        %2001 = vmatprep.mubr.f32.mxu0 0.0
        %2002 = vmatmul.mubr.f32.gmra.mxu0 %v1580
        %v2003 = vpop.f32.mrf.mxu0
        %v2004 = vadd.f32 %v1859, %v2003
        %v2005 = vpop.f32.mrf.mxu0
        %2006 = vmatprep.mubr.f32.mxu0 0.0
        %2007 = vmatmul.mubr.f32.gmra.mxu0 %v1583
        %v2008 = vpop.f32.mrf.mxu0
        %v2009 = vadd.f32 %v1864, %v2008
        %v2010 = vpop.f32.mrf.mxu0
        %2011 = vmatprep.mubr.f32.mxu0 0.0
        %2012 = vmatmul.mubr.f32.gmra.mxu0 %v1586
        %v2013 = vpop.f32.mrf.mxu0
        %v2014 = vadd.f32 %v1869, %v2013
        %v2015 = vpop.f32.mrf.mxu0
        %2016 = vmatprep.mubr.f32.mxu0 0.0
        %2017 = vmatmul.mubr.f32.gmra.mxu0 %v1589
        %v2018 = vpop.f32.mrf.mxu0
        %v2019 = vadd.f32 %v1874, %v2018
        %v2020 = vpop.f32.mrf.mxu0
        %2021 = vmatprep.mubr.f32.mxu0 0.0
        %2022 = vmatmul.mubr.f32.gmra.mxu0 %v1592
        %v2023 = vpop.f32.mrf.mxu0
        %v2024 = vadd.f32 %v1879, %v2023
        %v2025 = vpop.f32.mrf.mxu0
        %2026 = vmatprep.mubr.f32.mxu0 0.0
        %2027 = vmatmul.mubr.f32.gmra.mxu0 %v1595
        %v2028 = vpop.f32.mrf.mxu0
        %v2029 = vadd.f32 %v1884, %v2028
        %v2030 = vpop.f32.mrf.mxu0
        %2031 = vdwg.mxu0
        %v2032 = vmax.f32 %v1390, %v1954
        %v2033 = vmax.f32 %v1395, %v1959
        %v2034 = vmax.f32 %v1400, %v1964
        %v2035 = vmax.f32 %v1405, %v1969
        %v2036 = vmax.f32 %v1410, %v1974
        %v2037 = vmax.f32 %v1415, %v1979
        %v2038 = vmax.f32 %v1420, %v1984
        %v2039 = vmax.f32 %v1425, %v1989
        %v2040 = vmax.f32 %v1430, %v1994
        %v2041 = vmax.f32 %v1435, %v1999
        %v2042 = vmax.f32 %v1440, %v2004
        %v2043 = vmax.f32 %v1445, %v2009
        %v2044 = vmax.f32 %v1450, %v2014
        %v2045 = vmax.f32 %v1455, %v2019
        %v2046 = vmax.f32 %v1460, %v2024
        %v2047 = vmax.f32 %v1465, %v2029
        %s2048 = scalar_lea.vmem %s804, 1280 [#allocation2]
        %v2049 = vld [vmem:[%s2048] sm:$0xff]
        %v2050 = vld [vmem:[%s2048 + $0x8] sm:$0xff]
        %v2051 = vld [vmem:[%s2048 + $0x10] sm:$0xff]
        %v2052 = vld [vmem:[%s2048 + $0x18] sm:$0xff]
        %v2053 = vld [vmem:[%s2048 + $0x20] sm:$0xff]
        %v2054 = vld [vmem:[%s2048 + $0x28] sm:$0xff]
        %v2055 = vld [vmem:[%s2048 + $0x30] sm:$0xff]
        %v2056 = vld [vmem:[%s2048 + $0x38] sm:$0xff]
        %v2057 = vld [vmem:[%s2048 + $0x40] sm:$0xff]
        %v2058 = vld [vmem:[%s2048 + $0x48] sm:$0xff]
        %v2059 = vld [vmem:[%s2048 + $0x50] sm:$0xff]
        %v2060 = vld [vmem:[%s2048 + $0x58] sm:$0xff]
        %v2061 = vld [vmem:[%s2048 + $0x60] sm:$0xff]
        %v2062 = vld [vmem:[%s2048 + $0x68] sm:$0xff]
        %v2063 = vld [vmem:[%s2048 + $0x70] sm:$0xff]
        %v2064 = vld [vmem:[%s2048 + $0x78] sm:$0xff]
        %v2065 = vld [vmem:[%s2048 + $0x80] sm:$0xff]
        %v2066 = vld [vmem:[%s2048 + $0x88] sm:$0xff]
        %v2067 = vld [vmem:[%s2048 + $0x90] sm:$0xff]
        %v2068 = vld [vmem:[%s2048 + $0x98] sm:$0xff]
        %v2069 = vld [vmem:[%s2048 + $0xa0] sm:$0xff]
        %v2070 = vld [vmem:[%s2048 + $0xa8] sm:$0xff]
        %v2071 = vld [vmem:[%s2048 + $0xb0] sm:$0xff]
        %v2072 = vld [vmem:[%s2048 + $0xb8] sm:$0xff]
        %v2073 = vld [vmem:[%s2048 + $0xc0] sm:$0xff]
        %v2074 = vld [vmem:[%s2048 + $0xc8] sm:$0xff]
        %v2075 = vld [vmem:[%s2048 + $0xd0] sm:$0xff]
        %v2076 = vld [vmem:[%s2048 + $0xd8] sm:$0xff]
        %v2077 = vld [vmem:[%s2048 + $0xe0] sm:$0xff]
        %v2078 = vld [vmem:[%s2048 + $0xe8] sm:$0xff]
        %v2079 = vld [vmem:[%s2048 + $0xf0] sm:$0xff]
        %v2080 = vld [vmem:[%s2048 + $0xf8] sm:$0xff]
        %v2081 = vld [vmem:[%s2048 + $0x100] sm:$0xff]
        %v2082 = vld [vmem:[%s2048 + $0x108] sm:$0xff]
        %v2083 = vld [vmem:[%s2048 + $0x110] sm:$0xff]
        %v2084 = vld [vmem:[%s2048 + $0x118] sm:$0xff]
        %v2085 = vld [vmem:[%s2048 + $0x120] sm:$0xff]
        %v2086 = vld [vmem:[%s2048 + $0x128] sm:$0xff]
        %v2087 = vld [vmem:[%s2048 + $0x130] sm:$0xff]
        %v2088 = vld [vmem:[%s2048 + $0x138] sm:$0xff]
        %v2089 = vld [vmem:[%s2048 + $0x140] sm:$0xff]
        %v2090 = vld [vmem:[%s2048 + $0x148] sm:$0xff]
        %v2091 = vld [vmem:[%s2048 + $0x150] sm:$0xff]
        %v2092 = vld [vmem:[%s2048 + $0x158] sm:$0xff]
        %v2093 = vld [vmem:[%s2048 + $0x160] sm:$0xff]
        %v2094 = vld [vmem:[%s2048 + $0x168] sm:$0xff]
        %v2095 = vld [vmem:[%s2048 + $0x170] sm:$0xff]
        %v2096 = vld [vmem:[%s2048 + $0x178] sm:$0xff]
        %v2097 = vld [vmem:[%s2048 + $0x180] sm:$0xff]
        %v2098 = vld [vmem:[%s2048 + $0x188] sm:$0xff]
        %v2099 = vld [vmem:[%s2048 + $0x190] sm:$0xff]
        %v2100 = vld [vmem:[%s2048 + $0x198] sm:$0xff]
        %v2101 = vld [vmem:[%s2048 + $0x1a0] sm:$0xff]
        %v2102 = vld [vmem:[%s2048 + $0x1a8] sm:$0xff]
        %v2103 = vld [vmem:[%s2048 + $0x1b0] sm:$0xff]
        %v2104 = vld [vmem:[%s2048 + $0x1b8] sm:$0xff]
        %v2105 = vld [vmem:[%s2048 + $0x1c0] sm:$0xff]
        %v2106 = vld [vmem:[%s2048 + $0x1c8] sm:$0xff]
        %v2107 = vld [vmem:[%s2048 + $0x1d0] sm:$0xff]
        %v2108 = vld [vmem:[%s2048 + $0x1d8] sm:$0xff]
        %v2109 = vld [vmem:[%s2048 + $0x1e0] sm:$0xff]
        %v2110 = vld [vmem:[%s2048 + $0x1e8] sm:$0xff]
        %v2111 = vld [vmem:[%s2048 + $0x1f0] sm:$0xff]
        %v2112 = vld [vmem:[%s2048 + $0x1f8] sm:$0xff]
        %v2113 = vld [vmem:[%s2048 + $0x200] sm:$0xff]
        %v2114 = vld [vmem:[%s2048 + $0x208] sm:$0xff]
        %v2115 = vld [vmem:[%s2048 + $0x210] sm:$0xff]
        %v2116 = vld [vmem:[%s2048 + $0x218] sm:$0xff]
        %v2117 = vld [vmem:[%s2048 + $0x220] sm:$0xff]
        %v2118 = vld [vmem:[%s2048 + $0x228] sm:$0xff]
        %v2119 = vld [vmem:[%s2048 + $0x230] sm:$0xff]
        %v2120 = vld [vmem:[%s2048 + $0x238] sm:$0xff]
        %v2121 = vld [vmem:[%s2048 + $0x240] sm:$0xff]
        %v2122 = vld [vmem:[%s2048 + $0x248] sm:$0xff]
        %v2123 = vld [vmem:[%s2048 + $0x250] sm:$0xff]
        %v2124 = vld [vmem:[%s2048 + $0x258] sm:$0xff]
        %v2125 = vld [vmem:[%s2048 + $0x260] sm:$0xff]
        %v2126 = vld [vmem:[%s2048 + $0x268] sm:$0xff]
        %v2127 = vld [vmem:[%s2048 + $0x270] sm:$0xff]
        %v2128 = vld [vmem:[%s2048 + $0x278] sm:$0xff]
        %v2130 = vsel %vm984, %v2053, 0
        %v2133 = vsel %vm984, %v2058, 0
        %v2136 = vsel %vm984, %v2063, 0
        %v2139 = vsel %vm984, %v2068, 0
        %v2142 = vsel %vm984, %v2073, 0
        %v2145 = vsel %vm984, %v2078, 0
        %v2148 = vsel %vm984, %v2083, 0
        %v2151 = vsel %vm984, %v2088, 0
        %v2154 = vsel %vm984, %v2093, 0
        %v2157 = vsel %vm984, %v2098, 0
        %v2160 = vsel %vm984, %v2103, 0
        %v2163 = vsel %vm984, %v2108, 0
        %v2166 = vsel %vm984, %v2113, 0
        %v2169 = vsel %vm984, %v2118, 0
        %v2172 = vsel %vm984, %v2123, 0
        %v2175 = vsel %vm984, %v2128, 0
        %2177 = vmatprep.subr.mxu0 0.0
        %2178 = vmatpush1.msra.mxu0 %v847
        %2179 = vmatprep.subr.mxu0 0.0
        %2180 = vmatpush1.msra.mxu0 %v846
        %2181 = vmatprep.subr.mxu0 0.0
        %2182 = vmatpush1.msra.mxu0 %v845
        %2183 = vmatprep.subr.mxu0 0.0
        %2184 = vmatpush1.msra.mxu0 %v844
        %2185 = vmatprep.subr.mxu0 0.0
        %2186 = vmatpush1.msra.mxu0 %v843
        %2187 = vmatprep.subr.mxu0 0.0
        %2188 = vmatpush1.msra.mxu0 %v842
        %2189 = vmatprep.subr.mxu0 0.0
        %2190 = vmatpush1.msra.mxu0 %v841
        %2191 = vmatprep.subr.mxu0 0.0
        %2192 = vmatpush1.msra.mxu0 %v840
        %2193 = vmatprep.subr.mxu0 0.0
        %2194 = vmatpush1.msra.mxu0 %v839
        %2195 = vmatprep.subr.mxu0 0.0
        %2196 = vmatpush1.msra.mxu0 %v838
        %2197 = vmatprep.subr.mxu0 0.0
        %2198 = vmatpush1.msra.mxu0 %v837
        %2199 = vmatprep.subr.mxu0 0.0
        %2200 = vmatpush1.msra.mxu0 %v836
        %2201 = vmatprep.subr.mxu0 0.0
        %2202 = vmatpush1.msra.mxu0 %v835
        %2203 = vmatprep.subr.mxu0 0.0
        %2204 = vmatpush1.msra.mxu0 %v834
        %2205 = vmatprep.subr.mxu0 0.0
        %2206 = vmatpush1.msra.mxu0 %v833
        %2207 = vmatprep.subr.mxu0 0.0
        %2208 = vmatpush1.msra.mxu0 %v832
        %2209 = vmatprep.subr.mxu0 0.0
        %2210 = vmatpush2.msra.mxu0 %v863
        %2211 = vmatprep.subr.mxu0 0.0
        %2212 = vmatpush2.msra.mxu0 %v862
        %2213 = vmatprep.subr.mxu0 0.0
        %2214 = vmatpush2.msra.mxu0 %v861
        %2215 = vmatprep.subr.mxu0 0.0
        %2216 = vmatpush2.msra.mxu0 %v860
        %2217 = vmatprep.subr.mxu0 0.0
        %2218 = vmatpush2.msra.mxu0 %v859
        %2219 = vmatprep.subr.mxu0 0.0
        %2220 = vmatpush2.msra.mxu0 %v858
        %2221 = vmatprep.subr.mxu0 0.0
        %2222 = vmatpush2.msra.mxu0 %v857
        %2223 = vmatprep.subr.mxu0 0.0
        %2224 = vmatpush2.msra.mxu0 %v856
        %2225 = vmatprep.subr.mxu0 0.0
        %2226 = vmatpush2.msra.mxu0 %v855
        %2227 = vmatprep.subr.mxu0 0.0
        %2228 = vmatpush2.msra.mxu0 %v854
        %2229 = vmatprep.subr.mxu0 0.0
        %2230 = vmatpush2.msra.mxu0 %v853
        %2231 = vmatprep.subr.mxu0 0.0
        %2232 = vmatpush2.msra.mxu0 %v852
        %2233 = vmatprep.subr.mxu0 0.0
        %2234 = vmatpush2.msra.mxu0 %v851
        %2235 = vmatprep.subr.mxu0 0.0
        %2236 = vmatpush2.msra.mxu0 %v850
        %2237 = vmatprep.subr.mxu0 0.0
        %2238 = vmatpush2.msra.mxu0 %v849
        %2239 = vmatprep.subr.mxu0 0.0
        %2240 = vmatpush2.msra.mxu0 %v848
        %2241 = vmatprep.mubr.f32.mxu0 %v2050
        %2242 = vmatmul.mubr.f32.gmra.mxu0 %v2049
        %v2243 = vpop.f32.mrf.mxu0
        %v2244 = vadd.f32 0.0, %v2243
        %v2245 = vpop.f32.mrf.mxu0
        %2246 = vmatprep.mubr.f32.mxu0 %v2055
        %2247 = vmatmul.mubr.f32.gmra.mxu0 %v2054
        %v2248 = vpop.f32.mrf.mxu0
        %v2249 = vadd.f32 0.0, %v2248
        %v2250 = vpop.f32.mrf.mxu0
        %2251 = vmatprep.mubr.f32.mxu0 %v2060
        %2252 = vmatmul.mubr.f32.gmra.mxu0 %v2059
        %v2253 = vpop.f32.mrf.mxu0
        %v2254 = vadd.f32 0.0, %v2253
        %v2255 = vpop.f32.mrf.mxu0
        %2256 = vmatprep.mubr.f32.mxu0 %v2065
        %2257 = vmatmul.mubr.f32.gmra.mxu0 %v2064
        %v2258 = vpop.f32.mrf.mxu0
        %v2259 = vadd.f32 0.0, %v2258
        %v2260 = vpop.f32.mrf.mxu0
        %2261 = vmatprep.mubr.f32.mxu0 %v2070
        %2262 = vmatmul.mubr.f32.gmra.mxu0 %v2069
        %v2263 = vpop.f32.mrf.mxu0
        %v2264 = vadd.f32 0.0, %v2263
        %v2265 = vpop.f32.mrf.mxu0
        %2266 = vmatprep.mubr.f32.mxu0 %v2075
        %2267 = vmatmul.mubr.f32.gmra.mxu0 %v2074
        %v2268 = vpop.f32.mrf.mxu0
        %v2269 = vadd.f32 0.0, %v2268
        %v2270 = vpop.f32.mrf.mxu0
        %2271 = vmatprep.mubr.f32.mxu0 %v2080
        %2272 = vmatmul.mubr.f32.gmra.mxu0 %v2079
        %v2273 = vpop.f32.mrf.mxu0
        %v2274 = vadd.f32 0.0, %v2273
        %v2275 = vpop.f32.mrf.mxu0
        %2276 = vmatprep.mubr.f32.mxu0 %v2085
        %2277 = vmatmul.mubr.f32.gmra.mxu0 %v2084
        %v2278 = vpop.f32.mrf.mxu0
        %v2279 = vadd.f32 0.0, %v2278
        %v2280 = vpop.f32.mrf.mxu0
        %2281 = vmatprep.mubr.f32.mxu0 %v2090
        %2282 = vmatmul.mubr.f32.gmra.mxu0 %v2089
        %v2283 = vpop.f32.mrf.mxu0
        %v2284 = vadd.f32 0.0, %v2283
        %v2285 = vpop.f32.mrf.mxu0
        %2286 = vmatprep.mubr.f32.mxu0 %v2095
        %2287 = vmatmul.mubr.f32.gmra.mxu0 %v2094
        %v2288 = vpop.f32.mrf.mxu0
        %v2289 = vadd.f32 0.0, %v2288
        %v2290 = vpop.f32.mrf.mxu0
        %2291 = vmatprep.mubr.f32.mxu0 %v2100
        %2292 = vmatmul.mubr.f32.gmra.mxu0 %v2099
        %v2293 = vpop.f32.mrf.mxu0
        %v2294 = vadd.f32 0.0, %v2293
        %v2295 = vpop.f32.mrf.mxu0
        %2296 = vmatprep.mubr.f32.mxu0 %v2105
        %2297 = vmatmul.mubr.f32.gmra.mxu0 %v2104
        %v2298 = vpop.f32.mrf.mxu0
        %v2299 = vadd.f32 0.0, %v2298
        %v2300 = vpop.f32.mrf.mxu0
        %2301 = vmatprep.mubr.f32.mxu0 %v2110
        %2302 = vmatmul.mubr.f32.gmra.mxu0 %v2109
        %v2303 = vpop.f32.mrf.mxu0
        %v2304 = vadd.f32 0.0, %v2303
        %v2305 = vpop.f32.mrf.mxu0
        %2306 = vmatprep.mubr.f32.mxu0 %v2115
        %2307 = vmatmul.mubr.f32.gmra.mxu0 %v2114
        %v2308 = vpop.f32.mrf.mxu0
        %v2309 = vadd.f32 0.0, %v2308
        %v2310 = vpop.f32.mrf.mxu0
        %2311 = vmatprep.mubr.f32.mxu0 %v2120
        %2312 = vmatmul.mubr.f32.gmra.mxu0 %v2119
        %v2313 = vpop.f32.mrf.mxu0
        %v2314 = vadd.f32 0.0, %v2313
        %v2315 = vpop.f32.mrf.mxu0
        %2316 = vmatprep.mubr.f32.mxu0 %v2125
        %2317 = vmatmul.mubr.f32.gmra.mxu0 %v2124
        %v2318 = vpop.f32.mrf.mxu0
        %v2319 = vadd.f32 0.0, %v2318
        %v2320 = vpop.f32.mrf.mxu0
        %2321 = vdwg.mxu0
        %2322 = vmatprep.subr.mxu0 0.0
        %2323 = vmatpush1.msra.mxu0 %v879
        %2324 = vmatprep.subr.mxu0 0.0
        %2325 = vmatpush1.msra.mxu0 %v878
        %2326 = vmatprep.subr.mxu0 0.0
        %2327 = vmatpush1.msra.mxu0 %v877
        %2328 = vmatprep.subr.mxu0 0.0
        %2329 = vmatpush1.msra.mxu0 %v876
        %2330 = vmatprep.subr.mxu0 0.0
        %2331 = vmatpush1.msra.mxu0 %v875
        %2332 = vmatprep.subr.mxu0 0.0
        %2333 = vmatpush1.msra.mxu0 %v874
        %2334 = vmatprep.subr.mxu0 0.0
        %2335 = vmatpush1.msra.mxu0 %v873
        %2336 = vmatprep.subr.mxu0 0.0
        %2337 = vmatpush1.msra.mxu0 %v872
        %2338 = vmatprep.subr.mxu0 0.0
        %2339 = vmatpush1.msra.mxu0 %v871
        %2340 = vmatprep.subr.mxu0 0.0
        %2341 = vmatpush1.msra.mxu0 %v870
        %2342 = vmatprep.subr.mxu0 0.0
        %2343 = vmatpush1.msra.mxu0 %v869
        %2344 = vmatprep.subr.mxu0 0.0
        %2345 = vmatpush1.msra.mxu0 %v868
        %2346 = vmatprep.subr.mxu0 0.0
        %2347 = vmatpush1.msra.mxu0 %v867
        %2348 = vmatprep.subr.mxu0 0.0
        %2349 = vmatpush1.msra.mxu0 %v866
        %2350 = vmatprep.subr.mxu0 0.0
        %2351 = vmatpush1.msra.mxu0 %v865
        %2352 = vmatprep.subr.mxu0 0.0
        %2353 = vmatpush1.msra.mxu0 %v864
        %2354 = vmatprep.subr.mxu0 0.0
        %2355 = vmatpush2.msra.mxu0 %v895
        %2356 = vmatprep.subr.mxu0 0.0
        %2357 = vmatpush2.msra.mxu0 %v894
        %2358 = vmatprep.subr.mxu0 0.0
        %2359 = vmatpush2.msra.mxu0 %v893
        %2360 = vmatprep.subr.mxu0 0.0
        %2361 = vmatpush2.msra.mxu0 %v892
        %2362 = vmatprep.subr.mxu0 0.0
        %2363 = vmatpush2.msra.mxu0 %v891
        %2364 = vmatprep.subr.mxu0 0.0
        %2365 = vmatpush2.msra.mxu0 %v890
        %2366 = vmatprep.subr.mxu0 0.0
        %2367 = vmatpush2.msra.mxu0 %v889
        %2368 = vmatprep.subr.mxu0 0.0
        %2369 = vmatpush2.msra.mxu0 %v888
        %2370 = vmatprep.subr.mxu0 0.0
        %2371 = vmatpush2.msra.mxu0 %v887
        %2372 = vmatprep.subr.mxu0 0.0
        %2373 = vmatpush2.msra.mxu0 %v886
        %2374 = vmatprep.subr.mxu0 0.0
        %2375 = vmatpush2.msra.mxu0 %v885
        %2376 = vmatprep.subr.mxu0 0.0
        %2377 = vmatpush2.msra.mxu0 %v884
        %2378 = vmatprep.subr.mxu0 0.0
        %2379 = vmatpush2.msra.mxu0 %v883
        %2380 = vmatprep.subr.mxu0 0.0
        %2381 = vmatpush2.msra.mxu0 %v882
        %2382 = vmatprep.subr.mxu0 0.0
        %2383 = vmatpush2.msra.mxu0 %v881
        %2384 = vmatprep.subr.mxu0 0.0
        %2385 = vmatpush2.msra.mxu0 %v880
        %2386 = vmatprep.mubr.f32.mxu0 %v2052
        %2387 = vmatmul.mubr.f32.gmra.mxu0 %v2051
        %v2388 = vpop.f32.mrf.mxu0
        %v2389 = vadd.f32 %v2244, %v2388
        %v2390 = vpop.f32.mrf.mxu0
        %2391 = vmatprep.mubr.f32.mxu0 %v2057
        %2392 = vmatmul.mubr.f32.gmra.mxu0 %v2056
        %v2393 = vpop.f32.mrf.mxu0
        %v2394 = vadd.f32 %v2249, %v2393
        %v2395 = vpop.f32.mrf.mxu0
        %2396 = vmatprep.mubr.f32.mxu0 %v2062
        %2397 = vmatmul.mubr.f32.gmra.mxu0 %v2061
        %v2398 = vpop.f32.mrf.mxu0
        %v2399 = vadd.f32 %v2254, %v2398
        %v2400 = vpop.f32.mrf.mxu0
        %2401 = vmatprep.mubr.f32.mxu0 %v2067
        %2402 = vmatmul.mubr.f32.gmra.mxu0 %v2066
        %v2403 = vpop.f32.mrf.mxu0
        %v2404 = vadd.f32 %v2259, %v2403
        %v2405 = vpop.f32.mrf.mxu0
        %2406 = vmatprep.mubr.f32.mxu0 %v2072
        %2407 = vmatmul.mubr.f32.gmra.mxu0 %v2071
        %v2408 = vpop.f32.mrf.mxu0
        %v2409 = vadd.f32 %v2264, %v2408
        %v2410 = vpop.f32.mrf.mxu0
        %2411 = vmatprep.mubr.f32.mxu0 %v2077
        %2412 = vmatmul.mubr.f32.gmra.mxu0 %v2076
        %v2413 = vpop.f32.mrf.mxu0
        %v2414 = vadd.f32 %v2269, %v2413
        %v2415 = vpop.f32.mrf.mxu0
        %2416 = vmatprep.mubr.f32.mxu0 %v2082
        %2417 = vmatmul.mubr.f32.gmra.mxu0 %v2081
        %v2418 = vpop.f32.mrf.mxu0
        %v2419 = vadd.f32 %v2274, %v2418
        %v2420 = vpop.f32.mrf.mxu0
        %2421 = vmatprep.mubr.f32.mxu0 %v2087
        %2422 = vmatmul.mubr.f32.gmra.mxu0 %v2086
        %v2423 = vpop.f32.mrf.mxu0
        %v2424 = vadd.f32 %v2279, %v2423
        %v2425 = vpop.f32.mrf.mxu0
        %2426 = vmatprep.mubr.f32.mxu0 %v2092
        %2427 = vmatmul.mubr.f32.gmra.mxu0 %v2091
        %v2428 = vpop.f32.mrf.mxu0
        %v2429 = vadd.f32 %v2284, %v2428
        %v2430 = vpop.f32.mrf.mxu0
        %2431 = vmatprep.mubr.f32.mxu0 %v2097
        %2432 = vmatmul.mubr.f32.gmra.mxu0 %v2096
        %v2433 = vpop.f32.mrf.mxu0
        %v2434 = vadd.f32 %v2289, %v2433
        %v2435 = vpop.f32.mrf.mxu0
        %2436 = vmatprep.mubr.f32.mxu0 %v2102
        %2437 = vmatmul.mubr.f32.gmra.mxu0 %v2101
        %v2438 = vpop.f32.mrf.mxu0
        %v2439 = vadd.f32 %v2294, %v2438
        %v2440 = vpop.f32.mrf.mxu0
        %2441 = vmatprep.mubr.f32.mxu0 %v2107
        %2442 = vmatmul.mubr.f32.gmra.mxu0 %v2106
        %v2443 = vpop.f32.mrf.mxu0
        %v2444 = vadd.f32 %v2299, %v2443
        %v2445 = vpop.f32.mrf.mxu0
        %2446 = vmatprep.mubr.f32.mxu0 %v2112
        %2447 = vmatmul.mubr.f32.gmra.mxu0 %v2111
        %v2448 = vpop.f32.mrf.mxu0
        %v2449 = vadd.f32 %v2304, %v2448
        %v2450 = vpop.f32.mrf.mxu0
        %2451 = vmatprep.mubr.f32.mxu0 %v2117
        %2452 = vmatmul.mubr.f32.gmra.mxu0 %v2116
        %v2453 = vpop.f32.mrf.mxu0
        %v2454 = vadd.f32 %v2309, %v2453
        %v2455 = vpop.f32.mrf.mxu0
        %2456 = vmatprep.mubr.f32.mxu0 %v2122
        %2457 = vmatmul.mubr.f32.gmra.mxu0 %v2121
        %v2458 = vpop.f32.mrf.mxu0
        %v2459 = vadd.f32 %v2314, %v2458
        %v2460 = vpop.f32.mrf.mxu0
        %2461 = vmatprep.mubr.f32.mxu0 %v2127
        %2462 = vmatmul.mubr.f32.gmra.mxu0 %v2126
        %v2463 = vpop.f32.mrf.mxu0
        %v2464 = vadd.f32 %v2319, %v2463
        %v2465 = vpop.f32.mrf.mxu0
        %2466 = vdwg.mxu0
        %2467 = vmatprep.subr.mxu0 0.0
        %2468 = vmatpush1.msra.mxu0 0.0
        %2469 = vmatprep.subr.mxu0 0.0
        %2470 = vmatpush1.msra.mxu0 0.0
        %2471 = vmatprep.subr.mxu0 0.0
        %2472 = vmatpush1.msra.mxu0 0.0
        %2473 = vmatprep.subr.mxu0 0.0
        %2474 = vmatpush1.msra.mxu0 0.0
        %2475 = vmatprep.subr.mxu0 0.0
        %2476 = vmatpush1.msra.mxu0 0.0
        %2477 = vmatprep.subr.mxu0 0.0
        %2478 = vmatpush1.msra.mxu0 0.0
        %2479 = vmatprep.subr.mxu0 0.0
        %2480 = vmatpush1.msra.mxu0 0.0
        %2481 = vmatprep.subr.mxu0 0.0
        %2482 = vmatpush1.msra.mxu0 0.0
        %2483 = vmatprep.subr.mxu0 0.0
        %2484 = vmatpush1.msra.mxu0 %v903
        %2485 = vmatprep.subr.mxu0 0.0
        %2486 = vmatpush1.msra.mxu0 %v902
        %2487 = vmatprep.subr.mxu0 0.0
        %2488 = vmatpush1.msra.mxu0 %v901
        %2489 = vmatprep.subr.mxu0 0.0
        %2490 = vmatpush1.msra.mxu0 %v900
        %2491 = vmatprep.subr.mxu0 0.0
        %2492 = vmatpush1.msra.mxu0 %v899
        %2493 = vmatprep.subr.mxu0 0.0
        %2494 = vmatpush1.msra.mxu0 %v898
        %2495 = vmatprep.subr.mxu0 0.0
        %2496 = vmatpush1.msra.mxu0 %v897
        %2497 = vmatprep.subr.mxu0 0.0
        %2498 = vmatpush1.msra.mxu0 %v896
        %2499 = vmatprep.subr.mxu0 0.0
        %2500 = vmatpush2.msra.mxu0 0.0
        %2501 = vmatprep.subr.mxu0 0.0
        %2502 = vmatpush2.msra.mxu0 0.0
        %2503 = vmatprep.subr.mxu0 0.0
        %2504 = vmatpush2.msra.mxu0 0.0
        %2505 = vmatprep.subr.mxu0 0.0
        %2506 = vmatpush2.msra.mxu0 0.0
        %2507 = vmatprep.subr.mxu0 0.0
        %2508 = vmatpush2.msra.mxu0 0.0
        %2509 = vmatprep.subr.mxu0 0.0
        %2510 = vmatpush2.msra.mxu0 0.0
        %2511 = vmatprep.subr.mxu0 0.0
        %2512 = vmatpush2.msra.mxu0 0.0
        %2513 = vmatprep.subr.mxu0 0.0
        %2514 = vmatpush2.msra.mxu0 0.0
        %2515 = vmatprep.subr.mxu0 0.0
        %2516 = vmatpush2.msra.mxu0 0.0
        %2517 = vmatprep.subr.mxu0 0.0
        %2518 = vmatpush2.msra.mxu0 0.0
        %2519 = vmatprep.subr.mxu0 0.0
        %2520 = vmatpush2.msra.mxu0 0.0
        %2521 = vmatprep.subr.mxu0 0.0
        %2522 = vmatpush2.msra.mxu0 0.0
        %2523 = vmatprep.subr.mxu0 0.0
        %2524 = vmatpush2.msra.mxu0 0.0
        %2525 = vmatprep.subr.mxu0 0.0
        %2526 = vmatpush2.msra.mxu0 0.0
        %2527 = vmatprep.subr.mxu0 0.0
        %2528 = vmatpush2.msra.mxu0 0.0
        %2529 = vmatprep.subr.mxu0 0.0
        %2530 = vmatpush2.msra.mxu0 0.0
        %2531 = vmatprep.mubr.f32.mxu0 0.0
        %2532 = vmatmul.mubr.f32.gmra.mxu0 %v2130
        %v2533 = vpop.f32.mrf.mxu0
        %v2534 = vadd.f32 %v2389, %v2533
        %v2535 = vpop.f32.mrf.mxu0
        %2536 = vmatprep.mubr.f32.mxu0 0.0
        %2537 = vmatmul.mubr.f32.gmra.mxu0 %v2133
        %v2538 = vpop.f32.mrf.mxu0
        %v2539 = vadd.f32 %v2394, %v2538
        %v2540 = vpop.f32.mrf.mxu0
        %2541 = vmatprep.mubr.f32.mxu0 0.0
        %2542 = vmatmul.mubr.f32.gmra.mxu0 %v2136
        %v2543 = vpop.f32.mrf.mxu0
        %v2544 = vadd.f32 %v2399, %v2543
        %v2545 = vpop.f32.mrf.mxu0
        %2546 = vmatprep.mubr.f32.mxu0 0.0
        %2547 = vmatmul.mubr.f32.gmra.mxu0 %v2139
        %v2548 = vpop.f32.mrf.mxu0
        %v2549 = vadd.f32 %v2404, %v2548
        %v2550 = vpop.f32.mrf.mxu0
        %2551 = vmatprep.mubr.f32.mxu0 0.0
        %2552 = vmatmul.mubr.f32.gmra.mxu0 %v2142
        %v2553 = vpop.f32.mrf.mxu0
        %v2554 = vadd.f32 %v2409, %v2553
        %v2555 = vpop.f32.mrf.mxu0
        %2556 = vmatprep.mubr.f32.mxu0 0.0
        %2557 = vmatmul.mubr.f32.gmra.mxu0 %v2145
        %v2558 = vpop.f32.mrf.mxu0
        %v2559 = vadd.f32 %v2414, %v2558
        %v2560 = vpop.f32.mrf.mxu0
        %2561 = vmatprep.mubr.f32.mxu0 0.0
        %2562 = vmatmul.mubr.f32.gmra.mxu0 %v2148
        %v2563 = vpop.f32.mrf.mxu0
        %v2564 = vadd.f32 %v2419, %v2563
        %v2565 = vpop.f32.mrf.mxu0
        %2566 = vmatprep.mubr.f32.mxu0 0.0
        %2567 = vmatmul.mubr.f32.gmra.mxu0 %v2151
        %v2568 = vpop.f32.mrf.mxu0
        %v2569 = vadd.f32 %v2424, %v2568
        %v2570 = vpop.f32.mrf.mxu0
        %2571 = vmatprep.mubr.f32.mxu0 0.0
        %2572 = vmatmul.mubr.f32.gmra.mxu0 %v2154
        %v2573 = vpop.f32.mrf.mxu0
        %v2574 = vadd.f32 %v2429, %v2573
        %v2575 = vpop.f32.mrf.mxu0
        %2576 = vmatprep.mubr.f32.mxu0 0.0
        %2577 = vmatmul.mubr.f32.gmra.mxu0 %v2157
        %v2578 = vpop.f32.mrf.mxu0
        %v2579 = vadd.f32 %v2434, %v2578
        %v2580 = vpop.f32.mrf.mxu0
        %2581 = vmatprep.mubr.f32.mxu0 0.0
        %2582 = vmatmul.mubr.f32.gmra.mxu0 %v2160
        %v2583 = vpop.f32.mrf.mxu0
        %v2584 = vadd.f32 %v2439, %v2583
        %v2585 = vpop.f32.mrf.mxu0
        %2586 = vmatprep.mubr.f32.mxu0 0.0
        %2587 = vmatmul.mubr.f32.gmra.mxu0 %v2163
        %v2588 = vpop.f32.mrf.mxu0
        %v2589 = vadd.f32 %v2444, %v2588
        %v2590 = vpop.f32.mrf.mxu0
        %2591 = vmatprep.mubr.f32.mxu0 0.0
        %2592 = vmatmul.mubr.f32.gmra.mxu0 %v2166
        %v2593 = vpop.f32.mrf.mxu0
        %v2594 = vadd.f32 %v2449, %v2593
        %v2595 = vpop.f32.mrf.mxu0
        %2596 = vmatprep.mubr.f32.mxu0 0.0
        %2597 = vmatmul.mubr.f32.gmra.mxu0 %v2169
        %v2598 = vpop.f32.mrf.mxu0
        %v2599 = vadd.f32 %v2454, %v2598
        %v2600 = vpop.f32.mrf.mxu0
        %2601 = vmatprep.mubr.f32.mxu0 0.0
        %2602 = vmatmul.mubr.f32.gmra.mxu0 %v2172
        %v2603 = vpop.f32.mrf.mxu0
        %v2604 = vadd.f32 %v2459, %v2603
        %v2605 = vpop.f32.mrf.mxu0
        %2606 = vmatprep.mubr.f32.mxu0 0.0
        %2607 = vmatmul.mubr.f32.gmra.mxu0 %v2175
        %v2608 = vpop.f32.mrf.mxu0
        %v2609 = vadd.f32 %v2464, %v2608
        %v2610 = vpop.f32.mrf.mxu0
        %2611 = vdwg.mxu0
        %v2612 = vmax.f32 %v2032, %v2534
        %v2613 = vmax.f32 %v2033, %v2539
        %v2614 = vmax.f32 %v2034, %v2544
        %v2615 = vmax.f32 %v2035, %v2549
        %v2616 = vmax.f32 %v2036, %v2554
        %v2617 = vmax.f32 %v2037, %v2559
        %v2618 = vmax.f32 %v2038, %v2564
        %v2619 = vmax.f32 %v2039, %v2569
        %v2620 = vmax.f32 %v2040, %v2574
        %v2621 = vmax.f32 %v2041, %v2579
        %v2622 = vmax.f32 %v2042, %v2584
        %v2623 = vmax.f32 %v2043, %v2589
        %v2624 = vmax.f32 %v2044, %v2594
        %v2625 = vmax.f32 %v2045, %v2599
        %v2626 = vmax.f32 %v2046, %v2604
        %v2627 = vmax.f32 %v2047, %v2609
        %s2628 = scalar_lea.vmem %s804, 1920 [#allocation2]
        %v2629 = vld [vmem:[%s2628] sm:$0xff]
        %v2630 = vld [vmem:[%s2628 + $0x8] sm:$0xff]
        %v2631 = vld [vmem:[%s2628 + $0x10] sm:$0xff]
        %v2632 = vld [vmem:[%s2628 + $0x18] sm:$0xff]
        %v2633 = vld [vmem:[%s2628 + $0x20] sm:$0xff]
        %v2634 = vld [vmem:[%s2628 + $0x28] sm:$0xff]
        %v2635 = vld [vmem:[%s2628 + $0x30] sm:$0xff]
        %v2636 = vld [vmem:[%s2628 + $0x38] sm:$0xff]
        %v2637 = vld [vmem:[%s2628 + $0x40] sm:$0xff]
        %v2638 = vld [vmem:[%s2628 + $0x48] sm:$0xff]
        %v2639 = vld [vmem:[%s2628 + $0x50] sm:$0xff]
        %v2640 = vld [vmem:[%s2628 + $0x58] sm:$0xff]
        %v2641 = vld [vmem:[%s2628 + $0x60] sm:$0xff]
        %v2642 = vld [vmem:[%s2628 + $0x68] sm:$0xff]
        %v2643 = vld [vmem:[%s2628 + $0x70] sm:$0xff]
        %v2644 = vld [vmem:[%s2628 + $0x78] sm:$0xff]
        %v2645 = vld [vmem:[%s2628 + $0x80] sm:$0xff]
        %v2646 = vld [vmem:[%s2628 + $0x88] sm:$0xff]
        %v2647 = vld [vmem:[%s2628 + $0x90] sm:$0xff]
        %v2648 = vld [vmem:[%s2628 + $0x98] sm:$0xff]
        %v2649 = vld [vmem:[%s2628 + $0xa0] sm:$0xff]
        %v2650 = vld [vmem:[%s2628 + $0xa8] sm:$0xff]
        %v2651 = vld [vmem:[%s2628 + $0xb0] sm:$0xff]
        %v2652 = vld [vmem:[%s2628 + $0xb8] sm:$0xff]
        %v2653 = vld [vmem:[%s2628 + $0xc0] sm:$0xff]
        %v2654 = vld [vmem:[%s2628 + $0xc8] sm:$0xff]
        %v2655 = vld [vmem:[%s2628 + $0xd0] sm:$0xff]
        %v2656 = vld [vmem:[%s2628 + $0xd8] sm:$0xff]
        %v2657 = vld [vmem:[%s2628 + $0xe0] sm:$0xff]
        %v2658 = vld [vmem:[%s2628 + $0xe8] sm:$0xff]
        %v2659 = vld [vmem:[%s2628 + $0xf0] sm:$0xff]
        %v2660 = vld [vmem:[%s2628 + $0xf8] sm:$0xff]
        %v2661 = vld [vmem:[%s2628 + $0x100] sm:$0xff]
        %v2662 = vld [vmem:[%s2628 + $0x108] sm:$0xff]
        %v2663 = vld [vmem:[%s2628 + $0x110] sm:$0xff]
        %v2664 = vld [vmem:[%s2628 + $0x118] sm:$0xff]
        %v2665 = vld [vmem:[%s2628 + $0x120] sm:$0xff]
        %v2666 = vld [vmem:[%s2628 + $0x128] sm:$0xff]
        %v2667 = vld [vmem:[%s2628 + $0x130] sm:$0xff]
        %v2668 = vld [vmem:[%s2628 + $0x138] sm:$0xff]
        %v2669 = vld [vmem:[%s2628 + $0x140] sm:$0xff]
        %v2670 = vld [vmem:[%s2628 + $0x148] sm:$0xff]
        %v2671 = vld [vmem:[%s2628 + $0x150] sm:$0xff]
        %v2672 = vld [vmem:[%s2628 + $0x158] sm:$0xff]
        %v2673 = vld [vmem:[%s2628 + $0x160] sm:$0xff]
        %v2674 = vld [vmem:[%s2628 + $0x168] sm:$0xff]
        %v2675 = vld [vmem:[%s2628 + $0x170] sm:$0xff]
        %v2676 = vld [vmem:[%s2628 + $0x178] sm:$0xff]
        %v2677 = vld [vmem:[%s2628 + $0x180] sm:$0xff]
        %v2678 = vld [vmem:[%s2628 + $0x188] sm:$0xff]
        %v2679 = vld [vmem:[%s2628 + $0x190] sm:$0xff]
        %v2680 = vld [vmem:[%s2628 + $0x198] sm:$0xff]
        %v2681 = vld [vmem:[%s2628 + $0x1a0] sm:$0xff]
        %v2682 = vld [vmem:[%s2628 + $0x1a8] sm:$0xff]
        %v2683 = vld [vmem:[%s2628 + $0x1b0] sm:$0xff]
        %v2684 = vld [vmem:[%s2628 + $0x1b8] sm:$0xff]
        %v2685 = vld [vmem:[%s2628 + $0x1c0] sm:$0xff]
        %v2686 = vld [vmem:[%s2628 + $0x1c8] sm:$0xff]
        %v2687 = vld [vmem:[%s2628 + $0x1d0] sm:$0xff]
        %v2688 = vld [vmem:[%s2628 + $0x1d8] sm:$0xff]
        %v2689 = vld [vmem:[%s2628 + $0x1e0] sm:$0xff]
        %v2690 = vld [vmem:[%s2628 + $0x1e8] sm:$0xff]
        %v2691 = vld [vmem:[%s2628 + $0x1f0] sm:$0xff]
        %v2692 = vld [vmem:[%s2628 + $0x1f8] sm:$0xff]
        %v2693 = vld [vmem:[%s2628 + $0x200] sm:$0xff]
        %v2694 = vld [vmem:[%s2628 + $0x208] sm:$0xff]
        %v2695 = vld [vmem:[%s2628 + $0x210] sm:$0xff]
        %v2696 = vld [vmem:[%s2628 + $0x218] sm:$0xff]
        %v2697 = vld [vmem:[%s2628 + $0x220] sm:$0xff]
        %v2698 = vld [vmem:[%s2628 + $0x228] sm:$0xff]
        %v2699 = vld [vmem:[%s2628 + $0x230] sm:$0xff]
        %v2700 = vld [vmem:[%s2628 + $0x238] sm:$0xff]
        %v2701 = vld [vmem:[%s2628 + $0x240] sm:$0xff]
        %v2702 = vld [vmem:[%s2628 + $0x248] sm:$0xff]
        %v2703 = vld [vmem:[%s2628 + $0x250] sm:$0xff]
        %v2704 = vld [vmem:[%s2628 + $0x258] sm:$0xff]
        %v2705 = vld [vmem:[%s2628 + $0x260] sm:$0xff]
        %v2706 = vld [vmem:[%s2628 + $0x268] sm:$0xff]
        %v2707 = vld [vmem:[%s2628 + $0x270] sm:$0xff]
        %v2708 = vld [vmem:[%s2628 + $0x278] sm:$0xff]
        %v2710 = vsel %vm984, %v2633, 0
        %v2713 = vsel %vm984, %v2638, 0
        %v2716 = vsel %vm984, %v2643, 0
        %v2719 = vsel %vm984, %v2648, 0
        %v2722 = vsel %vm984, %v2653, 0
        %v2725 = vsel %vm984, %v2658, 0
        %v2728 = vsel %vm984, %v2663, 0
        %v2731 = vsel %vm984, %v2668, 0
        %v2734 = vsel %vm984, %v2673, 0
        %v2737 = vsel %vm984, %v2678, 0
        %v2740 = vsel %vm984, %v2683, 0
        %v2743 = vsel %vm984, %v2688, 0
        %v2746 = vsel %vm984, %v2693, 0
        %v2749 = vsel %vm984, %v2698, 0
        %v2752 = vsel %vm984, %v2703, 0
        %v2755 = vsel %vm984, %v2708, 0
        %2757 = vmatprep.subr.mxu0 0.0
        %2758 = vmatpush1.msra.mxu0 %v847
        %2759 = vmatprep.subr.mxu0 0.0
        %2760 = vmatpush1.msra.mxu0 %v846
        %2761 = vmatprep.subr.mxu0 0.0
        %2762 = vmatpush1.msra.mxu0 %v845
        %2763 = vmatprep.subr.mxu0 0.0
        %2764 = vmatpush1.msra.mxu0 %v844
        %2765 = vmatprep.subr.mxu0 0.0
        %2766 = vmatpush1.msra.mxu0 %v843
        %2767 = vmatprep.subr.mxu0 0.0
        %2768 = vmatpush1.msra.mxu0 %v842
        %2769 = vmatprep.subr.mxu0 0.0
        %2770 = vmatpush1.msra.mxu0 %v841
        %2771 = vmatprep.subr.mxu0 0.0
        %2772 = vmatpush1.msra.mxu0 %v840
        %2773 = vmatprep.subr.mxu0 0.0
        %2774 = vmatpush1.msra.mxu0 %v839
        %2775 = vmatprep.subr.mxu0 0.0
        %2776 = vmatpush1.msra.mxu0 %v838
        %2777 = vmatprep.subr.mxu0 0.0
        %2778 = vmatpush1.msra.mxu0 %v837
        %2779 = vmatprep.subr.mxu0 0.0
        %2780 = vmatpush1.msra.mxu0 %v836
        %2781 = vmatprep.subr.mxu0 0.0
        %2782 = vmatpush1.msra.mxu0 %v835
        %2783 = vmatprep.subr.mxu0 0.0
        %2784 = vmatpush1.msra.mxu0 %v834
        %2785 = vmatprep.subr.mxu0 0.0
        %2786 = vmatpush1.msra.mxu0 %v833
        %2787 = vmatprep.subr.mxu0 0.0
        %2788 = vmatpush1.msra.mxu0 %v832
        %2789 = vmatprep.subr.mxu0 0.0
        %2790 = vmatpush2.msra.mxu0 %v863
        %2791 = vmatprep.subr.mxu0 0.0
        %2792 = vmatpush2.msra.mxu0 %v862
        %2793 = vmatprep.subr.mxu0 0.0
        %2794 = vmatpush2.msra.mxu0 %v861
        %2795 = vmatprep.subr.mxu0 0.0
        %2796 = vmatpush2.msra.mxu0 %v860
        %2797 = vmatprep.subr.mxu0 0.0
        %2798 = vmatpush2.msra.mxu0 %v859
        %2799 = vmatprep.subr.mxu0 0.0
        %2800 = vmatpush2.msra.mxu0 %v858
        %2801 = vmatprep.subr.mxu0 0.0
        %2802 = vmatpush2.msra.mxu0 %v857
        %2803 = vmatprep.subr.mxu0 0.0
        %2804 = vmatpush2.msra.mxu0 %v856
        %2805 = vmatprep.subr.mxu0 0.0
        %2806 = vmatpush2.msra.mxu0 %v855
        %2807 = vmatprep.subr.mxu0 0.0
        %2808 = vmatpush2.msra.mxu0 %v854
        %2809 = vmatprep.subr.mxu0 0.0
        %2810 = vmatpush2.msra.mxu0 %v853
        %2811 = vmatprep.subr.mxu0 0.0
        %2812 = vmatpush2.msra.mxu0 %v852
        %2813 = vmatprep.subr.mxu0 0.0
        %2814 = vmatpush2.msra.mxu0 %v851
        %2815 = vmatprep.subr.mxu0 0.0
        %2816 = vmatpush2.msra.mxu0 %v850
        %2817 = vmatprep.subr.mxu0 0.0
        %2818 = vmatpush2.msra.mxu0 %v849
        %2819 = vmatprep.subr.mxu0 0.0
        %2820 = vmatpush2.msra.mxu0 %v848
        %2821 = vmatprep.mubr.f32.mxu0 %v2630
        %2822 = vmatmul.mubr.f32.gmra.mxu0 %v2629
        %v2823 = vpop.f32.mrf.mxu0
        %v2824 = vadd.f32 0.0, %v2823
        %v2825 = vpop.f32.mrf.mxu0
        %2826 = vmatprep.mubr.f32.mxu0 %v2635
        %2827 = vmatmul.mubr.f32.gmra.mxu0 %v2634
        %v2828 = vpop.f32.mrf.mxu0
        %v2829 = vadd.f32 0.0, %v2828
        %v2830 = vpop.f32.mrf.mxu0
        %2831 = vmatprep.mubr.f32.mxu0 %v2640
        %2832 = vmatmul.mubr.f32.gmra.mxu0 %v2639
        %v2833 = vpop.f32.mrf.mxu0
        %v2834 = vadd.f32 0.0, %v2833
        %v2835 = vpop.f32.mrf.mxu0
        %2836 = vmatprep.mubr.f32.mxu0 %v2645
        %2837 = vmatmul.mubr.f32.gmra.mxu0 %v2644
        %v2838 = vpop.f32.mrf.mxu0
        %v2839 = vadd.f32 0.0, %v2838
        %v2840 = vpop.f32.mrf.mxu0
        %2841 = vmatprep.mubr.f32.mxu0 %v2650
        %2842 = vmatmul.mubr.f32.gmra.mxu0 %v2649
        %v2843 = vpop.f32.mrf.mxu0
        %v2844 = vadd.f32 0.0, %v2843
        %v2845 = vpop.f32.mrf.mxu0
        %2846 = vmatprep.mubr.f32.mxu0 %v2655
        %2847 = vmatmul.mubr.f32.gmra.mxu0 %v2654
        %v2848 = vpop.f32.mrf.mxu0
        %v2849 = vadd.f32 0.0, %v2848
        %v2850 = vpop.f32.mrf.mxu0
        %2851 = vmatprep.mubr.f32.mxu0 %v2660
        %2852 = vmatmul.mubr.f32.gmra.mxu0 %v2659
        %v2853 = vpop.f32.mrf.mxu0
        %v2854 = vadd.f32 0.0, %v2853
        %v2855 = vpop.f32.mrf.mxu0
        %2856 = vmatprep.mubr.f32.mxu0 %v2665
        %2857 = vmatmul.mubr.f32.gmra.mxu0 %v2664
        %v2858 = vpop.f32.mrf.mxu0
        %v2859 = vadd.f32 0.0, %v2858
        %v2860 = vpop.f32.mrf.mxu0
        %2861 = vmatprep.mubr.f32.mxu0 %v2670
        %2862 = vmatmul.mubr.f32.gmra.mxu0 %v2669
        %v2863 = vpop.f32.mrf.mxu0
        %v2864 = vadd.f32 0.0, %v2863
        %v2865 = vpop.f32.mrf.mxu0
        %2866 = vmatprep.mubr.f32.mxu0 %v2675
        %2867 = vmatmul.mubr.f32.gmra.mxu0 %v2674
        %v2868 = vpop.f32.mrf.mxu0
        %v2869 = vadd.f32 0.0, %v2868
        %v2870 = vpop.f32.mrf.mxu0
        %2871 = vmatprep.mubr.f32.mxu0 %v2680
        %2872 = vmatmul.mubr.f32.gmra.mxu0 %v2679
        %v2873 = vpop.f32.mrf.mxu0
        %v2874 = vadd.f32 0.0, %v2873
        %v2875 = vpop.f32.mrf.mxu0
        %2876 = vmatprep.mubr.f32.mxu0 %v2685
        %2877 = vmatmul.mubr.f32.gmra.mxu0 %v2684
        %v2878 = vpop.f32.mrf.mxu0
        %v2879 = vadd.f32 0.0, %v2878
        %v2880 = vpop.f32.mrf.mxu0
        %2881 = vmatprep.mubr.f32.mxu0 %v2690
        %2882 = vmatmul.mubr.f32.gmra.mxu0 %v2689
        %v2883 = vpop.f32.mrf.mxu0
        %v2884 = vadd.f32 0.0, %v2883
        %v2885 = vpop.f32.mrf.mxu0
        %2886 = vmatprep.mubr.f32.mxu0 %v2695
        %2887 = vmatmul.mubr.f32.gmra.mxu0 %v2694
        %v2888 = vpop.f32.mrf.mxu0
        %v2889 = vadd.f32 0.0, %v2888
        %v2890 = vpop.f32.mrf.mxu0
        %2891 = vmatprep.mubr.f32.mxu0 %v2700
        %2892 = vmatmul.mubr.f32.gmra.mxu0 %v2699
        %v2893 = vpop.f32.mrf.mxu0
        %v2894 = vadd.f32 0.0, %v2893
        %v2895 = vpop.f32.mrf.mxu0
        %2896 = vmatprep.mubr.f32.mxu0 %v2705
        %2897 = vmatmul.mubr.f32.gmra.mxu0 %v2704
        %v2898 = vpop.f32.mrf.mxu0
        %v2899 = vadd.f32 0.0, %v2898
        %v2900 = vpop.f32.mrf.mxu0
        %2901 = vdwg.mxu0
        %2902 = vmatprep.subr.mxu0 0.0
        %2903 = vmatpush1.msra.mxu0 %v879
        %2904 = vmatprep.subr.mxu0 0.0
        %2905 = vmatpush1.msra.mxu0 %v878
        %2906 = vmatprep.subr.mxu0 0.0
        %2907 = vmatpush1.msra.mxu0 %v877
        %2908 = vmatprep.subr.mxu0 0.0
        %2909 = vmatpush1.msra.mxu0 %v876
        %2910 = vmatprep.subr.mxu0 0.0
        %2911 = vmatpush1.msra.mxu0 %v875
        %2912 = vmatprep.subr.mxu0 0.0
        %2913 = vmatpush1.msra.mxu0 %v874
        %2914 = vmatprep.subr.mxu0 0.0
        %2915 = vmatpush1.msra.mxu0 %v873
        %2916 = vmatprep.subr.mxu0 0.0
        %2917 = vmatpush1.msra.mxu0 %v872
        %2918 = vmatprep.subr.mxu0 0.0
        %2919 = vmatpush1.msra.mxu0 %v871
        %2920 = vmatprep.subr.mxu0 0.0
        %2921 = vmatpush1.msra.mxu0 %v870
        %2922 = vmatprep.subr.mxu0 0.0
        %2923 = vmatpush1.msra.mxu0 %v869
        %2924 = vmatprep.subr.mxu0 0.0
        %2925 = vmatpush1.msra.mxu0 %v868
        %2926 = vmatprep.subr.mxu0 0.0
        %2927 = vmatpush1.msra.mxu0 %v867
        %2928 = vmatprep.subr.mxu0 0.0
        %2929 = vmatpush1.msra.mxu0 %v866
        %2930 = vmatprep.subr.mxu0 0.0
        %2931 = vmatpush1.msra.mxu0 %v865
        %2932 = vmatprep.subr.mxu0 0.0
        %2933 = vmatpush1.msra.mxu0 %v864
        %2934 = vmatprep.subr.mxu0 0.0
        %2935 = vmatpush2.msra.mxu0 %v895
        %2936 = vmatprep.subr.mxu0 0.0
        %2937 = vmatpush2.msra.mxu0 %v894
        %2938 = vmatprep.subr.mxu0 0.0
        %2939 = vmatpush2.msra.mxu0 %v893
        %2940 = vmatprep.subr.mxu0 0.0
        %2941 = vmatpush2.msra.mxu0 %v892
        %2942 = vmatprep.subr.mxu0 0.0
        %2943 = vmatpush2.msra.mxu0 %v891
        %2944 = vmatprep.subr.mxu0 0.0
        %2945 = vmatpush2.msra.mxu0 %v890
        %2946 = vmatprep.subr.mxu0 0.0
        %2947 = vmatpush2.msra.mxu0 %v889
        %2948 = vmatprep.subr.mxu0 0.0
        %2949 = vmatpush2.msra.mxu0 %v888
        %2950 = vmatprep.subr.mxu0 0.0
        %2951 = vmatpush2.msra.mxu0 %v887
        %2952 = vmatprep.subr.mxu0 0.0
        %2953 = vmatpush2.msra.mxu0 %v886
        %2954 = vmatprep.subr.mxu0 0.0
        %2955 = vmatpush2.msra.mxu0 %v885
        %2956 = vmatprep.subr.mxu0 0.0
        %2957 = vmatpush2.msra.mxu0 %v884
        %2958 = vmatprep.subr.mxu0 0.0
        %2959 = vmatpush2.msra.mxu0 %v883
        %2960 = vmatprep.subr.mxu0 0.0
        %2961 = vmatpush2.msra.mxu0 %v882
        %2962 = vmatprep.subr.mxu0 0.0
        %2963 = vmatpush2.msra.mxu0 %v881
        %2964 = vmatprep.subr.mxu0 0.0
        %2965 = vmatpush2.msra.mxu0 %v880
        %2966 = vmatprep.mubr.f32.mxu0 %v2632
        %2967 = vmatmul.mubr.f32.gmra.mxu0 %v2631
        %v2968 = vpop.f32.mrf.mxu0
        %v2969 = vadd.f32 %v2824, %v2968
        %v2970 = vpop.f32.mrf.mxu0
        %2971 = vmatprep.mubr.f32.mxu0 %v2637
        %2972 = vmatmul.mubr.f32.gmra.mxu0 %v2636
        %v2973 = vpop.f32.mrf.mxu0
        %v2974 = vadd.f32 %v2829, %v2973
        %v2975 = vpop.f32.mrf.mxu0
        %2976 = vmatprep.mubr.f32.mxu0 %v2642
        %2977 = vmatmul.mubr.f32.gmra.mxu0 %v2641
        %v2978 = vpop.f32.mrf.mxu0
        %v2979 = vadd.f32 %v2834, %v2978
        %v2980 = vpop.f32.mrf.mxu0
        %2981 = vmatprep.mubr.f32.mxu0 %v2647
        %2982 = vmatmul.mubr.f32.gmra.mxu0 %v2646
        %v2983 = vpop.f32.mrf.mxu0
        %v2984 = vadd.f32 %v2839, %v2983
        %v2985 = vpop.f32.mrf.mxu0
        %2986 = vmatprep.mubr.f32.mxu0 %v2652
        %2987 = vmatmul.mubr.f32.gmra.mxu0 %v2651
        %v2988 = vpop.f32.mrf.mxu0
        %v2989 = vadd.f32 %v2844, %v2988
        %v2990 = vpop.f32.mrf.mxu0
        %2991 = vmatprep.mubr.f32.mxu0 %v2657
        %2992 = vmatmul.mubr.f32.gmra.mxu0 %v2656
        %v2993 = vpop.f32.mrf.mxu0
        %v2994 = vadd.f32 %v2849, %v2993
        %v2995 = vpop.f32.mrf.mxu0
        %2996 = vmatprep.mubr.f32.mxu0 %v2662
        %2997 = vmatmul.mubr.f32.gmra.mxu0 %v2661
        %v2998 = vpop.f32.mrf.mxu0
        %v2999 = vadd.f32 %v2854, %v2998
        %v3000 = vpop.f32.mrf.mxu0
        %3001 = vmatprep.mubr.f32.mxu0 %v2667
        %3002 = vmatmul.mubr.f32.gmra.mxu0 %v2666
        %v3003 = vpop.f32.mrf.mxu0
        %v3004 = vadd.f32 %v2859, %v3003
        %v3005 = vpop.f32.mrf.mxu0
        %3006 = vmatprep.mubr.f32.mxu0 %v2672
        %3007 = vmatmul.mubr.f32.gmra.mxu0 %v2671
        %v3008 = vpop.f32.mrf.mxu0
        %v3009 = vadd.f32 %v2864, %v3008
        %v3010 = vpop.f32.mrf.mxu0
        %3011 = vmatprep.mubr.f32.mxu0 %v2677
        %3012 = vmatmul.mubr.f32.gmra.mxu0 %v2676
        %v3013 = vpop.f32.mrf.mxu0
        %v3014 = vadd.f32 %v2869, %v3013
        %v3015 = vpop.f32.mrf.mxu0
        %3016 = vmatprep.mubr.f32.mxu0 %v2682
        %3017 = vmatmul.mubr.f32.gmra.mxu0 %v2681
        %v3018 = vpop.f32.mrf.mxu0
        %v3019 = vadd.f32 %v2874, %v3018
        %v3020 = vpop.f32.mrf.mxu0
        %3021 = vmatprep.mubr.f32.mxu0 %v2687
        %3022 = vmatmul.mubr.f32.gmra.mxu0 %v2686
        %v3023 = vpop.f32.mrf.mxu0
        %v3024 = vadd.f32 %v2879, %v3023
        %v3025 = vpop.f32.mrf.mxu0
        %3026 = vmatprep.mubr.f32.mxu0 %v2692
        %3027 = vmatmul.mubr.f32.gmra.mxu0 %v2691
        %v3028 = vpop.f32.mrf.mxu0
        %v3029 = vadd.f32 %v2884, %v3028
        %v3030 = vpop.f32.mrf.mxu0
        %3031 = vmatprep.mubr.f32.mxu0 %v2697
        %3032 = vmatmul.mubr.f32.gmra.mxu0 %v2696
        %v3033 = vpop.f32.mrf.mxu0
        %v3034 = vadd.f32 %v2889, %v3033
        %v3035 = vpop.f32.mrf.mxu0
        %3036 = vmatprep.mubr.f32.mxu0 %v2702
        %3037 = vmatmul.mubr.f32.gmra.mxu0 %v2701
        %v3038 = vpop.f32.mrf.mxu0
        %v3039 = vadd.f32 %v2894, %v3038
        %v3040 = vpop.f32.mrf.mxu0
        %3041 = vmatprep.mubr.f32.mxu0 %v2707
        %3042 = vmatmul.mubr.f32.gmra.mxu0 %v2706
        %v3043 = vpop.f32.mrf.mxu0
        %v3044 = vadd.f32 %v2899, %v3043
        %v3045 = vpop.f32.mrf.mxu0
        %3046 = vdwg.mxu0
        %3047 = vmatprep.subr.mxu0 0.0
        %3048 = vmatpush1.msra.mxu0 0.0
        %3049 = vmatprep.subr.mxu0 0.0
        %3050 = vmatpush1.msra.mxu0 0.0
        %3051 = vmatprep.subr.mxu0 0.0
        %3052 = vmatpush1.msra.mxu0 0.0
        %3053 = vmatprep.subr.mxu0 0.0
        %3054 = vmatpush1.msra.mxu0 0.0
        %3055 = vmatprep.subr.mxu0 0.0
        %3056 = vmatpush1.msra.mxu0 0.0
        %3057 = vmatprep.subr.mxu0 0.0
        %3058 = vmatpush1.msra.mxu0 0.0
        %3059 = vmatprep.subr.mxu0 0.0
        %3060 = vmatpush1.msra.mxu0 0.0
        %3061 = vmatprep.subr.mxu0 0.0
        %3062 = vmatpush1.msra.mxu0 0.0
        %3063 = vmatprep.subr.mxu0 0.0
        %3064 = vmatpush1.msra.mxu0 %v903
        %3065 = vmatprep.subr.mxu0 0.0
        %3066 = vmatpush1.msra.mxu0 %v902
        %3067 = vmatprep.subr.mxu0 0.0
        %3068 = vmatpush1.msra.mxu0 %v901
        %3069 = vmatprep.subr.mxu0 0.0
        %3070 = vmatpush1.msra.mxu0 %v900
        %3071 = vmatprep.subr.mxu0 0.0
        %3072 = vmatpush1.msra.mxu0 %v899
        %3073 = vmatprep.subr.mxu0 0.0
        %3074 = vmatpush1.msra.mxu0 %v898
        %3075 = vmatprep.subr.mxu0 0.0
        %3076 = vmatpush1.msra.mxu0 %v897
        %3077 = vmatprep.subr.mxu0 0.0
        %3078 = vmatpush1.msra.mxu0 %v896
        %3079 = vmatprep.subr.mxu0 0.0
        %3080 = vmatpush2.msra.mxu0 0.0
        %3081 = vmatprep.subr.mxu0 0.0
        %3082 = vmatpush2.msra.mxu0 0.0
        %3083 = vmatprep.subr.mxu0 0.0
        %3084 = vmatpush2.msra.mxu0 0.0
        %3085 = vmatprep.subr.mxu0 0.0
        %3086 = vmatpush2.msra.mxu0 0.0
        %3087 = vmatprep.subr.mxu0 0.0
        %3088 = vmatpush2.msra.mxu0 0.0
        %3089 = vmatprep.subr.mxu0 0.0
        %3090 = vmatpush2.msra.mxu0 0.0
        %3091 = vmatprep.subr.mxu0 0.0
        %3092 = vmatpush2.msra.mxu0 0.0
        %3093 = vmatprep.subr.mxu0 0.0
        %3094 = vmatpush2.msra.mxu0 0.0
        %3095 = vmatprep.subr.mxu0 0.0
        %3096 = vmatpush2.msra.mxu0 0.0
        %3097 = vmatprep.subr.mxu0 0.0
        %3098 = vmatpush2.msra.mxu0 0.0
        %3099 = vmatprep.subr.mxu0 0.0
        %3100 = vmatpush2.msra.mxu0 0.0
        %3101 = vmatprep.subr.mxu0 0.0
        %3102 = vmatpush2.msra.mxu0 0.0
        %3103 = vmatprep.subr.mxu0 0.0
        %3104 = vmatpush2.msra.mxu0 0.0
        %3105 = vmatprep.subr.mxu0 0.0
        %3106 = vmatpush2.msra.mxu0 0.0
        %3107 = vmatprep.subr.mxu0 0.0
        %3108 = vmatpush2.msra.mxu0 0.0
        %3109 = vmatprep.subr.mxu0 0.0
        %3110 = vmatpush2.msra.mxu0 0.0
        %3111 = vmatprep.mubr.f32.mxu0 0.0
        %3112 = vmatmul.mubr.f32.gmra.mxu0 %v2710
        %v3113 = vpop.f32.mrf.mxu0
        %v3114 = vadd.f32 %v2969, %v3113
        %v3115 = vpop.f32.mrf.mxu0
        %3116 = vmatprep.mubr.f32.mxu0 0.0
        %3117 = vmatmul.mubr.f32.gmra.mxu0 %v2713
        %v3118 = vpop.f32.mrf.mxu0
        %v3119 = vadd.f32 %v2974, %v3118
        %v3120 = vpop.f32.mrf.mxu0
        %3121 = vmatprep.mubr.f32.mxu0 0.0
        %3122 = vmatmul.mubr.f32.gmra.mxu0 %v2716
        %v3123 = vpop.f32.mrf.mxu0
        %v3124 = vadd.f32 %v2979, %v3123
        %v3125 = vpop.f32.mrf.mxu0
        %3126 = vmatprep.mubr.f32.mxu0 0.0
        %3127 = vmatmul.mubr.f32.gmra.mxu0 %v2719
        %v3128 = vpop.f32.mrf.mxu0
        %v3129 = vadd.f32 %v2984, %v3128
        %v3130 = vpop.f32.mrf.mxu0
        %3131 = vmatprep.mubr.f32.mxu0 0.0
        %3132 = vmatmul.mubr.f32.gmra.mxu0 %v2722
        %v3133 = vpop.f32.mrf.mxu0
        %v3134 = vadd.f32 %v2989, %v3133
        %v3135 = vpop.f32.mrf.mxu0
        %3136 = vmatprep.mubr.f32.mxu0 0.0
        %3137 = vmatmul.mubr.f32.gmra.mxu0 %v2725
        %v3138 = vpop.f32.mrf.mxu0
        %v3139 = vadd.f32 %v2994, %v3138
        %v3140 = vpop.f32.mrf.mxu0
        %3141 = vmatprep.mubr.f32.mxu0 0.0
        %3142 = vmatmul.mubr.f32.gmra.mxu0 %v2728
        %v3143 = vpop.f32.mrf.mxu0
        %v3144 = vadd.f32 %v2999, %v3143
        %v3145 = vpop.f32.mrf.mxu0
        %3146 = vmatprep.mubr.f32.mxu0 0.0
        %3147 = vmatmul.mubr.f32.gmra.mxu0 %v2731
        %v3148 = vpop.f32.mrf.mxu0
        %v3149 = vadd.f32 %v3004, %v3148
        %v3150 = vpop.f32.mrf.mxu0
        %3151 = vmatprep.mubr.f32.mxu0 0.0
        %3152 = vmatmul.mubr.f32.gmra.mxu0 %v2734
        %v3153 = vpop.f32.mrf.mxu0
        %v3154 = vadd.f32 %v3009, %v3153
        %v3155 = vpop.f32.mrf.mxu0
        %3156 = vmatprep.mubr.f32.mxu0 0.0
        %3157 = vmatmul.mubr.f32.gmra.mxu0 %v2737
        %v3158 = vpop.f32.mrf.mxu0
        %v3159 = vadd.f32 %v3014, %v3158
        %v3160 = vpop.f32.mrf.mxu0
        %3161 = vmatprep.mubr.f32.mxu0 0.0
        %3162 = vmatmul.mubr.f32.gmra.mxu0 %v2740
        %v3163 = vpop.f32.mrf.mxu0
        %v3164 = vadd.f32 %v3019, %v3163
        %v3165 = vpop.f32.mrf.mxu0
        %3166 = vmatprep.mubr.f32.mxu0 0.0
        %3167 = vmatmul.mubr.f32.gmra.mxu0 %v2743
        %v3168 = vpop.f32.mrf.mxu0
        %v3169 = vadd.f32 %v3024, %v3168
        %v3170 = vpop.f32.mrf.mxu0
        %3171 = vmatprep.mubr.f32.mxu0 0.0
        %3172 = vmatmul.mubr.f32.gmra.mxu0 %v2746
        %v3173 = vpop.f32.mrf.mxu0
        %v3174 = vadd.f32 %v3029, %v3173
        %v3175 = vpop.f32.mrf.mxu0
        %3176 = vmatprep.mubr.f32.mxu0 0.0
        %3177 = vmatmul.mubr.f32.gmra.mxu0 %v2749
        %v3178 = vpop.f32.mrf.mxu0
        %v3179 = vadd.f32 %v3034, %v3178
        %v3180 = vpop.f32.mrf.mxu0
        %3181 = vmatprep.mubr.f32.mxu0 0.0
        %3182 = vmatmul.mubr.f32.gmra.mxu0 %v2752
        %v3183 = vpop.f32.mrf.mxu0
        %v3184 = vadd.f32 %v3039, %v3183
        %v3185 = vpop.f32.mrf.mxu0
        %3186 = vmatprep.mubr.f32.mxu0 0.0
        %3187 = vmatmul.mubr.f32.gmra.mxu0 %v2755
        %v3188 = vpop.f32.mrf.mxu0
        %v3189 = vadd.f32 %v3044, %v3188
        %v3190 = vpop.f32.mrf.mxu0
        %3191 = vdwg.mxu0
        %v3192 = vmax.f32 %v2612, %v3114
        %v3193 = vmax.f32 %v2613, %v3119
        %v3194 = vmax.f32 %v2614, %v3124
        %v3195 = vmax.f32 %v2615, %v3129
        %v3196 = vmax.f32 %v2616, %v3134
        %v3197 = vmax.f32 %v2617, %v3139
        %v3198 = vmax.f32 %v2618, %v3144
        %v3199 = vmax.f32 %v2619, %v3149
        %v3200 = vmax.f32 %v2620, %v3154
        %v3201 = vmax.f32 %v2621, %v3159
        %v3202 = vmax.f32 %v2622, %v3164
        %v3203 = vmax.f32 %v2623, %v3169
        %v3204 = vmax.f32 %v2624, %v3174
        %v3205 = vmax.f32 %v2625, %v3179
        %v3206 = vmax.f32 %v2626, %v3184
        %v3207 = vmax.f32 %v2627, %v3189
        %v3208 = vld [vmem:[%s2] sm:$0x1]
        %v3210 = vlaneseq
        %v3211 = vshrl.u32 %v3210, 7
        %v3212 = vsub.s32 0, %v3211
        %v3213 = vrot.slane %v3208, %v3212
        %v3215 = vadd.f32 %v3192, %v3213
        %v3216 = vadd.f32 %v3193, %v3213
        %v3217 = vadd.f32 %v3194, %v3213
        %v3218 = vadd.f32 %v3195, %v3213
        %v3219 = vadd.f32 %v3196, %v3213
        %v3220 = vadd.f32 %v3197, %v3213
        %v3221 = vadd.f32 %v3198, %v3213
        %v3222 = vadd.f32 %v3199, %v3213
        %v3223 = vadd.f32 %v3200, %v3213
        %v3224 = vadd.f32 %v3201, %v3213
        %v3225 = vadd.f32 %v3202, %v3213
        %v3226 = vadd.f32 %v3203, %v3213
        %v3227 = vadd.f32 %v3204, %v3213
        %v3228 = vadd.f32 %v3205, %v3213
        %v3229 = vadd.f32 %v3206, %v3213
        %v3230 = vadd.f32 %v3207, %v3213
        %v3231 = vmax.f32 %v3215, 0.0
        %v3232 = vmax.f32 %v3216, 0.0
        %v3233 = vmax.f32 %v3217, 0.0
        %v3234 = vmax.f32 %v3218, 0.0
        %v3235 = vmax.f32 %v3219, 0.0
        %v3236 = vmax.f32 %v3220, 0.0
        %v3237 = vmax.f32 %v3221, 0.0
        %v3238 = vmax.f32 %v3222, 0.0
        %v3239 = vmax.f32 %v3223, 0.0
        %v3240 = vmax.f32 %v3224, 0.0
        %v3241 = vmax.f32 %v3225, 0.0
        %v3242 = vmax.f32 %v3226, 0.0
        %v3243 = vmax.f32 %v3227, 0.0
        %v3244 = vmax.f32 %v3228, 0.0
        %v3245 = vmax.f32 %v3229, 0.0
        %v3246 = vmax.f32 %v3230, 0.0
        %3247 = vst.msk [vmem:[%s830] sm:$0xff] %vm984, %v3231
        %3248 = vst.msk [vmem:[%s830 + $0x8] sm:$0xff] %vm984, %v3232
        %3249 = vst.msk [vmem:[%s830 + $0x10] sm:$0xff] %vm984, %v3233
        %3250 = vst.msk [vmem:[%s830 + $0x18] sm:$0xff] %vm984, %v3234
        %3251 = vst.msk [vmem:[%s830 + $0x20] sm:$0xff] %vm984, %v3235
        %3252 = vst.msk [vmem:[%s830 + $0x28] sm:$0xff] %vm984, %v3236
        %3253 = vst.msk [vmem:[%s830 + $0x30] sm:$0xff] %vm984, %v3237
        %3254 = vst.msk [vmem:[%s830 + $0x38] sm:$0xff] %vm984, %v3238
        %3255 = vst.msk [vmem:[%s830 + $0x40] sm:$0xff] %vm984, %v3239
        %3256 = vst.msk [vmem:[%s830 + $0x48] sm:$0xff] %vm984, %v3240
        %3257 = vst.msk [vmem:[%s830 + $0x50] sm:$0xff] %vm984, %v3241
        %3258 = vst.msk [vmem:[%s830 + $0x58] sm:$0xff] %vm984, %v3242
        %3259 = vst.msk [vmem:[%s830 + $0x60] sm:$0xff] %vm984, %v3243
        %3260 = vst.msk [vmem:[%s830 + $0x68] sm:$0xff] %vm984, %v3244
        %3261 = vst.msk [vmem:[%s830 + $0x70] sm:$0xff] %vm984, %v3245
        %3262 = vst.msk [vmem:[%s830 + $0x78] sm:$0xff] %vm984, %v3246
        %s3263 = smul.u32 16, %s14
        %p3264 = scmp.lt.s32.totalorder %s3263, 63
        %s3265 = scalar_select %p3264, %s3263, 63
        %s3266 = smul.addr %s3265, 8
        %s3267 = scalar_lea.vmem %s3, %s3266
        // Predicated region
        $region56: #{encoder_forward.4} parent=50 // pred_check
          %p3268 = pneg %p100
        $region57: #{encoder_forward.4} parent=50 // pred_check_branch
          %3270 = sbr.rel (%p3268) target = $region59
        $region58: #{encoder_forward.4} parent=50 // pred_region
          %s3271 = smul.u32 16, %s14
        $region59: #{encoder_forward.4} parent=50 // pred_fallthru
          _
      $region51: #{encoder_forward.4} parent=5 // pred_fallthru
        _
      %p3272 = scmp.le.s32.totalorder 2, %s9
      // Predicated region
      $region60: #{encoder_forward.4} parent=5 // pred_check
        %p3273 = pneg %p3272
      $region61: #{encoder_forward.4} parent=5 // pred_check_branch
        %3275 = sbr.rel (%p3273) target = $region63
      $region62: #{encoder_forward.4} parent=5 // pred_region
        %s3276 = ssub.s32 %s9, 2
        // Predicated region
        $region64: #{encoder_forward.4} parent=62 // pred_check
          %p3277 = pneg %p106
        $region65: #{encoder_forward.4} parent=62 // pred_check_branch
          %3279 = sbr.rel (%p3277) target = $region67
        $region66: #{encoder_forward.4} parent=62 // pred_region
          %s3280 = smul.u32 16, %s15
          %p3281 = scmp.lt.s32.totalorder %s3280, 63
          %s3282 = scalar_select %p3281, %s3280, 63
          %s3283 = smul.addr %s3282, 8
          %s3284 = scalar_lea.vmem %s3, %s3283
        $region67: #{encoder_forward.4} parent=62 // pred_fallthru
          _
      $region63: #{encoder_forward.4} parent=5 // pred_fallthru
        _
    $region6: #{encoder_forward.4} parent=1 // loop_footer
      %s13 = sadd.s32 1, %s9
    $region7: #{encoder_forward.4} parent=1 // loop_footer_branch
      %8 = sbr.rel target = $region3
    $region8: #{encoder_forward.4} parent=1 // loop_exit
      _

// kernel: encoder_forward.5
$region0: #{encoder_forward.5}
  #allocation0 [shape = 'u32[]', space=smem, size = 0x4, offset = 0x4, fixed_abs, tag = 'smem constant byte address 0x4 - core index']
  #allocation1 [shape = 'u32[144,128]{1,0:T(1,128)}', space=vmem, size = 0x12000, scoped, tag = 'internal scratch']
  %s0 = inlined_call_operand.vmem [shape: f32[4,32,1600], index: 0, kind: input, shape index: {}]
  %s1 = inlined_call_operand.vmem [shape: f32[1600,32], index: 1, kind: input, shape index: {}]
  %s2 = inlined_call_operand.vmem [shape: f32[1,32], index: 2, kind: input, shape index: {}]
  %s3 = inlined_call_operand.vmem [shape: f32[4,512,32], index: 3, kind: input, shape index: {}]
  %s4 = inlined_call_operand.vmem [shape: f32[1,32], index: 4, kind: input, shape index: {}]
  %s5 = inlined_call_operand.vmem [shape: f32[32,16], index: 5, kind: input, shape index: {}]
  %s6 = inlined_call_operand.vmem [shape: f32[1,16], index: 6, kind: input, shape index: {}]
  %s7 = inlined_call_operand.hbm [shape: f32[2,16], index: 7, kind: output, shape index: {}]
  %s8 = sld [smem:[#allocation0]]
  $region38: #{encoder_forward.5} parent=0
    _
  %s10 = ssub.s32 1, %s8
  %s11 = scalar_select 0, %s10, %s8
  $region1: #{encoder_forward.5} parent=0
    #allocation2 [shape = 'u8[1024]{0}', space=vmem, size = 0x400, scoped, tag = 'output window, operand 0, single buffered']
    #allocation3 [shape = 's32[1]{0}', space=sflag, size = 0x4, scoped, tag = 'scoped memory for encoder_forward.5']
    %12 = vsyncpa [#allocation3], 0
    // Predicated region
    $region2: #{encoder_forward.5} parent=1 // pred_check
      _
    $region3: #{encoder_forward.5} parent=1 // pred_check_branch
      %14 = sbr.rel (0) target = $region5
    $region4: #{encoder_forward.5} parent=1 // pred_region
      _
    $region5: #{encoder_forward.5} parent=1 // pred_fallthru
      _
    // Predicated region
    $region6: #{encoder_forward.5} parent=1 // pred_check
      _
    $region7: #{encoder_forward.5} parent=1 // pred_check_branch
      %16 = sbr.rel (0) target = $region9
    $region8: #{encoder_forward.5} parent=1 // pred_region
      _
    $region9: #{encoder_forward.5} parent=1 // pred_fallthru
      _
    // Predicated region
    $region10: #{encoder_forward.5} parent=1 // pred_check
      _
    $region11: #{encoder_forward.5} parent=1 // pred_check_branch
      %18 = sbr.rel (0) target = $region13
    $region12: #{encoder_forward.5} parent=1 // pred_region
      _
    $region13: #{encoder_forward.5} parent=1 // pred_fallthru
      _
    // Predicated region
    $region14: #{encoder_forward.5} parent=1 // pred_check
      _
    $region15: #{encoder_forward.5} parent=1 // pred_check_branch
      %20 = sbr.rel (0) target = $region17
    $region16: #{encoder_forward.5} parent=1 // pred_region
      _
    $region17: #{encoder_forward.5} parent=1 // pred_fallthru
      _
    // Predicated region
    $region18: #{encoder_forward.5} parent=1 // pred_check
      _
    $region19: #{encoder_forward.5} parent=1 // pred_check_branch
      %22 = sbr.rel (0) target = $region21
    $region20: #{encoder_forward.5} parent=1 // pred_region
      _
    $region21: #{encoder_forward.5} parent=1 // pred_fallthru
      _
    // Predicated region
    $region22: #{encoder_forward.5} parent=1 // pred_check
      _
    $region23: #{encoder_forward.5} parent=1 // pred_check_branch
      %24 = sbr.rel (0) target = $region25
    $region24: #{encoder_forward.5} parent=1 // pred_region
      _
    $region25: #{encoder_forward.5} parent=1 // pred_fallthru
      _
    // Predicated region
    $region26: #{encoder_forward.5} parent=1 // pred_check
      _
    $region27: #{encoder_forward.5} parent=1 // pred_check_branch
      %26 = sbr.rel (0) target = $region29
    $region28: #{encoder_forward.5} parent=1 // pred_region
      _
    $region29: #{encoder_forward.5} parent=1 // pred_fallthru
      _
    %v27 = vld [vmem:[%s1] sm:$0xff]
    %v28 = vld [vmem:[%s1 + $0x8] sm:$0xff]
    %v29 = vld [vmem:[%s1 + $0x10] sm:$0xff]
    %v30 = vld [vmem:[%s1 + $0x18] sm:$0xff]
    %v31 = vld [vmem:[%s1 + $0x20] sm:$0xff]
    %v32 = vld [vmem:[%s1 + $0x28] sm:$0xff]
    %v33 = vld [vmem:[%s1 + $0x30] sm:$0xff]
    %v34 = vld [vmem:[%s1 + $0x38] sm:$0xff]
    %v35 = vld [vmem:[%s1 + $0x40] sm:$0xff]
    %v36 = vld [vmem:[%s1 + $0x48] sm:$0xff]
    %v37 = vld [vmem:[%s1 + $0x50] sm:$0xff]
    %v38 = vld [vmem:[%s1 + $0x58] sm:$0xff]
    %v39 = vld [vmem:[%s1 + $0x60] sm:$0xff]
    %v40 = vld [vmem:[%s1 + $0x68] sm:$0xff]
    %v41 = vld [vmem:[%s1 + $0x70] sm:$0xff]
    %v42 = vld [vmem:[%s1 + $0x78] sm:$0xff]
    %v43 = vld [vmem:[%s1 + $0x80] sm:$0xff]
    %v44 = vld [vmem:[%s1 + $0x88] sm:$0xff]
    %v45 = vld [vmem:[%s1 + $0x90] sm:$0xff]
    %v46 = vld [vmem:[%s1 + $0x98] sm:$0xff]
    %v47 = vld [vmem:[%s1 + $0xa0] sm:$0xff]
    %v48 = vld [vmem:[%s1 + $0xa8] sm:$0xff]
    %v49 = vld [vmem:[%s1 + $0xb0] sm:$0xff]
    %v50 = vld [vmem:[%s1 + $0xb8] sm:$0xff]
    %v51 = vld [vmem:[%s1 + $0xc0] sm:$0xff]
    %v52 = vld [vmem:[%s1 + $0xc8] sm:$0xff]
    %v53 = vld [vmem:[%s1 + $0xd0] sm:$0xff]
    %v54 = vld [vmem:[%s1 + $0xd8] sm:$0xff]
    %v55 = vld [vmem:[%s1 + $0xe0] sm:$0xff]
    %v56 = vld [vmem:[%s1 + $0xe8] sm:$0xff]
    %v57 = vld [vmem:[%s1 + $0xf0] sm:$0xff]
    %v58 = vld [vmem:[%s1 + $0xf8] sm:$0xff]
    %v59 = vld [vmem:[%s1 + $0x100] sm:$0xff]
    %v60 = vld [vmem:[%s1 + $0x108] sm:$0xff]
    %v61 = vld [vmem:[%s1 + $0x110] sm:$0xff]
    %v62 = vld [vmem:[%s1 + $0x118] sm:$0xff]
    %v63 = vld [vmem:[%s1 + $0x120] sm:$0xff]
    %v64 = vld [vmem:[%s1 + $0x128] sm:$0xff]
    %v65 = vld [vmem:[%s1 + $0x130] sm:$0xff]
    %v66 = vld [vmem:[%s1 + $0x138] sm:$0xff]
    %v67 = vld [vmem:[%s1 + $0x140] sm:$0xff]
    %v68 = vld [vmem:[%s1 + $0x148] sm:$0xff]
    %v69 = vld [vmem:[%s1 + $0x150] sm:$0xff]
    %v70 = vld [vmem:[%s1 + $0x158] sm:$0xff]
    %v71 = vld [vmem:[%s1 + $0x160] sm:$0xff]
    %v72 = vld [vmem:[%s1 + $0x168] sm:$0xff]
    %v73 = vld [vmem:[%s1 + $0x170] sm:$0xff]
    %v74 = vld [vmem:[%s1 + $0x178] sm:$0xff]
    %v75 = vld [vmem:[%s1 + $0x180] sm:$0xff]
    %v76 = vld [vmem:[%s1 + $0x188] sm:$0xff]
    %v77 = vld [vmem:[%s1 + $0x190] sm:$0xff]
    %v78 = vld [vmem:[%s1 + $0x198] sm:$0xff]
    %v79 = vld [vmem:[%s1 + $0x1a0] sm:$0xff]
    %v80 = vld [vmem:[%s1 + $0x1a8] sm:$0xff]
    %v81 = vld [vmem:[%s1 + $0x1b0] sm:$0xff]
    %v82 = vld [vmem:[%s1 + $0x1b8] sm:$0xff]
    %v83 = vld [vmem:[%s1 + $0x1c0] sm:$0xff]
    %v84 = vld [vmem:[%s1 + $0x1c8] sm:$0xff]
    %v85 = vld [vmem:[%s1 + $0x1d0] sm:$0xff]
    %v86 = vld [vmem:[%s1 + $0x1d8] sm:$0xff]
    %v87 = vld [vmem:[%s1 + $0x1e0] sm:$0xff]
    %v88 = vld [vmem:[%s1 + $0x1e8] sm:$0xff]
    %v89 = vld [vmem:[%s1 + $0x1f0] sm:$0xff]
    %v90 = vld [vmem:[%s1 + $0x1f8] sm:$0xff]
    %v91 = vld [vmem:[%s1 + $0x200] sm:$0xff]
    %v92 = vld [vmem:[%s1 + $0x208] sm:$0xff]
    %v93 = vld [vmem:[%s1 + $0x210] sm:$0xff]
    %v94 = vld [vmem:[%s1 + $0x218] sm:$0xff]
    %v95 = vld [vmem:[%s1 + $0x220] sm:$0xff]
    %v96 = vld [vmem:[%s1 + $0x228] sm:$0xff]
    %v97 = vld [vmem:[%s1 + $0x230] sm:$0xff]
    %v98 = vld [vmem:[%s1 + $0x238] sm:$0xff]
    %v99 = vld [vmem:[%s1 + $0x240] sm:$0xff]
    %v100 = vld [vmem:[%s1 + $0x248] sm:$0xff]
    %v101 = vld [vmem:[%s1 + $0x250] sm:$0xff]
    %v102 = vld [vmem:[%s1 + $0x258] sm:$0xff]
    %v103 = vld [vmem:[%s1 + $0x260] sm:$0xff]
    %v104 = vld [vmem:[%s1 + $0x268] sm:$0xff]
    %v105 = vld [vmem:[%s1 + $0x270] sm:$0xff]
    %v106 = vld [vmem:[%s1 + $0x278] sm:$0xff]
    %v107 = vld [vmem:[%s1 + $0x280] sm:$0xff]
    %v108 = vld [vmem:[%s1 + $0x288] sm:$0xff]
    %v109 = vld [vmem:[%s1 + $0x290] sm:$0xff]
    %v110 = vld [vmem:[%s1 + $0x298] sm:$0xff]
    %v111 = vld [vmem:[%s1 + $0x2a0] sm:$0xff]
    %v112 = vld [vmem:[%s1 + $0x2a8] sm:$0xff]
    %v113 = vld [vmem:[%s1 + $0x2b0] sm:$0xff]
    %v114 = vld [vmem:[%s1 + $0x2b8] sm:$0xff]
    %v115 = vld [vmem:[%s1 + $0x2c0] sm:$0xff]
    %v116 = vld [vmem:[%s1 + $0x2c8] sm:$0xff]
    %v117 = vld [vmem:[%s1 + $0x2d0] sm:$0xff]
    %v118 = vld [vmem:[%s1 + $0x2d8] sm:$0xff]
    %v119 = vld [vmem:[%s1 + $0x2e0] sm:$0xff]
    %v120 = vld [vmem:[%s1 + $0x2e8] sm:$0xff]
    %v121 = vld [vmem:[%s1 + $0x2f0] sm:$0xff]
    %v122 = vld [vmem:[%s1 + $0x2f8] sm:$0xff]
    %v123 = vld [vmem:[%s1 + $0x300] sm:$0xff]
    %v124 = vld [vmem:[%s1 + $0x308] sm:$0xff]
    %v125 = vld [vmem:[%s1 + $0x310] sm:$0xff]
    %v126 = vld [vmem:[%s1 + $0x318] sm:$0xff]
    %v127 = vld [vmem:[%s1 + $0x320] sm:$0xff]
    %v128 = vld [vmem:[%s1 + $0x328] sm:$0xff]
    %v129 = vld [vmem:[%s1 + $0x330] sm:$0xff]
    %v130 = vld [vmem:[%s1 + $0x338] sm:$0xff]
    %v131 = vld [vmem:[%s1 + $0x340] sm:$0xff]
    %v132 = vld [vmem:[%s1 + $0x348] sm:$0xff]
    %v133 = vld [vmem:[%s1 + $0x350] sm:$0xff]
    %v134 = vld [vmem:[%s1 + $0x358] sm:$0xff]
    %v135 = vld [vmem:[%s1 + $0x360] sm:$0xff]
    %v136 = vld [vmem:[%s1 + $0x368] sm:$0xff]
    %v137 = vld [vmem:[%s1 + $0x370] sm:$0xff]
    %v138 = vld [vmem:[%s1 + $0x378] sm:$0xff]
    %v139 = vld [vmem:[%s1 + $0x380] sm:$0xff]
    %v140 = vld [vmem:[%s1 + $0x388] sm:$0xff]
    %v141 = vld [vmem:[%s1 + $0x390] sm:$0xff]
    %v142 = vld [vmem:[%s1 + $0x398] sm:$0xff]
    %v143 = vld [vmem:[%s1 + $0x3a0] sm:$0xff]
    %v144 = vld [vmem:[%s1 + $0x3a8] sm:$0xff]
    %v145 = vld [vmem:[%s1 + $0x3b0] sm:$0xff]
    %v146 = vld [vmem:[%s1 + $0x3b8] sm:$0xff]
    %v147 = vld [vmem:[%s1 + $0x3c0] sm:$0xff]
    %v148 = vld [vmem:[%s1 + $0x3c8] sm:$0xff]
    %v149 = vld [vmem:[%s1 + $0x3d0] sm:$0xff]
    %v150 = vld [vmem:[%s1 + $0x3d8] sm:$0xff]
    %v151 = vld [vmem:[%s1 + $0x3e0] sm:$0xff]
    %v152 = vld [vmem:[%s1 + $0x3e8] sm:$0xff]
    %v153 = vld [vmem:[%s1 + $0x3f0] sm:$0xff]
    %v154 = vld [vmem:[%s1 + $0x3f8] sm:$0xff]
    %v155 = vld [vmem:[%s1 + $0x400] sm:$0xff]
    %v156 = vld [vmem:[%s1 + $0x408] sm:$0xff]
    %v157 = vld [vmem:[%s1 + $0x410] sm:$0xff]
    %v158 = vld [vmem:[%s1 + $0x418] sm:$0xff]
    %v159 = vld [vmem:[%s1 + $0x420] sm:$0xff]
    %v160 = vld [vmem:[%s1 + $0x428] sm:$0xff]
    %v161 = vld [vmem:[%s1 + $0x430] sm:$0xff]
    %v162 = vld [vmem:[%s1 + $0x438] sm:$0xff]
    %v163 = vld [vmem:[%s1 + $0x440] sm:$0xff]
    %v164 = vld [vmem:[%s1 + $0x448] sm:$0xff]
    %v165 = vld [vmem:[%s1 + $0x450] sm:$0xff]
    %v166 = vld [vmem:[%s1 + $0x458] sm:$0xff]
    %v167 = vld [vmem:[%s1 + $0x460] sm:$0xff]
    %v168 = vld [vmem:[%s1 + $0x468] sm:$0xff]
    %v169 = vld [vmem:[%s1 + $0x470] sm:$0xff]
    %v170 = vld [vmem:[%s1 + $0x478] sm:$0xff]
    %v171 = vld [vmem:[%s1 + $0x480] sm:$0xff]
    %v172 = vld [vmem:[%s1 + $0x488] sm:$0xff]
    %v173 = vld [vmem:[%s1 + $0x490] sm:$0xff]
    %v174 = vld [vmem:[%s1 + $0x498] sm:$0xff]
    %v175 = vld [vmem:[%s1 + $0x4a0] sm:$0xff]
    %v176 = vld [vmem:[%s1 + $0x4a8] sm:$0xff]
    %v177 = vld [vmem:[%s1 + $0x4b0] sm:$0xff]
    %v178 = vld [vmem:[%s1 + $0x4b8] sm:$0xff]
    %v179 = vld [vmem:[%s1 + $0x4c0] sm:$0xff]
    %v180 = vld [vmem:[%s1 + $0x4c8] sm:$0xff]
    %v181 = vld [vmem:[%s1 + $0x4d0] sm:$0xff]
    %v182 = vld [vmem:[%s1 + $0x4d8] sm:$0xff]
    %v183 = vld [vmem:[%s1 + $0x4e0] sm:$0xff]
    %v184 = vld [vmem:[%s1 + $0x4e8] sm:$0xff]
    %v185 = vld [vmem:[%s1 + $0x4f0] sm:$0xff]
    %v186 = vld [vmem:[%s1 + $0x4f8] sm:$0xff]
    %v187 = vld [vmem:[%s1 + $0x500] sm:$0xff]
    %v188 = vld [vmem:[%s1 + $0x508] sm:$0xff]
    %v189 = vld [vmem:[%s1 + $0x510] sm:$0xff]
    %v190 = vld [vmem:[%s1 + $0x518] sm:$0xff]
    %v191 = vld [vmem:[%s1 + $0x520] sm:$0xff]
    %v192 = vld [vmem:[%s1 + $0x528] sm:$0xff]
    %v193 = vld [vmem:[%s1 + $0x530] sm:$0xff]
    %v194 = vld [vmem:[%s1 + $0x538] sm:$0xff]
    %v195 = vld [vmem:[%s1 + $0x540] sm:$0xff]
    %v196 = vld [vmem:[%s1 + $0x548] sm:$0xff]
    %v197 = vld [vmem:[%s1 + $0x550] sm:$0xff]
    %v198 = vld [vmem:[%s1 + $0x558] sm:$0xff]
    %v199 = vld [vmem:[%s1 + $0x560] sm:$0xff]
    %v200 = vld [vmem:[%s1 + $0x568] sm:$0xff]
    %v201 = vld [vmem:[%s1 + $0x570] sm:$0xff]
    %v202 = vld [vmem:[%s1 + $0x578] sm:$0xff]
    %v203 = vld [vmem:[%s1 + $0x580] sm:$0xff]
    %v204 = vld [vmem:[%s1 + $0x588] sm:$0xff]
    %v205 = vld [vmem:[%s1 + $0x590] sm:$0xff]
    %v206 = vld [vmem:[%s1 + $0x598] sm:$0xff]
    %v207 = vld [vmem:[%s1 + $0x5a0] sm:$0xff]
    %v208 = vld [vmem:[%s1 + $0x5a8] sm:$0xff]
    %v209 = vld [vmem:[%s1 + $0x5b0] sm:$0xff]
    %v210 = vld [vmem:[%s1 + $0x5b8] sm:$0xff]
    %v211 = vld [vmem:[%s1 + $0x5c0] sm:$0xff]
    %v212 = vld [vmem:[%s1 + $0x5c8] sm:$0xff]
    %v213 = vld [vmem:[%s1 + $0x5d0] sm:$0xff]
    %v214 = vld [vmem:[%s1 + $0x5d8] sm:$0xff]
    %v215 = vld [vmem:[%s1 + $0x5e0] sm:$0xff]
    %v216 = vld [vmem:[%s1 + $0x5e8] sm:$0xff]
    %v217 = vld [vmem:[%s1 + $0x5f0] sm:$0xff]
    %v218 = vld [vmem:[%s1 + $0x5f8] sm:$0xff]
    %v219 = vld [vmem:[%s1 + $0x600] sm:$0xff]
    %v220 = vld [vmem:[%s1 + $0x608] sm:$0xff]
    %v221 = vld [vmem:[%s1 + $0x610] sm:$0xff]
    %v222 = vld [vmem:[%s1 + $0x618] sm:$0xff]
    %v223 = vld [vmem:[%s1 + $0x620] sm:$0xff]
    %v224 = vld [vmem:[%s1 + $0x628] sm:$0xff]
    %v225 = vld [vmem:[%s1 + $0x630] sm:$0xff]
    %v226 = vld [vmem:[%s1 + $0x638] sm:$0xff]
    %v227 = vld [vmem:[%s0] sm:$0xff]
    %v228 = vld [vmem:[%s0 + $0x8] sm:$0xff]
    %v229 = vld [vmem:[%s0 + $0x10] sm:$0xff]
    %v230 = vld [vmem:[%s0 + $0x18] sm:$0xff]
    %v231 = vld [vmem:[%s0 + $0x20] sm:$0xff]
    %v232 = vld [vmem:[%s0 + $0x28] sm:$0xff]
    %v233 = vld [vmem:[%s0 + $0x30] sm:$0xff]
    %v234 = vld [vmem:[%s0 + $0x38] sm:$0xff]
    %v235 = vld [vmem:[%s0 + $0x40] sm:$0xff]
    %v236 = vld [vmem:[%s0 + $0x48] sm:$0xff]
    %v237 = vld [vmem:[%s0 + $0x50] sm:$0xff]
    %v238 = vld [vmem:[%s0 + $0x58] sm:$0xff]
    %v239 = vld [vmem:[%s0 + $0x60] sm:$0xff]
    %v240 = vld [vmem:[%s0 + $0x68] sm:$0xff]
    %v241 = vld [vmem:[%s0 + $0x70] sm:$0xff]
    %v242 = vld [vmem:[%s0 + $0x78] sm:$0xff]
    %v243 = vld [vmem:[%s0 + $0x80] sm:$0xff]
    %v244 = vld [vmem:[%s0 + $0x88] sm:$0xff]
    %v245 = vld [vmem:[%s0 + $0x90] sm:$0xff]
    %v246 = vld [vmem:[%s0 + $0x98] sm:$0xff]
    %v247 = vld [vmem:[%s0 + $0xa0] sm:$0xff]
    %v248 = vld [vmem:[%s0 + $0xa8] sm:$0xff]
    %v249 = vld [vmem:[%s0 + $0xb0] sm:$0xff]
    %v250 = vld [vmem:[%s0 + $0xb8] sm:$0xff]
    %v251 = vld [vmem:[%s0 + $0xc0] sm:$0xff]
    %v252 = vld [vmem:[%s0 + $0xc8] sm:$0xff]
    %v253 = vld [vmem:[%s0 + $0xd0] sm:$0xff]
    %v254 = vld [vmem:[%s0 + $0xd8] sm:$0xff]
    %v255 = vld [vmem:[%s0 + $0xe0] sm:$0xff]
    %v256 = vld [vmem:[%s0 + $0xe8] sm:$0xff]
    %v257 = vld [vmem:[%s0 + $0xf0] sm:$0xff]
    %v258 = vld [vmem:[%s0 + $0xf8] sm:$0xff]
    %v259 = vld [vmem:[%s0 + $0x100] sm:$0xff]
    %v260 = vld [vmem:[%s0 + $0x108] sm:$0xff]
    %v261 = vld [vmem:[%s0 + $0x110] sm:$0xff]
    %v262 = vld [vmem:[%s0 + $0x118] sm:$0xff]
    %v263 = vld [vmem:[%s0 + $0x120] sm:$0xff]
    %v264 = vld [vmem:[%s0 + $0x128] sm:$0xff]
    %v265 = vld [vmem:[%s0 + $0x130] sm:$0xff]
    %v266 = vld [vmem:[%s0 + $0x138] sm:$0xff]
    %v267 = vld [vmem:[%s0 + $0x140] sm:$0xff]
    %v268 = vld [vmem:[%s0 + $0x148] sm:$0xff]
    %v269 = vld [vmem:[%s0 + $0x150] sm:$0xff]
    %v270 = vld [vmem:[%s0 + $0x158] sm:$0xff]
    %v271 = vld [vmem:[%s0 + $0x160] sm:$0xff]
    %v272 = vld [vmem:[%s0 + $0x168] sm:$0xff]
    %v273 = vld [vmem:[%s0 + $0x170] sm:$0xff]
    %v274 = vld [vmem:[%s0 + $0x178] sm:$0xff]
    %v275 = vld [vmem:[%s0 + $0x180] sm:$0xff]
    %v276 = vld [vmem:[%s0 + $0x188] sm:$0xff]
    %v277 = vld [vmem:[%s0 + $0x190] sm:$0xff]
    %v278 = vld [vmem:[%s0 + $0x198] sm:$0xff]
    %vm279 = vcmask 523264
    %v281 = vsel %vm279, %v239, 0
    %v284 = vsel %vm279, %v252, 0
    %v287 = vsel %vm279, %v265, 0
    %v290 = vsel %vm279, %v278, 0
    %292 = vmatprep.subr.mxu0 0.0
    %293 = vmatpush1.msra.mxu0 %v42
    %294 = vmatprep.subr.mxu0 0.0
    %295 = vmatpush1.msra.mxu0 %v41
    %296 = vmatprep.subr.mxu0 0.0
    %297 = vmatpush1.msra.mxu0 %v40
    %298 = vmatprep.subr.mxu0 0.0
    %299 = vmatpush1.msra.mxu0 %v39
    %300 = vmatprep.subr.mxu0 0.0
    %301 = vmatpush1.msra.mxu0 %v38
    %302 = vmatprep.subr.mxu0 0.0
    %303 = vmatpush1.msra.mxu0 %v37
    %304 = vmatprep.subr.mxu0 0.0
    %305 = vmatpush1.msra.mxu0 %v36
    %306 = vmatprep.subr.mxu0 0.0
    %307 = vmatpush1.msra.mxu0 %v35
    %308 = vmatprep.subr.mxu0 0.0
    %309 = vmatpush1.msra.mxu0 %v34
    %310 = vmatprep.subr.mxu0 0.0
    %311 = vmatpush1.msra.mxu0 %v33
    %312 = vmatprep.subr.mxu0 0.0
    %313 = vmatpush1.msra.mxu0 %v32
    %314 = vmatprep.subr.mxu0 0.0
    %315 = vmatpush1.msra.mxu0 %v31
    %316 = vmatprep.subr.mxu0 0.0
    %317 = vmatpush1.msra.mxu0 %v30
    %318 = vmatprep.subr.mxu0 0.0
    %319 = vmatpush1.msra.mxu0 %v29
    %320 = vmatprep.subr.mxu0 0.0
    %321 = vmatpush1.msra.mxu0 %v28
    %322 = vmatprep.subr.mxu0 0.0
    %323 = vmatpush1.msra.mxu0 %v27
    %324 = vmatprep.subr.mxu0 0.0
    %325 = vmatpush2.msra.mxu0 %v58
    %326 = vmatprep.subr.mxu0 0.0
    %327 = vmatpush2.msra.mxu0 %v57
    %328 = vmatprep.subr.mxu0 0.0
    %329 = vmatpush2.msra.mxu0 %v56
    %330 = vmatprep.subr.mxu0 0.0
    %331 = vmatpush2.msra.mxu0 %v55
    %332 = vmatprep.subr.mxu0 0.0
    %333 = vmatpush2.msra.mxu0 %v54
    %334 = vmatprep.subr.mxu0 0.0
    %335 = vmatpush2.msra.mxu0 %v53
    %336 = vmatprep.subr.mxu0 0.0
    %337 = vmatpush2.msra.mxu0 %v52
    %338 = vmatprep.subr.mxu0 0.0
    %339 = vmatpush2.msra.mxu0 %v51
    %340 = vmatprep.subr.mxu0 0.0
    %341 = vmatpush2.msra.mxu0 %v50
    %342 = vmatprep.subr.mxu0 0.0
    %343 = vmatpush2.msra.mxu0 %v49
    %344 = vmatprep.subr.mxu0 0.0
    %345 = vmatpush2.msra.mxu0 %v48
    %346 = vmatprep.subr.mxu0 0.0
    %347 = vmatpush2.msra.mxu0 %v47
    %348 = vmatprep.subr.mxu0 0.0
    %349 = vmatpush2.msra.mxu0 %v46
    %350 = vmatprep.subr.mxu0 0.0
    %351 = vmatpush2.msra.mxu0 %v45
    %352 = vmatprep.subr.mxu0 0.0
    %353 = vmatpush2.msra.mxu0 %v44
    %354 = vmatprep.subr.mxu0 0.0
    %355 = vmatpush2.msra.mxu0 %v43
    %356 = vmatprep.mubr.f32.mxu0 %v228
    %357 = vmatmul.mubr.f32.gmra.mxu0 %v227
    %v358 = vpop.f32.mrf.mxu0
    %v359 = vadd.f32 0.0, %v358
    %v360 = vpop.f32.mrf.mxu0
    %361 = vmatprep.mubr.f32.mxu0 %v241
    %362 = vmatmul.mubr.f32.gmra.mxu0 %v240
    %v363 = vpop.f32.mrf.mxu0
    %v364 = vadd.f32 0.0, %v363
    %v365 = vpop.f32.mrf.mxu0
    %366 = vmatprep.mubr.f32.mxu0 %v254
    %367 = vmatmul.mubr.f32.gmra.mxu0 %v253
    %v368 = vpop.f32.mrf.mxu0
    %v369 = vadd.f32 0.0, %v368
    %v370 = vpop.f32.mrf.mxu0
    %371 = vmatprep.mubr.f32.mxu0 %v267
    %372 = vmatmul.mubr.f32.gmra.mxu0 %v266
    %v373 = vpop.f32.mrf.mxu0
    %v374 = vadd.f32 0.0, %v373
    %v375 = vpop.f32.mrf.mxu0
    %376 = vdwg.mxu0
    %377 = vmatprep.subr.mxu0 0.0
    %378 = vmatpush1.msra.mxu0 %v74
    %379 = vmatprep.subr.mxu0 0.0
    %380 = vmatpush1.msra.mxu0 %v73
    %381 = vmatprep.subr.mxu0 0.0
    %382 = vmatpush1.msra.mxu0 %v72
    %383 = vmatprep.subr.mxu0 0.0
    %384 = vmatpush1.msra.mxu0 %v71
    %385 = vmatprep.subr.mxu0 0.0
    %386 = vmatpush1.msra.mxu0 %v70
    %387 = vmatprep.subr.mxu0 0.0
    %388 = vmatpush1.msra.mxu0 %v69
    %389 = vmatprep.subr.mxu0 0.0
    %390 = vmatpush1.msra.mxu0 %v68
    %391 = vmatprep.subr.mxu0 0.0
    %392 = vmatpush1.msra.mxu0 %v67
    %393 = vmatprep.subr.mxu0 0.0
    %394 = vmatpush1.msra.mxu0 %v66
    %395 = vmatprep.subr.mxu0 0.0
    %396 = vmatpush1.msra.mxu0 %v65
    %397 = vmatprep.subr.mxu0 0.0
    %398 = vmatpush1.msra.mxu0 %v64
    %399 = vmatprep.subr.mxu0 0.0
    %400 = vmatpush1.msra.mxu0 %v63
    %401 = vmatprep.subr.mxu0 0.0
    %402 = vmatpush1.msra.mxu0 %v62
    %403 = vmatprep.subr.mxu0 0.0
    %404 = vmatpush1.msra.mxu0 %v61
    %405 = vmatprep.subr.mxu0 0.0
    %406 = vmatpush1.msra.mxu0 %v60
    %407 = vmatprep.subr.mxu0 0.0
    %408 = vmatpush1.msra.mxu0 %v59
    %409 = vmatprep.subr.mxu0 0.0
    %410 = vmatpush2.msra.mxu0 %v90
    %411 = vmatprep.subr.mxu0 0.0
    %412 = vmatpush2.msra.mxu0 %v89
    %413 = vmatprep.subr.mxu0 0.0
    %414 = vmatpush2.msra.mxu0 %v88
    %415 = vmatprep.subr.mxu0 0.0
    %416 = vmatpush2.msra.mxu0 %v87
    %417 = vmatprep.subr.mxu0 0.0
    %418 = vmatpush2.msra.mxu0 %v86
    %419 = vmatprep.subr.mxu0 0.0
    %420 = vmatpush2.msra.mxu0 %v85
    %421 = vmatprep.subr.mxu0 0.0
    %422 = vmatpush2.msra.mxu0 %v84
    %423 = vmatprep.subr.mxu0 0.0
    %424 = vmatpush2.msra.mxu0 %v83
    %425 = vmatprep.subr.mxu0 0.0
    %426 = vmatpush2.msra.mxu0 %v82
    %427 = vmatprep.subr.mxu0 0.0
    %428 = vmatpush2.msra.mxu0 %v81
    %429 = vmatprep.subr.mxu0 0.0
    %430 = vmatpush2.msra.mxu0 %v80
    %431 = vmatprep.subr.mxu0 0.0
    %432 = vmatpush2.msra.mxu0 %v79
    %433 = vmatprep.subr.mxu0 0.0
    %434 = vmatpush2.msra.mxu0 %v78
    %435 = vmatprep.subr.mxu0 0.0
    %436 = vmatpush2.msra.mxu0 %v77
    %437 = vmatprep.subr.mxu0 0.0
    %438 = vmatpush2.msra.mxu0 %v76
    %439 = vmatprep.subr.mxu0 0.0
    %440 = vmatpush2.msra.mxu0 %v75
    %441 = vmatprep.mubr.f32.mxu0 %v230
    %442 = vmatmul.mubr.f32.gmra.mxu0 %v229
    %v443 = vpop.f32.mrf.mxu0
    %v444 = vadd.f32 %v359, %v443
    %v445 = vpop.f32.mrf.mxu0
    %446 = vmatprep.mubr.f32.mxu0 %v243
    %447 = vmatmul.mubr.f32.gmra.mxu0 %v242
    %v448 = vpop.f32.mrf.mxu0
    %v449 = vadd.f32 %v364, %v448
    %v450 = vpop.f32.mrf.mxu0
    %451 = vmatprep.mubr.f32.mxu0 %v256
    %452 = vmatmul.mubr.f32.gmra.mxu0 %v255
    %v453 = vpop.f32.mrf.mxu0
    %v454 = vadd.f32 %v369, %v453
    %v455 = vpop.f32.mrf.mxu0
    %456 = vmatprep.mubr.f32.mxu0 %v269
    %457 = vmatmul.mubr.f32.gmra.mxu0 %v268
    %v458 = vpop.f32.mrf.mxu0
    %v459 = vadd.f32 %v374, %v458
    %v460 = vpop.f32.mrf.mxu0
    %461 = vdwg.mxu0
    %462 = vmatprep.subr.mxu0 0.0
    %463 = vmatpush1.msra.mxu0 %v106
    %464 = vmatprep.subr.mxu0 0.0
    %465 = vmatpush1.msra.mxu0 %v105
    %466 = vmatprep.subr.mxu0 0.0
    %467 = vmatpush1.msra.mxu0 %v104
    %468 = vmatprep.subr.mxu0 0.0
    %469 = vmatpush1.msra.mxu0 %v103
    %470 = vmatprep.subr.mxu0 0.0
    %471 = vmatpush1.msra.mxu0 %v102
    %472 = vmatprep.subr.mxu0 0.0
    %473 = vmatpush1.msra.mxu0 %v101
    %474 = vmatprep.subr.mxu0 0.0
    %475 = vmatpush1.msra.mxu0 %v100
    %476 = vmatprep.subr.mxu0 0.0
    %477 = vmatpush1.msra.mxu0 %v99
    %478 = vmatprep.subr.mxu0 0.0
    %479 = vmatpush1.msra.mxu0 %v98
    %480 = vmatprep.subr.mxu0 0.0
    %481 = vmatpush1.msra.mxu0 %v97
    %482 = vmatprep.subr.mxu0 0.0
    %483 = vmatpush1.msra.mxu0 %v96
    %484 = vmatprep.subr.mxu0 0.0
    %485 = vmatpush1.msra.mxu0 %v95
    %486 = vmatprep.subr.mxu0 0.0
    %487 = vmatpush1.msra.mxu0 %v94
    %488 = vmatprep.subr.mxu0 0.0
    %489 = vmatpush1.msra.mxu0 %v93
    %490 = vmatprep.subr.mxu0 0.0
    %491 = vmatpush1.msra.mxu0 %v92
    %492 = vmatprep.subr.mxu0 0.0
    %493 = vmatpush1.msra.mxu0 %v91
    %494 = vmatprep.subr.mxu0 0.0
    %495 = vmatpush2.msra.mxu0 %v122
    %496 = vmatprep.subr.mxu0 0.0
    %497 = vmatpush2.msra.mxu0 %v121
    %498 = vmatprep.subr.mxu0 0.0
    %499 = vmatpush2.msra.mxu0 %v120
    %500 = vmatprep.subr.mxu0 0.0
    %501 = vmatpush2.msra.mxu0 %v119
    %502 = vmatprep.subr.mxu0 0.0
    %503 = vmatpush2.msra.mxu0 %v118
    %504 = vmatprep.subr.mxu0 0.0
    %505 = vmatpush2.msra.mxu0 %v117
    %506 = vmatprep.subr.mxu0 0.0
    %507 = vmatpush2.msra.mxu0 %v116
    %508 = vmatprep.subr.mxu0 0.0
    %509 = vmatpush2.msra.mxu0 %v115
    %510 = vmatprep.subr.mxu0 0.0
    %511 = vmatpush2.msra.mxu0 %v114
    %512 = vmatprep.subr.mxu0 0.0
    %513 = vmatpush2.msra.mxu0 %v113
    %514 = vmatprep.subr.mxu0 0.0
    %515 = vmatpush2.msra.mxu0 %v112
    %516 = vmatprep.subr.mxu0 0.0
    %517 = vmatpush2.msra.mxu0 %v111
    %518 = vmatprep.subr.mxu0 0.0
    %519 = vmatpush2.msra.mxu0 %v110
    %520 = vmatprep.subr.mxu0 0.0
    %521 = vmatpush2.msra.mxu0 %v109
    %522 = vmatprep.subr.mxu0 0.0
    %523 = vmatpush2.msra.mxu0 %v108
    %524 = vmatprep.subr.mxu0 0.0
    %525 = vmatpush2.msra.mxu0 %v107
    %526 = vmatprep.mubr.f32.mxu0 %v232
    %527 = vmatmul.mubr.f32.gmra.mxu0 %v231
    %v528 = vpop.f32.mrf.mxu0
    %v529 = vadd.f32 %v444, %v528
    %v530 = vpop.f32.mrf.mxu0
    %531 = vmatprep.mubr.f32.mxu0 %v245
    %532 = vmatmul.mubr.f32.gmra.mxu0 %v244
    %v533 = vpop.f32.mrf.mxu0
    %v534 = vadd.f32 %v449, %v533
    %v535 = vpop.f32.mrf.mxu0
    %536 = vmatprep.mubr.f32.mxu0 %v258
    %537 = vmatmul.mubr.f32.gmra.mxu0 %v257
    %v538 = vpop.f32.mrf.mxu0
    %v539 = vadd.f32 %v454, %v538
    %v540 = vpop.f32.mrf.mxu0
    %541 = vmatprep.mubr.f32.mxu0 %v271
    %542 = vmatmul.mubr.f32.gmra.mxu0 %v270
    %v543 = vpop.f32.mrf.mxu0
    %v544 = vadd.f32 %v459, %v543
    %v545 = vpop.f32.mrf.mxu0
    %546 = vdwg.mxu0
    %547 = vmatprep.subr.mxu0 0.0
    %548 = vmatpush1.msra.mxu0 %v138
    %549 = vmatprep.subr.mxu0 0.0
    %550 = vmatpush1.msra.mxu0 %v137
    %551 = vmatprep.subr.mxu0 0.0
    %552 = vmatpush1.msra.mxu0 %v136
    %553 = vmatprep.subr.mxu0 0.0
    %554 = vmatpush1.msra.mxu0 %v135
    %555 = vmatprep.subr.mxu0 0.0
    %556 = vmatpush1.msra.mxu0 %v134
    %557 = vmatprep.subr.mxu0 0.0
    %558 = vmatpush1.msra.mxu0 %v133
    %559 = vmatprep.subr.mxu0 0.0
    %560 = vmatpush1.msra.mxu0 %v132
    %561 = vmatprep.subr.mxu0 0.0
    %562 = vmatpush1.msra.mxu0 %v131
    %563 = vmatprep.subr.mxu0 0.0
    %564 = vmatpush1.msra.mxu0 %v130
    %565 = vmatprep.subr.mxu0 0.0
    %566 = vmatpush1.msra.mxu0 %v129
    %567 = vmatprep.subr.mxu0 0.0
    %568 = vmatpush1.msra.mxu0 %v128
    %569 = vmatprep.subr.mxu0 0.0
    %570 = vmatpush1.msra.mxu0 %v127
    %571 = vmatprep.subr.mxu0 0.0
    %572 = vmatpush1.msra.mxu0 %v126
    %573 = vmatprep.subr.mxu0 0.0
    %574 = vmatpush1.msra.mxu0 %v125
    %575 = vmatprep.subr.mxu0 0.0
    %576 = vmatpush1.msra.mxu0 %v124
    %577 = vmatprep.subr.mxu0 0.0
    %578 = vmatpush1.msra.mxu0 %v123
    %579 = vmatprep.subr.mxu0 0.0
    %580 = vmatpush2.msra.mxu0 %v154
    %581 = vmatprep.subr.mxu0 0.0
    %582 = vmatpush2.msra.mxu0 %v153
    %583 = vmatprep.subr.mxu0 0.0
    %584 = vmatpush2.msra.mxu0 %v152
    %585 = vmatprep.subr.mxu0 0.0
    %586 = vmatpush2.msra.mxu0 %v151
    %587 = vmatprep.subr.mxu0 0.0
    %588 = vmatpush2.msra.mxu0 %v150
    %589 = vmatprep.subr.mxu0 0.0
    %590 = vmatpush2.msra.mxu0 %v149
    %591 = vmatprep.subr.mxu0 0.0
    %592 = vmatpush2.msra.mxu0 %v148
    %593 = vmatprep.subr.mxu0 0.0
    %594 = vmatpush2.msra.mxu0 %v147
    %595 = vmatprep.subr.mxu0 0.0
    %596 = vmatpush2.msra.mxu0 %v146
    %597 = vmatprep.subr.mxu0 0.0
    %598 = vmatpush2.msra.mxu0 %v145
    %599 = vmatprep.subr.mxu0 0.0
    %600 = vmatpush2.msra.mxu0 %v144
    %601 = vmatprep.subr.mxu0 0.0
    %602 = vmatpush2.msra.mxu0 %v143
    %603 = vmatprep.subr.mxu0 0.0
    %604 = vmatpush2.msra.mxu0 %v142
    %605 = vmatprep.subr.mxu0 0.0
    %606 = vmatpush2.msra.mxu0 %v141
    %607 = vmatprep.subr.mxu0 0.0
    %608 = vmatpush2.msra.mxu0 %v140
    %609 = vmatprep.subr.mxu0 0.0
    %610 = vmatpush2.msra.mxu0 %v139
    %611 = vmatprep.mubr.f32.mxu0 %v234
    %612 = vmatmul.mubr.f32.gmra.mxu0 %v233
    %v613 = vpop.f32.mrf.mxu0
    %v614 = vadd.f32 %v529, %v613
    %v615 = vpop.f32.mrf.mxu0
    %616 = vmatprep.mubr.f32.mxu0 %v247
    %617 = vmatmul.mubr.f32.gmra.mxu0 %v246
    %v618 = vpop.f32.mrf.mxu0
    %v619 = vadd.f32 %v534, %v618
    %v620 = vpop.f32.mrf.mxu0
    %621 = vmatprep.mubr.f32.mxu0 %v260
    %622 = vmatmul.mubr.f32.gmra.mxu0 %v259
    %v623 = vpop.f32.mrf.mxu0
    %v624 = vadd.f32 %v539, %v623
    %v625 = vpop.f32.mrf.mxu0
    %626 = vmatprep.mubr.f32.mxu0 %v273
    %627 = vmatmul.mubr.f32.gmra.mxu0 %v272
    %v628 = vpop.f32.mrf.mxu0
    %v629 = vadd.f32 %v544, %v628
    %v630 = vpop.f32.mrf.mxu0
    %631 = vdwg.mxu0
    %632 = vmatprep.subr.mxu0 0.0
    %633 = vmatpush1.msra.mxu0 %v170
    %634 = vmatprep.subr.mxu0 0.0
    %635 = vmatpush1.msra.mxu0 %v169
    %636 = vmatprep.subr.mxu0 0.0
    %637 = vmatpush1.msra.mxu0 %v168
    %638 = vmatprep.subr.mxu0 0.0
    %639 = vmatpush1.msra.mxu0 %v167
    %640 = vmatprep.subr.mxu0 0.0
    %641 = vmatpush1.msra.mxu0 %v166
    %642 = vmatprep.subr.mxu0 0.0
    %643 = vmatpush1.msra.mxu0 %v165
    %644 = vmatprep.subr.mxu0 0.0
    %645 = vmatpush1.msra.mxu0 %v164
    %646 = vmatprep.subr.mxu0 0.0
    %647 = vmatpush1.msra.mxu0 %v163
    %648 = vmatprep.subr.mxu0 0.0
    %649 = vmatpush1.msra.mxu0 %v162
    %650 = vmatprep.subr.mxu0 0.0
    %651 = vmatpush1.msra.mxu0 %v161
    %652 = vmatprep.subr.mxu0 0.0
    %653 = vmatpush1.msra.mxu0 %v160
    %654 = vmatprep.subr.mxu0 0.0
    %655 = vmatpush1.msra.mxu0 %v159
    %656 = vmatprep.subr.mxu0 0.0
    %657 = vmatpush1.msra.mxu0 %v158
    %658 = vmatprep.subr.mxu0 0.0
    %659 = vmatpush1.msra.mxu0 %v157
    %660 = vmatprep.subr.mxu0 0.0
    %661 = vmatpush1.msra.mxu0 %v156
    %662 = vmatprep.subr.mxu0 0.0
    %663 = vmatpush1.msra.mxu0 %v155
    %664 = vmatprep.subr.mxu0 0.0
    %665 = vmatpush2.msra.mxu0 %v186
    %666 = vmatprep.subr.mxu0 0.0
    %667 = vmatpush2.msra.mxu0 %v185
    %668 = vmatprep.subr.mxu0 0.0
    %669 = vmatpush2.msra.mxu0 %v184
    %670 = vmatprep.subr.mxu0 0.0
    %671 = vmatpush2.msra.mxu0 %v183
    %672 = vmatprep.subr.mxu0 0.0
    %673 = vmatpush2.msra.mxu0 %v182
    %674 = vmatprep.subr.mxu0 0.0
    %675 = vmatpush2.msra.mxu0 %v181
    %676 = vmatprep.subr.mxu0 0.0
    %677 = vmatpush2.msra.mxu0 %v180
    %678 = vmatprep.subr.mxu0 0.0
    %679 = vmatpush2.msra.mxu0 %v179
    %680 = vmatprep.subr.mxu0 0.0
    %681 = vmatpush2.msra.mxu0 %v178
    %682 = vmatprep.subr.mxu0 0.0
    %683 = vmatpush2.msra.mxu0 %v177
    %684 = vmatprep.subr.mxu0 0.0
    %685 = vmatpush2.msra.mxu0 %v176
    %686 = vmatprep.subr.mxu0 0.0
    %687 = vmatpush2.msra.mxu0 %v175
    %688 = vmatprep.subr.mxu0 0.0
    %689 = vmatpush2.msra.mxu0 %v174
    %690 = vmatprep.subr.mxu0 0.0
    %691 = vmatpush2.msra.mxu0 %v173
    %692 = vmatprep.subr.mxu0 0.0
    %693 = vmatpush2.msra.mxu0 %v172
    %694 = vmatprep.subr.mxu0 0.0
    %695 = vmatpush2.msra.mxu0 %v171
    %696 = vmatprep.mubr.f32.mxu0 %v236
    %697 = vmatmul.mubr.f32.gmra.mxu0 %v235
    %v698 = vpop.f32.mrf.mxu0
    %v699 = vadd.f32 %v614, %v698
    %v700 = vpop.f32.mrf.mxu0
    %701 = vmatprep.mubr.f32.mxu0 %v249
    %702 = vmatmul.mubr.f32.gmra.mxu0 %v248
    %v703 = vpop.f32.mrf.mxu0
    %v704 = vadd.f32 %v619, %v703
    %v705 = vpop.f32.mrf.mxu0
    %706 = vmatprep.mubr.f32.mxu0 %v262
    %707 = vmatmul.mubr.f32.gmra.mxu0 %v261
    %v708 = vpop.f32.mrf.mxu0
    %v709 = vadd.f32 %v624, %v708
    %v710 = vpop.f32.mrf.mxu0
    %711 = vmatprep.mubr.f32.mxu0 %v275
    %712 = vmatmul.mubr.f32.gmra.mxu0 %v274
    %v713 = vpop.f32.mrf.mxu0
    %v714 = vadd.f32 %v629, %v713
    %v715 = vpop.f32.mrf.mxu0
    %716 = vdwg.mxu0
    %717 = vmatprep.subr.mxu0 0.0
    %718 = vmatpush1.msra.mxu0 %v202
    %719 = vmatprep.subr.mxu0 0.0
    %720 = vmatpush1.msra.mxu0 %v201
    %721 = vmatprep.subr.mxu0 0.0
    %722 = vmatpush1.msra.mxu0 %v200
    %723 = vmatprep.subr.mxu0 0.0
    %724 = vmatpush1.msra.mxu0 %v199
    %725 = vmatprep.subr.mxu0 0.0
    %726 = vmatpush1.msra.mxu0 %v198
    %727 = vmatprep.subr.mxu0 0.0
    %728 = vmatpush1.msra.mxu0 %v197
    %729 = vmatprep.subr.mxu0 0.0
    %730 = vmatpush1.msra.mxu0 %v196
    %731 = vmatprep.subr.mxu0 0.0
    %732 = vmatpush1.msra.mxu0 %v195
    %733 = vmatprep.subr.mxu0 0.0
    %734 = vmatpush1.msra.mxu0 %v194
    %735 = vmatprep.subr.mxu0 0.0
    %736 = vmatpush1.msra.mxu0 %v193
    %737 = vmatprep.subr.mxu0 0.0
    %738 = vmatpush1.msra.mxu0 %v192
    %739 = vmatprep.subr.mxu0 0.0
    %740 = vmatpush1.msra.mxu0 %v191
    %741 = vmatprep.subr.mxu0 0.0
    %742 = vmatpush1.msra.mxu0 %v190
    %743 = vmatprep.subr.mxu0 0.0
    %744 = vmatpush1.msra.mxu0 %v189
    %745 = vmatprep.subr.mxu0 0.0
    %746 = vmatpush1.msra.mxu0 %v188
    %747 = vmatprep.subr.mxu0 0.0
    %748 = vmatpush1.msra.mxu0 %v187
    %749 = vmatprep.subr.mxu0 0.0
    %750 = vmatpush2.msra.mxu0 %v218
    %751 = vmatprep.subr.mxu0 0.0
    %752 = vmatpush2.msra.mxu0 %v217
    %753 = vmatprep.subr.mxu0 0.0
    %754 = vmatpush2.msra.mxu0 %v216
    %755 = vmatprep.subr.mxu0 0.0
    %756 = vmatpush2.msra.mxu0 %v215
    %757 = vmatprep.subr.mxu0 0.0
    %758 = vmatpush2.msra.mxu0 %v214
    %759 = vmatprep.subr.mxu0 0.0
    %760 = vmatpush2.msra.mxu0 %v213
    %761 = vmatprep.subr.mxu0 0.0
    %762 = vmatpush2.msra.mxu0 %v212
    %763 = vmatprep.subr.mxu0 0.0
    %764 = vmatpush2.msra.mxu0 %v211
    %765 = vmatprep.subr.mxu0 0.0
    %766 = vmatpush2.msra.mxu0 %v210
    %767 = vmatprep.subr.mxu0 0.0
    %768 = vmatpush2.msra.mxu0 %v209
    %769 = vmatprep.subr.mxu0 0.0
    %770 = vmatpush2.msra.mxu0 %v208
    %771 = vmatprep.subr.mxu0 0.0
    %772 = vmatpush2.msra.mxu0 %v207
    %773 = vmatprep.subr.mxu0 0.0
    %774 = vmatpush2.msra.mxu0 %v206
    %775 = vmatprep.subr.mxu0 0.0
    %776 = vmatpush2.msra.mxu0 %v205
    %777 = vmatprep.subr.mxu0 0.0
    %778 = vmatpush2.msra.mxu0 %v204
    %779 = vmatprep.subr.mxu0 0.0
    %780 = vmatpush2.msra.mxu0 %v203
    %781 = vmatprep.mubr.f32.mxu0 %v238
    %782 = vmatmul.mubr.f32.gmra.mxu0 %v237
    %v783 = vpop.f32.mrf.mxu0
    %v784 = vadd.f32 %v699, %v783
    %v785 = vpop.f32.mrf.mxu0
    %786 = vmatprep.mubr.f32.mxu0 %v251
    %787 = vmatmul.mubr.f32.gmra.mxu0 %v250
    %v788 = vpop.f32.mrf.mxu0
    %v789 = vadd.f32 %v704, %v788
    %v790 = vpop.f32.mrf.mxu0
    %791 = vmatprep.mubr.f32.mxu0 %v264
    %792 = vmatmul.mubr.f32.gmra.mxu0 %v263
    %v793 = vpop.f32.mrf.mxu0
    %v794 = vadd.f32 %v709, %v793
    %v795 = vpop.f32.mrf.mxu0
    %796 = vmatprep.mubr.f32.mxu0 %v277
    %797 = vmatmul.mubr.f32.gmra.mxu0 %v276
    %v798 = vpop.f32.mrf.mxu0
    %v799 = vadd.f32 %v714, %v798
    %v800 = vpop.f32.mrf.mxu0
    %801 = vdwg.mxu0
    %802 = vmatprep.subr.mxu0 0.0
    %803 = vmatpush1.msra.mxu0 0.0
    %804 = vmatprep.subr.mxu0 0.0
    %805 = vmatpush1.msra.mxu0 0.0
    %806 = vmatprep.subr.mxu0 0.0
    %807 = vmatpush1.msra.mxu0 0.0
    %808 = vmatprep.subr.mxu0 0.0
    %809 = vmatpush1.msra.mxu0 0.0
    %810 = vmatprep.subr.mxu0 0.0
    %811 = vmatpush1.msra.mxu0 0.0
    %812 = vmatprep.subr.mxu0 0.0
    %813 = vmatpush1.msra.mxu0 0.0
    %814 = vmatprep.subr.mxu0 0.0
    %815 = vmatpush1.msra.mxu0 0.0
    %816 = vmatprep.subr.mxu0 0.0
    %817 = vmatpush1.msra.mxu0 0.0
    %818 = vmatprep.subr.mxu0 0.0
    %819 = vmatpush1.msra.mxu0 %v226
    %820 = vmatprep.subr.mxu0 0.0
    %821 = vmatpush1.msra.mxu0 %v225
    %822 = vmatprep.subr.mxu0 0.0
    %823 = vmatpush1.msra.mxu0 %v224
    %824 = vmatprep.subr.mxu0 0.0
    %825 = vmatpush1.msra.mxu0 %v223
    %826 = vmatprep.subr.mxu0 0.0
    %827 = vmatpush1.msra.mxu0 %v222
    %828 = vmatprep.subr.mxu0 0.0
    %829 = vmatpush1.msra.mxu0 %v221
    %830 = vmatprep.subr.mxu0 0.0
    %831 = vmatpush1.msra.mxu0 %v220
    %832 = vmatprep.subr.mxu0 0.0
    %833 = vmatpush1.msra.mxu0 %v219
    %834 = vmatprep.subr.mxu0 0.0
    %835 = vmatpush2.msra.mxu0 0.0
    %836 = vmatprep.subr.mxu0 0.0
    %837 = vmatpush2.msra.mxu0 0.0
    %838 = vmatprep.subr.mxu0 0.0
    %839 = vmatpush2.msra.mxu0 0.0
    %840 = vmatprep.subr.mxu0 0.0
    %841 = vmatpush2.msra.mxu0 0.0
    %842 = vmatprep.subr.mxu0 0.0
    %843 = vmatpush2.msra.mxu0 0.0
    %844 = vmatprep.subr.mxu0 0.0
    %845 = vmatpush2.msra.mxu0 0.0
    %846 = vmatprep.subr.mxu0 0.0
    %847 = vmatpush2.msra.mxu0 0.0
    %848 = vmatprep.subr.mxu0 0.0
    %849 = vmatpush2.msra.mxu0 0.0
    %850 = vmatprep.subr.mxu0 0.0
    %851 = vmatpush2.msra.mxu0 0.0
    %852 = vmatprep.subr.mxu0 0.0
    %853 = vmatpush2.msra.mxu0 0.0
    %854 = vmatprep.subr.mxu0 0.0
    %855 = vmatpush2.msra.mxu0 0.0
    %856 = vmatprep.subr.mxu0 0.0
    %857 = vmatpush2.msra.mxu0 0.0
    %858 = vmatprep.subr.mxu0 0.0
    %859 = vmatpush2.msra.mxu0 0.0
    %860 = vmatprep.subr.mxu0 0.0
    %861 = vmatpush2.msra.mxu0 0.0
    %862 = vmatprep.subr.mxu0 0.0
    %863 = vmatpush2.msra.mxu0 0.0
    %864 = vmatprep.subr.mxu0 0.0
    %865 = vmatpush2.msra.mxu0 0.0
    %866 = vmatprep.mubr.f32.mxu0 0.0
    %867 = vmatmul.mubr.f32.gmra.mxu0 %v281
    %v868 = vpop.f32.mrf.mxu0
    %v869 = vadd.f32 %v784, %v868
    %v870 = vpop.f32.mrf.mxu0
    %871 = vmatprep.mubr.f32.mxu0 0.0
    %872 = vmatmul.mubr.f32.gmra.mxu0 %v284
    %v873 = vpop.f32.mrf.mxu0
    %v874 = vadd.f32 %v789, %v873
    %v875 = vpop.f32.mrf.mxu0
    %876 = vmatprep.mubr.f32.mxu0 0.0
    %877 = vmatmul.mubr.f32.gmra.mxu0 %v287
    %v878 = vpop.f32.mrf.mxu0
    %v879 = vadd.f32 %v794, %v878
    %v880 = vpop.f32.mrf.mxu0
    %881 = vmatprep.mubr.f32.mxu0 0.0
    %882 = vmatmul.mubr.f32.gmra.mxu0 %v290
    %v883 = vpop.f32.mrf.mxu0
    %v884 = vadd.f32 %v799, %v883
    %v885 = vpop.f32.mrf.mxu0
    %886 = vdwg.mxu0
    %s887 = scalar_lea.vmem %s0, 416
    %v888 = vld [vmem:[%s887] sm:$0xff]
    %v889 = vld [vmem:[%s887 + $0x8] sm:$0xff]
    %v890 = vld [vmem:[%s887 + $0x10] sm:$0xff]
    %v891 = vld [vmem:[%s887 + $0x18] sm:$0xff]
    %v892 = vld [vmem:[%s887 + $0x20] sm:$0xff]
    %v893 = vld [vmem:[%s887 + $0x28] sm:$0xff]
    %v894 = vld [vmem:[%s887 + $0x30] sm:$0xff]
    %v895 = vld [vmem:[%s887 + $0x38] sm:$0xff]
    %v896 = vld [vmem:[%s887 + $0x40] sm:$0xff]
    %v897 = vld [vmem:[%s887 + $0x48] sm:$0xff]
    %v898 = vld [vmem:[%s887 + $0x50] sm:$0xff]
    %v899 = vld [vmem:[%s887 + $0x58] sm:$0xff]
    %v900 = vld [vmem:[%s887 + $0x60] sm:$0xff]
    %v901 = vld [vmem:[%s887 + $0x68] sm:$0xff]
    %v902 = vld [vmem:[%s887 + $0x70] sm:$0xff]
    %v903 = vld [vmem:[%s887 + $0x78] sm:$0xff]
    %v904 = vld [vmem:[%s887 + $0x80] sm:$0xff]
    %v905 = vld [vmem:[%s887 + $0x88] sm:$0xff]
    %v906 = vld [vmem:[%s887 + $0x90] sm:$0xff]
    %v907 = vld [vmem:[%s887 + $0x98] sm:$0xff]
    %v908 = vld [vmem:[%s887 + $0xa0] sm:$0xff]
    %v909 = vld [vmem:[%s887 + $0xa8] sm:$0xff]
    %v910 = vld [vmem:[%s887 + $0xb0] sm:$0xff]
    %v911 = vld [vmem:[%s887 + $0xb8] sm:$0xff]
    %v912 = vld [vmem:[%s887 + $0xc0] sm:$0xff]
    %v913 = vld [vmem:[%s887 + $0xc8] sm:$0xff]
    %v914 = vld [vmem:[%s887 + $0xd0] sm:$0xff]
    %v915 = vld [vmem:[%s887 + $0xd8] sm:$0xff]
    %v916 = vld [vmem:[%s887 + $0xe0] sm:$0xff]
    %v917 = vld [vmem:[%s887 + $0xe8] sm:$0xff]
    %v918 = vld [vmem:[%s887 + $0xf0] sm:$0xff]
    %v919 = vld [vmem:[%s887 + $0xf8] sm:$0xff]
    %v920 = vld [vmem:[%s887 + $0x100] sm:$0xff]
    %v921 = vld [vmem:[%s887 + $0x108] sm:$0xff]
    %v922 = vld [vmem:[%s887 + $0x110] sm:$0xff]
    %v923 = vld [vmem:[%s887 + $0x118] sm:$0xff]
    %v924 = vld [vmem:[%s887 + $0x120] sm:$0xff]
    %v925 = vld [vmem:[%s887 + $0x128] sm:$0xff]
    %v926 = vld [vmem:[%s887 + $0x130] sm:$0xff]
    %v927 = vld [vmem:[%s887 + $0x138] sm:$0xff]
    %v928 = vld [vmem:[%s887 + $0x140] sm:$0xff]
    %v929 = vld [vmem:[%s887 + $0x148] sm:$0xff]
    %v930 = vld [vmem:[%s887 + $0x150] sm:$0xff]
    %v931 = vld [vmem:[%s887 + $0x158] sm:$0xff]
    %v932 = vld [vmem:[%s887 + $0x160] sm:$0xff]
    %v933 = vld [vmem:[%s887 + $0x168] sm:$0xff]
    %v934 = vld [vmem:[%s887 + $0x170] sm:$0xff]
    %v935 = vld [vmem:[%s887 + $0x178] sm:$0xff]
    %v936 = vld [vmem:[%s887 + $0x180] sm:$0xff]
    %v937 = vld [vmem:[%s887 + $0x188] sm:$0xff]
    %v938 = vld [vmem:[%s887 + $0x190] sm:$0xff]
    %v939 = vld [vmem:[%s887 + $0x198] sm:$0xff]
    %v941 = vsel %vm279, %v900, 0
    %v944 = vsel %vm279, %v913, 0
    %v947 = vsel %vm279, %v926, 0
    %v950 = vsel %vm279, %v939, 0
    %952 = vmatprep.subr.mxu0 0.0
    %953 = vmatpush1.msra.mxu0 %v42
    %954 = vmatprep.subr.mxu0 0.0
    %955 = vmatpush1.msra.mxu0 %v41
    %956 = vmatprep.subr.mxu0 0.0
    %957 = vmatpush1.msra.mxu0 %v40
    %958 = vmatprep.subr.mxu0 0.0
    %959 = vmatpush1.msra.mxu0 %v39
    %960 = vmatprep.subr.mxu0 0.0
    %961 = vmatpush1.msra.mxu0 %v38
    %962 = vmatprep.subr.mxu0 0.0
    %963 = vmatpush1.msra.mxu0 %v37
    %964 = vmatprep.subr.mxu0 0.0
    %965 = vmatpush1.msra.mxu0 %v36
    %966 = vmatprep.subr.mxu0 0.0
    %967 = vmatpush1.msra.mxu0 %v35
    %968 = vmatprep.subr.mxu0 0.0
    %969 = vmatpush1.msra.mxu0 %v34
    %970 = vmatprep.subr.mxu0 0.0
    %971 = vmatpush1.msra.mxu0 %v33
    %972 = vmatprep.subr.mxu0 0.0
    %973 = vmatpush1.msra.mxu0 %v32
    %974 = vmatprep.subr.mxu0 0.0
    %975 = vmatpush1.msra.mxu0 %v31
    %976 = vmatprep.subr.mxu0 0.0
    %977 = vmatpush1.msra.mxu0 %v30
    %978 = vmatprep.subr.mxu0 0.0
    %979 = vmatpush1.msra.mxu0 %v29
    %980 = vmatprep.subr.mxu0 0.0
    %981 = vmatpush1.msra.mxu0 %v28
    %982 = vmatprep.subr.mxu0 0.0
    %983 = vmatpush1.msra.mxu0 %v27
    %984 = vmatprep.subr.mxu0 0.0
    %985 = vmatpush2.msra.mxu0 %v58
    %986 = vmatprep.subr.mxu0 0.0
    %987 = vmatpush2.msra.mxu0 %v57
    %988 = vmatprep.subr.mxu0 0.0
    %989 = vmatpush2.msra.mxu0 %v56
    %990 = vmatprep.subr.mxu0 0.0
    %991 = vmatpush2.msra.mxu0 %v55
    %992 = vmatprep.subr.mxu0 0.0
    %993 = vmatpush2.msra.mxu0 %v54
    %994 = vmatprep.subr.mxu0 0.0
    %995 = vmatpush2.msra.mxu0 %v53
    %996 = vmatprep.subr.mxu0 0.0
    %997 = vmatpush2.msra.mxu0 %v52
    %998 = vmatprep.subr.mxu0 0.0
    %999 = vmatpush2.msra.mxu0 %v51
    %1000 = vmatprep.subr.mxu0 0.0
    %1001 = vmatpush2.msra.mxu0 %v50
    %1002 = vmatprep.subr.mxu0 0.0
    %1003 = vmatpush2.msra.mxu0 %v49
    %1004 = vmatprep.subr.mxu0 0.0
    %1005 = vmatpush2.msra.mxu0 %v48
    %1006 = vmatprep.subr.mxu0 0.0
    %1007 = vmatpush2.msra.mxu0 %v47
    %1008 = vmatprep.subr.mxu0 0.0
    %1009 = vmatpush2.msra.mxu0 %v46
    %1010 = vmatprep.subr.mxu0 0.0
    %1011 = vmatpush2.msra.mxu0 %v45
    %1012 = vmatprep.subr.mxu0 0.0
    %1013 = vmatpush2.msra.mxu0 %v44
    %1014 = vmatprep.subr.mxu0 0.0
    %1015 = vmatpush2.msra.mxu0 %v43
    %1016 = vmatprep.mubr.f32.mxu0 %v889
    %1017 = vmatmul.mubr.f32.gmra.mxu0 %v888
    %v1018 = vpop.f32.mrf.mxu0
    %v1019 = vadd.f32 0.0, %v1018
    %v1020 = vpop.f32.mrf.mxu0
    %1021 = vmatprep.mubr.f32.mxu0 %v902
    %1022 = vmatmul.mubr.f32.gmra.mxu0 %v901
    %v1023 = vpop.f32.mrf.mxu0
    %v1024 = vadd.f32 0.0, %v1023
    %v1025 = vpop.f32.mrf.mxu0
    %1026 = vmatprep.mubr.f32.mxu0 %v915
    %1027 = vmatmul.mubr.f32.gmra.mxu0 %v914
    %v1028 = vpop.f32.mrf.mxu0
    %v1029 = vadd.f32 0.0, %v1028
    %v1030 = vpop.f32.mrf.mxu0
    %1031 = vmatprep.mubr.f32.mxu0 %v928
    %1032 = vmatmul.mubr.f32.gmra.mxu0 %v927
    %v1033 = vpop.f32.mrf.mxu0
    %v1034 = vadd.f32 0.0, %v1033
    %v1035 = vpop.f32.mrf.mxu0
    %1036 = vdwg.mxu0
    %1037 = vmatprep.subr.mxu0 0.0
    %1038 = vmatpush1.msra.mxu0 %v74
    %1039 = vmatprep.subr.mxu0 0.0
    %1040 = vmatpush1.msra.mxu0 %v73
    %1041 = vmatprep.subr.mxu0 0.0
    %1042 = vmatpush1.msra.mxu0 %v72
    %1043 = vmatprep.subr.mxu0 0.0
    %1044 = vmatpush1.msra.mxu0 %v71
    %1045 = vmatprep.subr.mxu0 0.0
    %1046 = vmatpush1.msra.mxu0 %v70
    %1047 = vmatprep.subr.mxu0 0.0
    %1048 = vmatpush1.msra.mxu0 %v69
    %1049 = vmatprep.subr.mxu0 0.0
    %1050 = vmatpush1.msra.mxu0 %v68
    %1051 = vmatprep.subr.mxu0 0.0
    %1052 = vmatpush1.msra.mxu0 %v67
    %1053 = vmatprep.subr.mxu0 0.0
    %1054 = vmatpush1.msra.mxu0 %v66
    %1055 = vmatprep.subr.mxu0 0.0
    %1056 = vmatpush1.msra.mxu0 %v65
    %1057 = vmatprep.subr.mxu0 0.0
    %1058 = vmatpush1.msra.mxu0 %v64
    %1059 = vmatprep.subr.mxu0 0.0
    %1060 = vmatpush1.msra.mxu0 %v63
    %1061 = vmatprep.subr.mxu0 0.0
    %1062 = vmatpush1.msra.mxu0 %v62
    %1063 = vmatprep.subr.mxu0 0.0
    %1064 = vmatpush1.msra.mxu0 %v61
    %1065 = vmatprep.subr.mxu0 0.0
    %1066 = vmatpush1.msra.mxu0 %v60
    %1067 = vmatprep.subr.mxu0 0.0
    %1068 = vmatpush1.msra.mxu0 %v59
    %1069 = vmatprep.subr.mxu0 0.0
    %1070 = vmatpush2.msra.mxu0 %v90
    %1071 = vmatprep.subr.mxu0 0.0
    %1072 = vmatpush2.msra.mxu0 %v89
    %1073 = vmatprep.subr.mxu0 0.0
    %1074 = vmatpush2.msra.mxu0 %v88
    %1075 = vmatprep.subr.mxu0 0.0
    %1076 = vmatpush2.msra.mxu0 %v87
    %1077 = vmatprep.subr.mxu0 0.0
    %1078 = vmatpush2.msra.mxu0 %v86
    %1079 = vmatprep.subr.mxu0 0.0
    %1080 = vmatpush2.msra.mxu0 %v85
    %1081 = vmatprep.subr.mxu0 0.0
    %1082 = vmatpush2.msra.mxu0 %v84
    %1083 = vmatprep.subr.mxu0 0.0
    %1084 = vmatpush2.msra.mxu0 %v83
    %1085 = vmatprep.subr.mxu0 0.0
    %1086 = vmatpush2.msra.mxu0 %v82
    %1087 = vmatprep.subr.mxu0 0.0
    %1088 = vmatpush2.msra.mxu0 %v81
    %1089 = vmatprep.subr.mxu0 0.0
    %1090 = vmatpush2.msra.mxu0 %v80
    %1091 = vmatprep.subr.mxu0 0.0
    %1092 = vmatpush2.msra.mxu0 %v79
    %1093 = vmatprep.subr.mxu0 0.0
    %1094 = vmatpush2.msra.mxu0 %v78
    %1095 = vmatprep.subr.mxu0 0.0
    %1096 = vmatpush2.msra.mxu0 %v77
    %1097 = vmatprep.subr.mxu0 0.0
    %1098 = vmatpush2.msra.mxu0 %v76
    %1099 = vmatprep.subr.mxu0 0.0
    %1100 = vmatpush2.msra.mxu0 %v75
    %1101 = vmatprep.mubr.f32.mxu0 %v891
    %1102 = vmatmul.mubr.f32.gmra.mxu0 %v890
    %v1103 = vpop.f32.mrf.mxu0
    %v1104 = vadd.f32 %v1019, %v1103
    %v1105 = vpop.f32.mrf.mxu0
    %1106 = vmatprep.mubr.f32.mxu0 %v904
    %1107 = vmatmul.mubr.f32.gmra.mxu0 %v903
    %v1108 = vpop.f32.mrf.mxu0
    %v1109 = vadd.f32 %v1024, %v1108
    %v1110 = vpop.f32.mrf.mxu0
    %1111 = vmatprep.mubr.f32.mxu0 %v917
    %1112 = vmatmul.mubr.f32.gmra.mxu0 %v916
    %v1113 = vpop.f32.mrf.mxu0
    %v1114 = vadd.f32 %v1029, %v1113
    %v1115 = vpop.f32.mrf.mxu0
    %1116 = vmatprep.mubr.f32.mxu0 %v930
    %1117 = vmatmul.mubr.f32.gmra.mxu0 %v929
    %v1118 = vpop.f32.mrf.mxu0
    %v1119 = vadd.f32 %v1034, %v1118
    %v1120 = vpop.f32.mrf.mxu0
    %1121 = vdwg.mxu0
    %1122 = vmatprep.subr.mxu0 0.0
    %1123 = vmatpush1.msra.mxu0 %v106
    %1124 = vmatprep.subr.mxu0 0.0
    %1125 = vmatpush1.msra.mxu0 %v105
    %1126 = vmatprep.subr.mxu0 0.0
    %1127 = vmatpush1.msra.mxu0 %v104
    %1128 = vmatprep.subr.mxu0 0.0
    %1129 = vmatpush1.msra.mxu0 %v103
    %1130 = vmatprep.subr.mxu0 0.0
    %1131 = vmatpush1.msra.mxu0 %v102
    %1132 = vmatprep.subr.mxu0 0.0
    %1133 = vmatpush1.msra.mxu0 %v101
    %1134 = vmatprep.subr.mxu0 0.0
    %1135 = vmatpush1.msra.mxu0 %v100
    %1136 = vmatprep.subr.mxu0 0.0
    %1137 = vmatpush1.msra.mxu0 %v99
    %1138 = vmatprep.subr.mxu0 0.0
    %1139 = vmatpush1.msra.mxu0 %v98
    %1140 = vmatprep.subr.mxu0 0.0
    %1141 = vmatpush1.msra.mxu0 %v97
    %1142 = vmatprep.subr.mxu0 0.0
    %1143 = vmatpush1.msra.mxu0 %v96
    %1144 = vmatprep.subr.mxu0 0.0
    %1145 = vmatpush1.msra.mxu0 %v95
    %1146 = vmatprep.subr.mxu0 0.0
    %1147 = vmatpush1.msra.mxu0 %v94
    %1148 = vmatprep.subr.mxu0 0.0
    %1149 = vmatpush1.msra.mxu0 %v93
    %1150 = vmatprep.subr.mxu0 0.0
    %1151 = vmatpush1.msra.mxu0 %v92
    %1152 = vmatprep.subr.mxu0 0.0
    %1153 = vmatpush1.msra.mxu0 %v91
    %1154 = vmatprep.subr.mxu0 0.0
    %1155 = vmatpush2.msra.mxu0 %v122
    %1156 = vmatprep.subr.mxu0 0.0
    %1157 = vmatpush2.msra.mxu0 %v121
    %1158 = vmatprep.subr.mxu0 0.0
    %1159 = vmatpush2.msra.mxu0 %v120
    %1160 = vmatprep.subr.mxu0 0.0
    %1161 = vmatpush2.msra.mxu0 %v119
    %1162 = vmatprep.subr.mxu0 0.0
    %1163 = vmatpush2.msra.mxu0 %v118
    %1164 = vmatprep.subr.mxu0 0.0
    %1165 = vmatpush2.msra.mxu0 %v117
    %1166 = vmatprep.subr.mxu0 0.0
    %1167 = vmatpush2.msra.mxu0 %v116
    %1168 = vmatprep.subr.mxu0 0.0
    %1169 = vmatpush2.msra.mxu0 %v115
    %1170 = vmatprep.subr.mxu0 0.0
    %1171 = vmatpush2.msra.mxu0 %v114
    %1172 = vmatprep.subr.mxu0 0.0
    %1173 = vmatpush2.msra.mxu0 %v113
    %1174 = vmatprep.subr.mxu0 0.0
    %1175 = vmatpush2.msra.mxu0 %v112
    %1176 = vmatprep.subr.mxu0 0.0
    %1177 = vmatpush2.msra.mxu0 %v111
    %1178 = vmatprep.subr.mxu0 0.0
    %1179 = vmatpush2.msra.mxu0 %v110
    %1180 = vmatprep.subr.mxu0 0.0
    %1181 = vmatpush2.msra.mxu0 %v109
    %1182 = vmatprep.subr.mxu0 0.0
    %1183 = vmatpush2.msra.mxu0 %v108
    %1184 = vmatprep.subr.mxu0 0.0
    %1185 = vmatpush2.msra.mxu0 %v107
    %1186 = vmatprep.mubr.f32.mxu0 %v893
    %1187 = vmatmul.mubr.f32.gmra.mxu0 %v892
    %v1188 = vpop.f32.mrf.mxu0
    %v1189 = vadd.f32 %v1104, %v1188
    %v1190 = vpop.f32.mrf.mxu0
    %1191 = vmatprep.mubr.f32.mxu0 %v906
    %1192 = vmatmul.mubr.f32.gmra.mxu0 %v905
    %v1193 = vpop.f32.mrf.mxu0
    %v1194 = vadd.f32 %v1109, %v1193
    %v1195 = vpop.f32.mrf.mxu0
    %1196 = vmatprep.mubr.f32.mxu0 %v919
    %1197 = vmatmul.mubr.f32.gmra.mxu0 %v918
    %v1198 = vpop.f32.mrf.mxu0
    %v1199 = vadd.f32 %v1114, %v1198
    %v1200 = vpop.f32.mrf.mxu0
    %1201 = vmatprep.mubr.f32.mxu0 %v932
    %1202 = vmatmul.mubr.f32.gmra.mxu0 %v931
    %v1203 = vpop.f32.mrf.mxu0
    %v1204 = vadd.f32 %v1119, %v1203
    %v1205 = vpop.f32.mrf.mxu0
    %1206 = vdwg.mxu0
    %1207 = vmatprep.subr.mxu0 0.0
    %1208 = vmatpush1.msra.mxu0 %v138
    %1209 = vmatprep.subr.mxu0 0.0
    %1210 = vmatpush1.msra.mxu0 %v137
    %1211 = vmatprep.subr.mxu0 0.0
    %1212 = vmatpush1.msra.mxu0 %v136
    %1213 = vmatprep.subr.mxu0 0.0
    %1214 = vmatpush1.msra.mxu0 %v135
    %1215 = vmatprep.subr.mxu0 0.0
    %1216 = vmatpush1.msra.mxu0 %v134
    %1217 = vmatprep.subr.mxu0 0.0
    %1218 = vmatpush1.msra.mxu0 %v133
    %1219 = vmatprep.subr.mxu0 0.0
    %1220 = vmatpush1.msra.mxu0 %v132
    %1221 = vmatprep.subr.mxu0 0.0
    %1222 = vmatpush1.msra.mxu0 %v131
    %1223 = vmatprep.subr.mxu0 0.0
    %1224 = vmatpush1.msra.mxu0 %v130
    %1225 = vmatprep.subr.mxu0 0.0
    %1226 = vmatpush1.msra.mxu0 %v129
    %1227 = vmatprep.subr.mxu0 0.0
    %1228 = vmatpush1.msra.mxu0 %v128
    %1229 = vmatprep.subr.mxu0 0.0
    %1230 = vmatpush1.msra.mxu0 %v127
    %1231 = vmatprep.subr.mxu0 0.0
    %1232 = vmatpush1.msra.mxu0 %v126
    %1233 = vmatprep.subr.mxu0 0.0
    %1234 = vmatpush1.msra.mxu0 %v125
    %1235 = vmatprep.subr.mxu0 0.0
    %1236 = vmatpush1.msra.mxu0 %v124
    %1237 = vmatprep.subr.mxu0 0.0
    %1238 = vmatpush1.msra.mxu0 %v123
    %1239 = vmatprep.subr.mxu0 0.0
    %1240 = vmatpush2.msra.mxu0 %v154
    %1241 = vmatprep.subr.mxu0 0.0
    %1242 = vmatpush2.msra.mxu0 %v153
    %1243 = vmatprep.subr.mxu0 0.0
    %1244 = vmatpush2.msra.mxu0 %v152
    %1245 = vmatprep.subr.mxu0 0.0
    %1246 = vmatpush2.msra.mxu0 %v151
    %1247 = vmatprep.subr.mxu0 0.0
    %1248 = vmatpush2.msra.mxu0 %v150
    %1249 = vmatprep.subr.mxu0 0.0
    %1250 = vmatpush2.msra.mxu0 %v149
    %1251 = vmatprep.subr.mxu0 0.0
    %1252 = vmatpush2.msra.mxu0 %v148
    %1253 = vmatprep.subr.mxu0 0.0
    %1254 = vmatpush2.msra.mxu0 %v147
    %1255 = vmatprep.subr.mxu0 0.0
    %1256 = vmatpush2.msra.mxu0 %v146
    %1257 = vmatprep.subr.mxu0 0.0
    %1258 = vmatpush2.msra.mxu0 %v145
    %1259 = vmatprep.subr.mxu0 0.0
    %1260 = vmatpush2.msra.mxu0 %v144
    %1261 = vmatprep.subr.mxu0 0.0
    %1262 = vmatpush2.msra.mxu0 %v143
    %1263 = vmatprep.subr.mxu0 0.0
    %1264 = vmatpush2.msra.mxu0 %v142
    %1265 = vmatprep.subr.mxu0 0.0
    %1266 = vmatpush2.msra.mxu0 %v141
    %1267 = vmatprep.subr.mxu0 0.0
    %1268 = vmatpush2.msra.mxu0 %v140
    %1269 = vmatprep.subr.mxu0 0.0
    %1270 = vmatpush2.msra.mxu0 %v139
    %1271 = vmatprep.mubr.f32.mxu0 %v895
    %1272 = vmatmul.mubr.f32.gmra.mxu0 %v894
    %v1273 = vpop.f32.mrf.mxu0
    %v1274 = vadd.f32 %v1189, %v1273
    %v1275 = vpop.f32.mrf.mxu0
    %1276 = vmatprep.mubr.f32.mxu0 %v908
    %1277 = vmatmul.mubr.f32.gmra.mxu0 %v907
    %v1278 = vpop.f32.mrf.mxu0
    %v1279 = vadd.f32 %v1194, %v1278
    %v1280 = vpop.f32.mrf.mxu0
    %1281 = vmatprep.mubr.f32.mxu0 %v921
    %1282 = vmatmul.mubr.f32.gmra.mxu0 %v920
    %v1283 = vpop.f32.mrf.mxu0
    %v1284 = vadd.f32 %v1199, %v1283
    %v1285 = vpop.f32.mrf.mxu0
    %1286 = vmatprep.mubr.f32.mxu0 %v934
    %1287 = vmatmul.mubr.f32.gmra.mxu0 %v933
    %v1288 = vpop.f32.mrf.mxu0
    %v1289 = vadd.f32 %v1204, %v1288
    %v1290 = vpop.f32.mrf.mxu0
    %1291 = vdwg.mxu0
    %1292 = vmatprep.subr.mxu0 0.0
    %1293 = vmatpush1.msra.mxu0 %v170
    %1294 = vmatprep.subr.mxu0 0.0
    %1295 = vmatpush1.msra.mxu0 %v169
    %1296 = vmatprep.subr.mxu0 0.0
    %1297 = vmatpush1.msra.mxu0 %v168
    %1298 = vmatprep.subr.mxu0 0.0
    %1299 = vmatpush1.msra.mxu0 %v167
    %1300 = vmatprep.subr.mxu0 0.0
    %1301 = vmatpush1.msra.mxu0 %v166
    %1302 = vmatprep.subr.mxu0 0.0
    %1303 = vmatpush1.msra.mxu0 %v165
    %1304 = vmatprep.subr.mxu0 0.0
    %1305 = vmatpush1.msra.mxu0 %v164
    %1306 = vmatprep.subr.mxu0 0.0
    %1307 = vmatpush1.msra.mxu0 %v163
    %1308 = vmatprep.subr.mxu0 0.0
    %1309 = vmatpush1.msra.mxu0 %v162
    %1310 = vmatprep.subr.mxu0 0.0
    %1311 = vmatpush1.msra.mxu0 %v161
    %1312 = vmatprep.subr.mxu0 0.0
    %1313 = vmatpush1.msra.mxu0 %v160
    %1314 = vmatprep.subr.mxu0 0.0
    %1315 = vmatpush1.msra.mxu0 %v159
    %1316 = vmatprep.subr.mxu0 0.0
    %1317 = vmatpush1.msra.mxu0 %v158
    %1318 = vmatprep.subr.mxu0 0.0
    %1319 = vmatpush1.msra.mxu0 %v157
    %1320 = vmatprep.subr.mxu0 0.0
    %1321 = vmatpush1.msra.mxu0 %v156
    %1322 = vmatprep.subr.mxu0 0.0
    %1323 = vmatpush1.msra.mxu0 %v155
    %1324 = vmatprep.subr.mxu0 0.0
    %1325 = vmatpush2.msra.mxu0 %v186
    %1326 = vmatprep.subr.mxu0 0.0
    %1327 = vmatpush2.msra.mxu0 %v185
    %1328 = vmatprep.subr.mxu0 0.0
    %1329 = vmatpush2.msra.mxu0 %v184
    %1330 = vmatprep.subr.mxu0 0.0
    %1331 = vmatpush2.msra.mxu0 %v183
    %1332 = vmatprep.subr.mxu0 0.0
    %1333 = vmatpush2.msra.mxu0 %v182
    %1334 = vmatprep.subr.mxu0 0.0
    %1335 = vmatpush2.msra.mxu0 %v181
    %1336 = vmatprep.subr.mxu0 0.0
    %1337 = vmatpush2.msra.mxu0 %v180
    %1338 = vmatprep.subr.mxu0 0.0
    %1339 = vmatpush2.msra.mxu0 %v179
    %1340 = vmatprep.subr.mxu0 0.0
    %1341 = vmatpush2.msra.mxu0 %v178
    %1342 = vmatprep.subr.mxu0 0.0
    %1343 = vmatpush2.msra.mxu0 %v177
    %1344 = vmatprep.subr.mxu0 0.0
    %1345 = vmatpush2.msra.mxu0 %v176
    %1346 = vmatprep.subr.mxu0 0.0
    %1347 = vmatpush2.msra.mxu0 %v175
    %1348 = vmatprep.subr.mxu0 0.0
    %1349 = vmatpush2.msra.mxu0 %v174
    %1350 = vmatprep.subr.mxu0 0.0
    %1351 = vmatpush2.msra.mxu0 %v173
    %1352 = vmatprep.subr.mxu0 0.0
    %1353 = vmatpush2.msra.mxu0 %v172
    %1354 = vmatprep.subr.mxu0 0.0
    %1355 = vmatpush2.msra.mxu0 %v171
    %1356 = vmatprep.mubr.f32.mxu0 %v897
    %1357 = vmatmul.mubr.f32.gmra.mxu0 %v896
    %v1358 = vpop.f32.mrf.mxu0
    %v1359 = vadd.f32 %v1274, %v1358
    %v1360 = vpop.f32.mrf.mxu0
    %1361 = vmatprep.mubr.f32.mxu0 %v910
    %1362 = vmatmul.mubr.f32.gmra.mxu0 %v909
    %v1363 = vpop.f32.mrf.mxu0
    %v1364 = vadd.f32 %v1279, %v1363
    %v1365 = vpop.f32.mrf.mxu0
    %1366 = vmatprep.mubr.f32.mxu0 %v923
    %1367 = vmatmul.mubr.f32.gmra.mxu0 %v922
    %v1368 = vpop.f32.mrf.mxu0
    %v1369 = vadd.f32 %v1284, %v1368
    %v1370 = vpop.f32.mrf.mxu0
    %1371 = vmatprep.mubr.f32.mxu0 %v936
    %1372 = vmatmul.mubr.f32.gmra.mxu0 %v935
    %v1373 = vpop.f32.mrf.mxu0
    %v1374 = vadd.f32 %v1289, %v1373
    %v1375 = vpop.f32.mrf.mxu0
    %1376 = vdwg.mxu0
    %1377 = vmatprep.subr.mxu0 0.0
    %1378 = vmatpush1.msra.mxu0 %v202
    %1379 = vmatprep.subr.mxu0 0.0
    %1380 = vmatpush1.msra.mxu0 %v201
    %1381 = vmatprep.subr.mxu0 0.0
    %1382 = vmatpush1.msra.mxu0 %v200
    %1383 = vmatprep.subr.mxu0 0.0
    %1384 = vmatpush1.msra.mxu0 %v199
    %1385 = vmatprep.subr.mxu0 0.0
    %1386 = vmatpush1.msra.mxu0 %v198
    %1387 = vmatprep.subr.mxu0 0.0
    %1388 = vmatpush1.msra.mxu0 %v197
    %1389 = vmatprep.subr.mxu0 0.0
    %1390 = vmatpush1.msra.mxu0 %v196
    %1391 = vmatprep.subr.mxu0 0.0
    %1392 = vmatpush1.msra.mxu0 %v195
    %1393 = vmatprep.subr.mxu0 0.0
    %1394 = vmatpush1.msra.mxu0 %v194
    %1395 = vmatprep.subr.mxu0 0.0
    %1396 = vmatpush1.msra.mxu0 %v193
    %1397 = vmatprep.subr.mxu0 0.0
    %1398 = vmatpush1.msra.mxu0 %v192
    %1399 = vmatprep.subr.mxu0 0.0
    %1400 = vmatpush1.msra.mxu0 %v191
    %1401 = vmatprep.subr.mxu0 0.0
    %1402 = vmatpush1.msra.mxu0 %v190
    %1403 = vmatprep.subr.mxu0 0.0
    %1404 = vmatpush1.msra.mxu0 %v189
    %1405 = vmatprep.subr.mxu0 0.0
    %1406 = vmatpush1.msra.mxu0 %v188
    %1407 = vmatprep.subr.mxu0 0.0
    %1408 = vmatpush1.msra.mxu0 %v187
    %1409 = vmatprep.subr.mxu0 0.0
    %1410 = vmatpush2.msra.mxu0 %v218
    %1411 = vmatprep.subr.mxu0 0.0
    %1412 = vmatpush2.msra.mxu0 %v217
    %1413 = vmatprep.subr.mxu0 0.0
    %1414 = vmatpush2.msra.mxu0 %v216
    %1415 = vmatprep.subr.mxu0 0.0
    %1416 = vmatpush2.msra.mxu0 %v215
    %1417 = vmatprep.subr.mxu0 0.0
    %1418 = vmatpush2.msra.mxu0 %v214
    %1419 = vmatprep.subr.mxu0 0.0
    %1420 = vmatpush2.msra.mxu0 %v213
    %1421 = vmatprep.subr.mxu0 0.0
    %1422 = vmatpush2.msra.mxu0 %v212
    %1423 = vmatprep.subr.mxu0 0.0
    %1424 = vmatpush2.msra.mxu0 %v211
    %1425 = vmatprep.subr.mxu0 0.0
    %1426 = vmatpush2.msra.mxu0 %v210
    %1427 = vmatprep.subr.mxu0 0.0
    %1428 = vmatpush2.msra.mxu0 %v209
    %1429 = vmatprep.subr.mxu0 0.0
    %1430 = vmatpush2.msra.mxu0 %v208
    %1431 = vmatprep.subr.mxu0 0.0
    %1432 = vmatpush2.msra.mxu0 %v207
    %1433 = vmatprep.subr.mxu0 0.0
    %1434 = vmatpush2.msra.mxu0 %v206
    %1435 = vmatprep.subr.mxu0 0.0
    %1436 = vmatpush2.msra.mxu0 %v205
    %1437 = vmatprep.subr.mxu0 0.0
    %1438 = vmatpush2.msra.mxu0 %v204
    %1439 = vmatprep.subr.mxu0 0.0
    %1440 = vmatpush2.msra.mxu0 %v203
    %1441 = vmatprep.mubr.f32.mxu0 %v899
    %1442 = vmatmul.mubr.f32.gmra.mxu0 %v898
    %v1443 = vpop.f32.mrf.mxu0
    %v1444 = vadd.f32 %v1359, %v1443
    %v1445 = vpop.f32.mrf.mxu0
    %1446 = vmatprep.mubr.f32.mxu0 %v912
    %1447 = vmatmul.mubr.f32.gmra.mxu0 %v911
    %v1448 = vpop.f32.mrf.mxu0
    %v1449 = vadd.f32 %v1364, %v1448
    %v1450 = vpop.f32.mrf.mxu0
    %1451 = vmatprep.mubr.f32.mxu0 %v925
    %1452 = vmatmul.mubr.f32.gmra.mxu0 %v924
    %v1453 = vpop.f32.mrf.mxu0
    %v1454 = vadd.f32 %v1369, %v1453
    %v1455 = vpop.f32.mrf.mxu0
    %1456 = vmatprep.mubr.f32.mxu0 %v938
    %1457 = vmatmul.mubr.f32.gmra.mxu0 %v937
    %v1458 = vpop.f32.mrf.mxu0
    %v1459 = vadd.f32 %v1374, %v1458
    %v1460 = vpop.f32.mrf.mxu0
    %1461 = vdwg.mxu0
    %1462 = vmatprep.subr.mxu0 0.0
    %1463 = vmatpush1.msra.mxu0 0.0
    %1464 = vmatprep.subr.mxu0 0.0
    %1465 = vmatpush1.msra.mxu0 0.0
    %1466 = vmatprep.subr.mxu0 0.0
    %1467 = vmatpush1.msra.mxu0 0.0
    %1468 = vmatprep.subr.mxu0 0.0
    %1469 = vmatpush1.msra.mxu0 0.0
    %1470 = vmatprep.subr.mxu0 0.0
    %1471 = vmatpush1.msra.mxu0 0.0
    %1472 = vmatprep.subr.mxu0 0.0
    %1473 = vmatpush1.msra.mxu0 0.0
    %1474 = vmatprep.subr.mxu0 0.0
    %1475 = vmatpush1.msra.mxu0 0.0
    %1476 = vmatprep.subr.mxu0 0.0
    %1477 = vmatpush1.msra.mxu0 0.0
    %1478 = vmatprep.subr.mxu0 0.0
    %1479 = vmatpush1.msra.mxu0 %v226
    %1480 = vmatprep.subr.mxu0 0.0
    %1481 = vmatpush1.msra.mxu0 %v225
    %1482 = vmatprep.subr.mxu0 0.0
    %1483 = vmatpush1.msra.mxu0 %v224
    %1484 = vmatprep.subr.mxu0 0.0
    %1485 = vmatpush1.msra.mxu0 %v223
    %1486 = vmatprep.subr.mxu0 0.0
    %1487 = vmatpush1.msra.mxu0 %v222
    %1488 = vmatprep.subr.mxu0 0.0
    %1489 = vmatpush1.msra.mxu0 %v221
    %1490 = vmatprep.subr.mxu0 0.0
    %1491 = vmatpush1.msra.mxu0 %v220
    %1492 = vmatprep.subr.mxu0 0.0
    %1493 = vmatpush1.msra.mxu0 %v219
    %1494 = vmatprep.subr.mxu0 0.0
    %1495 = vmatpush2.msra.mxu0 0.0
    %1496 = vmatprep.subr.mxu0 0.0
    %1497 = vmatpush2.msra.mxu0 0.0
    %1498 = vmatprep.subr.mxu0 0.0
    %1499 = vmatpush2.msra.mxu0 0.0
    %1500 = vmatprep.subr.mxu0 0.0
    %1501 = vmatpush2.msra.mxu0 0.0
    %1502 = vmatprep.subr.mxu0 0.0
    %1503 = vmatpush2.msra.mxu0 0.0
    %1504 = vmatprep.subr.mxu0 0.0
    %1505 = vmatpush2.msra.mxu0 0.0
    %1506 = vmatprep.subr.mxu0 0.0
    %1507 = vmatpush2.msra.mxu0 0.0
    %1508 = vmatprep.subr.mxu0 0.0
    %1509 = vmatpush2.msra.mxu0 0.0
    %1510 = vmatprep.subr.mxu0 0.0
    %1511 = vmatpush2.msra.mxu0 0.0
    %1512 = vmatprep.subr.mxu0 0.0
    %1513 = vmatpush2.msra.mxu0 0.0
    %1514 = vmatprep.subr.mxu0 0.0
    %1515 = vmatpush2.msra.mxu0 0.0
    %1516 = vmatprep.subr.mxu0 0.0
    %1517 = vmatpush2.msra.mxu0 0.0
    %1518 = vmatprep.subr.mxu0 0.0
    %1519 = vmatpush2.msra.mxu0 0.0
    %1520 = vmatprep.subr.mxu0 0.0
    %1521 = vmatpush2.msra.mxu0 0.0
    %1522 = vmatprep.subr.mxu0 0.0
    %1523 = vmatpush2.msra.mxu0 0.0
    %1524 = vmatprep.subr.mxu0 0.0
    %1525 = vmatpush2.msra.mxu0 0.0
    %1526 = vmatprep.mubr.f32.mxu0 0.0
    %1527 = vmatmul.mubr.f32.gmra.mxu0 %v941
    %v1528 = vpop.f32.mrf.mxu0
    %v1529 = vadd.f32 %v1444, %v1528
    %v1530 = vpop.f32.mrf.mxu0
    %1531 = vmatprep.mubr.f32.mxu0 0.0
    %1532 = vmatmul.mubr.f32.gmra.mxu0 %v944
    %v1533 = vpop.f32.mrf.mxu0
    %v1534 = vadd.f32 %v1449, %v1533
    %v1535 = vpop.f32.mrf.mxu0
    %1536 = vmatprep.mubr.f32.mxu0 0.0
    %1537 = vmatmul.mubr.f32.gmra.mxu0 %v947
    %v1538 = vpop.f32.mrf.mxu0
    %v1539 = vadd.f32 %v1454, %v1538
    %v1540 = vpop.f32.mrf.mxu0
    %1541 = vmatprep.mubr.f32.mxu0 0.0
    %1542 = vmatmul.mubr.f32.gmra.mxu0 %v950
    %v1543 = vpop.f32.mrf.mxu0
    %v1544 = vadd.f32 %v1459, %v1543
    %v1545 = vpop.f32.mrf.mxu0
    %1546 = vdwg.mxu0
    %v1547 = vmax.f32 %v869, %v1529
    %v1548 = vmax.f32 %v874, %v1534
    %v1549 = vmax.f32 %v879, %v1539
    %v1550 = vmax.f32 %v884, %v1544
    %s1551 = scalar_lea.vmem %s0, 832
    %v1552 = vld [vmem:[%s1551] sm:$0xff]
    %v1553 = vld [vmem:[%s1551 + $0x8] sm:$0xff]
    %v1554 = vld [vmem:[%s1551 + $0x10] sm:$0xff]
    %v1555 = vld [vmem:[%s1551 + $0x18] sm:$0xff]
    %v1556 = vld [vmem:[%s1551 + $0x20] sm:$0xff]
    %v1557 = vld [vmem:[%s1551 + $0x28] sm:$0xff]
    %v1558 = vld [vmem:[%s1551 + $0x30] sm:$0xff]
    %v1559 = vld [vmem:[%s1551 + $0x38] sm:$0xff]
    %v1560 = vld [vmem:[%s1551 + $0x40] sm:$0xff]
    %v1561 = vld [vmem:[%s1551 + $0x48] sm:$0xff]
    %v1562 = vld [vmem:[%s1551 + $0x50] sm:$0xff]
    %v1563 = vld [vmem:[%s1551 + $0x58] sm:$0xff]
    %v1564 = vld [vmem:[%s1551 + $0x60] sm:$0xff]
    %v1565 = vld [vmem:[%s1551 + $0x68] sm:$0xff]
    %v1566 = vld [vmem:[%s1551 + $0x70] sm:$0xff]
    %v1567 = vld [vmem:[%s1551 + $0x78] sm:$0xff]
    %v1568 = vld [vmem:[%s1551 + $0x80] sm:$0xff]
    %v1569 = vld [vmem:[%s1551 + $0x88] sm:$0xff]
    %v1570 = vld [vmem:[%s1551 + $0x90] sm:$0xff]
    %v1571 = vld [vmem:[%s1551 + $0x98] sm:$0xff]
    %v1572 = vld [vmem:[%s1551 + $0xa0] sm:$0xff]
    %v1573 = vld [vmem:[%s1551 + $0xa8] sm:$0xff]
    %v1574 = vld [vmem:[%s1551 + $0xb0] sm:$0xff]
    %v1575 = vld [vmem:[%s1551 + $0xb8] sm:$0xff]
    %v1576 = vld [vmem:[%s1551 + $0xc0] sm:$0xff]
    %v1577 = vld [vmem:[%s1551 + $0xc8] sm:$0xff]
    %v1578 = vld [vmem:[%s1551 + $0xd0] sm:$0xff]
    %v1579 = vld [vmem:[%s1551 + $0xd8] sm:$0xff]
    %v1580 = vld [vmem:[%s1551 + $0xe0] sm:$0xff]
    %v1581 = vld [vmem:[%s1551 + $0xe8] sm:$0xff]
    %v1582 = vld [vmem:[%s1551 + $0xf0] sm:$0xff]
    %v1583 = vld [vmem:[%s1551 + $0xf8] sm:$0xff]
    %v1584 = vld [vmem:[%s1551 + $0x100] sm:$0xff]
    %v1585 = vld [vmem:[%s1551 + $0x108] sm:$0xff]
    %v1586 = vld [vmem:[%s1551 + $0x110] sm:$0xff]
    %v1587 = vld [vmem:[%s1551 + $0x118] sm:$0xff]
    %v1588 = vld [vmem:[%s1551 + $0x120] sm:$0xff]
    %v1589 = vld [vmem:[%s1551 + $0x128] sm:$0xff]
    %v1590 = vld [vmem:[%s1551 + $0x130] sm:$0xff]
    %v1591 = vld [vmem:[%s1551 + $0x138] sm:$0xff]
    %v1592 = vld [vmem:[%s1551 + $0x140] sm:$0xff]
    %v1593 = vld [vmem:[%s1551 + $0x148] sm:$0xff]
    %v1594 = vld [vmem:[%s1551 + $0x150] sm:$0xff]
    %v1595 = vld [vmem:[%s1551 + $0x158] sm:$0xff]
    %v1596 = vld [vmem:[%s1551 + $0x160] sm:$0xff]
    %v1597 = vld [vmem:[%s1551 + $0x168] sm:$0xff]
    %v1598 = vld [vmem:[%s1551 + $0x170] sm:$0xff]
    %v1599 = vld [vmem:[%s1551 + $0x178] sm:$0xff]
    %v1600 = vld [vmem:[%s1551 + $0x180] sm:$0xff]
    %v1601 = vld [vmem:[%s1551 + $0x188] sm:$0xff]
    %v1602 = vld [vmem:[%s1551 + $0x190] sm:$0xff]
    %v1603 = vld [vmem:[%s1551 + $0x198] sm:$0xff]
    %v1605 = vsel %vm279, %v1564, 0
    %v1608 = vsel %vm279, %v1577, 0
    %v1611 = vsel %vm279, %v1590, 0
    %v1614 = vsel %vm279, %v1603, 0
    %1616 = vmatprep.subr.mxu0 0.0
    %1617 = vmatpush1.msra.mxu0 %v42
    %1618 = vmatprep.subr.mxu0 0.0
    %1619 = vmatpush1.msra.mxu0 %v41
    %1620 = vmatprep.subr.mxu0 0.0
    %1621 = vmatpush1.msra.mxu0 %v40
    %1622 = vmatprep.subr.mxu0 0.0
    %1623 = vmatpush1.msra.mxu0 %v39
    %1624 = vmatprep.subr.mxu0 0.0
    %1625 = vmatpush1.msra.mxu0 %v38
    %1626 = vmatprep.subr.mxu0 0.0
    %1627 = vmatpush1.msra.mxu0 %v37
    %1628 = vmatprep.subr.mxu0 0.0
    %1629 = vmatpush1.msra.mxu0 %v36
    %1630 = vmatprep.subr.mxu0 0.0
    %1631 = vmatpush1.msra.mxu0 %v35
    %1632 = vmatprep.subr.mxu0 0.0
    %1633 = vmatpush1.msra.mxu0 %v34
    %1634 = vmatprep.subr.mxu0 0.0
    %1635 = vmatpush1.msra.mxu0 %v33
    %1636 = vmatprep.subr.mxu0 0.0
    %1637 = vmatpush1.msra.mxu0 %v32
    %1638 = vmatprep.subr.mxu0 0.0
    %1639 = vmatpush1.msra.mxu0 %v31
    %1640 = vmatprep.subr.mxu0 0.0
    %1641 = vmatpush1.msra.mxu0 %v30
    %1642 = vmatprep.subr.mxu0 0.0
    %1643 = vmatpush1.msra.mxu0 %v29
    %1644 = vmatprep.subr.mxu0 0.0
    %1645 = vmatpush1.msra.mxu0 %v28
    %1646 = vmatprep.subr.mxu0 0.0
    %1647 = vmatpush1.msra.mxu0 %v27
    %1648 = vmatprep.subr.mxu0 0.0
    %1649 = vmatpush2.msra.mxu0 %v58
    %1650 = vmatprep.subr.mxu0 0.0
    %1651 = vmatpush2.msra.mxu0 %v57
    %1652 = vmatprep.subr.mxu0 0.0
    %1653 = vmatpush2.msra.mxu0 %v56
    %1654 = vmatprep.subr.mxu0 0.0
    %1655 = vmatpush2.msra.mxu0 %v55
    %1656 = vmatprep.subr.mxu0 0.0
    %1657 = vmatpush2.msra.mxu0 %v54
    %1658 = vmatprep.subr.mxu0 0.0
    %1659 = vmatpush2.msra.mxu0 %v53
    %1660 = vmatprep.subr.mxu0 0.0
    %1661 = vmatpush2.msra.mxu0 %v52
    %1662 = vmatprep.subr.mxu0 0.0
    %1663 = vmatpush2.msra.mxu0 %v51
    %1664 = vmatprep.subr.mxu0 0.0
    %1665 = vmatpush2.msra.mxu0 %v50
    %1666 = vmatprep.subr.mxu0 0.0
    %1667 = vmatpush2.msra.mxu0 %v49
    %1668 = vmatprep.subr.mxu0 0.0
    %1669 = vmatpush2.msra.mxu0 %v48
    %1670 = vmatprep.subr.mxu0 0.0
    %1671 = vmatpush2.msra.mxu0 %v47
    %1672 = vmatprep.subr.mxu0 0.0
    %1673 = vmatpush2.msra.mxu0 %v46
    %1674 = vmatprep.subr.mxu0 0.0
    %1675 = vmatpush2.msra.mxu0 %v45
    %1676 = vmatprep.subr.mxu0 0.0
    %1677 = vmatpush2.msra.mxu0 %v44
    %1678 = vmatprep.subr.mxu0 0.0
    %1679 = vmatpush2.msra.mxu0 %v43
    %1680 = vmatprep.mubr.f32.mxu0 %v1553
    %1681 = vmatmul.mubr.f32.gmra.mxu0 %v1552
    %v1682 = vpop.f32.mrf.mxu0
    %v1683 = vadd.f32 0.0, %v1682
    %v1684 = vpop.f32.mrf.mxu0
    %1685 = vmatprep.mubr.f32.mxu0 %v1566
    %1686 = vmatmul.mubr.f32.gmra.mxu0 %v1565
    %v1687 = vpop.f32.mrf.mxu0
    %v1688 = vadd.f32 0.0, %v1687
    %v1689 = vpop.f32.mrf.mxu0
    %1690 = vmatprep.mubr.f32.mxu0 %v1579
    %1691 = vmatmul.mubr.f32.gmra.mxu0 %v1578
    %v1692 = vpop.f32.mrf.mxu0
    %v1693 = vadd.f32 0.0, %v1692
    %v1694 = vpop.f32.mrf.mxu0
    %1695 = vmatprep.mubr.f32.mxu0 %v1592
    %1696 = vmatmul.mubr.f32.gmra.mxu0 %v1591
    %v1697 = vpop.f32.mrf.mxu0
    %v1698 = vadd.f32 0.0, %v1697
    %v1699 = vpop.f32.mrf.mxu0
    %1700 = vdwg.mxu0
    %1701 = vmatprep.subr.mxu0 0.0
    %1702 = vmatpush1.msra.mxu0 %v74
    %1703 = vmatprep.subr.mxu0 0.0
    %1704 = vmatpush1.msra.mxu0 %v73
    %1705 = vmatprep.subr.mxu0 0.0
    %1706 = vmatpush1.msra.mxu0 %v72
    %1707 = vmatprep.subr.mxu0 0.0
    %1708 = vmatpush1.msra.mxu0 %v71
    %1709 = vmatprep.subr.mxu0 0.0
    %1710 = vmatpush1.msra.mxu0 %v70
    %1711 = vmatprep.subr.mxu0 0.0
    %1712 = vmatpush1.msra.mxu0 %v69
    %1713 = vmatprep.subr.mxu0 0.0
    %1714 = vmatpush1.msra.mxu0 %v68
    %1715 = vmatprep.subr.mxu0 0.0
    %1716 = vmatpush1.msra.mxu0 %v67
    %1717 = vmatprep.subr.mxu0 0.0
    %1718 = vmatpush1.msra.mxu0 %v66
    %1719 = vmatprep.subr.mxu0 0.0
    %1720 = vmatpush1.msra.mxu0 %v65
    %1721 = vmatprep.subr.mxu0 0.0
    %1722 = vmatpush1.msra.mxu0 %v64
    %1723 = vmatprep.subr.mxu0 0.0
    %1724 = vmatpush1.msra.mxu0 %v63
    %1725 = vmatprep.subr.mxu0 0.0
    %1726 = vmatpush1.msra.mxu0 %v62
    %1727 = vmatprep.subr.mxu0 0.0
    %1728 = vmatpush1.msra.mxu0 %v61
    %1729 = vmatprep.subr.mxu0 0.0
    %1730 = vmatpush1.msra.mxu0 %v60
    %1731 = vmatprep.subr.mxu0 0.0
    %1732 = vmatpush1.msra.mxu0 %v59
    %1733 = vmatprep.subr.mxu0 0.0
    %1734 = vmatpush2.msra.mxu0 %v90
    %1735 = vmatprep.subr.mxu0 0.0
    %1736 = vmatpush2.msra.mxu0 %v89
    %1737 = vmatprep.subr.mxu0 0.0
    %1738 = vmatpush2.msra.mxu0 %v88
    %1739 = vmatprep.subr.mxu0 0.0
    %1740 = vmatpush2.msra.mxu0 %v87
    %1741 = vmatprep.subr.mxu0 0.0
    %1742 = vmatpush2.msra.mxu0 %v86
    %1743 = vmatprep.subr.mxu0 0.0
    %1744 = vmatpush2.msra.mxu0 %v85
    %1745 = vmatprep.subr.mxu0 0.0
    %1746 = vmatpush2.msra.mxu0 %v84
    %1747 = vmatprep.subr.mxu0 0.0
    %1748 = vmatpush2.msra.mxu0 %v83
    %1749 = vmatprep.subr.mxu0 0.0
    %1750 = vmatpush2.msra.mxu0 %v82
    %1751 = vmatprep.subr.mxu0 0.0
    %1752 = vmatpush2.msra.mxu0 %v81
    %1753 = vmatprep.subr.mxu0 0.0
    %1754 = vmatpush2.msra.mxu0 %v80
    %1755 = vmatprep.subr.mxu0 0.0
    %1756 = vmatpush2.msra.mxu0 %v79
    %1757 = vmatprep.subr.mxu0 0.0
    %1758 = vmatpush2.msra.mxu0 %v78
    %1759 = vmatprep.subr.mxu0 0.0
    %1760 = vmatpush2.msra.mxu0 %v77
    %1761 = vmatprep.subr.mxu0 0.0
    %1762 = vmatpush2.msra.mxu0 %v76
    %1763 = vmatprep.subr.mxu0 0.0
    %1764 = vmatpush2.msra.mxu0 %v75
    %1765 = vmatprep.mubr.f32.mxu0 %v1555
    %1766 = vmatmul.mubr.f32.gmra.mxu0 %v1554
    %v1767 = vpop.f32.mrf.mxu0
    %v1768 = vadd.f32 %v1683, %v1767
    %v1769 = vpop.f32.mrf.mxu0
    %1770 = vmatprep.mubr.f32.mxu0 %v1568
    %1771 = vmatmul.mubr.f32.gmra.mxu0 %v1567
    %v1772 = vpop.f32.mrf.mxu0
    %v1773 = vadd.f32 %v1688, %v1772
    %v1774 = vpop.f32.mrf.mxu0
    %1775 = vmatprep.mubr.f32.mxu0 %v1581
    %1776 = vmatmul.mubr.f32.gmra.mxu0 %v1580
    %v1777 = vpop.f32.mrf.mxu0
    %v1778 = vadd.f32 %v1693, %v1777
    %v1779 = vpop.f32.mrf.mxu0
    %1780 = vmatprep.mubr.f32.mxu0 %v1594
    %1781 = vmatmul.mubr.f32.gmra.mxu0 %v1593
    %v1782 = vpop.f32.mrf.mxu0
    %v1783 = vadd.f32 %v1698, %v1782
    %v1784 = vpop.f32.mrf.mxu0
    %1785 = vdwg.mxu0
    %1786 = vmatprep.subr.mxu0 0.0
    %1787 = vmatpush1.msra.mxu0 %v106
    %1788 = vmatprep.subr.mxu0 0.0
    %1789 = vmatpush1.msra.mxu0 %v105
    %1790 = vmatprep.subr.mxu0 0.0
    %1791 = vmatpush1.msra.mxu0 %v104
    %1792 = vmatprep.subr.mxu0 0.0
    %1793 = vmatpush1.msra.mxu0 %v103
    %1794 = vmatprep.subr.mxu0 0.0
    %1795 = vmatpush1.msra.mxu0 %v102
    %1796 = vmatprep.subr.mxu0 0.0
    %1797 = vmatpush1.msra.mxu0 %v101
    %1798 = vmatprep.subr.mxu0 0.0
    %1799 = vmatpush1.msra.mxu0 %v100
    %1800 = vmatprep.subr.mxu0 0.0
    %1801 = vmatpush1.msra.mxu0 %v99
    %1802 = vmatprep.subr.mxu0 0.0
    %1803 = vmatpush1.msra.mxu0 %v98
    %1804 = vmatprep.subr.mxu0 0.0
    %1805 = vmatpush1.msra.mxu0 %v97
    %1806 = vmatprep.subr.mxu0 0.0
    %1807 = vmatpush1.msra.mxu0 %v96
    %1808 = vmatprep.subr.mxu0 0.0
    %1809 = vmatpush1.msra.mxu0 %v95
    %1810 = vmatprep.subr.mxu0 0.0
    %1811 = vmatpush1.msra.mxu0 %v94
    %1812 = vmatprep.subr.mxu0 0.0
    %1813 = vmatpush1.msra.mxu0 %v93
    %1814 = vmatprep.subr.mxu0 0.0
    %1815 = vmatpush1.msra.mxu0 %v92
    %1816 = vmatprep.subr.mxu0 0.0
    %1817 = vmatpush1.msra.mxu0 %v91
    %1818 = vmatprep.subr.mxu0 0.0
    %1819 = vmatpush2.msra.mxu0 %v122
    %1820 = vmatprep.subr.mxu0 0.0
    %1821 = vmatpush2.msra.mxu0 %v121
    %1822 = vmatprep.subr.mxu0 0.0
    %1823 = vmatpush2.msra.mxu0 %v120
    %1824 = vmatprep.subr.mxu0 0.0
    %1825 = vmatpush2.msra.mxu0 %v119
    %1826 = vmatprep.subr.mxu0 0.0
    %1827 = vmatpush2.msra.mxu0 %v118
    %1828 = vmatprep.subr.mxu0 0.0
    %1829 = vmatpush2.msra.mxu0 %v117
    %1830 = vmatprep.subr.mxu0 0.0
    %1831 = vmatpush2.msra.mxu0 %v116
    %1832 = vmatprep.subr.mxu0 0.0
    %1833 = vmatpush2.msra.mxu0 %v115
    %1834 = vmatprep.subr.mxu0 0.0
    %1835 = vmatpush2.msra.mxu0 %v114
    %1836 = vmatprep.subr.mxu0 0.0
    %1837 = vmatpush2.msra.mxu0 %v113
    %1838 = vmatprep.subr.mxu0 0.0
    %1839 = vmatpush2.msra.mxu0 %v112
    %1840 = vmatprep.subr.mxu0 0.0
    %1841 = vmatpush2.msra.mxu0 %v111
    %1842 = vmatprep.subr.mxu0 0.0
    %1843 = vmatpush2.msra.mxu0 %v110
    %1844 = vmatprep.subr.mxu0 0.0
    %1845 = vmatpush2.msra.mxu0 %v109
    %1846 = vmatprep.subr.mxu0 0.0
    %1847 = vmatpush2.msra.mxu0 %v108
    %1848 = vmatprep.subr.mxu0 0.0
    %1849 = vmatpush2.msra.mxu0 %v107
    %1850 = vmatprep.mubr.f32.mxu0 %v1557
    %1851 = vmatmul.mubr.f32.gmra.mxu0 %v1556
    %v1852 = vpop.f32.mrf.mxu0
    %v1853 = vadd.f32 %v1768, %v1852
    %v1854 = vpop.f32.mrf.mxu0
    %1855 = vmatprep.mubr.f32.mxu0 %v1570
    %1856 = vmatmul.mubr.f32.gmra.mxu0 %v1569
    %v1857 = vpop.f32.mrf.mxu0
    %v1858 = vadd.f32 %v1773, %v1857
    %v1859 = vpop.f32.mrf.mxu0
    %1860 = vmatprep.mubr.f32.mxu0 %v1583
    %1861 = vmatmul.mubr.f32.gmra.mxu0 %v1582
    %v1862 = vpop.f32.mrf.mxu0
    %v1863 = vadd.f32 %v1778, %v1862
    %v1864 = vpop.f32.mrf.mxu0
    %1865 = vmatprep.mubr.f32.mxu0 %v1596
    %1866 = vmatmul.mubr.f32.gmra.mxu0 %v1595
    %v1867 = vpop.f32.mrf.mxu0
    %v1868 = vadd.f32 %v1783, %v1867
    %v1869 = vpop.f32.mrf.mxu0
    %1870 = vdwg.mxu0
    %1871 = vmatprep.subr.mxu0 0.0
    %1872 = vmatpush1.msra.mxu0 %v138
    %1873 = vmatprep.subr.mxu0 0.0
    %1874 = vmatpush1.msra.mxu0 %v137
    %1875 = vmatprep.subr.mxu0 0.0
    %1876 = vmatpush1.msra.mxu0 %v136
    %1877 = vmatprep.subr.mxu0 0.0
    %1878 = vmatpush1.msra.mxu0 %v135
    %1879 = vmatprep.subr.mxu0 0.0
    %1880 = vmatpush1.msra.mxu0 %v134
    %1881 = vmatprep.subr.mxu0 0.0
    %1882 = vmatpush1.msra.mxu0 %v133
    %1883 = vmatprep.subr.mxu0 0.0
    %1884 = vmatpush1.msra.mxu0 %v132
    %1885 = vmatprep.subr.mxu0 0.0
    %1886 = vmatpush1.msra.mxu0 %v131
    %1887 = vmatprep.subr.mxu0 0.0
    %1888 = vmatpush1.msra.mxu0 %v130
    %1889 = vmatprep.subr.mxu0 0.0
    %1890 = vmatpush1.msra.mxu0 %v129
    %1891 = vmatprep.subr.mxu0 0.0
    %1892 = vmatpush1.msra.mxu0 %v128
    %1893 = vmatprep.subr.mxu0 0.0
    %1894 = vmatpush1.msra.mxu0 %v127
    %1895 = vmatprep.subr.mxu0 0.0
    %1896 = vmatpush1.msra.mxu0 %v126
    %1897 = vmatprep.subr.mxu0 0.0
    %1898 = vmatpush1.msra.mxu0 %v125
    %1899 = vmatprep.subr.mxu0 0.0
    %1900 = vmatpush1.msra.mxu0 %v124
    %1901 = vmatprep.subr.mxu0 0.0
    %1902 = vmatpush1.msra.mxu0 %v123
    %1903 = vmatprep.subr.mxu0 0.0
    %1904 = vmatpush2.msra.mxu0 %v154
    %1905 = vmatprep.subr.mxu0 0.0
    %1906 = vmatpush2.msra.mxu0 %v153
    %1907 = vmatprep.subr.mxu0 0.0
    %1908 = vmatpush2.msra.mxu0 %v152
    %1909 = vmatprep.subr.mxu0 0.0
    %1910 = vmatpush2.msra.mxu0 %v151
    %1911 = vmatprep.subr.mxu0 0.0
    %1912 = vmatpush2.msra.mxu0 %v150
    %1913 = vmatprep.subr.mxu0 0.0
    %1914 = vmatpush2.msra.mxu0 %v149
    %1915 = vmatprep.subr.mxu0 0.0
    %1916 = vmatpush2.msra.mxu0 %v148
    %1917 = vmatprep.subr.mxu0 0.0
    %1918 = vmatpush2.msra.mxu0 %v147
    %1919 = vmatprep.subr.mxu0 0.0
    %1920 = vmatpush2.msra.mxu0 %v146
    %1921 = vmatprep.subr.mxu0 0.0
    %1922 = vmatpush2.msra.mxu0 %v145
    %1923 = vmatprep.subr.mxu0 0.0
    %1924 = vmatpush2.msra.mxu0 %v144
    %1925 = vmatprep.subr.mxu0 0.0
    %1926 = vmatpush2.msra.mxu0 %v143
    %1927 = vmatprep.subr.mxu0 0.0
    %1928 = vmatpush2.msra.mxu0 %v142
    %1929 = vmatprep.subr.mxu0 0.0
    %1930 = vmatpush2.msra.mxu0 %v141
    %1931 = vmatprep.subr.mxu0 0.0
    %1932 = vmatpush2.msra.mxu0 %v140
    %1933 = vmatprep.subr.mxu0 0.0
    %1934 = vmatpush2.msra.mxu0 %v139
    %1935 = vmatprep.mubr.f32.mxu0 %v1559
    %1936 = vmatmul.mubr.f32.gmra.mxu0 %v1558
    %v1937 = vpop.f32.mrf.mxu0
    %v1938 = vadd.f32 %v1853, %v1937
    %v1939 = vpop.f32.mrf.mxu0
    %1940 = vmatprep.mubr.f32.mxu0 %v1572
    %1941 = vmatmul.mubr.f32.gmra.mxu0 %v1571
    %v1942 = vpop.f32.mrf.mxu0
    %v1943 = vadd.f32 %v1858, %v1942
    %v1944 = vpop.f32.mrf.mxu0
    %1945 = vmatprep.mubr.f32.mxu0 %v1585
    %1946 = vmatmul.mubr.f32.gmra.mxu0 %v1584
    %v1947 = vpop.f32.mrf.mxu0
    %v1948 = vadd.f32 %v1863, %v1947
    %v1949 = vpop.f32.mrf.mxu0
    %1950 = vmatprep.mubr.f32.mxu0 %v1598
    %1951 = vmatmul.mubr.f32.gmra.mxu0 %v1597
    %v1952 = vpop.f32.mrf.mxu0
    %v1953 = vadd.f32 %v1868, %v1952
    %v1954 = vpop.f32.mrf.mxu0
    %1955 = vdwg.mxu0
    %1956 = vmatprep.subr.mxu0 0.0
    %1957 = vmatpush1.msra.mxu0 %v170
    %1958 = vmatprep.subr.mxu0 0.0
    %1959 = vmatpush1.msra.mxu0 %v169
    %1960 = vmatprep.subr.mxu0 0.0
    %1961 = vmatpush1.msra.mxu0 %v168
    %1962 = vmatprep.subr.mxu0 0.0
    %1963 = vmatpush1.msra.mxu0 %v167
    %1964 = vmatprep.subr.mxu0 0.0
    %1965 = vmatpush1.msra.mxu0 %v166
    %1966 = vmatprep.subr.mxu0 0.0
    %1967 = vmatpush1.msra.mxu0 %v165
    %1968 = vmatprep.subr.mxu0 0.0
    %1969 = vmatpush1.msra.mxu0 %v164
    %1970 = vmatprep.subr.mxu0 0.0
    %1971 = vmatpush1.msra.mxu0 %v163
    %1972 = vmatprep.subr.mxu0 0.0
    %1973 = vmatpush1.msra.mxu0 %v162
    %1974 = vmatprep.subr.mxu0 0.0
    %1975 = vmatpush1.msra.mxu0 %v161
    %1976 = vmatprep.subr.mxu0 0.0
    %1977 = vmatpush1.msra.mxu0 %v160
    %1978 = vmatprep.subr.mxu0 0.0
    %1979 = vmatpush1.msra.mxu0 %v159
    %1980 = vmatprep.subr.mxu0 0.0
    %1981 = vmatpush1.msra.mxu0 %v158
    %1982 = vmatprep.subr.mxu0 0.0
    %1983 = vmatpush1.msra.mxu0 %v157
    %1984 = vmatprep.subr.mxu0 0.0
    %1985 = vmatpush1.msra.mxu0 %v156
    %1986 = vmatprep.subr.mxu0 0.0
    %1987 = vmatpush1.msra.mxu0 %v155
    %1988 = vmatprep.subr.mxu0 0.0
    %1989 = vmatpush2.msra.mxu0 %v186
    %1990 = vmatprep.subr.mxu0 0.0
    %1991 = vmatpush2.msra.mxu0 %v185
    %1992 = vmatprep.subr.mxu0 0.0
    %1993 = vmatpush2.msra.mxu0 %v184
    %1994 = vmatprep.subr.mxu0 0.0
    %1995 = vmatpush2.msra.mxu0 %v183
    %1996 = vmatprep.subr.mxu0 0.0
    %1997 = vmatpush2.msra.mxu0 %v182
    %1998 = vmatprep.subr.mxu0 0.0
    %1999 = vmatpush2.msra.mxu0 %v181
    %2000 = vmatprep.subr.mxu0 0.0
    %2001 = vmatpush2.msra.mxu0 %v180
    %2002 = vmatprep.subr.mxu0 0.0
    %2003 = vmatpush2.msra.mxu0 %v179
    %2004 = vmatprep.subr.mxu0 0.0
    %2005 = vmatpush2.msra.mxu0 %v178
    %2006 = vmatprep.subr.mxu0 0.0
    %2007 = vmatpush2.msra.mxu0 %v177
    %2008 = vmatprep.subr.mxu0 0.0
    %2009 = vmatpush2.msra.mxu0 %v176
    %2010 = vmatprep.subr.mxu0 0.0
    %2011 = vmatpush2.msra.mxu0 %v175
    %2012 = vmatprep.subr.mxu0 0.0
    %2013 = vmatpush2.msra.mxu0 %v174
    %2014 = vmatprep.subr.mxu0 0.0
    %2015 = vmatpush2.msra.mxu0 %v173
    %2016 = vmatprep.subr.mxu0 0.0
    %2017 = vmatpush2.msra.mxu0 %v172
    %2018 = vmatprep.subr.mxu0 0.0
    %2019 = vmatpush2.msra.mxu0 %v171
    %2020 = vmatprep.mubr.f32.mxu0 %v1561
    %2021 = vmatmul.mubr.f32.gmra.mxu0 %v1560
    %v2022 = vpop.f32.mrf.mxu0
    %v2023 = vadd.f32 %v1938, %v2022
    %v2024 = vpop.f32.mrf.mxu0
    %2025 = vmatprep.mubr.f32.mxu0 %v1574
    %2026 = vmatmul.mubr.f32.gmra.mxu0 %v1573
    %v2027 = vpop.f32.mrf.mxu0
    %v2028 = vadd.f32 %v1943, %v2027
    %v2029 = vpop.f32.mrf.mxu0
    %2030 = vmatprep.mubr.f32.mxu0 %v1587
    %2031 = vmatmul.mubr.f32.gmra.mxu0 %v1586
    %v2032 = vpop.f32.mrf.mxu0
    %v2033 = vadd.f32 %v1948, %v2032
    %v2034 = vpop.f32.mrf.mxu0
    %2035 = vmatprep.mubr.f32.mxu0 %v1600
    %2036 = vmatmul.mubr.f32.gmra.mxu0 %v1599
    %v2037 = vpop.f32.mrf.mxu0
    %v2038 = vadd.f32 %v1953, %v2037
    %v2039 = vpop.f32.mrf.mxu0
    %2040 = vdwg.mxu0
    %2041 = vmatprep.subr.mxu0 0.0
    %2042 = vmatpush1.msra.mxu0 %v202
    %2043 = vmatprep.subr.mxu0 0.0
    %2044 = vmatpush1.msra.mxu0 %v201
    %2045 = vmatprep.subr.mxu0 0.0
    %2046 = vmatpush1.msra.mxu0 %v200
    %2047 = vmatprep.subr.mxu0 0.0
    %2048 = vmatpush1.msra.mxu0 %v199
    %2049 = vmatprep.subr.mxu0 0.0
    %2050 = vmatpush1.msra.mxu0 %v198
    %2051 = vmatprep.subr.mxu0 0.0
    %2052 = vmatpush1.msra.mxu0 %v197
    %2053 = vmatprep.subr.mxu0 0.0
    %2054 = vmatpush1.msra.mxu0 %v196
    %2055 = vmatprep.subr.mxu0 0.0
    %2056 = vmatpush1.msra.mxu0 %v195
    %2057 = vmatprep.subr.mxu0 0.0
    %2058 = vmatpush1.msra.mxu0 %v194
    %2059 = vmatprep.subr.mxu0 0.0
    %2060 = vmatpush1.msra.mxu0 %v193
    %2061 = vmatprep.subr.mxu0 0.0
    %2062 = vmatpush1.msra.mxu0 %v192
    %2063 = vmatprep.subr.mxu0 0.0
    %2064 = vmatpush1.msra.mxu0 %v191
    %2065 = vmatprep.subr.mxu0 0.0
    %2066 = vmatpush1.msra.mxu0 %v190
    %2067 = vmatprep.subr.mxu0 0.0
    %2068 = vmatpush1.msra.mxu0 %v189
    %2069 = vmatprep.subr.mxu0 0.0
    %2070 = vmatpush1.msra.mxu0 %v188
    %2071 = vmatprep.subr.mxu0 0.0
    %2072 = vmatpush1.msra.mxu0 %v187
    %2073 = vmatprep.subr.mxu0 0.0
    %2074 = vmatpush2.msra.mxu0 %v218
    %2075 = vmatprep.subr.mxu0 0.0
    %2076 = vmatpush2.msra.mxu0 %v217
    %2077 = vmatprep.subr.mxu0 0.0
    %2078 = vmatpush2.msra.mxu0 %v216
    %2079 = vmatprep.subr.mxu0 0.0
    %2080 = vmatpush2.msra.mxu0 %v215
    %2081 = vmatprep.subr.mxu0 0.0
    %2082 = vmatpush2.msra.mxu0 %v214
    %2083 = vmatprep.subr.mxu0 0.0
    %2084 = vmatpush2.msra.mxu0 %v213
    %2085 = vmatprep.subr.mxu0 0.0
    %2086 = vmatpush2.msra.mxu0 %v212
    %2087 = vmatprep.subr.mxu0 0.0
    %2088 = vmatpush2.msra.mxu0 %v211
    %2089 = vmatprep.subr.mxu0 0.0
    %2090 = vmatpush2.msra.mxu0 %v210
    %2091 = vmatprep.subr.mxu0 0.0
    %2092 = vmatpush2.msra.mxu0 %v209
    %2093 = vmatprep.subr.mxu0 0.0
    %2094 = vmatpush2.msra.mxu0 %v208
    %2095 = vmatprep.subr.mxu0 0.0
    %2096 = vmatpush2.msra.mxu0 %v207
    %2097 = vmatprep.subr.mxu0 0.0
    %2098 = vmatpush2.msra.mxu0 %v206
    %2099 = vmatprep.subr.mxu0 0.0
    %2100 = vmatpush2.msra.mxu0 %v205
    %2101 = vmatprep.subr.mxu0 0.0
    %2102 = vmatpush2.msra.mxu0 %v204
    %2103 = vmatprep.subr.mxu0 0.0
    %2104 = vmatpush2.msra.mxu0 %v203
    %2105 = vmatprep.mubr.f32.mxu0 %v1563
    %2106 = vmatmul.mubr.f32.gmra.mxu0 %v1562
    %v2107 = vpop.f32.mrf.mxu0
    %v2108 = vadd.f32 %v2023, %v2107
    %v2109 = vpop.f32.mrf.mxu0
    %2110 = vmatprep.mubr.f32.mxu0 %v1576
    %2111 = vmatmul.mubr.f32.gmra.mxu0 %v1575
    %v2112 = vpop.f32.mrf.mxu0
    %v2113 = vadd.f32 %v2028, %v2112
    %v2114 = vpop.f32.mrf.mxu0
    %2115 = vmatprep.mubr.f32.mxu0 %v1589
    %2116 = vmatmul.mubr.f32.gmra.mxu0 %v1588
    %v2117 = vpop.f32.mrf.mxu0
    %v2118 = vadd.f32 %v2033, %v2117
    %v2119 = vpop.f32.mrf.mxu0
    %2120 = vmatprep.mubr.f32.mxu0 %v1602
    %2121 = vmatmul.mubr.f32.gmra.mxu0 %v1601
    %v2122 = vpop.f32.mrf.mxu0
    %v2123 = vadd.f32 %v2038, %v2122
    %v2124 = vpop.f32.mrf.mxu0
    %2125 = vdwg.mxu0
    %2126 = vmatprep.subr.mxu0 0.0
    %2127 = vmatpush1.msra.mxu0 0.0
    %2128 = vmatprep.subr.mxu0 0.0
    %2129 = vmatpush1.msra.mxu0 0.0
    %2130 = vmatprep.subr.mxu0 0.0
    %2131 = vmatpush1.msra.mxu0 0.0
    %2132 = vmatprep.subr.mxu0 0.0
    %2133 = vmatpush1.msra.mxu0 0.0
    %2134 = vmatprep.subr.mxu0 0.0
    %2135 = vmatpush1.msra.mxu0 0.0
    %2136 = vmatprep.subr.mxu0 0.0
    %2137 = vmatpush1.msra.mxu0 0.0
    %2138 = vmatprep.subr.mxu0 0.0
    %2139 = vmatpush1.msra.mxu0 0.0
    %2140 = vmatprep.subr.mxu0 0.0
    %2141 = vmatpush1.msra.mxu0 0.0
    %2142 = vmatprep.subr.mxu0 0.0
    %2143 = vmatpush1.msra.mxu0 %v226
    %2144 = vmatprep.subr.mxu0 0.0
    %2145 = vmatpush1.msra.mxu0 %v225
    %2146 = vmatprep.subr.mxu0 0.0
    %2147 = vmatpush1.msra.mxu0 %v224
    %2148 = vmatprep.subr.mxu0 0.0
    %2149 = vmatpush1.msra.mxu0 %v223
    %2150 = vmatprep.subr.mxu0 0.0
    %2151 = vmatpush1.msra.mxu0 %v222
    %2152 = vmatprep.subr.mxu0 0.0
    %2153 = vmatpush1.msra.mxu0 %v221
    %2154 = vmatprep.subr.mxu0 0.0
    %2155 = vmatpush1.msra.mxu0 %v220
    %2156 = vmatprep.subr.mxu0 0.0
    %2157 = vmatpush1.msra.mxu0 %v219
    %2158 = vmatprep.subr.mxu0 0.0
    %2159 = vmatpush2.msra.mxu0 0.0
    %2160 = vmatprep.subr.mxu0 0.0
    %2161 = vmatpush2.msra.mxu0 0.0
    %2162 = vmatprep.subr.mxu0 0.0
    %2163 = vmatpush2.msra.mxu0 0.0
    %2164 = vmatprep.subr.mxu0 0.0
    %2165 = vmatpush2.msra.mxu0 0.0
    %2166 = vmatprep.subr.mxu0 0.0
    %2167 = vmatpush2.msra.mxu0 0.0
    %2168 = vmatprep.subr.mxu0 0.0
    %2169 = vmatpush2.msra.mxu0 0.0
    %2170 = vmatprep.subr.mxu0 0.0
    %2171 = vmatpush2.msra.mxu0 0.0
    %2172 = vmatprep.subr.mxu0 0.0
    %2173 = vmatpush2.msra.mxu0 0.0
    %2174 = vmatprep.subr.mxu0 0.0
    %2175 = vmatpush2.msra.mxu0 0.0
    %2176 = vmatprep.subr.mxu0 0.0
    %2177 = vmatpush2.msra.mxu0 0.0
    %2178 = vmatprep.subr.mxu0 0.0
    %2179 = vmatpush2.msra.mxu0 0.0
    %2180 = vmatprep.subr.mxu0 0.0
    %2181 = vmatpush2.msra.mxu0 0.0
    %2182 = vmatprep.subr.mxu0 0.0
    %2183 = vmatpush2.msra.mxu0 0.0
    %2184 = vmatprep.subr.mxu0 0.0
    %2185 = vmatpush2.msra.mxu0 0.0
    %2186 = vmatprep.subr.mxu0 0.0
    %2187 = vmatpush2.msra.mxu0 0.0
    %2188 = vmatprep.subr.mxu0 0.0
    %2189 = vmatpush2.msra.mxu0 0.0
    %2190 = vmatprep.mubr.f32.mxu0 0.0
    %2191 = vmatmul.mubr.f32.gmra.mxu0 %v1605
    %v2192 = vpop.f32.mrf.mxu0
    %v2193 = vadd.f32 %v2108, %v2192
    %v2194 = vpop.f32.mrf.mxu0
    %2195 = vmatprep.mubr.f32.mxu0 0.0
    %2196 = vmatmul.mubr.f32.gmra.mxu0 %v1608
    %v2197 = vpop.f32.mrf.mxu0
    %v2198 = vadd.f32 %v2113, %v2197
    %v2199 = vpop.f32.mrf.mxu0
    %2200 = vmatprep.mubr.f32.mxu0 0.0
    %2201 = vmatmul.mubr.f32.gmra.mxu0 %v1611
    %v2202 = vpop.f32.mrf.mxu0
    %v2203 = vadd.f32 %v2118, %v2202
    %v2204 = vpop.f32.mrf.mxu0
    %2205 = vmatprep.mubr.f32.mxu0 0.0
    %2206 = vmatmul.mubr.f32.gmra.mxu0 %v1614
    %v2207 = vpop.f32.mrf.mxu0
    %v2208 = vadd.f32 %v2123, %v2207
    %v2209 = vpop.f32.mrf.mxu0
    %2210 = vdwg.mxu0
    %v2211 = vmax.f32 %v1547, %v2193
    %v2212 = vmax.f32 %v1548, %v2198
    %v2213 = vmax.f32 %v1549, %v2203
    %v2214 = vmax.f32 %v1550, %v2208
    %s2215 = scalar_lea.vmem %s0, 1248
    %v2216 = vld [vmem:[%s2215] sm:$0xff]
    %v2217 = vld [vmem:[%s2215 + $0x8] sm:$0xff]
    %v2218 = vld [vmem:[%s2215 + $0x10] sm:$0xff]
    %v2219 = vld [vmem:[%s2215 + $0x18] sm:$0xff]
    %v2220 = vld [vmem:[%s2215 + $0x20] sm:$0xff]
    %v2221 = vld [vmem:[%s2215 + $0x28] sm:$0xff]
    %v2222 = vld [vmem:[%s2215 + $0x30] sm:$0xff]
    %v2223 = vld [vmem:[%s2215 + $0x38] sm:$0xff]
    %v2224 = vld [vmem:[%s2215 + $0x40] sm:$0xff]
    %v2225 = vld [vmem:[%s2215 + $0x48] sm:$0xff]
    %v2226 = vld [vmem:[%s2215 + $0x50] sm:$0xff]
    %v2227 = vld [vmem:[%s2215 + $0x58] sm:$0xff]
    %v2228 = vld [vmem:[%s2215 + $0x60] sm:$0xff]
    %v2229 = vld [vmem:[%s2215 + $0x68] sm:$0xff]
    %v2230 = vld [vmem:[%s2215 + $0x70] sm:$0xff]
    %v2231 = vld [vmem:[%s2215 + $0x78] sm:$0xff]
    %v2232 = vld [vmem:[%s2215 + $0x80] sm:$0xff]
    %v2233 = vld [vmem:[%s2215 + $0x88] sm:$0xff]
    %v2234 = vld [vmem:[%s2215 + $0x90] sm:$0xff]
    %v2235 = vld [vmem:[%s2215 + $0x98] sm:$0xff]
    %v2236 = vld [vmem:[%s2215 + $0xa0] sm:$0xff]
    %v2237 = vld [vmem:[%s2215 + $0xa8] sm:$0xff]
    %v2238 = vld [vmem:[%s2215 + $0xb0] sm:$0xff]
    %v2239 = vld [vmem:[%s2215 + $0xb8] sm:$0xff]
    %v2240 = vld [vmem:[%s2215 + $0xc0] sm:$0xff]
    %v2241 = vld [vmem:[%s2215 + $0xc8] sm:$0xff]
    %v2242 = vld [vmem:[%s2215 + $0xd0] sm:$0xff]
    %v2243 = vld [vmem:[%s2215 + $0xd8] sm:$0xff]
    %v2244 = vld [vmem:[%s2215 + $0xe0] sm:$0xff]
    %v2245 = vld [vmem:[%s2215 + $0xe8] sm:$0xff]
    %v2246 = vld [vmem:[%s2215 + $0xf0] sm:$0xff]
    %v2247 = vld [vmem:[%s2215 + $0xf8] sm:$0xff]
    %v2248 = vld [vmem:[%s2215 + $0x100] sm:$0xff]
    %v2249 = vld [vmem:[%s2215 + $0x108] sm:$0xff]
    %v2250 = vld [vmem:[%s2215 + $0x110] sm:$0xff]
    %v2251 = vld [vmem:[%s2215 + $0x118] sm:$0xff]
    %v2252 = vld [vmem:[%s2215 + $0x120] sm:$0xff]
    %v2253 = vld [vmem:[%s2215 + $0x128] sm:$0xff]
    %v2254 = vld [vmem:[%s2215 + $0x130] sm:$0xff]
    %v2255 = vld [vmem:[%s2215 + $0x138] sm:$0xff]
    %v2256 = vld [vmem:[%s2215 + $0x140] sm:$0xff]
    %v2257 = vld [vmem:[%s2215 + $0x148] sm:$0xff]
    %v2258 = vld [vmem:[%s2215 + $0x150] sm:$0xff]
    %v2259 = vld [vmem:[%s2215 + $0x158] sm:$0xff]
    %v2260 = vld [vmem:[%s2215 + $0x160] sm:$0xff]
    %v2261 = vld [vmem:[%s2215 + $0x168] sm:$0xff]
    %v2262 = vld [vmem:[%s2215 + $0x170] sm:$0xff]
    %v2263 = vld [vmem:[%s2215 + $0x178] sm:$0xff]
    %v2264 = vld [vmem:[%s2215 + $0x180] sm:$0xff]
    %v2265 = vld [vmem:[%s2215 + $0x188] sm:$0xff]
    %v2266 = vld [vmem:[%s2215 + $0x190] sm:$0xff]
    %v2267 = vld [vmem:[%s2215 + $0x198] sm:$0xff]
    %v2269 = vsel %vm279, %v2228, 0
    %v2272 = vsel %vm279, %v2241, 0
    %v2275 = vsel %vm279, %v2254, 0
    %v2278 = vsel %vm279, %v2267, 0
    %2280 = vmatprep.subr.mxu0 0.0
    %2281 = vmatpush1.msra.mxu0 %v42
    %2282 = vmatprep.subr.mxu0 0.0
    %2283 = vmatpush1.msra.mxu0 %v41
    %2284 = vmatprep.subr.mxu0 0.0
    %2285 = vmatpush1.msra.mxu0 %v40
    %2286 = vmatprep.subr.mxu0 0.0
    %2287 = vmatpush1.msra.mxu0 %v39
    %2288 = vmatprep.subr.mxu0 0.0
    %2289 = vmatpush1.msra.mxu0 %v38
    %2290 = vmatprep.subr.mxu0 0.0
    %2291 = vmatpush1.msra.mxu0 %v37
    %2292 = vmatprep.subr.mxu0 0.0
    %2293 = vmatpush1.msra.mxu0 %v36
    %2294 = vmatprep.subr.mxu0 0.0
    %2295 = vmatpush1.msra.mxu0 %v35
    %2296 = vmatprep.subr.mxu0 0.0
    %2297 = vmatpush1.msra.mxu0 %v34
    %2298 = vmatprep.subr.mxu0 0.0
    %2299 = vmatpush1.msra.mxu0 %v33
    %2300 = vmatprep.subr.mxu0 0.0
    %2301 = vmatpush1.msra.mxu0 %v32
    %2302 = vmatprep.subr.mxu0 0.0
    %2303 = vmatpush1.msra.mxu0 %v31
    %2304 = vmatprep.subr.mxu0 0.0
    %2305 = vmatpush1.msra.mxu0 %v30
    %2306 = vmatprep.subr.mxu0 0.0
    %2307 = vmatpush1.msra.mxu0 %v29
    %2308 = vmatprep.subr.mxu0 0.0
    %2309 = vmatpush1.msra.mxu0 %v28
    %2310 = vmatprep.subr.mxu0 0.0
    %2311 = vmatpush1.msra.mxu0 %v27
    %2312 = vmatprep.subr.mxu0 0.0
    %2313 = vmatpush2.msra.mxu0 %v58
    %2314 = vmatprep.subr.mxu0 0.0
    %2315 = vmatpush2.msra.mxu0 %v57
    %2316 = vmatprep.subr.mxu0 0.0
    %2317 = vmatpush2.msra.mxu0 %v56
    %2318 = vmatprep.subr.mxu0 0.0
    %2319 = vmatpush2.msra.mxu0 %v55
    %2320 = vmatprep.subr.mxu0 0.0
    %2321 = vmatpush2.msra.mxu0 %v54
    %2322 = vmatprep.subr.mxu0 0.0
    %2323 = vmatpush2.msra.mxu0 %v53
    %2324 = vmatprep.subr.mxu0 0.0
    %2325 = vmatpush2.msra.mxu0 %v52
    %2326 = vmatprep.subr.mxu0 0.0
    %2327 = vmatpush2.msra.mxu0 %v51
    %2328 = vmatprep.subr.mxu0 0.0
    %2329 = vmatpush2.msra.mxu0 %v50
    %2330 = vmatprep.subr.mxu0 0.0
    %2331 = vmatpush2.msra.mxu0 %v49
    %2332 = vmatprep.subr.mxu0 0.0
    %2333 = vmatpush2.msra.mxu0 %v48
    %2334 = vmatprep.subr.mxu0 0.0
    %2335 = vmatpush2.msra.mxu0 %v47
    %2336 = vmatprep.subr.mxu0 0.0
    %2337 = vmatpush2.msra.mxu0 %v46
    %2338 = vmatprep.subr.mxu0 0.0
    %2339 = vmatpush2.msra.mxu0 %v45
    %2340 = vmatprep.subr.mxu0 0.0
    %2341 = vmatpush2.msra.mxu0 %v44
    %2342 = vmatprep.subr.mxu0 0.0
    %2343 = vmatpush2.msra.mxu0 %v43
    %2344 = vmatprep.mubr.f32.mxu0 %v2217
    %2345 = vmatmul.mubr.f32.gmra.mxu0 %v2216
    %v2346 = vpop.f32.mrf.mxu0
    %v2347 = vadd.f32 0.0, %v2346
    %v2348 = vpop.f32.mrf.mxu0
    %2349 = vmatprep.mubr.f32.mxu0 %v2230
    %2350 = vmatmul.mubr.f32.gmra.mxu0 %v2229
    %v2351 = vpop.f32.mrf.mxu0
    %v2352 = vadd.f32 0.0, %v2351
    %v2353 = vpop.f32.mrf.mxu0
    %2354 = vmatprep.mubr.f32.mxu0 %v2243
    %2355 = vmatmul.mubr.f32.gmra.mxu0 %v2242
    %v2356 = vpop.f32.mrf.mxu0
    %v2357 = vadd.f32 0.0, %v2356
    %v2358 = vpop.f32.mrf.mxu0
    %2359 = vmatprep.mubr.f32.mxu0 %v2256
    %2360 = vmatmul.mubr.f32.gmra.mxu0 %v2255
    %v2361 = vpop.f32.mrf.mxu0
    %v2362 = vadd.f32 0.0, %v2361
    %v2363 = vpop.f32.mrf.mxu0
    %2364 = vdwg.mxu0
    %2365 = vmatprep.subr.mxu0 0.0
    %2366 = vmatpush1.msra.mxu0 %v74
    %2367 = vmatprep.subr.mxu0 0.0
    %2368 = vmatpush1.msra.mxu0 %v73
    %2369 = vmatprep.subr.mxu0 0.0
    %2370 = vmatpush1.msra.mxu0 %v72
    %2371 = vmatprep.subr.mxu0 0.0
    %2372 = vmatpush1.msra.mxu0 %v71
    %2373 = vmatprep.subr.mxu0 0.0
    %2374 = vmatpush1.msra.mxu0 %v70
    %2375 = vmatprep.subr.mxu0 0.0
    %2376 = vmatpush1.msra.mxu0 %v69
    %2377 = vmatprep.subr.mxu0 0.0
    %2378 = vmatpush1.msra.mxu0 %v68
    %2379 = vmatprep.subr.mxu0 0.0
    %2380 = vmatpush1.msra.mxu0 %v67
    %2381 = vmatprep.subr.mxu0 0.0
    %2382 = vmatpush1.msra.mxu0 %v66
    %2383 = vmatprep.subr.mxu0 0.0
    %2384 = vmatpush1.msra.mxu0 %v65
    %2385 = vmatprep.subr.mxu0 0.0
    %2386 = vmatpush1.msra.mxu0 %v64
    %2387 = vmatprep.subr.mxu0 0.0
    %2388 = vmatpush1.msra.mxu0 %v63
    %2389 = vmatprep.subr.mxu0 0.0
    %2390 = vmatpush1.msra.mxu0 %v62
    %2391 = vmatprep.subr.mxu0 0.0
    %2392 = vmatpush1.msra.mxu0 %v61
    %2393 = vmatprep.subr.mxu0 0.0
    %2394 = vmatpush1.msra.mxu0 %v60
    %2395 = vmatprep.subr.mxu0 0.0
    %2396 = vmatpush1.msra.mxu0 %v59
    %2397 = vmatprep.subr.mxu0 0.0
    %2398 = vmatpush2.msra.mxu0 %v90
    %2399 = vmatprep.subr.mxu0 0.0
    %2400 = vmatpush2.msra.mxu0 %v89
    %2401 = vmatprep.subr.mxu0 0.0
    %2402 = vmatpush2.msra.mxu0 %v88
    %2403 = vmatprep.subr.mxu0 0.0
    %2404 = vmatpush2.msra.mxu0 %v87
    %2405 = vmatprep.subr.mxu0 0.0
    %2406 = vmatpush2.msra.mxu0 %v86
    %2407 = vmatprep.subr.mxu0 0.0
    %2408 = vmatpush2.msra.mxu0 %v85
    %2409 = vmatprep.subr.mxu0 0.0
    %2410 = vmatpush2.msra.mxu0 %v84
    %2411 = vmatprep.subr.mxu0 0.0
    %2412 = vmatpush2.msra.mxu0 %v83
    %2413 = vmatprep.subr.mxu0 0.0
    %2414 = vmatpush2.msra.mxu0 %v82
    %2415 = vmatprep.subr.mxu0 0.0
    %2416 = vmatpush2.msra.mxu0 %v81
    %2417 = vmatprep.subr.mxu0 0.0
    %2418 = vmatpush2.msra.mxu0 %v80
    %2419 = vmatprep.subr.mxu0 0.0
    %2420 = vmatpush2.msra.mxu0 %v79
    %2421 = vmatprep.subr.mxu0 0.0
    %2422 = vmatpush2.msra.mxu0 %v78
    %2423 = vmatprep.subr.mxu0 0.0
    %2424 = vmatpush2.msra.mxu0 %v77
    %2425 = vmatprep.subr.mxu0 0.0
    %2426 = vmatpush2.msra.mxu0 %v76
    %2427 = vmatprep.subr.mxu0 0.0
    %2428 = vmatpush2.msra.mxu0 %v75
    %2429 = vmatprep.mubr.f32.mxu0 %v2219
    %2430 = vmatmul.mubr.f32.gmra.mxu0 %v2218
    %v2431 = vpop.f32.mrf.mxu0
    %v2432 = vadd.f32 %v2347, %v2431
    %v2433 = vpop.f32.mrf.mxu0
    %2434 = vmatprep.mubr.f32.mxu0 %v2232
    %2435 = vmatmul.mubr.f32.gmra.mxu0 %v2231
    %v2436 = vpop.f32.mrf.mxu0
    %v2437 = vadd.f32 %v2352, %v2436
    %v2438 = vpop.f32.mrf.mxu0
    %2439 = vmatprep.mubr.f32.mxu0 %v2245
    %2440 = vmatmul.mubr.f32.gmra.mxu0 %v2244
    %v2441 = vpop.f32.mrf.mxu0
    %v2442 = vadd.f32 %v2357, %v2441
    %v2443 = vpop.f32.mrf.mxu0
    %2444 = vmatprep.mubr.f32.mxu0 %v2258
    %2445 = vmatmul.mubr.f32.gmra.mxu0 %v2257
    %v2446 = vpop.f32.mrf.mxu0
    %v2447 = vadd.f32 %v2362, %v2446
    %v2448 = vpop.f32.mrf.mxu0
    %2449 = vdwg.mxu0
    %2450 = vmatprep.subr.mxu0 0.0
    %2451 = vmatpush1.msra.mxu0 %v106
    %2452 = vmatprep.subr.mxu0 0.0
    %2453 = vmatpush1.msra.mxu0 %v105
    %2454 = vmatprep.subr.mxu0 0.0
    %2455 = vmatpush1.msra.mxu0 %v104
    %2456 = vmatprep.subr.mxu0 0.0
    %2457 = vmatpush1.msra.mxu0 %v103
    %2458 = vmatprep.subr.mxu0 0.0
    %2459 = vmatpush1.msra.mxu0 %v102
    %2460 = vmatprep.subr.mxu0 0.0
    %2461 = vmatpush1.msra.mxu0 %v101
    %2462 = vmatprep.subr.mxu0 0.0
    %2463 = vmatpush1.msra.mxu0 %v100
    %2464 = vmatprep.subr.mxu0 0.0
    %2465 = vmatpush1.msra.mxu0 %v99
    %2466 = vmatprep.subr.mxu0 0.0
    %2467 = vmatpush1.msra.mxu0 %v98
    %2468 = vmatprep.subr.mxu0 0.0
    %2469 = vmatpush1.msra.mxu0 %v97
    %2470 = vmatprep.subr.mxu0 0.0
    %2471 = vmatpush1.msra.mxu0 %v96
    %2472 = vmatprep.subr.mxu0 0.0
    %2473 = vmatpush1.msra.mxu0 %v95
    %2474 = vmatprep.subr.mxu0 0.0
    %2475 = vmatpush1.msra.mxu0 %v94
    %2476 = vmatprep.subr.mxu0 0.0
    %2477 = vmatpush1.msra.mxu0 %v93
    %2478 = vmatprep.subr.mxu0 0.0
    %2479 = vmatpush1.msra.mxu0 %v92
    %2480 = vmatprep.subr.mxu0 0.0
    %2481 = vmatpush1.msra.mxu0 %v91
    %2482 = vmatprep.subr.mxu0 0.0
    %2483 = vmatpush2.msra.mxu0 %v122
    %2484 = vmatprep.subr.mxu0 0.0
    %2485 = vmatpush2.msra.mxu0 %v121
    %2486 = vmatprep.subr.mxu0 0.0
    %2487 = vmatpush2.msra.mxu0 %v120
    %2488 = vmatprep.subr.mxu0 0.0
    %2489 = vmatpush2.msra.mxu0 %v119
    %2490 = vmatprep.subr.mxu0 0.0
    %2491 = vmatpush2.msra.mxu0 %v118
    %2492 = vmatprep.subr.mxu0 0.0
    %2493 = vmatpush2.msra.mxu0 %v117
    %2494 = vmatprep.subr.mxu0 0.0
    %2495 = vmatpush2.msra.mxu0 %v116
    %2496 = vmatprep.subr.mxu0 0.0
    %2497 = vmatpush2.msra.mxu0 %v115
    %2498 = vmatprep.subr.mxu0 0.0
    %2499 = vmatpush2.msra.mxu0 %v114
    %2500 = vmatprep.subr.mxu0 0.0
    %2501 = vmatpush2.msra.mxu0 %v113
    %2502 = vmatprep.subr.mxu0 0.0
    %2503 = vmatpush2.msra.mxu0 %v112
    %2504 = vmatprep.subr.mxu0 0.0
    %2505 = vmatpush2.msra.mxu0 %v111
    %2506 = vmatprep.subr.mxu0 0.0
    %2507 = vmatpush2.msra.mxu0 %v110
    %2508 = vmatprep.subr.mxu0 0.0
    %2509 = vmatpush2.msra.mxu0 %v109
    %2510 = vmatprep.subr.mxu0 0.0
    %2511 = vmatpush2.msra.mxu0 %v108
    %2512 = vmatprep.subr.mxu0 0.0
    %2513 = vmatpush2.msra.mxu0 %v107
    %2514 = vmatprep.mubr.f32.mxu0 %v2221
    %2515 = vmatmul.mubr.f32.gmra.mxu0 %v2220
    %v2516 = vpop.f32.mrf.mxu0
    %v2517 = vadd.f32 %v2432, %v2516
    %v2518 = vpop.f32.mrf.mxu0
    %2519 = vmatprep.mubr.f32.mxu0 %v2234
    %2520 = vmatmul.mubr.f32.gmra.mxu0 %v2233
    %v2521 = vpop.f32.mrf.mxu0
    %v2522 = vadd.f32 %v2437, %v2521
    %v2523 = vpop.f32.mrf.mxu0
    %2524 = vmatprep.mubr.f32.mxu0 %v2247
    %2525 = vmatmul.mubr.f32.gmra.mxu0 %v2246
    %v2526 = vpop.f32.mrf.mxu0
    %v2527 = vadd.f32 %v2442, %v2526
    %v2528 = vpop.f32.mrf.mxu0
    %2529 = vmatprep.mubr.f32.mxu0 %v2260
    %2530 = vmatmul.mubr.f32.gmra.mxu0 %v2259
    %v2531 = vpop.f32.mrf.mxu0
    %v2532 = vadd.f32 %v2447, %v2531
    %v2533 = vpop.f32.mrf.mxu0
    %2534 = vdwg.mxu0
    %2535 = vmatprep.subr.mxu0 0.0
    %2536 = vmatpush1.msra.mxu0 %v138
    %2537 = vmatprep.subr.mxu0 0.0
    %2538 = vmatpush1.msra.mxu0 %v137
    %2539 = vmatprep.subr.mxu0 0.0
    %2540 = vmatpush1.msra.mxu0 %v136
    %2541 = vmatprep.subr.mxu0 0.0
    %2542 = vmatpush1.msra.mxu0 %v135
    %2543 = vmatprep.subr.mxu0 0.0
    %2544 = vmatpush1.msra.mxu0 %v134
    %2545 = vmatprep.subr.mxu0 0.0
    %2546 = vmatpush1.msra.mxu0 %v133
    %2547 = vmatprep.subr.mxu0 0.0
    %2548 = vmatpush1.msra.mxu0 %v132
    %2549 = vmatprep.subr.mxu0 0.0
    %2550 = vmatpush1.msra.mxu0 %v131
    %2551 = vmatprep.subr.mxu0 0.0
    %2552 = vmatpush1.msra.mxu0 %v130
    %2553 = vmatprep.subr.mxu0 0.0
    %2554 = vmatpush1.msra.mxu0 %v129
    %2555 = vmatprep.subr.mxu0 0.0
    %2556 = vmatpush1.msra.mxu0 %v128
    %2557 = vmatprep.subr.mxu0 0.0
    %2558 = vmatpush1.msra.mxu0 %v127
    %2559 = vmatprep.subr.mxu0 0.0
    %2560 = vmatpush1.msra.mxu0 %v126
    %2561 = vmatprep.subr.mxu0 0.0
    %2562 = vmatpush1.msra.mxu0 %v125
    %2563 = vmatprep.subr.mxu0 0.0
    %2564 = vmatpush1.msra.mxu0 %v124
    %2565 = vmatprep.subr.mxu0 0.0
    %2566 = vmatpush1.msra.mxu0 %v123
    %2567 = vmatprep.subr.mxu0 0.0
    %2568 = vmatpush2.msra.mxu0 %v154
    %2569 = vmatprep.subr.mxu0 0.0
    %2570 = vmatpush2.msra.mxu0 %v153
    %2571 = vmatprep.subr.mxu0 0.0
    %2572 = vmatpush2.msra.mxu0 %v152
    %2573 = vmatprep.subr.mxu0 0.0
    %2574 = vmatpush2.msra.mxu0 %v151
    %2575 = vmatprep.subr.mxu0 0.0
    %2576 = vmatpush2.msra.mxu0 %v150
    %2577 = vmatprep.subr.mxu0 0.0
    %2578 = vmatpush2.msra.mxu0 %v149
    %2579 = vmatprep.subr.mxu0 0.0
    %2580 = vmatpush2.msra.mxu0 %v148
    %2581 = vmatprep.subr.mxu0 0.0
    %2582 = vmatpush2.msra.mxu0 %v147
    %2583 = vmatprep.subr.mxu0 0.0
    %2584 = vmatpush2.msra.mxu0 %v146
    %2585 = vmatprep.subr.mxu0 0.0
    %2586 = vmatpush2.msra.mxu0 %v145
    %2587 = vmatprep.subr.mxu0 0.0
    %2588 = vmatpush2.msra.mxu0 %v144
    %2589 = vmatprep.subr.mxu0 0.0
    %2590 = vmatpush2.msra.mxu0 %v143
    %2591 = vmatprep.subr.mxu0 0.0
    %2592 = vmatpush2.msra.mxu0 %v142
    %2593 = vmatprep.subr.mxu0 0.0
    %2594 = vmatpush2.msra.mxu0 %v141
    %2595 = vmatprep.subr.mxu0 0.0
    %2596 = vmatpush2.msra.mxu0 %v140
    %2597 = vmatprep.subr.mxu0 0.0
    %2598 = vmatpush2.msra.mxu0 %v139
    %2599 = vmatprep.mubr.f32.mxu0 %v2223
    %2600 = vmatmul.mubr.f32.gmra.mxu0 %v2222
    %v2601 = vpop.f32.mrf.mxu0
    %v2602 = vadd.f32 %v2517, %v2601
    %v2603 = vpop.f32.mrf.mxu0
    %2604 = vmatprep.mubr.f32.mxu0 %v2236
    %2605 = vmatmul.mubr.f32.gmra.mxu0 %v2235
    %v2606 = vpop.f32.mrf.mxu0
    %v2607 = vadd.f32 %v2522, %v2606
    %v2608 = vpop.f32.mrf.mxu0
    %2609 = vmatprep.mubr.f32.mxu0 %v2249
    %2610 = vmatmul.mubr.f32.gmra.mxu0 %v2248
    %v2611 = vpop.f32.mrf.mxu0
    %v2612 = vadd.f32 %v2527, %v2611
    %v2613 = vpop.f32.mrf.mxu0
    %2614 = vmatprep.mubr.f32.mxu0 %v2262
    %2615 = vmatmul.mubr.f32.gmra.mxu0 %v2261
    %v2616 = vpop.f32.mrf.mxu0
    %v2617 = vadd.f32 %v2532, %v2616
    %v2618 = vpop.f32.mrf.mxu0
    %2619 = vdwg.mxu0
    %2620 = vmatprep.subr.mxu0 0.0
    %2621 = vmatpush1.msra.mxu0 %v170
    %2622 = vmatprep.subr.mxu0 0.0
    %2623 = vmatpush1.msra.mxu0 %v169
    %2624 = vmatprep.subr.mxu0 0.0
    %2625 = vmatpush1.msra.mxu0 %v168
    %2626 = vmatprep.subr.mxu0 0.0
    %2627 = vmatpush1.msra.mxu0 %v167
    %2628 = vmatprep.subr.mxu0 0.0
    %2629 = vmatpush1.msra.mxu0 %v166
    %2630 = vmatprep.subr.mxu0 0.0
    %2631 = vmatpush1.msra.mxu0 %v165
    %2632 = vmatprep.subr.mxu0 0.0
    %2633 = vmatpush1.msra.mxu0 %v164
    %2634 = vmatprep.subr.mxu0 0.0
    %2635 = vmatpush1.msra.mxu0 %v163
    %2636 = vmatprep.subr.mxu0 0.0
    %2637 = vmatpush1.msra.mxu0 %v162
    %2638 = vmatprep.subr.mxu0 0.0
    %2639 = vmatpush1.msra.mxu0 %v161
    %2640 = vmatprep.subr.mxu0 0.0
    %2641 = vmatpush1.msra.mxu0 %v160
    %2642 = vmatprep.subr.mxu0 0.0
    %2643 = vmatpush1.msra.mxu0 %v159
    %2644 = vmatprep.subr.mxu0 0.0
    %2645 = vmatpush1.msra.mxu0 %v158
    %2646 = vmatprep.subr.mxu0 0.0
    %2647 = vmatpush1.msra.mxu0 %v157
    %2648 = vmatprep.subr.mxu0 0.0
    %2649 = vmatpush1.msra.mxu0 %v156
    %2650 = vmatprep.subr.mxu0 0.0
    %2651 = vmatpush1.msra.mxu0 %v155
    %2652 = vmatprep.subr.mxu0 0.0
    %2653 = vmatpush2.msra.mxu0 %v186
    %2654 = vmatprep.subr.mxu0 0.0
    %2655 = vmatpush2.msra.mxu0 %v185
    %2656 = vmatprep.subr.mxu0 0.0
    %2657 = vmatpush2.msra.mxu0 %v184
    %2658 = vmatprep.subr.mxu0 0.0
    %2659 = vmatpush2.msra.mxu0 %v183
    %2660 = vmatprep.subr.mxu0 0.0
    %2661 = vmatpush2.msra.mxu0 %v182
    %2662 = vmatprep.subr.mxu0 0.0
    %2663 = vmatpush2.msra.mxu0 %v181
    %2664 = vmatprep.subr.mxu0 0.0
    %2665 = vmatpush2.msra.mxu0 %v180
    %2666 = vmatprep.subr.mxu0 0.0
    %2667 = vmatpush2.msra.mxu0 %v179
    %2668 = vmatprep.subr.mxu0 0.0
    %2669 = vmatpush2.msra.mxu0 %v178
    %2670 = vmatprep.subr.mxu0 0.0
    %2671 = vmatpush2.msra.mxu0 %v177
    %2672 = vmatprep.subr.mxu0 0.0
    %2673 = vmatpush2.msra.mxu0 %v176
    %2674 = vmatprep.subr.mxu0 0.0
    %2675 = vmatpush2.msra.mxu0 %v175
    %2676 = vmatprep.subr.mxu0 0.0
    %2677 = vmatpush2.msra.mxu0 %v174
    %2678 = vmatprep.subr.mxu0 0.0
    %2679 = vmatpush2.msra.mxu0 %v173
    %2680 = vmatprep.subr.mxu0 0.0
    %2681 = vmatpush2.msra.mxu0 %v172
    %2682 = vmatprep.subr.mxu0 0.0
    %2683 = vmatpush2.msra.mxu0 %v171
    %2684 = vmatprep.mubr.f32.mxu0 %v2225
    %2685 = vmatmul.mubr.f32.gmra.mxu0 %v2224
    %v2686 = vpop.f32.mrf.mxu0
    %v2687 = vadd.f32 %v2602, %v2686
    %v2688 = vpop.f32.mrf.mxu0
    %2689 = vmatprep.mubr.f32.mxu0 %v2238
    %2690 = vmatmul.mubr.f32.gmra.mxu0 %v2237
    %v2691 = vpop.f32.mrf.mxu0
    %v2692 = vadd.f32 %v2607, %v2691
    %v2693 = vpop.f32.mrf.mxu0
    %2694 = vmatprep.mubr.f32.mxu0 %v2251
    %2695 = vmatmul.mubr.f32.gmra.mxu0 %v2250
    %v2696 = vpop.f32.mrf.mxu0
    %v2697 = vadd.f32 %v2612, %v2696
    %v2698 = vpop.f32.mrf.mxu0
    %2699 = vmatprep.mubr.f32.mxu0 %v2264
    %2700 = vmatmul.mubr.f32.gmra.mxu0 %v2263
    %v2701 = vpop.f32.mrf.mxu0
    %v2702 = vadd.f32 %v2617, %v2701
    %v2703 = vpop.f32.mrf.mxu0
    %2704 = vdwg.mxu0
    %2705 = vmatprep.subr.mxu0 0.0
    %2706 = vmatpush1.msra.mxu0 %v202
    %2707 = vmatprep.subr.mxu0 0.0
    %2708 = vmatpush1.msra.mxu0 %v201
    %2709 = vmatprep.subr.mxu0 0.0
    %2710 = vmatpush1.msra.mxu0 %v200
    %2711 = vmatprep.subr.mxu0 0.0
    %2712 = vmatpush1.msra.mxu0 %v199
    %2713 = vmatprep.subr.mxu0 0.0
    %2714 = vmatpush1.msra.mxu0 %v198
    %2715 = vmatprep.subr.mxu0 0.0
    %2716 = vmatpush1.msra.mxu0 %v197
    %2717 = vmatprep.subr.mxu0 0.0
    %2718 = vmatpush1.msra.mxu0 %v196
    %2719 = vmatprep.subr.mxu0 0.0
    %2720 = vmatpush1.msra.mxu0 %v195
    %2721 = vmatprep.subr.mxu0 0.0
    %2722 = vmatpush1.msra.mxu0 %v194
    %2723 = vmatprep.subr.mxu0 0.0
    %2724 = vmatpush1.msra.mxu0 %v193
    %2725 = vmatprep.subr.mxu0 0.0
    %2726 = vmatpush1.msra.mxu0 %v192
    %2727 = vmatprep.subr.mxu0 0.0
    %2728 = vmatpush1.msra.mxu0 %v191
    %2729 = vmatprep.subr.mxu0 0.0
    %2730 = vmatpush1.msra.mxu0 %v190
    %2731 = vmatprep.subr.mxu0 0.0
    %2732 = vmatpush1.msra.mxu0 %v189
    %2733 = vmatprep.subr.mxu0 0.0
    %2734 = vmatpush1.msra.mxu0 %v188
    %2735 = vmatprep.subr.mxu0 0.0
    %2736 = vmatpush1.msra.mxu0 %v187
    %2737 = vmatprep.subr.mxu0 0.0
    %2738 = vmatpush2.msra.mxu0 %v218
    %2739 = vmatprep.subr.mxu0 0.0
    %2740 = vmatpush2.msra.mxu0 %v217
    %2741 = vmatprep.subr.mxu0 0.0
    %2742 = vmatpush2.msra.mxu0 %v216
    %2743 = vmatprep.subr.mxu0 0.0
    %2744 = vmatpush2.msra.mxu0 %v215
    %2745 = vmatprep.subr.mxu0 0.0
    %2746 = vmatpush2.msra.mxu0 %v214
    %2747 = vmatprep.subr.mxu0 0.0
    %2748 = vmatpush2.msra.mxu0 %v213
    %2749 = vmatprep.subr.mxu0 0.0
    %2750 = vmatpush2.msra.mxu0 %v212
    %2751 = vmatprep.subr.mxu0 0.0
    %2752 = vmatpush2.msra.mxu0 %v211
    %2753 = vmatprep.subr.mxu0 0.0
    %2754 = vmatpush2.msra.mxu0 %v210
    %2755 = vmatprep.subr.mxu0 0.0
    %2756 = vmatpush2.msra.mxu0 %v209
    %2757 = vmatprep.subr.mxu0 0.0
    %2758 = vmatpush2.msra.mxu0 %v208
    %2759 = vmatprep.subr.mxu0 0.0
    %2760 = vmatpush2.msra.mxu0 %v207
    %2761 = vmatprep.subr.mxu0 0.0
    %2762 = vmatpush2.msra.mxu0 %v206
    %2763 = vmatprep.subr.mxu0 0.0
    %2764 = vmatpush2.msra.mxu0 %v205
    %2765 = vmatprep.subr.mxu0 0.0
    %2766 = vmatpush2.msra.mxu0 %v204
    %2767 = vmatprep.subr.mxu0 0.0
    %2768 = vmatpush2.msra.mxu0 %v203
    %2769 = vmatprep.mubr.f32.mxu0 %v2227
    %2770 = vmatmul.mubr.f32.gmra.mxu0 %v2226
    %v2771 = vpop.f32.mrf.mxu0
    %v2772 = vadd.f32 %v2687, %v2771
    %v2773 = vpop.f32.mrf.mxu0
    %2774 = vmatprep.mubr.f32.mxu0 %v2240
    %2775 = vmatmul.mubr.f32.gmra.mxu0 %v2239
    %v2776 = vpop.f32.mrf.mxu0
    %v2777 = vadd.f32 %v2692, %v2776
    %v2778 = vpop.f32.mrf.mxu0
    %2779 = vmatprep.mubr.f32.mxu0 %v2253
    %2780 = vmatmul.mubr.f32.gmra.mxu0 %v2252
    %v2781 = vpop.f32.mrf.mxu0
    %v2782 = vadd.f32 %v2697, %v2781
    %v2783 = vpop.f32.mrf.mxu0
    %2784 = vmatprep.mubr.f32.mxu0 %v2266
    %2785 = vmatmul.mubr.f32.gmra.mxu0 %v2265
    %v2786 = vpop.f32.mrf.mxu0
    %v2787 = vadd.f32 %v2702, %v2786
    %v2788 = vpop.f32.mrf.mxu0
    %2789 = vdwg.mxu0
    %2790 = vmatprep.subr.mxu0 0.0
    %2791 = vmatpush1.msra.mxu0 0.0
    %2792 = vmatprep.subr.mxu0 0.0
    %2793 = vmatpush1.msra.mxu0 0.0
    %2794 = vmatprep.subr.mxu0 0.0
    %2795 = vmatpush1.msra.mxu0 0.0
    %2796 = vmatprep.subr.mxu0 0.0
    %2797 = vmatpush1.msra.mxu0 0.0
    %2798 = vmatprep.subr.mxu0 0.0
    %2799 = vmatpush1.msra.mxu0 0.0
    %2800 = vmatprep.subr.mxu0 0.0
    %2801 = vmatpush1.msra.mxu0 0.0
    %2802 = vmatprep.subr.mxu0 0.0
    %2803 = vmatpush1.msra.mxu0 0.0
    %2804 = vmatprep.subr.mxu0 0.0
    %2805 = vmatpush1.msra.mxu0 0.0
    %2806 = vmatprep.subr.mxu0 0.0
    %2807 = vmatpush1.msra.mxu0 %v226
    %2808 = vmatprep.subr.mxu0 0.0
    %2809 = vmatpush1.msra.mxu0 %v225
    %2810 = vmatprep.subr.mxu0 0.0
    %2811 = vmatpush1.msra.mxu0 %v224
    %2812 = vmatprep.subr.mxu0 0.0
    %2813 = vmatpush1.msra.mxu0 %v223
    %2814 = vmatprep.subr.mxu0 0.0
    %2815 = vmatpush1.msra.mxu0 %v222
    %2816 = vmatprep.subr.mxu0 0.0
    %2817 = vmatpush1.msra.mxu0 %v221
    %2818 = vmatprep.subr.mxu0 0.0
    %2819 = vmatpush1.msra.mxu0 %v220
    %2820 = vmatprep.subr.mxu0 0.0
    %2821 = vmatpush1.msra.mxu0 %v219
    %2822 = vmatprep.subr.mxu0 0.0
    %2823 = vmatpush2.msra.mxu0 0.0
    %2824 = vmatprep.subr.mxu0 0.0
    %2825 = vmatpush2.msra.mxu0 0.0
    %2826 = vmatprep.subr.mxu0 0.0
    %2827 = vmatpush2.msra.mxu0 0.0
    %2828 = vmatprep.subr.mxu0 0.0
    %2829 = vmatpush2.msra.mxu0 0.0
    %2830 = vmatprep.subr.mxu0 0.0
    %2831 = vmatpush2.msra.mxu0 0.0
    %2832 = vmatprep.subr.mxu0 0.0
    %2833 = vmatpush2.msra.mxu0 0.0
    %2834 = vmatprep.subr.mxu0 0.0
    %2835 = vmatpush2.msra.mxu0 0.0
    %2836 = vmatprep.subr.mxu0 0.0
    %2837 = vmatpush2.msra.mxu0 0.0
    %2838 = vmatprep.subr.mxu0 0.0
    %2839 = vmatpush2.msra.mxu0 0.0
    %2840 = vmatprep.subr.mxu0 0.0
    %2841 = vmatpush2.msra.mxu0 0.0
    %2842 = vmatprep.subr.mxu0 0.0
    %2843 = vmatpush2.msra.mxu0 0.0
    %2844 = vmatprep.subr.mxu0 0.0
    %2845 = vmatpush2.msra.mxu0 0.0
    %2846 = vmatprep.subr.mxu0 0.0
    %2847 = vmatpush2.msra.mxu0 0.0
    %2848 = vmatprep.subr.mxu0 0.0
    %2849 = vmatpush2.msra.mxu0 0.0
    %2850 = vmatprep.subr.mxu0 0.0
    %2851 = vmatpush2.msra.mxu0 0.0
    %2852 = vmatprep.subr.mxu0 0.0
    %2853 = vmatpush2.msra.mxu0 0.0
    %2854 = vmatprep.mubr.f32.mxu0 0.0
    %2855 = vmatmul.mubr.f32.gmra.mxu0 %v2269
    %v2856 = vpop.f32.mrf.mxu0
    %v2857 = vadd.f32 %v2772, %v2856
    %v2858 = vpop.f32.mrf.mxu0
    %2859 = vmatprep.mubr.f32.mxu0 0.0
    %2860 = vmatmul.mubr.f32.gmra.mxu0 %v2272
    %v2861 = vpop.f32.mrf.mxu0
    %v2862 = vadd.f32 %v2777, %v2861
    %v2863 = vpop.f32.mrf.mxu0
    %2864 = vmatprep.mubr.f32.mxu0 0.0
    %2865 = vmatmul.mubr.f32.gmra.mxu0 %v2275
    %v2866 = vpop.f32.mrf.mxu0
    %v2867 = vadd.f32 %v2782, %v2866
    %v2868 = vpop.f32.mrf.mxu0
    %2869 = vmatprep.mubr.f32.mxu0 0.0
    %2870 = vmatmul.mubr.f32.gmra.mxu0 %v2278
    %v2871 = vpop.f32.mrf.mxu0
    %v2872 = vadd.f32 %v2787, %v2871
    %v2873 = vpop.f32.mrf.mxu0
    %2874 = vdwg.mxu0
    %v2875 = vmax.f32 %v2211, %v2857
    %v2876 = vmax.f32 %v2212, %v2862
    %v2877 = vmax.f32 %v2213, %v2867
    %v2878 = vmax.f32 %v2214, %v2872
    %v2879 = vld [vmem:[%s2] sm:$0x1]
    %v2881 = vlaneseq
    %v2882 = vshrl.u32 %v2881, 7
    %v2883 = vsub.s32 0, %v2882
    %v2884 = vrot.slane %v2879, %v2883
    %v2886 = vadd.f32 %v2875, %v2884
    %v2887 = vadd.f32 %v2876, %v2884
    %v2888 = vadd.f32 %v2877, %v2884
    %v2889 = vadd.f32 %v2878, %v2884
    %v2890 = vmax.f32 %v2886, 0.0
    %v2891 = vmax.f32 %v2887, 0.0
    %v2892 = vmax.f32 %v2888, 0.0
    %v2893 = vmax.f32 %v2889, 0.0
    %v2895 = vrot.slane %v2890, 2
    %2896 = vrot.lane.b32.xlu0 %v2895, 32
    %v2897 = vpop.permute.xlu0 %2896
    %v2899 = vrot.slane %v2890, 4
    %2900 = vrot.lane.b32.xlu0 %v2899, 64
    %v2901 = vpop.permute.xlu0 %2900
    %v2903 = vrot.slane %v2890, 6
    %2904 = vrot.lane.b32.xlu0 %v2903, 96
    %v2905 = vpop.permute.xlu0 %2904
    %v2908 = vrot.slane %v2891, 2
    %2909 = vrot.lane.b32.xlu0 %v2908, 32
    %v2910 = vpop.permute.xlu0 %2909
    %v2912 = vrot.slane %v2891, 4
    %2913 = vrot.lane.b32.xlu0 %v2912, 64
    %v2914 = vpop.permute.xlu0 %2913
    %v2916 = vrot.slane %v2891, 6
    %2917 = vrot.lane.b32.xlu0 %v2916, 96
    %v2918 = vpop.permute.xlu0 %2917
    %v2921 = vrot.slane %v2892, 2
    %2922 = vrot.lane.b32.xlu0 %v2921, 32
    %v2923 = vpop.permute.xlu0 %2922
    %v2925 = vrot.slane %v2892, 4
    %2926 = vrot.lane.b32.xlu0 %v2925, 64
    %v2927 = vpop.permute.xlu0 %2926
    %v2929 = vrot.slane %v2892, 6
    %2930 = vrot.lane.b32.xlu0 %v2929, 96
    %v2931 = vpop.permute.xlu0 %2930
    %v2934 = vrot.slane %v2893, 2
    %2935 = vrot.lane.b32.xlu0 %v2934, 32
    %v2936 = vpop.permute.xlu0 %2935
    %v2938 = vrot.slane %v2893, 4
    %2939 = vrot.lane.b32.xlu0 %v2938, 64
    %v2940 = vpop.permute.xlu0 %2939
    %v2942 = vrot.slane %v2893, 6
    %2943 = vrot.lane.b32.xlu0 %v2942, 96
    %v2944 = vpop.permute.xlu0 %2943
    %vm2946 = vcmask 261120
    %v2947 = vsel %vm2946, %v2890, %v2897
    %v2948 = vsel %vm279, %v2947, %v2901
    %vm2949 = vcmask 785408
    %v2950 = vsel %vm2949, %v2948, %v2905
    %v2951 = vsel %vm2946, %v2891, %v2910
    %v2952 = vsel %vm279, %v2951, %v2914
    %v2953 = vsel %vm2949, %v2952, %v2918
    %v2954 = vsel %vm2946, %v2892, %v2923
    %v2955 = vsel %vm279, %v2954, %v2927
    %v2956 = vsel %vm2949, %v2955, %v2931
    %v2957 = vsel %vm2946, %v2893, %v2936
    %v2958 = vsel %vm279, %v2957, %v2940
    %v2959 = vsel %vm2949, %v2958, %v2944
    %v2960 = vld [vmem:[%s3] sm:$0xff]
    %v2961 = vld [vmem:[%s3 + $0x8] sm:$0xff]
    %v2962 = vld [vmem:[%s3 + $0x10] sm:$0xff]
    %v2963 = vld [vmem:[%s3 + $0x18] sm:$0xff]
    %v2964 = vld [vmem:[%s3 + $0x20] sm:$0xff]
    %v2965 = vld [vmem:[%s3 + $0x28] sm:$0xff]
    %v2966 = vld [vmem:[%s3 + $0x30] sm:$0xff]
    %v2967 = vld [vmem:[%s3 + $0x38] sm:$0xff]
    %v2968 = vld [vmem:[%s3 + $0x40] sm:$0xff]
    %v2969 = vld [vmem:[%s3 + $0x48] sm:$0xff]
    %v2970 = vld [vmem:[%s3 + $0x50] sm:$0xff]
    %v2971 = vld [vmem:[%s3 + $0x58] sm:$0xff]
    %v2972 = vld [vmem:[%s3 + $0x60] sm:$0xff]
    %v2973 = vld [vmem:[%s3 + $0x68] sm:$0xff]
    %v2974 = vld [vmem:[%s3 + $0x70] sm:$0xff]
    %v2975 = vld [vmem:[%s3 + $0x78] sm:$0xff]
    %v2976 = vld [vmem:[%s3 + $0x80] sm:$0xff]
    %v2977 = vld [vmem:[%s3 + $0x88] sm:$0xff]
    %v2978 = vld [vmem:[%s3 + $0x90] sm:$0xff]
    %v2979 = vld [vmem:[%s3 + $0x98] sm:$0xff]
    %v2980 = vld [vmem:[%s3 + $0xa0] sm:$0xff]
    %v2981 = vld [vmem:[%s3 + $0xa8] sm:$0xff]
    %v2982 = vld [vmem:[%s3 + $0xb0] sm:$0xff]
    %v2983 = vld [vmem:[%s3 + $0xb8] sm:$0xff]
    %v2984 = vld [vmem:[%s3 + $0xc0] sm:$0xff]
    %v2985 = vld [vmem:[%s3 + $0xc8] sm:$0xff]
    %v2986 = vld [vmem:[%s3 + $0xd0] sm:$0xff]
    %v2987 = vld [vmem:[%s3 + $0xd8] sm:$0xff]
    %v2988 = vld [vmem:[%s3 + $0xe0] sm:$0xff]
    %v2989 = vld [vmem:[%s3 + $0xe8] sm:$0xff]
    %v2990 = vld [vmem:[%s3 + $0xf0] sm:$0xff]
    %v2991 = vld [vmem:[%s3 + $0xf8] sm:$0xff]
    %v2992 = vld [vmem:[%s3 + $0x100] sm:$0xff]
    %v2993 = vld [vmem:[%s3 + $0x108] sm:$0xff]
    %v2994 = vld [vmem:[%s3 + $0x110] sm:$0xff]
    %v2995 = vld [vmem:[%s3 + $0x118] sm:$0xff]
    %v2996 = vld [vmem:[%s3 + $0x120] sm:$0xff]
    %v2997 = vld [vmem:[%s3 + $0x128] sm:$0xff]
    %v2998 = vld [vmem:[%s3 + $0x130] sm:$0xff]
    %v2999 = vld [vmem:[%s3 + $0x138] sm:$0xff]
    %v3000 = vld [vmem:[%s3 + $0x140] sm:$0xff]
    %v3001 = vld [vmem:[%s3 + $0x148] sm:$0xff]
    %v3002 = vld [vmem:[%s3 + $0x150] sm:$0xff]
    %v3003 = vld [vmem:[%s3 + $0x158] sm:$0xff]
    %v3004 = vld [vmem:[%s3 + $0x160] sm:$0xff]
    %v3005 = vld [vmem:[%s3 + $0x168] sm:$0xff]
    %v3006 = vld [vmem:[%s3 + $0x170] sm:$0xff]
    %v3007 = vld [vmem:[%s3 + $0x178] sm:$0xff]
    %v3008 = vld [vmem:[%s3 + $0x180] sm:$0xff]
    %v3009 = vld [vmem:[%s3 + $0x188] sm:$0xff]
    %v3010 = vld [vmem:[%s3 + $0x190] sm:$0xff]
    %v3011 = vld [vmem:[%s3 + $0x198] sm:$0xff]
    %v3012 = vld [vmem:[%s3 + $0x1a0] sm:$0xff]
    %v3013 = vld [vmem:[%s3 + $0x1a8] sm:$0xff]
    %v3014 = vld [vmem:[%s3 + $0x1b0] sm:$0xff]
    %v3015 = vld [vmem:[%s3 + $0x1b8] sm:$0xff]
    %v3016 = vld [vmem:[%s3 + $0x1c0] sm:$0xff]
    %v3017 = vld [vmem:[%s3 + $0x1c8] sm:$0xff]
    %v3018 = vld [vmem:[%s3 + $0x1d0] sm:$0xff]
    %v3019 = vld [vmem:[%s3 + $0x1d8] sm:$0xff]
    %v3020 = vld [vmem:[%s3 + $0x1e0] sm:$0xff]
    %v3021 = vld [vmem:[%s3 + $0x1e8] sm:$0xff]
    %v3022 = vld [vmem:[%s3 + $0x1f0] sm:$0xff]
    %v3023 = vld [vmem:[%s3 + $0x1f8] sm:$0xff]
    %3024 = vmatprep.subr.mxu0 0.0
    %3025 = vmatpush1.msra.mxu0 %v2975
    %3026 = vmatprep.subr.mxu0 0.0
    %3027 = vmatpush1.msra.mxu0 %v2974
    %3028 = vmatprep.subr.mxu0 0.0
    %3029 = vmatpush1.msra.mxu0 %v2973
    %3030 = vmatprep.subr.mxu0 0.0
    %3031 = vmatpush1.msra.mxu0 %v2972
    %3032 = vmatprep.subr.mxu0 0.0
    %3033 = vmatpush1.msra.mxu0 %v2971
    %3034 = vmatprep.subr.mxu0 0.0
    %3035 = vmatpush1.msra.mxu0 %v2970
    %3036 = vmatprep.subr.mxu0 0.0
    %3037 = vmatpush1.msra.mxu0 %v2969
    %3038 = vmatprep.subr.mxu0 0.0
    %3039 = vmatpush1.msra.mxu0 %v2968
    %3040 = vmatprep.subr.mxu0 0.0
    %3041 = vmatpush1.msra.mxu0 %v2967
    %3042 = vmatprep.subr.mxu0 0.0
    %3043 = vmatpush1.msra.mxu0 %v2966
    %3044 = vmatprep.subr.mxu0 0.0
    %3045 = vmatpush1.msra.mxu0 %v2965
    %3046 = vmatprep.subr.mxu0 0.0
    %3047 = vmatpush1.msra.mxu0 %v2964
    %3048 = vmatprep.subr.mxu0 0.0
    %3049 = vmatpush1.msra.mxu0 %v2963
    %3050 = vmatprep.subr.mxu0 0.0
    %3051 = vmatpush1.msra.mxu0 %v2962
    %3052 = vmatprep.subr.mxu0 0.0
    %3053 = vmatpush1.msra.mxu0 %v2961
    %3054 = vmatprep.subr.mxu0 0.0
    %3055 = vmatpush1.msra.mxu0 %v2960
    %3056 = vmatprep.subr.mxu0 0.0
    %3057 = vmatpush2.msra.mxu0 %v2991
    %3058 = vmatprep.subr.mxu0 0.0
    %3059 = vmatpush2.msra.mxu0 %v2990
    %3060 = vmatprep.subr.mxu0 0.0
    %3061 = vmatpush2.msra.mxu0 %v2989
    %3062 = vmatprep.subr.mxu0 0.0
    %3063 = vmatpush2.msra.mxu0 %v2988
    %3064 = vmatprep.subr.mxu0 0.0
    %3065 = vmatpush2.msra.mxu0 %v2987
    %3066 = vmatprep.subr.mxu0 0.0
    %3067 = vmatpush2.msra.mxu0 %v2986
    %3068 = vmatprep.subr.mxu0 0.0
    %3069 = vmatpush2.msra.mxu0 %v2985
    %3070 = vmatprep.subr.mxu0 0.0
    %3071 = vmatpush2.msra.mxu0 %v2984
    %3072 = vmatprep.subr.mxu0 0.0
    %3073 = vmatpush2.msra.mxu0 %v2983
    %3074 = vmatprep.subr.mxu0 0.0
    %3075 = vmatpush2.msra.mxu0 %v2982
    %3076 = vmatprep.subr.mxu0 0.0
    %3077 = vmatpush2.msra.mxu0 %v2981
    %3078 = vmatprep.subr.mxu0 0.0
    %3079 = vmatpush2.msra.mxu0 %v2980
    %3080 = vmatprep.subr.mxu0 0.0
    %3081 = vmatpush2.msra.mxu0 %v2979
    %3082 = vmatprep.subr.mxu0 0.0
    %3083 = vmatpush2.msra.mxu0 %v2978
    %3084 = vmatprep.subr.mxu0 0.0
    %3085 = vmatpush2.msra.mxu0 %v2977
    %3086 = vmatprep.subr.mxu0 0.0
    %3087 = vmatpush2.msra.mxu0 %v2976
    %3088 = vmatprep.mubr.f32.mxu0 %v2953
    %3089 = vmatmul.mubr.f32.gmra.mxu0 %v2950
    %v3090 = vpop.f32.mrf.mxu0
    %v3091 = vadd.f32 0.0, %v3090
    %v3092 = vpop.f32.mrf.mxu0
    %3093 = vdwg.mxu0
    %3094 = vmatprep.subr.mxu0 0.0
    %3095 = vmatpush1.msra.mxu0 %v3007
    %3096 = vmatprep.subr.mxu0 0.0
    %3097 = vmatpush1.msra.mxu0 %v3006
    %3098 = vmatprep.subr.mxu0 0.0
    %3099 = vmatpush1.msra.mxu0 %v3005
    %3100 = vmatprep.subr.mxu0 0.0
    %3101 = vmatpush1.msra.mxu0 %v3004
    %3102 = vmatprep.subr.mxu0 0.0
    %3103 = vmatpush1.msra.mxu0 %v3003
    %3104 = vmatprep.subr.mxu0 0.0
    %3105 = vmatpush1.msra.mxu0 %v3002
    %3106 = vmatprep.subr.mxu0 0.0
    %3107 = vmatpush1.msra.mxu0 %v3001
    %3108 = vmatprep.subr.mxu0 0.0
    %3109 = vmatpush1.msra.mxu0 %v3000
    %3110 = vmatprep.subr.mxu0 0.0
    %3111 = vmatpush1.msra.mxu0 %v2999
    %3112 = vmatprep.subr.mxu0 0.0
    %3113 = vmatpush1.msra.mxu0 %v2998
    %3114 = vmatprep.subr.mxu0 0.0
    %3115 = vmatpush1.msra.mxu0 %v2997
    %3116 = vmatprep.subr.mxu0 0.0
    %3117 = vmatpush1.msra.mxu0 %v2996
    %3118 = vmatprep.subr.mxu0 0.0
    %3119 = vmatpush1.msra.mxu0 %v2995
    %3120 = vmatprep.subr.mxu0 0.0
    %3121 = vmatpush1.msra.mxu0 %v2994
    %3122 = vmatprep.subr.mxu0 0.0
    %3123 = vmatpush1.msra.mxu0 %v2993
    %3124 = vmatprep.subr.mxu0 0.0
    %3125 = vmatpush1.msra.mxu0 %v2992
    %3126 = vmatprep.subr.mxu0 0.0
    %3127 = vmatpush2.msra.mxu0 %v3023
    %3128 = vmatprep.subr.mxu0 0.0
    %3129 = vmatpush2.msra.mxu0 %v3022
    %3130 = vmatprep.subr.mxu0 0.0
    %3131 = vmatpush2.msra.mxu0 %v3021
    %3132 = vmatprep.subr.mxu0 0.0
    %3133 = vmatpush2.msra.mxu0 %v3020
    %3134 = vmatprep.subr.mxu0 0.0
    %3135 = vmatpush2.msra.mxu0 %v3019
    %3136 = vmatprep.subr.mxu0 0.0
    %3137 = vmatpush2.msra.mxu0 %v3018
    %3138 = vmatprep.subr.mxu0 0.0
    %3139 = vmatpush2.msra.mxu0 %v3017
    %3140 = vmatprep.subr.mxu0 0.0
    %3141 = vmatpush2.msra.mxu0 %v3016
    %3142 = vmatprep.subr.mxu0 0.0
    %3143 = vmatpush2.msra.mxu0 %v3015
    %3144 = vmatprep.subr.mxu0 0.0
    %3145 = vmatpush2.msra.mxu0 %v3014
    %3146 = vmatprep.subr.mxu0 0.0
    %3147 = vmatpush2.msra.mxu0 %v3013
    %3148 = vmatprep.subr.mxu0 0.0
    %3149 = vmatpush2.msra.mxu0 %v3012
    %3150 = vmatprep.subr.mxu0 0.0
    %3151 = vmatpush2.msra.mxu0 %v3011
    %3152 = vmatprep.subr.mxu0 0.0
    %3153 = vmatpush2.msra.mxu0 %v3010
    %3154 = vmatprep.subr.mxu0 0.0
    %3155 = vmatpush2.msra.mxu0 %v3009
    %3156 = vmatprep.subr.mxu0 0.0
    %3157 = vmatpush2.msra.mxu0 %v3008
    %3158 = vmatprep.mubr.f32.mxu0 %v2959
    %3159 = vmatmul.mubr.f32.gmra.mxu0 %v2956
    %v3160 = vpop.f32.mrf.mxu0
    %v3161 = vadd.f32 %v3091, %v3160
    %v3162 = vpop.f32.mrf.mxu0
    %3163 = vdwg.mxu0
    %s3164 = scalar_lea.vmem %s3, 512
    %v3165 = vld [vmem:[%s3164] sm:$0xff]
    %v3166 = vld [vmem:[%s3164 + $0x8] sm:$0xff]
    %v3167 = vld [vmem:[%s3164 + $0x10] sm:$0xff]
    %v3168 = vld [vmem:[%s3164 + $0x18] sm:$0xff]
    %v3169 = vld [vmem:[%s3164 + $0x20] sm:$0xff]
    %v3170 = vld [vmem:[%s3164 + $0x28] sm:$0xff]
    %v3171 = vld [vmem:[%s3164 + $0x30] sm:$0xff]
    %v3172 = vld [vmem:[%s3164 + $0x38] sm:$0xff]
    %v3173 = vld [vmem:[%s3164 + $0x40] sm:$0xff]
    %v3174 = vld [vmem:[%s3164 + $0x48] sm:$0xff]
    %v3175 = vld [vmem:[%s3164 + $0x50] sm:$0xff]
    %v3176 = vld [vmem:[%s3164 + $0x58] sm:$0xff]
    %v3177 = vld [vmem:[%s3164 + $0x60] sm:$0xff]
    %v3178 = vld [vmem:[%s3164 + $0x68] sm:$0xff]
    %v3179 = vld [vmem:[%s3164 + $0x70] sm:$0xff]
    %v3180 = vld [vmem:[%s3164 + $0x78] sm:$0xff]
    %v3181 = vld [vmem:[%s3164 + $0x80] sm:$0xff]
    %v3182 = vld [vmem:[%s3164 + $0x88] sm:$0xff]
    %v3183 = vld [vmem:[%s3164 + $0x90] sm:$0xff]
    %v3184 = vld [vmem:[%s3164 + $0x98] sm:$0xff]
    %v3185 = vld [vmem:[%s3164 + $0xa0] sm:$0xff]
    %v3186 = vld [vmem:[%s3164 + $0xa8] sm:$0xff]
    %v3187 = vld [vmem:[%s3164 + $0xb0] sm:$0xff]
    %v3188 = vld [vmem:[%s3164 + $0xb8] sm:$0xff]
    %v3189 = vld [vmem:[%s3164 + $0xc0] sm:$0xff]
    %v3190 = vld [vmem:[%s3164 + $0xc8] sm:$0xff]
    %v3191 = vld [vmem:[%s3164 + $0xd0] sm:$0xff]
    %v3192 = vld [vmem:[%s3164 + $0xd8] sm:$0xff]
    %v3193 = vld [vmem:[%s3164 + $0xe0] sm:$0xff]
    %v3194 = vld [vmem:[%s3164 + $0xe8] sm:$0xff]
    %v3195 = vld [vmem:[%s3164 + $0xf0] sm:$0xff]
    %v3196 = vld [vmem:[%s3164 + $0xf8] sm:$0xff]
    %v3197 = vld [vmem:[%s3164 + $0x100] sm:$0xff]
    %v3198 = vld [vmem:[%s3164 + $0x108] sm:$0xff]
    %v3199 = vld [vmem:[%s3164 + $0x110] sm:$0xff]
    %v3200 = vld [vmem:[%s3164 + $0x118] sm:$0xff]
    %v3201 = vld [vmem:[%s3164 + $0x120] sm:$0xff]
    %v3202 = vld [vmem:[%s3164 + $0x128] sm:$0xff]
    %v3203 = vld [vmem:[%s3164 + $0x130] sm:$0xff]
    %v3204 = vld [vmem:[%s3164 + $0x138] sm:$0xff]
    %v3205 = vld [vmem:[%s3164 + $0x140] sm:$0xff]
    %v3206 = vld [vmem:[%s3164 + $0x148] sm:$0xff]
    %v3207 = vld [vmem:[%s3164 + $0x150] sm:$0xff]
    %v3208 = vld [vmem:[%s3164 + $0x158] sm:$0xff]
    %v3209 = vld [vmem:[%s3164 + $0x160] sm:$0xff]
    %v3210 = vld [vmem:[%s3164 + $0x168] sm:$0xff]
    %v3211 = vld [vmem:[%s3164 + $0x170] sm:$0xff]
    %v3212 = vld [vmem:[%s3164 + $0x178] sm:$0xff]
    %v3213 = vld [vmem:[%s3164 + $0x180] sm:$0xff]
    %v3214 = vld [vmem:[%s3164 + $0x188] sm:$0xff]
    %v3215 = vld [vmem:[%s3164 + $0x190] sm:$0xff]
    %v3216 = vld [vmem:[%s3164 + $0x198] sm:$0xff]
    %v3217 = vld [vmem:[%s3164 + $0x1a0] sm:$0xff]
    %v3218 = vld [vmem:[%s3164 + $0x1a8] sm:$0xff]
    %v3219 = vld [vmem:[%s3164 + $0x1b0] sm:$0xff]
    %v3220 = vld [vmem:[%s3164 + $0x1b8] sm:$0xff]
    %v3221 = vld [vmem:[%s3164 + $0x1c0] sm:$0xff]
    %v3222 = vld [vmem:[%s3164 + $0x1c8] sm:$0xff]
    %v3223 = vld [vmem:[%s3164 + $0x1d0] sm:$0xff]
    %v3224 = vld [vmem:[%s3164 + $0x1d8] sm:$0xff]
    %v3225 = vld [vmem:[%s3164 + $0x1e0] sm:$0xff]
    %v3226 = vld [vmem:[%s3164 + $0x1e8] sm:$0xff]
    %v3227 = vld [vmem:[%s3164 + $0x1f0] sm:$0xff]
    %v3228 = vld [vmem:[%s3164 + $0x1f8] sm:$0xff]
    %3229 = vmatprep.subr.mxu0 0.0
    %3230 = vmatpush1.msra.mxu0 %v3180
    %3231 = vmatprep.subr.mxu0 0.0
    %3232 = vmatpush1.msra.mxu0 %v3179
    %3233 = vmatprep.subr.mxu0 0.0
    %3234 = vmatpush1.msra.mxu0 %v3178
    %3235 = vmatprep.subr.mxu0 0.0
    %3236 = vmatpush1.msra.mxu0 %v3177
    %3237 = vmatprep.subr.mxu0 0.0
    %3238 = vmatpush1.msra.mxu0 %v3176
    %3239 = vmatprep.subr.mxu0 0.0
    %3240 = vmatpush1.msra.mxu0 %v3175
    %3241 = vmatprep.subr.mxu0 0.0
    %3242 = vmatpush1.msra.mxu0 %v3174
    %3243 = vmatprep.subr.mxu0 0.0
    %3244 = vmatpush1.msra.mxu0 %v3173
    %3245 = vmatprep.subr.mxu0 0.0
    %3246 = vmatpush1.msra.mxu0 %v3172
    %3247 = vmatprep.subr.mxu0 0.0
    %3248 = vmatpush1.msra.mxu0 %v3171
    %3249 = vmatprep.subr.mxu0 0.0
    %3250 = vmatpush1.msra.mxu0 %v3170
    %3251 = vmatprep.subr.mxu0 0.0
    %3252 = vmatpush1.msra.mxu0 %v3169
    %3253 = vmatprep.subr.mxu0 0.0
    %3254 = vmatpush1.msra.mxu0 %v3168
    %3255 = vmatprep.subr.mxu0 0.0
    %3256 = vmatpush1.msra.mxu0 %v3167
    %3257 = vmatprep.subr.mxu0 0.0
    %3258 = vmatpush1.msra.mxu0 %v3166
    %3259 = vmatprep.subr.mxu0 0.0
    %3260 = vmatpush1.msra.mxu0 %v3165
    %3261 = vmatprep.subr.mxu0 0.0
    %3262 = vmatpush2.msra.mxu0 %v3196
    %3263 = vmatprep.subr.mxu0 0.0
    %3264 = vmatpush2.msra.mxu0 %v3195
    %3265 = vmatprep.subr.mxu0 0.0
    %3266 = vmatpush2.msra.mxu0 %v3194
    %3267 = vmatprep.subr.mxu0 0.0
    %3268 = vmatpush2.msra.mxu0 %v3193
    %3269 = vmatprep.subr.mxu0 0.0
    %3270 = vmatpush2.msra.mxu0 %v3192
    %3271 = vmatprep.subr.mxu0 0.0
    %3272 = vmatpush2.msra.mxu0 %v3191
    %3273 = vmatprep.subr.mxu0 0.0
    %3274 = vmatpush2.msra.mxu0 %v3190
    %3275 = vmatprep.subr.mxu0 0.0
    %3276 = vmatpush2.msra.mxu0 %v3189
    %3277 = vmatprep.subr.mxu0 0.0
    %3278 = vmatpush2.msra.mxu0 %v3188
    %3279 = vmatprep.subr.mxu0 0.0
    %3280 = vmatpush2.msra.mxu0 %v3187
    %3281 = vmatprep.subr.mxu0 0.0
    %3282 = vmatpush2.msra.mxu0 %v3186
    %3283 = vmatprep.subr.mxu0 0.0
    %3284 = vmatpush2.msra.mxu0 %v3185
    %3285 = vmatprep.subr.mxu0 0.0
    %3286 = vmatpush2.msra.mxu0 %v3184
    %3287 = vmatprep.subr.mxu0 0.0
    %3288 = vmatpush2.msra.mxu0 %v3183
    %3289 = vmatprep.subr.mxu0 0.0
    %3290 = vmatpush2.msra.mxu0 %v3182
    %3291 = vmatprep.subr.mxu0 0.0
    %3292 = vmatpush2.msra.mxu0 %v3181
    %3293 = vmatprep.mubr.f32.mxu0 %v2953
    %3294 = vmatmul.mubr.f32.gmra.mxu0 %v2950
    %v3295 = vpop.f32.mrf.mxu0
    %v3296 = vadd.f32 0.0, %v3295
    %v3297 = vpop.f32.mrf.mxu0
    %3298 = vdwg.mxu0
    %3299 = vmatprep.subr.mxu0 0.0
    %3300 = vmatpush1.msra.mxu0 %v3212
    %3301 = vmatprep.subr.mxu0 0.0
    %3302 = vmatpush1.msra.mxu0 %v3211
    %3303 = vmatprep.subr.mxu0 0.0
    %3304 = vmatpush1.msra.mxu0 %v3210
    %3305 = vmatprep.subr.mxu0 0.0
    %3306 = vmatpush1.msra.mxu0 %v3209
    %3307 = vmatprep.subr.mxu0 0.0
    %3308 = vmatpush1.msra.mxu0 %v3208
    %3309 = vmatprep.subr.mxu0 0.0
    %3310 = vmatpush1.msra.mxu0 %v3207
    %3311 = vmatprep.subr.mxu0 0.0
    %3312 = vmatpush1.msra.mxu0 %v3206
    %3313 = vmatprep.subr.mxu0 0.0
    %3314 = vmatpush1.msra.mxu0 %v3205
    %3315 = vmatprep.subr.mxu0 0.0
    %3316 = vmatpush1.msra.mxu0 %v3204
    %3317 = vmatprep.subr.mxu0 0.0
    %3318 = vmatpush1.msra.mxu0 %v3203
    %3319 = vmatprep.subr.mxu0 0.0
    %3320 = vmatpush1.msra.mxu0 %v3202
    %3321 = vmatprep.subr.mxu0 0.0
    %3322 = vmatpush1.msra.mxu0 %v3201
    %3323 = vmatprep.subr.mxu0 0.0
    %3324 = vmatpush1.msra.mxu0 %v3200
    %3325 = vmatprep.subr.mxu0 0.0
    %3326 = vmatpush1.msra.mxu0 %v3199
    %3327 = vmatprep.subr.mxu0 0.0
    %3328 = vmatpush1.msra.mxu0 %v3198
    %3329 = vmatprep.subr.mxu0 0.0
    %3330 = vmatpush1.msra.mxu0 %v3197
    %3331 = vmatprep.subr.mxu0 0.0
    %3332 = vmatpush2.msra.mxu0 %v3228
    %3333 = vmatprep.subr.mxu0 0.0
    %3334 = vmatpush2.msra.mxu0 %v3227
    %3335 = vmatprep.subr.mxu0 0.0
    %3336 = vmatpush2.msra.mxu0 %v3226
    %3337 = vmatprep.subr.mxu0 0.0
    %3338 = vmatpush2.msra.mxu0 %v3225
    %3339 = vmatprep.subr.mxu0 0.0
    %3340 = vmatpush2.msra.mxu0 %v3224
    %3341 = vmatprep.subr.mxu0 0.0
    %3342 = vmatpush2.msra.mxu0 %v3223
    %3343 = vmatprep.subr.mxu0 0.0
    %3344 = vmatpush2.msra.mxu0 %v3222
    %3345 = vmatprep.subr.mxu0 0.0
    %3346 = vmatpush2.msra.mxu0 %v3221
    %3347 = vmatprep.subr.mxu0 0.0
    %3348 = vmatpush2.msra.mxu0 %v3220
    %3349 = vmatprep.subr.mxu0 0.0
    %3350 = vmatpush2.msra.mxu0 %v3219
    %3351 = vmatprep.subr.mxu0 0.0
    %3352 = vmatpush2.msra.mxu0 %v3218
    %3353 = vmatprep.subr.mxu0 0.0
    %3354 = vmatpush2.msra.mxu0 %v3217
    %3355 = vmatprep.subr.mxu0 0.0
    %3356 = vmatpush2.msra.mxu0 %v3216
    %3357 = vmatprep.subr.mxu0 0.0
    %3358 = vmatpush2.msra.mxu0 %v3215
    %3359 = vmatprep.subr.mxu0 0.0
    %3360 = vmatpush2.msra.mxu0 %v3214
    %3361 = vmatprep.subr.mxu0 0.0
    %3362 = vmatpush2.msra.mxu0 %v3213
    %3363 = vmatprep.mubr.f32.mxu0 %v2959
    %3364 = vmatmul.mubr.f32.gmra.mxu0 %v2956
    %v3365 = vpop.f32.mrf.mxu0
    %v3366 = vadd.f32 %v3296, %v3365
    %v3367 = vpop.f32.mrf.mxu0
    %3368 = vdwg.mxu0
    %v3369 = vmax.f32 %v3161, %v3366
    %s3370 = scalar_lea.vmem %s3, 1024
    %v3371 = vld [vmem:[%s3370] sm:$0xff]
    %v3372 = vld [vmem:[%s3370 + $0x8] sm:$0xff]
    %v3373 = vld [vmem:[%s3370 + $0x10] sm:$0xff]
    %v3374 = vld [vmem:[%s3370 + $0x18] sm:$0xff]
    %v3375 = vld [vmem:[%s3370 + $0x20] sm:$0xff]
    %v3376 = vld [vmem:[%s3370 + $0x28] sm:$0xff]
    %v3377 = vld [vmem:[%s3370 + $0x30] sm:$0xff]
    %v3378 = vld [vmem:[%s3370 + $0x38] sm:$0xff]
    %v3379 = vld [vmem:[%s3370 + $0x40] sm:$0xff]
    %v3380 = vld [vmem:[%s3370 + $0x48] sm:$0xff]
    %v3381 = vld [vmem:[%s3370 + $0x50] sm:$0xff]
    %v3382 = vld [vmem:[%s3370 + $0x58] sm:$0xff]
    %v3383 = vld [vmem:[%s3370 + $0x60] sm:$0xff]
    %v3384 = vld [vmem:[%s3370 + $0x68] sm:$0xff]
    %v3385 = vld [vmem:[%s3370 + $0x70] sm:$0xff]
    %v3386 = vld [vmem:[%s3370 + $0x78] sm:$0xff]
    %v3387 = vld [vmem:[%s3370 + $0x80] sm:$0xff]
    %v3388 = vld [vmem:[%s3370 + $0x88] sm:$0xff]
    %v3389 = vld [vmem:[%s3370 + $0x90] sm:$0xff]
    %v3390 = vld [vmem:[%s3370 + $0x98] sm:$0xff]
    %v3391 = vld [vmem:[%s3370 + $0xa0] sm:$0xff]
    %v3392 = vld [vmem:[%s3370 + $0xa8] sm:$0xff]
    %v3393 = vld [vmem:[%s3370 + $0xb0] sm:$0xff]
    %v3394 = vld [vmem:[%s3370 + $0xb8] sm:$0xff]
    %v3395 = vld [vmem:[%s3370 + $0xc0] sm:$0xff]
    %v3396 = vld [vmem:[%s3370 + $0xc8] sm:$0xff]
    %v3397 = vld [vmem:[%s3370 + $0xd0] sm:$0xff]
    %v3398 = vld [vmem:[%s3370 + $0xd8] sm:$0xff]
    %v3399 = vld [vmem:[%s3370 + $0xe0] sm:$0xff]
    %v3400 = vld [vmem:[%s3370 + $0xe8] sm:$0xff]
    %v3401 = vld [vmem:[%s3370 + $0xf0] sm:$0xff]
    %v3402 = vld [vmem:[%s3370 + $0xf8] sm:$0xff]
    %v3403 = vld [vmem:[%s3370 + $0x100] sm:$0xff]
    %v3404 = vld [vmem:[%s3370 + $0x108] sm:$0xff]
    %v3405 = vld [vmem:[%s3370 + $0x110] sm:$0xff]
    %v3406 = vld [vmem:[%s3370 + $0x118] sm:$0xff]
    %v3407 = vld [vmem:[%s3370 + $0x120] sm:$0xff]
    %v3408 = vld [vmem:[%s3370 + $0x128] sm:$0xff]
    %v3409 = vld [vmem:[%s3370 + $0x130] sm:$0xff]
    %v3410 = vld [vmem:[%s3370 + $0x138] sm:$0xff]
    %v3411 = vld [vmem:[%s3370 + $0x140] sm:$0xff]
    %v3412 = vld [vmem:[%s3370 + $0x148] sm:$0xff]
    %v3413 = vld [vmem:[%s3370 + $0x150] sm:$0xff]
    %v3414 = vld [vmem:[%s3370 + $0x158] sm:$0xff]
    %v3415 = vld [vmem:[%s3370 + $0x160] sm:$0xff]
    %v3416 = vld [vmem:[%s3370 + $0x168] sm:$0xff]
    %v3417 = vld [vmem:[%s3370 + $0x170] sm:$0xff]
    %v3418 = vld [vmem:[%s3370 + $0x178] sm:$0xff]
    %v3419 = vld [vmem:[%s3370 + $0x180] sm:$0xff]
    %v3420 = vld [vmem:[%s3370 + $0x188] sm:$0xff]
    %v3421 = vld [vmem:[%s3370 + $0x190] sm:$0xff]
    %v3422 = vld [vmem:[%s3370 + $0x198] sm:$0xff]
    %v3423 = vld [vmem:[%s3370 + $0x1a0] sm:$0xff]
    %v3424 = vld [vmem:[%s3370 + $0x1a8] sm:$0xff]
    %v3425 = vld [vmem:[%s3370 + $0x1b0] sm:$0xff]
    %v3426 = vld [vmem:[%s3370 + $0x1b8] sm:$0xff]
    %v3427 = vld [vmem:[%s3370 + $0x1c0] sm:$0xff]
    %v3428 = vld [vmem:[%s3370 + $0x1c8] sm:$0xff]
    %v3429 = vld [vmem:[%s3370 + $0x1d0] sm:$0xff]
    %v3430 = vld [vmem:[%s3370 + $0x1d8] sm:$0xff]
    %v3431 = vld [vmem:[%s3370 + $0x1e0] sm:$0xff]
    %v3432 = vld [vmem:[%s3370 + $0x1e8] sm:$0xff]
    %v3433 = vld [vmem:[%s3370 + $0x1f0] sm:$0xff]
    %v3434 = vld [vmem:[%s3370 + $0x1f8] sm:$0xff]
    %3435 = vmatprep.subr.mxu0 0.0
    %3436 = vmatpush1.msra.mxu0 %v3386
    %3437 = vmatprep.subr.mxu0 0.0
    %3438 = vmatpush1.msra.mxu0 %v3385
    %3439 = vmatprep.subr.mxu0 0.0
    %3440 = vmatpush1.msra.mxu0 %v3384
    %3441 = vmatprep.subr.mxu0 0.0
    %3442 = vmatpush1.msra.mxu0 %v3383
    %3443 = vmatprep.subr.mxu0 0.0
    %3444 = vmatpush1.msra.mxu0 %v3382
    %3445 = vmatprep.subr.mxu0 0.0
    %3446 = vmatpush1.msra.mxu0 %v3381
    %3447 = vmatprep.subr.mxu0 0.0
    %3448 = vmatpush1.msra.mxu0 %v3380
    %3449 = vmatprep.subr.mxu0 0.0
    %3450 = vmatpush1.msra.mxu0 %v3379
    %3451 = vmatprep.subr.mxu0 0.0
    %3452 = vmatpush1.msra.mxu0 %v3378
    %3453 = vmatprep.subr.mxu0 0.0
    %3454 = vmatpush1.msra.mxu0 %v3377
    %3455 = vmatprep.subr.mxu0 0.0
    %3456 = vmatpush1.msra.mxu0 %v3376
    %3457 = vmatprep.subr.mxu0 0.0
    %3458 = vmatpush1.msra.mxu0 %v3375
    %3459 = vmatprep.subr.mxu0 0.0
    %3460 = vmatpush1.msra.mxu0 %v3374
    %3461 = vmatprep.subr.mxu0 0.0
    %3462 = vmatpush1.msra.mxu0 %v3373
    %3463 = vmatprep.subr.mxu0 0.0
    %3464 = vmatpush1.msra.mxu0 %v3372
    %3465 = vmatprep.subr.mxu0 0.0
    %3466 = vmatpush1.msra.mxu0 %v3371
    %3467 = vmatprep.subr.mxu0 0.0
    %3468 = vmatpush2.msra.mxu0 %v3402
    %3469 = vmatprep.subr.mxu0 0.0
    %3470 = vmatpush2.msra.mxu0 %v3401
    %3471 = vmatprep.subr.mxu0 0.0
    %3472 = vmatpush2.msra.mxu0 %v3400
    %3473 = vmatprep.subr.mxu0 0.0
    %3474 = vmatpush2.msra.mxu0 %v3399
    %3475 = vmatprep.subr.mxu0 0.0
    %3476 = vmatpush2.msra.mxu0 %v3398
    %3477 = vmatprep.subr.mxu0 0.0
    %3478 = vmatpush2.msra.mxu0 %v3397
    %3479 = vmatprep.subr.mxu0 0.0
    %3480 = vmatpush2.msra.mxu0 %v3396
    %3481 = vmatprep.subr.mxu0 0.0
    %3482 = vmatpush2.msra.mxu0 %v3395
    %3483 = vmatprep.subr.mxu0 0.0
    %3484 = vmatpush2.msra.mxu0 %v3394
    %3485 = vmatprep.subr.mxu0 0.0
    %3486 = vmatpush2.msra.mxu0 %v3393
    %3487 = vmatprep.subr.mxu0 0.0
    %3488 = vmatpush2.msra.mxu0 %v3392
    %3489 = vmatprep.subr.mxu0 0.0
    %3490 = vmatpush2.msra.mxu0 %v3391
    %3491 = vmatprep.subr.mxu0 0.0
    %3492 = vmatpush2.msra.mxu0 %v3390
    %3493 = vmatprep.subr.mxu0 0.0
    %3494 = vmatpush2.msra.mxu0 %v3389
    %3495 = vmatprep.subr.mxu0 0.0
    %3496 = vmatpush2.msra.mxu0 %v3388
    %3497 = vmatprep.subr.mxu0 0.0
    %3498 = vmatpush2.msra.mxu0 %v3387
    %3499 = vmatprep.mubr.f32.mxu0 %v2953
    %3500 = vmatmul.mubr.f32.gmra.mxu0 %v2950
    %v3501 = vpop.f32.mrf.mxu0
    %v3502 = vadd.f32 0.0, %v3501
    %v3503 = vpop.f32.mrf.mxu0
    %3504 = vdwg.mxu0
    %3505 = vmatprep.subr.mxu0 0.0
    %3506 = vmatpush1.msra.mxu0 %v3418
    %3507 = vmatprep.subr.mxu0 0.0
    %3508 = vmatpush1.msra.mxu0 %v3417
    %3509 = vmatprep.subr.mxu0 0.0
    %3510 = vmatpush1.msra.mxu0 %v3416
    %3511 = vmatprep.subr.mxu0 0.0
    %3512 = vmatpush1.msra.mxu0 %v3415
    %3513 = vmatprep.subr.mxu0 0.0
    %3514 = vmatpush1.msra.mxu0 %v3414
    %3515 = vmatprep.subr.mxu0 0.0
    %3516 = vmatpush1.msra.mxu0 %v3413
    %3517 = vmatprep.subr.mxu0 0.0
    %3518 = vmatpush1.msra.mxu0 %v3412
    %3519 = vmatprep.subr.mxu0 0.0
    %3520 = vmatpush1.msra.mxu0 %v3411
    %3521 = vmatprep.subr.mxu0 0.0
    %3522 = vmatpush1.msra.mxu0 %v3410
    %3523 = vmatprep.subr.mxu0 0.0
    %3524 = vmatpush1.msra.mxu0 %v3409
    %3525 = vmatprep.subr.mxu0 0.0
    %3526 = vmatpush1.msra.mxu0 %v3408
    %3527 = vmatprep.subr.mxu0 0.0
    %3528 = vmatpush1.msra.mxu0 %v3407
    %3529 = vmatprep.subr.mxu0 0.0
    %3530 = vmatpush1.msra.mxu0 %v3406
    %3531 = vmatprep.subr.mxu0 0.0
    %3532 = vmatpush1.msra.mxu0 %v3405
    %3533 = vmatprep.subr.mxu0 0.0
    %3534 = vmatpush1.msra.mxu0 %v3404
    %3535 = vmatprep.subr.mxu0 0.0
    %3536 = vmatpush1.msra.mxu0 %v3403
    %3537 = vmatprep.subr.mxu0 0.0
    %3538 = vmatpush2.msra.mxu0 %v3434
    %3539 = vmatprep.subr.mxu0 0.0
    %3540 = vmatpush2.msra.mxu0 %v3433
    %3541 = vmatprep.subr.mxu0 0.0
    %3542 = vmatpush2.msra.mxu0 %v3432
    %3543 = vmatprep.subr.mxu0 0.0
    %3544 = vmatpush2.msra.mxu0 %v3431
    %3545 = vmatprep.subr.mxu0 0.0
    %3546 = vmatpush2.msra.mxu0 %v3430
    %3547 = vmatprep.subr.mxu0 0.0
    %3548 = vmatpush2.msra.mxu0 %v3429
    %3549 = vmatprep.subr.mxu0 0.0
    %3550 = vmatpush2.msra.mxu0 %v3428
    %3551 = vmatprep.subr.mxu0 0.0
    %3552 = vmatpush2.msra.mxu0 %v3427
    %3553 = vmatprep.subr.mxu0 0.0
    %3554 = vmatpush2.msra.mxu0 %v3426
    %3555 = vmatprep.subr.mxu0 0.0
    %3556 = vmatpush2.msra.mxu0 %v3425
    %3557 = vmatprep.subr.mxu0 0.0
    %3558 = vmatpush2.msra.mxu0 %v3424
    %3559 = vmatprep.subr.mxu0 0.0
    %3560 = vmatpush2.msra.mxu0 %v3423
    %3561 = vmatprep.subr.mxu0 0.0
    %3562 = vmatpush2.msra.mxu0 %v3422
    %3563 = vmatprep.subr.mxu0 0.0
    %3564 = vmatpush2.msra.mxu0 %v3421
    %3565 = vmatprep.subr.mxu0 0.0
    %3566 = vmatpush2.msra.mxu0 %v3420
    %3567 = vmatprep.subr.mxu0 0.0
    %3568 = vmatpush2.msra.mxu0 %v3419
    %3569 = vmatprep.mubr.f32.mxu0 %v2959
    %3570 = vmatmul.mubr.f32.gmra.mxu0 %v2956
    %v3571 = vpop.f32.mrf.mxu0
    %v3572 = vadd.f32 %v3502, %v3571
    %v3573 = vpop.f32.mrf.mxu0
    %3574 = vdwg.mxu0
    %v3575 = vmax.f32 %v3369, %v3572
    %s3576 = scalar_lea.vmem %s3, 1536
    %v3577 = vld [vmem:[%s3576] sm:$0xff]
    %v3578 = vld [vmem:[%s3576 + $0x8] sm:$0xff]
    %v3579 = vld [vmem:[%s3576 + $0x10] sm:$0xff]
    %v3580 = vld [vmem:[%s3576 + $0x18] sm:$0xff]
    %v3581 = vld [vmem:[%s3576 + $0x20] sm:$0xff]
    %v3582 = vld [vmem:[%s3576 + $0x28] sm:$0xff]
    %v3583 = vld [vmem:[%s3576 + $0x30] sm:$0xff]
    %v3584 = vld [vmem:[%s3576 + $0x38] sm:$0xff]
    %v3585 = vld [vmem:[%s3576 + $0x40] sm:$0xff]
    %v3586 = vld [vmem:[%s3576 + $0x48] sm:$0xff]
    %v3587 = vld [vmem:[%s3576 + $0x50] sm:$0xff]
    %v3588 = vld [vmem:[%s3576 + $0x58] sm:$0xff]
    %v3589 = vld [vmem:[%s3576 + $0x60] sm:$0xff]
    %v3590 = vld [vmem:[%s3576 + $0x68] sm:$0xff]
    %v3591 = vld [vmem:[%s3576 + $0x70] sm:$0xff]
    %v3592 = vld [vmem:[%s3576 + $0x78] sm:$0xff]
    %v3593 = vld [vmem:[%s3576 + $0x80] sm:$0xff]
    %v3594 = vld [vmem:[%s3576 + $0x88] sm:$0xff]
    %v3595 = vld [vmem:[%s3576 + $0x90] sm:$0xff]
    %v3596 = vld [vmem:[%s3576 + $0x98] sm:$0xff]
    %v3597 = vld [vmem:[%s3576 + $0xa0] sm:$0xff]
    %v3598 = vld [vmem:[%s3576 + $0xa8] sm:$0xff]
    %v3599 = vld [vmem:[%s3576 + $0xb0] sm:$0xff]
    %v3600 = vld [vmem:[%s3576 + $0xb8] sm:$0xff]
    %v3601 = vld [vmem:[%s3576 + $0xc0] sm:$0xff]
    %v3602 = vld [vmem:[%s3576 + $0xc8] sm:$0xff]
    %v3603 = vld [vmem:[%s3576 + $0xd0] sm:$0xff]
    %v3604 = vld [vmem:[%s3576 + $0xd8] sm:$0xff]
    %v3605 = vld [vmem:[%s3576 + $0xe0] sm:$0xff]
    %v3606 = vld [vmem:[%s3576 + $0xe8] sm:$0xff]
    %v3607 = vld [vmem:[%s3576 + $0xf0] sm:$0xff]
    %v3608 = vld [vmem:[%s3576 + $0xf8] sm:$0xff]
    %v3609 = vld [vmem:[%s3576 + $0x100] sm:$0xff]
    %v3610 = vld [vmem:[%s3576 + $0x108] sm:$0xff]
    %v3611 = vld [vmem:[%s3576 + $0x110] sm:$0xff]
    %v3612 = vld [vmem:[%s3576 + $0x118] sm:$0xff]
    %v3613 = vld [vmem:[%s3576 + $0x120] sm:$0xff]
    %v3614 = vld [vmem:[%s3576 + $0x128] sm:$0xff]
    %v3615 = vld [vmem:[%s3576 + $0x130] sm:$0xff]
    %v3616 = vld [vmem:[%s3576 + $0x138] sm:$0xff]
    %v3617 = vld [vmem:[%s3576 + $0x140] sm:$0xff]
    %v3618 = vld [vmem:[%s3576 + $0x148] sm:$0xff]
    %v3619 = vld [vmem:[%s3576 + $0x150] sm:$0xff]
    %v3620 = vld [vmem:[%s3576 + $0x158] sm:$0xff]
    %v3621 = vld [vmem:[%s3576 + $0x160] sm:$0xff]
    %v3622 = vld [vmem:[%s3576 + $0x168] sm:$0xff]
    %v3623 = vld [vmem:[%s3576 + $0x170] sm:$0xff]
    %v3624 = vld [vmem:[%s3576 + $0x178] sm:$0xff]
    %v3625 = vld [vmem:[%s3576 + $0x180] sm:$0xff]
    %v3626 = vld [vmem:[%s3576 + $0x188] sm:$0xff]
    %v3627 = vld [vmem:[%s3576 + $0x190] sm:$0xff]
    %v3628 = vld [vmem:[%s3576 + $0x198] sm:$0xff]
    %v3629 = vld [vmem:[%s3576 + $0x1a0] sm:$0xff]
    %v3630 = vld [vmem:[%s3576 + $0x1a8] sm:$0xff]
    %v3631 = vld [vmem:[%s3576 + $0x1b0] sm:$0xff]
    %v3632 = vld [vmem:[%s3576 + $0x1b8] sm:$0xff]
    %v3633 = vld [vmem:[%s3576 + $0x1c0] sm:$0xff]
    %v3634 = vld [vmem:[%s3576 + $0x1c8] sm:$0xff]
    %v3635 = vld [vmem:[%s3576 + $0x1d0] sm:$0xff]
    %v3636 = vld [vmem:[%s3576 + $0x1d8] sm:$0xff]
    %v3637 = vld [vmem:[%s3576 + $0x1e0] sm:$0xff]
    %v3638 = vld [vmem:[%s3576 + $0x1e8] sm:$0xff]
    %v3639 = vld [vmem:[%s3576 + $0x1f0] sm:$0xff]
    %v3640 = vld [vmem:[%s3576 + $0x1f8] sm:$0xff]
    %3641 = vmatprep.subr.mxu0 0.0
    %3642 = vmatpush1.msra.mxu0 %v3592
    %3643 = vmatprep.subr.mxu0 0.0
    %3644 = vmatpush1.msra.mxu0 %v3591
    %3645 = vmatprep.subr.mxu0 0.0
    %3646 = vmatpush1.msra.mxu0 %v3590
    %3647 = vmatprep.subr.mxu0 0.0
    %3648 = vmatpush1.msra.mxu0 %v3589
    %3649 = vmatprep.subr.mxu0 0.0
    %3650 = vmatpush1.msra.mxu0 %v3588
    %3651 = vmatprep.subr.mxu0 0.0
    %3652 = vmatpush1.msra.mxu0 %v3587
    %3653 = vmatprep.subr.mxu0 0.0
    %3654 = vmatpush1.msra.mxu0 %v3586
    %3655 = vmatprep.subr.mxu0 0.0
    %3656 = vmatpush1.msra.mxu0 %v3585
    %3657 = vmatprep.subr.mxu0 0.0
    %3658 = vmatpush1.msra.mxu0 %v3584
    %3659 = vmatprep.subr.mxu0 0.0
    %3660 = vmatpush1.msra.mxu0 %v3583
    %3661 = vmatprep.subr.mxu0 0.0
    %3662 = vmatpush1.msra.mxu0 %v3582
    %3663 = vmatprep.subr.mxu0 0.0
    %3664 = vmatpush1.msra.mxu0 %v3581
    %3665 = vmatprep.subr.mxu0 0.0
    %3666 = vmatpush1.msra.mxu0 %v3580
    %3667 = vmatprep.subr.mxu0 0.0
    %3668 = vmatpush1.msra.mxu0 %v3579
    %3669 = vmatprep.subr.mxu0 0.0
    %3670 = vmatpush1.msra.mxu0 %v3578
    %3671 = vmatprep.subr.mxu0 0.0
    %3672 = vmatpush1.msra.mxu0 %v3577
    %3673 = vmatprep.subr.mxu0 0.0
    %3674 = vmatpush2.msra.mxu0 %v3608
    %3675 = vmatprep.subr.mxu0 0.0
    %3676 = vmatpush2.msra.mxu0 %v3607
    %3677 = vmatprep.subr.mxu0 0.0
    %3678 = vmatpush2.msra.mxu0 %v3606
    %3679 = vmatprep.subr.mxu0 0.0
    %3680 = vmatpush2.msra.mxu0 %v3605
    %3681 = vmatprep.subr.mxu0 0.0
    %3682 = vmatpush2.msra.mxu0 %v3604
    %3683 = vmatprep.subr.mxu0 0.0
    %3684 = vmatpush2.msra.mxu0 %v3603
    %3685 = vmatprep.subr.mxu0 0.0
    %3686 = vmatpush2.msra.mxu0 %v3602
    %3687 = vmatprep.subr.mxu0 0.0
    %3688 = vmatpush2.msra.mxu0 %v3601
    %3689 = vmatprep.subr.mxu0 0.0
    %3690 = vmatpush2.msra.mxu0 %v3600
    %3691 = vmatprep.subr.mxu0 0.0
    %3692 = vmatpush2.msra.mxu0 %v3599
    %3693 = vmatprep.subr.mxu0 0.0
    %3694 = vmatpush2.msra.mxu0 %v3598
    %3695 = vmatprep.subr.mxu0 0.0
    %3696 = vmatpush2.msra.mxu0 %v3597
    %3697 = vmatprep.subr.mxu0 0.0
    %3698 = vmatpush2.msra.mxu0 %v3596
    %3699 = vmatprep.subr.mxu0 0.0
    %3700 = vmatpush2.msra.mxu0 %v3595
    %3701 = vmatprep.subr.mxu0 0.0
    %3702 = vmatpush2.msra.mxu0 %v3594
    %3703 = vmatprep.subr.mxu0 0.0
    %3704 = vmatpush2.msra.mxu0 %v3593
    %3705 = vmatprep.mubr.f32.mxu0 %v2953
    %3706 = vmatmul.mubr.f32.gmra.mxu0 %v2950
    %v3707 = vpop.f32.mrf.mxu0
    %v3708 = vadd.f32 0.0, %v3707
    %v3709 = vpop.f32.mrf.mxu0
    %3710 = vdwg.mxu0
    %3711 = vmatprep.subr.mxu0 0.0
    %3712 = vmatpush1.msra.mxu0 %v3624
    %3713 = vmatprep.subr.mxu0 0.0
    %3714 = vmatpush1.msra.mxu0 %v3623
    %3715 = vmatprep.subr.mxu0 0.0
    %3716 = vmatpush1.msra.mxu0 %v3622
    %3717 = vmatprep.subr.mxu0 0.0
    %3718 = vmatpush1.msra.mxu0 %v3621
    %3719 = vmatprep.subr.mxu0 0.0
    %3720 = vmatpush1.msra.mxu0 %v3620
    %3721 = vmatprep.subr.mxu0 0.0
    %3722 = vmatpush1.msra.mxu0 %v3619
    %3723 = vmatprep.subr.mxu0 0.0
    %3724 = vmatpush1.msra.mxu0 %v3618
    %3725 = vmatprep.subr.mxu0 0.0
    %3726 = vmatpush1.msra.mxu0 %v3617
    %3727 = vmatprep.subr.mxu0 0.0
    %3728 = vmatpush1.msra.mxu0 %v3616
    %3729 = vmatprep.subr.mxu0 0.0
    %3730 = vmatpush1.msra.mxu0 %v3615
    %3731 = vmatprep.subr.mxu0 0.0
    %3732 = vmatpush1.msra.mxu0 %v3614
    %3733 = vmatprep.subr.mxu0 0.0
    %3734 = vmatpush1.msra.mxu0 %v3613
    %3735 = vmatprep.subr.mxu0 0.0
    %3736 = vmatpush1.msra.mxu0 %v3612
    %3737 = vmatprep.subr.mxu0 0.0
    %3738 = vmatpush1.msra.mxu0 %v3611
    %3739 = vmatprep.subr.mxu0 0.0
    %3740 = vmatpush1.msra.mxu0 %v3610
    %3741 = vmatprep.subr.mxu0 0.0
    %3742 = vmatpush1.msra.mxu0 %v3609
    %3743 = vmatprep.subr.mxu0 0.0
    %3744 = vmatpush2.msra.mxu0 %v3640
    %3745 = vmatprep.subr.mxu0 0.0
    %3746 = vmatpush2.msra.mxu0 %v3639
    %3747 = vmatprep.subr.mxu0 0.0
    %3748 = vmatpush2.msra.mxu0 %v3638
    %3749 = vmatprep.subr.mxu0 0.0
    %3750 = vmatpush2.msra.mxu0 %v3637
    %3751 = vmatprep.subr.mxu0 0.0
    %3752 = vmatpush2.msra.mxu0 %v3636
    %3753 = vmatprep.subr.mxu0 0.0
    %3754 = vmatpush2.msra.mxu0 %v3635
    %3755 = vmatprep.subr.mxu0 0.0
    %3756 = vmatpush2.msra.mxu0 %v3634
    %3757 = vmatprep.subr.mxu0 0.0
    %3758 = vmatpush2.msra.mxu0 %v3633
    %3759 = vmatprep.subr.mxu0 0.0
    %3760 = vmatpush2.msra.mxu0 %v3632
    %3761 = vmatprep.subr.mxu0 0.0
    %3762 = vmatpush2.msra.mxu0 %v3631
    %3763 = vmatprep.subr.mxu0 0.0
    %3764 = vmatpush2.msra.mxu0 %v3630
    %3765 = vmatprep.subr.mxu0 0.0
    %3766 = vmatpush2.msra.mxu0 %v3629
    %3767 = vmatprep.subr.mxu0 0.0
    %3768 = vmatpush2.msra.mxu0 %v3628
    %3769 = vmatprep.subr.mxu0 0.0
    %3770 = vmatpush2.msra.mxu0 %v3627
    %3771 = vmatprep.subr.mxu0 0.0
    %3772 = vmatpush2.msra.mxu0 %v3626
    %3773 = vmatprep.subr.mxu0 0.0
    %3774 = vmatpush2.msra.mxu0 %v3625
    %3775 = vmatprep.mubr.f32.mxu0 %v2959
    %3776 = vmatmul.mubr.f32.gmra.mxu0 %v2956
    %v3777 = vpop.f32.mrf.mxu0
    %v3778 = vadd.f32 %v3708, %v3777
    %v3779 = vpop.f32.mrf.mxu0
    %3780 = vdwg.mxu0
    %v3781 = vmax.f32 %v3575, %v3778
    %v3782 = vld [vmem:[%s4] sm:$0x1]
    %v3784 = vlaneseq
    %v3785 = vshrl.u32 %v3784, 7
    %v3786 = vsub.s32 0, %v3785
    %v3787 = vrot.slane %v3782, %v3786
    %v3789 = vadd.f32 %v3781, %v3787
    %v3790 = vmax.f32 %v3789, 0.0
    %v3791 = vld [vmem:[%s5] sm:$0xff]
    %v3792 = vld [vmem:[%s5 + $0x8] sm:$0xff]
    %v3793 = vld [vmem:[%s5 + $0x10] sm:$0xff]
    %v3794 = vld [vmem:[%s5 + $0x18] sm:$0xff]
    %v3795 = vld [vmem:[%s6] sm:$0x1]
    %v3797 = vlaneseq
    %v3798 = vshrl.u32 %v3797, 7
    %v3799 = vsub.s32 0, %v3798
    %v3800 = vrot.slane %v3795, %v3799
    %v3803 = vsel %vm2946, %v3790, 0
    %3805 = vmatprep.subr.mxu0 0.0
    %3806 = vmatpush1.msra.mxu0 0.0
    %3807 = vmatprep.subr.mxu0 0.0
    %3808 = vmatpush1.msra.mxu0 0.0
    %3809 = vmatprep.subr.mxu0 0.0
    %3810 = vmatpush1.msra.mxu0 0.0
    %3811 = vmatprep.subr.mxu0 0.0
    %3812 = vmatpush1.msra.mxu0 0.0
    %3813 = vmatprep.subr.mxu0 0.0
    %3814 = vmatpush1.msra.mxu0 0.0
    %3815 = vmatprep.subr.mxu0 0.0
    %3816 = vmatpush1.msra.mxu0 0.0
    %3817 = vmatprep.subr.mxu0 0.0
    %3818 = vmatpush1.msra.mxu0 0.0
    %3819 = vmatprep.subr.mxu0 0.0
    %3820 = vmatpush1.msra.mxu0 0.0
    %3821 = vmatprep.subr.mxu0 0.0
    %3822 = vmatpush1.msra.mxu0 0.0
    %3823 = vmatprep.subr.mxu0 0.0
    %3824 = vmatpush1.msra.mxu0 0.0
    %3825 = vmatprep.subr.mxu0 0.0
    %3826 = vmatpush1.msra.mxu0 0.0
    %3827 = vmatprep.subr.mxu0 0.0
    %3828 = vmatpush1.msra.mxu0 0.0
    %3829 = vmatprep.subr.mxu0 0.0
    %3830 = vmatpush1.msra.mxu0 %v3794
    %3831 = vmatprep.subr.mxu0 0.0
    %3832 = vmatpush1.msra.mxu0 %v3793
    %3833 = vmatprep.subr.mxu0 0.0
    %3834 = vmatpush1.msra.mxu0 %v3792
    %3835 = vmatprep.subr.mxu0 0.0
    %3836 = vmatpush1.msra.mxu0 %v3791
    %3837 = vmatprep.subr.mxu0 0.0
    %3838 = vmatpush2.msra.mxu0 0.0
    %3839 = vmatprep.subr.mxu0 0.0
    %3840 = vmatpush2.msra.mxu0 0.0
    %3841 = vmatprep.subr.mxu0 0.0
    %3842 = vmatpush2.msra.mxu0 0.0
    %3843 = vmatprep.subr.mxu0 0.0
    %3844 = vmatpush2.msra.mxu0 0.0
    %3845 = vmatprep.subr.mxu0 0.0
    %3846 = vmatpush2.msra.mxu0 0.0
    %3847 = vmatprep.subr.mxu0 0.0
    %3848 = vmatpush2.msra.mxu0 0.0
    %3849 = vmatprep.subr.mxu0 0.0
    %3850 = vmatpush2.msra.mxu0 0.0
    %3851 = vmatprep.subr.mxu0 0.0
    %3852 = vmatpush2.msra.mxu0 0.0
    %3853 = vmatprep.subr.mxu0 0.0
    %3854 = vmatpush2.msra.mxu0 0.0
    %3855 = vmatprep.subr.mxu0 0.0
    %3856 = vmatpush2.msra.mxu0 0.0
    %3857 = vmatprep.subr.mxu0 0.0
    %3858 = vmatpush2.msra.mxu0 0.0
    %3859 = vmatprep.subr.mxu0 0.0
    %3860 = vmatpush2.msra.mxu0 0.0
    %3861 = vmatprep.subr.mxu0 0.0
    %3862 = vmatpush2.msra.mxu0 0.0
    %3863 = vmatprep.subr.mxu0 0.0
    %3864 = vmatpush2.msra.mxu0 0.0
    %3865 = vmatprep.subr.mxu0 0.0
    %3866 = vmatpush2.msra.mxu0 0.0
    %3867 = vmatprep.subr.mxu0 0.0
    %3868 = vmatpush2.msra.mxu0 0.0
    %3869 = vmatprep.mubr.f32.mxu0 0.0
    %3870 = vmatmul.mubr.f32.gmra.mxu0 %v3803
    %v3871 = vpop.f32.mrf.mxu0
    %v3872 = vadd.f32 %v3800, %v3871
    %v3873 = vpop.f32.mrf.mxu0
    %3874 = vdwg.mxu0
    %v3875 = vmul.f32 %v3872, 0.5
    %v3876 = vtanh.pop %v3875
    %v3877 = vadd.f32 %v3876, 1.0
    %v3878 = vmul.f32 %v3877, 0.5
    %vm3879 = vcmask 123904
    %3880 = vst.msk [vmem:[#allocation2] sm:$0x3] %vm3879, %v3878
    // Predicated region
    $region30: #{encoder_forward.5} parent=1 // pred_check
      _
    $region31: #{encoder_forward.5} parent=1 // pred_check_branch
      %3882 = sbr.rel (0) target = $region33
    $region32: #{encoder_forward.5} parent=1 // pred_region
      %s3884 = ssub.s32 32, 32
      %3885 = vsyncadd [#allocation3], %s3884
      %s3887 = sshll.u32 [#allocation2], 4
      %s3888 = int_to_ptr.vmem [resolvable:$true] %s3887
      %3890 = dma.vmem_to_hbm [thread:$0]  %s3888, 32, %s7, [#allocation3]
    $region33: #{encoder_forward.5} parent=1 // pred_fallthru
      _
    // Predicated region
    $region34: #{encoder_forward.5} parent=1 // pred_check
      _
    $region35: #{encoder_forward.5} parent=1 // pred_check_branch
      %3892 = sbr.rel (0) target = $region37
    $region36: #{encoder_forward.5} parent=1 // pred_region
      %3893 = dma.done [#allocation3], 32
    $region37: #{encoder_forward.5} parent=1 // pred_fallthru
      _
    %3894 = vsyncpa [#allocation3], 1

</llo_original>
